<compile_context>
chip_gen: v7x
topology: tpu7x:2x2x1
jax: 0.10.0
libtpu: 0.0.40
codegen_flags: <defaults>
</compile_context>

<pallas_src>
from functools import partial

import numpy as np
import jax
import jax.numpy as jnp
from jax.experimental import pallas as pl
from jax.experimental.pallas import tpu as pltpu


# --------------------------------------------------------------------------
# small helpers
# --------------------------------------------------------------------------
def _layernorm(x, g, b, eps):
    mu = jnp.mean(x, axis=-1, keepdims=True)
    xc = x - mu
    var = jnp.mean(xc * xc, axis=-1, keepdims=True)
    return xc * jax.lax.rsqrt(var + eps) * g + b


def _mm_bf16(a, b):
    """2-D MXU matmul: bf16 operands, f32 accumulation."""
    return jnp.dot(a.astype(jnp.bfloat16), b.astype(jnp.bfloat16),
                   preferred_element_type=jnp.float32)


# --------------------------------------------------------------------------
# trace-time constant builders (cached)
# --------------------------------------------------------------------------
_BICUBIC_CACHE = {}
_MASK_CACHE = {}
_POOL_CACHE = {}


def _bicubic_matrix(out_size, in_size, A=-0.75):
    """PyTorch-style bicubic (align_corners=False) as a dense (out,in) matrix."""
    key = (out_size, in_size)
    if key in _BICUBIC_CACHE:
        return _BICUBIC_CACHE[key]
    W = np.zeros((out_size, in_size), dtype=np.float32)
    scale = in_size / out_size
    for i in range(out_size):
        src = (i + 0.5) * scale - 0.5
        x0 = int(np.floor(src))
        t = src - x0

        def c1(x):
            return ((A + 2.0) * x - (A + 3.0)) * x * x + 1.0

        def c2(x):
            return ((A * x - 5.0 * A) * x + 8.0 * A) * x - 4.0 * A

        ws = [c2(t + 1.0), c1(t), c1(1.0 - t), c2(2.0 - t)]
        for j, wv in enumerate(ws):
            idx = min(max(x0 - 1 + j, 0), in_size - 1)
            W[i, idx] += wv
    _BICUBIC_CACHE[key] = jnp.asarray(W)
    return _BICUBIC_CACHE[key]


def _block_diag_mask(groups, seq):
    """Additive attention mask (0 inside each sequence, -1e30 across sequences)."""
    key = (groups, seq)
    if key not in _MASK_CACHE:
        m = np.full((groups * seq, groups * seq), -1e30, np.float32)
        for g in range(groups):
            m[g * seq:(g + 1) * seq, g * seq:(g + 1) * seq] = 0.0
        _MASK_CACHE[key] = jnp.asarray(m)
    return _MASK_CACHE[key]


def _pool_matrix(groups, seq):
    """(groups, groups*seq) matrix that mean-pools each sequence's rows."""
    key = (groups, seq)
    if key not in _POOL_CACHE:
        m = np.zeros((groups, groups * seq), np.float32)
        for g in range(groups):
            m[g, g * seq:(g + 1) * seq] = 1.0 / seq
        _POOL_CACHE[key] = jnp.asarray(m)
    return _POOL_CACHE[key]


# --------------------------------------------------------------------------
# Pallas kernels
# --------------------------------------------------------------------------
def _bicubic_kernel(x_ref, wh_ref, wwt_ref, o_ref):
    # x: (BC, H, W), wh: (th, H), wwt: (W, tw) -> o: (BC, th, tw). One grid step.
    wh = wh_ref[...]
    wwt = wwt_ref[...]
    for i in range(x_ref.shape[0]):                       # static unroll over planes
        rows = jnp.dot(wh, x_ref[i], preferred_element_type=jnp.float32)   # (th, W)
        o_ref[i] = jnp.dot(rows, wwt, preferred_element_type=jnp.float32)  # (th, tw)


def _patch_embed_kernel(xp_ref, w_ref, b_ref, o_ref):
    # xp: (N*L, C*p*p) f32, w: (C*p*p, D) bf16 -> tokens (N*L, D) f32
    o_ref[...] = _mm_bf16(xp_ref[...], w_ref[...]) + b_ref[...]


def _stack_kernel(x_ref, mask_ref,
                  n1g_ref, n1b_ref, wqkv_ref, bqkv_ref, wproj_ref, bproj_ref,
                  n2g_ref, n2b_ref, fc1w_ref, fc1b_ref, fc2w_ref, fc2b_ref,
                  o_ref, *, num_heads, eps):
    """One pre-norm transformer block per grid step d; activation stays resident in the
    output VMEM block across the whole depth axis."""
    d = pl.program_id(0)

    @pl.when(d == 0)
    def _():
        o_ref[...] = x_ref[...]

    x = o_ref[...]                                         # (R, D) f32, carried in VMEM
    D = x.shape[-1]
    dh = D // num_heads
    scale = float(dh) ** -0.5
    mask = mask_ref[...]                                   # (R, R) additive mask

    # ---- attention branch ---------------------------------------------------
    h1 = _layernorm(x, n1g_ref[...], n1b_ref[...], eps)
    h1b = h1.astype(jnp.bfloat16)

    attn = jnp.zeros_like(x)
    for h in range(num_heads):                             # static unroll; leading-dim
        q = _mm_bf16(h1b, wqkv_ref[0, h]) + bqkv_ref[0, h]   # weight indexing is free
        k = _mm_bf16(h1b, wqkv_ref[1, h]) + bqkv_ref[1, h]
        v = _mm_bf16(h1b, wqkv_ref[2, h]) + bqkv_ref[2, h]
        s = jax.lax.dot_general((q * scale).astype(jnp.bfloat16), k.astype(jnp.bfloat16),
                                (((1,), (1,)), ((), ())),
                                preferred_element_type=jnp.float32)       # (R, R)
        s = s + mask
        s = s - jnp.max(s, axis=-1, keepdims=True)
        p = jnp.exp(s)
        p = p * pl.reciprocal(jnp.sum(p, axis=-1, keepdims=True), approx=True)
        o_h = _mm_bf16(p, v)                                              # (R, dh)
        attn = attn + _mm_bf16(o_h, wproj_ref[h])                         # (R, D)
    x1 = x + attn + bproj_ref[...]

    # ---- MLP branch ---------------------------------------------------------
    h2 = _layernorm(x1, n2g_ref[...], n2b_ref[...], eps)
    h2 = _mm_bf16(h2, fc1w_ref[...]) + fc1b_ref[...]
    h2 = jax.nn.gelu(h2, approximate=True)
    h2 = _mm_bf16(h2, fc2w_ref[...]) + fc2b_ref[...]

    o_ref[...] = x1 + h2


def _pool_pos_kernel(x_ref, g_ref, b_ref, pm_ref, pos_ref, o_ref, *, eps):
    # Encoder final LN + per-sequence token mean (via pooling matmul) + fusion pos add.
    y = _layernorm(x_ref[...], g_ref[...], b_ref[...], eps)              # (R, D)
    pooled = jnp.dot(pm_ref[...], y, preferred_element_type=jnp.float32)  # (N, D)
    o_ref[...] = pooled + pos_ref[...]


def _epilogue_kernel(x_ref, g_ref, b_ref, pm_ref,
                     w1_ref, b1_ref, w2_ref, b2_ref, w3_ref, b3_ref, o_ref, *, eps):
    # Fusion final LN + token mean + all three 3-layer MLP heads in one kernel.
    y = _layernorm(x_ref[...], g_ref[...], b_ref[...], eps)              # (R, D)
    pooled = jnp.dot(pm_ref[...], y, preferred_element_type=jnp.float32)  # (B, D)
    for h in range(3):                                                    # static unroll
        t = jnp.dot(pooled, w1_ref[h], preferred_element_type=jnp.float32) + b1_ref[h]
        t = jax.nn.gelu(t, approximate=True)
        t = jnp.dot(t, w2_ref[h], preferred_element_type=jnp.float32) + b2_ref[h]
        t = jax.nn.gelu(t, approximate=True)
        o_ref[h] = jnp.dot(t, w3_ref[h], preferred_element_type=jnp.float32) + b3_ref[h]


# --------------------------------------------------------------------------
# Pallas wrappers
# --------------------------------------------------------------------------
def bicubic_resize(x, th, tw):
    """x: (B, C, H, W) -> (B, C, th, tw); one single-step kernel over all planes."""
    B, C, H, W = x.shape
    Wh = _bicubic_matrix(th, H)
    WwT = _bicubic_matrix(tw, W).T
    xr = x.reshape(B * C, H, W)
    out = pl.pallas_call(
        _bicubic_kernel,
        out_shape=jax.ShapeDtypeStruct((B * C, th, tw), jnp.float32),
        grid=(1,),
        in_specs=[pl.BlockSpec((B * C, H, W), lambda i: (0, 0, 0)),
                  pl.BlockSpec((th, H), lambda i: (0, 0)),
                  pl.BlockSpec((W, tw), lambda i: (0, 0))],
        out_specs=pl.BlockSpec((B * C, th, tw), lambda i: (0, 0, 0)),
    )(xr, Wh, WwT)
    return out.reshape(B, C, th, tw)


def patch_embed_tokens(xp_flat, w, b):
    """xp_flat: (N*L, C*p*p) -> (N*L, D) patch tokens; single grid step, M = N*L."""
    M, Cpp = xp_flat.shape
    D = w.shape[1]
    return pl.pallas_call(
        _patch_embed_kernel,
        out_shape=jax.ShapeDtypeStruct((M, D), jnp.float32),
        grid=(1,),
        in_specs=[pl.BlockSpec((M, Cpp), lambda i: (0, 0)),
                  pl.BlockSpec((Cpp, D), lambda i: (0, 0)),
                  pl.BlockSpec((1, D), lambda i: (0, 0))],
        out_specs=pl.BlockSpec((M, D), lambda i: (0, 0)),
    )(xp_flat, w, b)


def transformer_stack(x_flat, bp, num_heads, groups, seq_len, eps=1e-6):
    """Whole transformer stack in ONE pallas_call: grid=(depth,) ('arbitrary'), stacked
    weights indexed by depth, activation resident in the output VMEM block."""
    R, D = x_flat.shape
    assert R == groups * seq_len
    depth = bp["w_qkv"].shape[0]
    mask = _block_diag_mask(groups, seq_len)

    weight_keys = ("n1_g", "n1_b", "w_qkv", "b_qkv", "w_proj", "b_proj",
                   "n2_g", "n2_b", "fc1_w", "fc1_b", "fc2_w", "fc2_b")

    def wspec(arr):
        nd = arr.ndim
        return pl.BlockSpec((None,) + arr.shape[1:],
                            lambda d, nd=nd: (d,) + (0,) * (nd - 1))

    return pl.pallas_call(
        partial(_stack_kernel, num_heads=num_heads, eps=eps),
        out_shape=jax.ShapeDtypeStruct((R, D), jnp.float32),
        grid=(depth,),
        in_specs=[pl.BlockSpec((R, D), lambda d: (0, 0)),
                  pl.BlockSpec((R, R), lambda d: (0, 0))]
                 + [wspec(bp[k]) for k in weight_keys],
        out_specs=pl.BlockSpec((R, D), lambda d: (0, 0)),
        compiler_params=pltpu.CompilerParams(
            dimension_semantics=("arbitrary",),
            vmem_limit_bytes=32 * 1024 * 1024),
    )(x_flat, mask, *[bp[k] for k in weight_keys])


def encoder_pool_with_pos(tok_flat, g, b, pos_full, n_seq, seq_len, eps=1e-6):
    """Encoder LN + per-image token mean + fusion pos-embed add; one grid step."""
    R, D = tok_flat.shape
    pm = _pool_matrix(n_seq, seq_len)
    return pl.pallas_call(
        partial(_pool_pos_kernel, eps=eps),
        out_shape=jax.ShapeDtypeStruct((n_seq, D), jnp.float32),
        grid=(1,),
        in_specs=[pl.BlockSpec((R, D), lambda i: (0, 0)),
                  pl.BlockSpec((1, D), lambda i: (0, 0)),
                  pl.BlockSpec((1, D), lambda i: (0, 0)),
                  pl.BlockSpec((n_seq, R), lambda i: (0, 0)),
                  pl.BlockSpec((n_seq, D), lambda i: (0, 0))],
        out_specs=pl.BlockSpec((n_seq, D), lambda i: (0, 0)),
    )(tok_flat, g, b, pm, pos_full)


def fusion_pool_and_heads(z_flat, g, b, hp, batch, seq_len, eps=1e-6):
    """Fusion LN + token mean + three MLP heads fused into one epilogue kernel."""
    R, D = z_flat.shape
    C = hp["w3"].shape[-1]
    pm = _pool_matrix(batch, seq_len)
    out = pl.pallas_call(
        partial(_epilogue_kernel, eps=eps),
        out_shape=jax.ShapeDtypeStruct((3, batch, C), jnp.float32),
        grid=(1,),
        in_specs=[pl.BlockSpec((R, D), lambda i: (0, 0)),
                  pl.BlockSpec((1, D), lambda i: (0, 0)),
                  pl.BlockSpec((1, D), lambda i: (0, 0)),
                  pl.BlockSpec((batch, R), lambda i: (0, 0)),
                  pl.BlockSpec(hp["w1"].shape, lambda i: (0, 0, 0)),
                  pl.BlockSpec(hp["b1"].shape, lambda i: (0, 0, 0)),
                  pl.BlockSpec(hp["w2"].shape, lambda i: (0, 0, 0)),
                  pl.BlockSpec(hp["b2"].shape, lambda i: (0, 0, 0)),
                  pl.BlockSpec(hp["w3"].shape, lambda i: (0, 0, 0)),
                  pl.BlockSpec(hp["b3"].shape, lambda i: (0, 0, 0))],
        out_specs=pl.BlockSpec((3, batch, C), lambda i: (0, 0, 0)),
    )(z_flat, g, b, pm, hp["w1"], hp["b1"], hp["w2"], hp["b2"], hp["w3"], hp["b3"])
    return out[0], out[1], out[2]


# --------------------------------------------------------------------------
# Model glue (layout-only ops in XLA; all heavy compute in the kernels above)
# --------------------------------------------------------------------------
def interpolate_split(x, num_patches, fm, input_size):
    B, C, H, W = x.shape
    all_p = []
    for n_h, n_w in num_patches:
        th, tw = n_h * fm, n_w * fm
        sx = x if (input_size[0], input_size[1]) == (th, tw) else bicubic_resize(x, th, tw)
        p = sx.reshape(B, C, n_h, fm, n_w, fm)
        p = p.transpose(0, 2, 4, 1, 3, 5).reshape(B, n_h * n_w, C, fm, fm)
        all_p.append(p)
    xc = jnp.concatenate(all_p, axis=1)                      # (B, total, C, fm, fm)
    return xc.reshape(B * xc.shape[1], C, fm, fm)


def multiscale_forward(x, params, cfg):
    B = x.shape[0]
    fm = cfg["fm_input_size"]
    patch = cfg["patch_size"]
    D = cfg["embed_dim"]

    # multi-scale resize + split into per-scale sub-images
    patches = interpolate_split(x, cfg["num_patches"], fm, cfg["input_size"])  # (N, C, fm, fm)
    N, C = patches.shape[0], patches.shape[1]
    n_p = N // B
    nh = fm // patch
    L = nh * nh
    S = L + 1

    # layout-only: patchify to a flat (N*L, C*p*p) slab
    xp = patches.reshape(N, C, nh, patch, nh, patch)
    xp = xp.transpose(0, 2, 4, 1, 3, 5).reshape(N * L, C * patch * patch)

    enc = params["encoder"]
    tok = patch_embed_tokens(xp, enc["pe_w"], enc["pe_b"])                      # (N*L, D)

    # layout-only: prepend cls token + add ViT pos embedding (tiny, (N*S, D))
    tok = tok.reshape(N, L, D)
    cls = jnp.broadcast_to(enc["cls"].reshape(1, 1, D), (N, 1, D))
    seq = (jnp.concatenate([cls, tok], axis=1) + enc["pos"].reshape(1, S, D)).reshape(N * S, D)

    # ViT encoder stack (one pallas_call over depth)
    seq = transformer_stack(seq, enc["blocks"], cfg["num_heads"], groups=N, seq_len=S)

    # encoder pool + fusion pos embed add (one kernel)
    fus = params["fusion"]
    pos_full = jnp.tile(fus["pos"].reshape(n_p, D), (B, 1))                     # (N, D)
    feats = encoder_pool_with_pos(seq, enc["norm_g"], enc["norm_b"], pos_full, N, S)

    # fusion transformer stack (one pallas_call over fusion depth)
    z = transformer_stack(feats, fus["blocks"], cfg["fusion_num_heads"],
                          groups=B, seq_len=n_p)

    # final LN + mean + three heads (one kernel)
    return fusion_pool_and_heads(z, fus["norm_g"], fus["norm_b"], params["heads"], B, n_p)


# --------------------------------------------------------------------------
# Deterministic parameter init (synthetic — shapes from the module's __init__)
# --------------------------------------------------------------------------
def _init_blocks(key, depth, dim, mlp_ratio, num_heads):
    hidden = int(dim * mlp_ratio)
    dh = dim // num_heads

    def one(k):
        kk = jax.random.split(k, 4)
        qkv_w = jax.random.normal(kk[0], (dim, 3 * dim), jnp.float32) * 0.02
        proj_w = jax.random.normal(kk[1], (dim, dim), jnp.float32) * 0.02
        fc1_w = jax.random.normal(kk[2], (dim, hidden), jnp.float32) * 0.02
        fc2_w = jax.random.normal(kk[3], (hidden, dim), jnp.float32) * 0.02
        return dict(
            n1_g=jnp.ones((1, dim), jnp.float32), n1_b=jnp.zeros((1, dim), jnp.float32),
            # (dim, 3*dim) -> (3, heads, dim, dh): per-(q/k/v, head) weight slabs (bf16)
            w_qkv=qkv_w.reshape(dim, 3, num_heads, dh).transpose(1, 2, 0, 3).astype(jnp.bfloat16),
            b_qkv=jnp.zeros((3, num_heads, 1, dh), jnp.float32),
            # (dim, dim) -> (heads, dh, dim): per-head out-projection slabs (bf16)
            w_proj=proj_w.reshape(num_heads, dh, dim).astype(jnp.bfloat16),
            b_proj=jnp.zeros((1, dim), jnp.float32),
            n2_g=jnp.ones((1, dim), jnp.float32), n2_b=jnp.zeros((1, dim), jnp.float32),
            fc1_w=fc1_w.astype(jnp.bfloat16), fc1_b=jnp.zeros((1, hidden), jnp.float32),
            fc2_w=fc2_w.astype(jnp.bfloat16), fc2_b=jnp.zeros((1, dim), jnp.float32),
        )

    blocks = [one(k) for k in jax.random.split(key, depth)]
    return jax.tree_util.tree_map(lambda *xs: jnp.stack(xs), *blocks)


def _init_heads(key, dim, num_classes):
    ch = [dim, dim // 2, dim // 4, num_classes]

    def one(k):
        kk = jax.random.split(k, 3)
        return dict(
            w1=jax.random.normal(kk[0], (ch[0], ch[1]), jnp.float32) * 0.02,
            b1=jnp.zeros((1, ch[1]), jnp.float32),
            w2=jax.random.normal(kk[1], (ch[1], ch[2]), jnp.float32) * 0.02,
            b2=jnp.zeros((1, ch[2]), jnp.float32),
            w3=jax.random.normal(kk[2], (ch[2], ch[3]), jnp.float32) * 0.02,
            b3=jnp.zeros((1, ch[3]), jnp.float32),
        )

    heads = [one(k) for k in jax.random.split(key, 3)]   # dme, icdr_01, icdr_4
    return jax.tree_util.tree_map(lambda *xs: jnp.stack(xs), *heads)


def init_params(key, cfg):
    D = cfg["embed_dim"]
    C = 3
    p = cfg["patch_size"]
    fm = cfg["fm_input_size"]
    L = (fm // p) ** 2
    total_patches = sum(nh * nw for nh, nw in cfg["num_patches"])
    keys = jax.random.split(key, 7)

    encoder = dict(
        pe_w=(jax.random.normal(keys[0], (C * p * p, D), jnp.float32) * 0.02).astype(jnp.bfloat16),
        pe_b=jnp.zeros((1, D), jnp.float32),
        cls=jax.random.normal(keys[1], (1, 1, D), jnp.float32) * 0.02,
        pos=jax.random.normal(keys[2], (1, L + 1, D), jnp.float32) * 0.02,
        blocks=_init_blocks(keys[3], cfg["depth"], D, cfg["mlp_ratio"], cfg["num_heads"]),
        norm_g=jnp.ones((1, D), jnp.float32), norm_b=jnp.zeros((1, D), jnp.float32),
    )
    fusion = dict(
        pos=jax.random.normal(keys[4], (1, total_patches, D), jnp.float32) * 0.02,
        blocks=_init_blocks(keys[5], cfg["fusion_layer_num"], D, cfg["fusion_mlp_ratio"],
                            cfg["fusion_num_heads"]),
        norm_g=jnp.ones((1, D), jnp.float32), norm_b=jnp.zeros((1, D), jnp.float32),
    )
    heads = _init_heads(keys[6], D, cfg["num_classes"])
    return dict(encoder=encoder, fusion=fusion, heads=heads)


# --------------------------------------------------------------------------
if __name__ == "__main__":
    cfg = dict(
        input_size=(64, 64),
        num_patches=((2, 2), (1, 1)),
        fm_input_size=32,
        patch_size=16,
        embed_dim=64,
        depth=2,
        num_heads=4,
        mlp_ratio=4,
        fusion_layer_num=1,
        fusion_num_heads=4,
        fusion_mlp_ratio=1,
        num_classes=5,
    )
    root = jax.random.PRNGKey(0)
    k_param, k_input = jax.random.split(root)
    params = init_params(k_param, cfg)

    x = jax.random.normal(
        k_input, (2, 3, cfg["input_size"][0], cfg["input_size"][1]), jnp.float32)

    # whole forward in a single jitted XLA program; cfg is static via closure
    fwd = jax.jit(lambda xx, pp: multiscale_forward(xx, pp, cfg))
    x_dme, x_icdr_01, x_icdr_4 = fwd(x, params)
    jax.block_until_ready((x_dme, x_icdr_01, x_icdr_4))

    assert x_dme.shape == (2, cfg["num_classes"])
    assert x_icdr_01.shape == (2, cfg["num_classes"])
    assert x_icdr_4.shape == (2, cfg["num_classes"])
    assert all(bool(jnp.all(jnp.isfinite(t))) for t in (x_dme, x_icdr_01, x_icdr_4))
    print("KERNEL_OK")
</pallas_src>

<mosaic_0001>
module attributes {stable_mosaic.version = 11 : i64} {
  func.func @_bicubic_kernel(%arg0: i32, %arg1: memref<6x64x64xf32, #tpu.memory_space<vmem>>, %arg2: memref<32x64xf32, #tpu.memory_space<vmem>>, %arg3: memref<64x32xf32, #tpu.memory_space<vmem>>, %arg4: memref<6x32x32xf32, #tpu.memory_space<vmem>>) attributes {dimension_semantics = [#tpu.dimension_semantics<arbitrary>], iteration_bounds = array<i64: 1>, scalar_prefetch = 0 : i64, scratch_operands = 0 : i64, tpu.core_type = #tpu.core_type<tc>, window_params = [{pipeline_mode = #tpu.pipeline_mode<synchronous>, transform_indices = @transform_0, window_bounds = array<i64: 6, 64, 64>}, {pipeline_mode = #tpu.pipeline_mode<synchronous>, transform_indices = @transform_1, window_bounds = array<i64: 32, 64>}, {pipeline_mode = #tpu.pipeline_mode<synchronous>, transform_indices = @transform_2, window_bounds = array<i64: 64, 32>}, {pipeline_mode = #tpu.pipeline_mode<synchronous>, transform_indices = @transform_3, window_bounds = array<i64: 6, 32, 32>}]} {
    %c0 = arith.constant 0 : index
    %c0_0 = arith.constant 0 : index
    %0 = vector.load %arg2[%c0, %c0_0] : memref<32x64xf32, #tpu.memory_space<vmem>>, vector<32x64xf32>
    %c0_1 = arith.constant 0 : index
    %c0_2 = arith.constant 0 : index
    %1 = vector.load %arg3[%c0_1, %c0_2] : memref<64x32xf32, #tpu.memory_space<vmem>>, vector<64x32xf32>
    %c0_3 = arith.constant 0 : index
    %c0_4 = arith.constant 0 : index
    %c0_5 = arith.constant 0 : index
    %2 = vector.load %arg1[%c0_3, %c0_4, %c0_5] : memref<6x64x64xf32, #tpu.memory_space<vmem>>, vector<1x64x64xf32>
    %3 = vector.shape_cast %2 : vector<1x64x64xf32> to vector<64x64xf32>
    %cst = arith.constant dense<0.000000e+00> : vector<32x64xf32>
    %4 = tpu.matmul %0, %3, %cst {dimension_numbers = #tpu.dot_dimension_numbers<[1], [0], [0], [1], [0, 0, 1, 1], [], []>} : vector<32x64xf32>, vector<64x64xf32>, vector<32x64xf32> -> vector<32x64xf32>
    %cst_6 = arith.constant dense<0.000000e+00> : vector<32x32xf32>
    %5 = tpu.matmul %4, %1, %cst_6 {dimension_numbers = #tpu.dot_dimension_numbers<[1], [0], [0], [1], [0, 0, 1, 1], [], []>} : vector<32x64xf32>, vector<64x32xf32>, vector<32x32xf32> -> vector<32x32xf32>
    %c0_7 = arith.constant 0 : index
    %c0_8 = arith.constant 0 : index
    %c0_9 = arith.constant 0 : index
    %6 = vector.load %arg4[%c0_7, %c0_8, %c0_9] : memref<6x32x32xf32, #tpu.memory_space<vmem>>, vector<1x32x32xf32>
    %7 = vector.shape_cast %6 : vector<1x32x32xf32> to vector<32x32xf32>
    %8 = vector.shape_cast %5 : vector<32x32xf32> to vector<1x32x32xf32>
    tpu.vector_store %arg4[%c0_7, %c0_8, %c0_9], %8 {strides = array<i32>} : memref<6x32x32xf32, #tpu.memory_space<vmem>>, vector<1x32x32xf32>,
    %c1 = arith.constant 1 : index
    %c0_10 = arith.constant 0 : index
    %c0_11 = arith.constant 0 : index
    %9 = vector.load %arg1[%c1, %c0_10, %c0_11] : memref<6x64x64xf32, #tpu.memory_space<vmem>>, vector<1x64x64xf32>
    %10 = vector.shape_cast %9 : vector<1x64x64xf32> to vector<64x64xf32>
    %cst_12 = arith.constant dense<0.000000e+00> : vector<32x64xf32>
    %11 = tpu.matmul %0, %10, %cst_12 {dimension_numbers = #tpu.dot_dimension_numbers<[1], [0], [0], [1], [0, 0, 1, 1], [], []>} : vector<32x64xf32>, vector<64x64xf32>, vector<32x64xf32> -> vector<32x64xf32>
    %cst_13 = arith.constant dense<0.000000e+00> : vector<32x32xf32>
    %12 = tpu.matmul %11, %1, %cst_13 {dimension_numbers = #tpu.dot_dimension_numbers<[1], [0], [0], [1], [0, 0, 1, 1], [], []>} : vector<32x64xf32>, vector<64x32xf32>, vector<32x32xf32> -> vector<32x32xf32>
    %c1_14 = arith.constant 1 : index
    %c0_15 = arith.constant 0 : index
    %c0_16 = arith.constant 0 : index
    %13 = vector.load %arg4[%c1_14, %c0_15, %c0_16] : memref<6x32x32xf32, #tpu.memory_space<vmem>>, vector<1x32x32xf32>
    %14 = vector.shape_cast %13 : vector<1x32x32xf32> to vector<32x32xf32>
    %15 = vector.shape_cast %12 : vector<32x32xf32> to vector<1x32x32xf32>
    tpu.vector_store %arg4[%c1_14, %c0_15, %c0_16], %15 {strides = array<i32>} : memref<6x32x32xf32, #tpu.memory_space<vmem>>, vector<1x32x32xf32>,
    %c2 = arith.constant 2 : index
    %c0_17 = arith.constant 0 : index
    %c0_18 = arith.constant 0 : index
    %16 = vector.load %arg1[%c2, %c0_17, %c0_18] : memref<6x64x64xf32, #tpu.memory_space<vmem>>, vector<1x64x64xf32>
    %17 = vector.shape_cast %16 : vector<1x64x64xf32> to vector<64x64xf32>
    %cst_19 = arith.constant dense<0.000000e+00> : vector<32x64xf32>
    %18 = tpu.matmul %0, %17, %cst_19 {dimension_numbers = #tpu.dot_dimension_numbers<[1], [0], [0], [1], [0, 0, 1, 1], [], []>} : vector<32x64xf32>, vector<64x64xf32>, vector<32x64xf32> -> vector<32x64xf32>
    %cst_20 = arith.constant dense<0.000000e+00> : vector<32x32xf32>
    %19 = tpu.matmul %18, %1, %cst_20 {dimension_numbers = #tpu.dot_dimension_numbers<[1], [0], [0], [1], [0, 0, 1, 1], [], []>} : vector<32x64xf32>, vector<64x32xf32>, vector<32x32xf32> -> vector<32x32xf32>
    %c2_21 = arith.constant 2 : index
    %c0_22 = arith.constant 0 : index
    %c0_23 = arith.constant 0 : index
    %20 = vector.load %arg4[%c2_21, %c0_22, %c0_23] : memref<6x32x32xf32, #tpu.memory_space<vmem>>, vector<1x32x32xf32>
    %21 = vector.shape_cast %20 : vector<1x32x32xf32> to vector<32x32xf32>
    %22 = vector.shape_cast %19 : vector<32x32xf32> to vector<1x32x32xf32>
    tpu.vector_store %arg4[%c2_21, %c0_22, %c0_23], %22 {strides = array<i32>} : memref<6x32x32xf32, #tpu.memory_space<vmem>>, vector<1x32x32xf32>,
    %c3 = arith.constant 3 : index
    %c0_24 = arith.constant 0 : index
    %c0_25 = arith.constant 0 : index
    %23 = vector.load %arg1[%c3, %c0_24, %c0_25] : memref<6x64x64xf32, #tpu.memory_space<vmem>>, vector<1x64x64xf32>
    %24 = vector.shape_cast %23 : vector<1x64x64xf32> to vector<64x64xf32>
    %cst_26 = arith.constant dense<0.000000e+00> : vector<32x64xf32>
    %25 = tpu.matmul %0, %24, %cst_26 {dimension_numbers = #tpu.dot_dimension_numbers<[1], [0], [0], [1], [0, 0, 1, 1], [], []>} : vector<32x64xf32>, vector<64x64xf32>, vector<32x64xf32> -> vector<32x64xf32>
    %cst_27 = arith.constant dense<0.000000e+00> : vector<32x32xf32>
    %26 = tpu.matmul %25, %1, %cst_27 {dimension_numbers = #tpu.dot_dimension_numbers<[1], [0], [0], [1], [0, 0, 1, 1], [], []>} : vector<32x64xf32>, vector<64x32xf32>, vector<32x32xf32> -> vector<32x32xf32>
    %c3_28 = arith.constant 3 : index
    %c0_29 = arith.constant 0 : index
    %c0_30 = arith.constant 0 : index
    %27 = vector.load %arg4[%c3_28, %c0_29, %c0_30] : memref<6x32x32xf32, #tpu.memory_space<vmem>>, vector<1x32x32xf32>
    %28 = vector.shape_cast %27 : vector<1x32x32xf32> to vector<32x32xf32>
    %29 = vector.shape_cast %26 : vector<32x32xf32> to vector<1x32x32xf32>
    tpu.vector_store %arg4[%c3_28, %c0_29, %c0_30], %29 {strides = array<i32>} : memref<6x32x32xf32, #tpu.memory_space<vmem>>, vector<1x32x32xf32>,
    %c4 = arith.constant 4 : index
    %c0_31 = arith.constant 0 : index
    %c0_32 = arith.constant 0 : index
    %30 = vector.load %arg1[%c4, %c0_31, %c0_32] : memref<6x64x64xf32, #tpu.memory_space<vmem>>, vector<1x64x64xf32>
    %31 = vector.shape_cast %30 : vector<1x64x64xf32> to vector<64x64xf32>
    %cst_33 = arith.constant dense<0.000000e+00> : vector<32x64xf32>
    %32 = tpu.matmul %0, %31, %cst_33 {dimension_numbers = #tpu.dot_dimension_numbers<[1], [0], [0], [1], [0, 0, 1, 1], [], []>} : vector<32x64xf32>, vector<64x64xf32>, vector<32x64xf32> -> vector<32x64xf32>
    %cst_34 = arith.constant dense<0.000000e+00> : vector<32x32xf32>
    %33 = tpu.matmul %32, %1, %cst_34 {dimension_numbers = #tpu.dot_dimension_numbers<[1], [0], [0], [1], [0, 0, 1, 1], [], []>} : vector<32x64xf32>, vector<64x32xf32>, vector<32x32xf32> -> vector<32x32xf32>
    %c4_35 = arith.constant 4 : index
    %c0_36 = arith.constant 0 : index
    %c0_37 = arith.constant 0 : index
    %34 = vector.load %arg4[%c4_35, %c0_36, %c0_37] : memref<6x32x32xf32, #tpu.memory_space<vmem>>, vector<1x32x32xf32>
    %35 = vector.shape_cast %34 : vector<1x32x32xf32> to vector<32x32xf32>
    %36 = vector.shape_cast %33 : vector<32x32xf32> to vector<1x32x32xf32>
    tpu.vector_store %arg4[%c4_35, %c0_36, %c0_37], %36 {strides = array<i32>} : memref<6x32x32xf32, #tpu.memory_space<vmem>>, vector<1x32x32xf32>,
    %c5 = arith.constant 5 : index
    %c0_38 = arith.constant 0 : index
    %c0_39 = arith.constant 0 : index
    %37 = vector.load %arg1[%c5, %c0_38, %c0_39] : memref<6x64x64xf32, #tpu.memory_space<vmem>>, vector<1x64x64xf32>
    %38 = vector.shape_cast %37 : vector<1x64x64xf32> to vector<64x64xf32>
    %cst_40 = arith.constant dense<0.000000e+00> : vector<32x64xf32>
    %39 = tpu.matmul %0, %38, %cst_40 {dimension_numbers = #tpu.dot_dimension_numbers<[1], [0], [0], [1], [0, 0, 1, 1], [], []>} : vector<32x64xf32>, vector<64x64xf32>, vector<32x64xf32> -> vector<32x64xf32>
    %cst_41 = arith.constant dense<0.000000e+00> : vector<32x32xf32>
    %40 = tpu.matmul %39, %1, %cst_41 {dimension_numbers = #tpu.dot_dimension_numbers<[1], [0], [0], [1], [0, 0, 1, 1], [], []>} : vector<32x64xf32>, vector<64x32xf32>, vector<32x32xf32> -> vector<32x32xf32>
    %c5_42 = arith.constant 5 : index
    %c0_43 = arith.constant 0 : index
    %c0_44 = arith.constant 0 : index
    %41 = vector.load %arg4[%c5_42, %c0_43, %c0_44] : memref<6x32x32xf32, #tpu.memory_space<vmem>>, vector<1x32x32xf32>
    %42 = vector.shape_cast %41 : vector<1x32x32xf32> to vector<32x32xf32>
    %43 = vector.shape_cast %40 : vector<32x32xf32> to vector<1x32x32xf32>
    tpu.vector_store %arg4[%c5_42, %c0_43, %c0_44], %43 {strides = array<i32>} : memref<6x32x32xf32, #tpu.memory_space<vmem>>, vector<1x32x32xf32>,
    return
  }
  func.func @transform_0(%arg0: i32) -> (i32, i32, i32) {
    %c0_i32 = arith.constant 0 : i32
    %c0_i32_0 = arith.constant 0 : i32
    %c0_i32_1 = arith.constant 0 : i32
    %c0_i32_2 = arith.constant 0 : i32
    return %c0_i32, %c0_i32_0, %c0_i32_1 : i32, i32, i32
  }
  func.func @transform_1(%arg0: i32) -> (i32, i32) {
    %c0_i32 = arith.constant 0 : i32
    %c0_i32_0 = arith.constant 0 : i32
    %c0_i32_1 = arith.constant 0 : i32
    return %c0_i32, %c0_i32_0 : i32, i32
  }
  func.func @transform_2(%arg0: i32) -> (i32, i32) {
    %c0_i32 = arith.constant 0 : i32
    %c0_i32_0 = arith.constant 0 : i32
    %c0_i32_1 = arith.constant 0 : i32
    return %c0_i32, %c0_i32_0 : i32, i32
  }
  func.func @transform_3(%arg0: i32) -> (i32, i32, i32) {
    %c0_i32 = arith.constant 0 : i32
    %c0_i32_0 = arith.constant 0 : i32
    %c0_i32_1 = arith.constant 0 : i32
    %c0_i32_2 = arith.constant 0 : i32
    return %c0_i32, %c0_i32_0, %c0_i32_1 : i32, i32, i32
  }
}

module attributes {stable_mosaic.version = 11 : i64} {
  func.func @_patch_embed_kernel(%arg0: i32, %arg1: memref<40x768xf32, #tpu.memory_space<vmem>>, %arg2: memref<768x64xbf16, #tpu.memory_space<vmem>>, %arg3: memref<1x64xf32, #tpu.memory_space<vmem>>, %arg4: memref<40x64xf32, #tpu.memory_space<vmem>>) attributes {dimension_semantics = [#tpu.dimension_semantics<arbitrary>], iteration_bounds = array<i64: 1>, scalar_prefetch = 0 : i64, scratch_operands = 0 : i64, tpu.core_type = #tpu.core_type<tc>, window_params = [{pipeline_mode = #tpu.pipeline_mode<synchronous>, transform_indices = @transform_0, window_bounds = array<i64: 40, 768>}, {pipeline_mode = #tpu.pipeline_mode<synchronous>, transform_indices = @transform_1, window_bounds = array<i64: 768, 64>}, {pipeline_mode = #tpu.pipeline_mode<synchronous>, transform_indices = @transform_2, window_bounds = array<i64: 1, 64>}, {pipeline_mode = #tpu.pipeline_mode<synchronous>, transform_indices = @transform_3, window_bounds = array<i64: 40, 64>}]} {
    %c0 = arith.constant 0 : index
    %c0_0 = arith.constant 0 : index
    %0 = vector.load %arg1[%c0, %c0_0] : memref<40x768xf32, #tpu.memory_space<vmem>>, vector<40x768xf32>
    %c0_1 = arith.constant 0 : index
    %c0_2 = arith.constant 0 : index
    %1 = vector.load %arg2[%c0_1, %c0_2] : memref<768x64xbf16, #tpu.memory_space<vmem>>, vector<768x64xbf16>
    %2 = arith.truncf %0 : vector<40x768xf32> to vector<40x768xbf16>
    %cst = arith.constant dense<0.000000e+00> : vector<40x64xf32>
    %3 = tpu.matmul %2, %1, %cst {dimension_numbers = #tpu.dot_dimension_numbers<[1], [0], [0], [1], [0, 0, 1, 1], [], []>} : vector<40x768xbf16>, vector<768x64xbf16>, vector<40x64xf32> -> vector<40x64xf32>
    %c0_3 = arith.constant 0 : index
    %c0_4 = arith.constant 0 : index
    %4 = vector.load %arg3[%c0_3, %c0_4] : memref<1x64xf32, #tpu.memory_space<vmem>>, vector<1x64xf32>
    %5 = vector.broadcast %4 : vector<1x64xf32> to vector<40x64xf32>
    %6 = arith.addf %3, %5 : vector<40x64xf32>
    %c0_5 = arith.constant 0 : index
    %c0_6 = arith.constant 0 : index
    %7 = vector.load %arg4[%c0_5, %c0_6] : memref<40x64xf32, #tpu.memory_space<vmem>>, vector<40x64xf32>
    tpu.vector_store %arg4[%c0_5, %c0_6], %6 {strides = array<i32>} : memref<40x64xf32, #tpu.memory_space<vmem>>, vector<40x64xf32>,
    return
  }
  func.func @transform_0(%arg0: i32) -> (i32, i32) {
    %c0_i32 = arith.constant 0 : i32
    %c0_i32_0 = arith.constant 0 : i32
    %c0_i32_1 = arith.constant 0 : i32
    return %c0_i32, %c0_i32_0 : i32, i32
  }
  func.func @transform_1(%arg0: i32) -> (i32, i32) {
    %c0_i32 = arith.constant 0 : i32
    %c0_i32_0 = arith.constant 0 : i32
    %c0_i32_1 = arith.constant 0 : i32
    return %c0_i32, %c0_i32_0 : i32, i32
  }
  func.func @transform_2(%arg0: i32) -> (i32, i32) {
    %c0_i32 = arith.constant 0 : i32
    %c0_i32_0 = arith.constant 0 : i32
    %c0_i32_1 = arith.constant 0 : i32
    return %c0_i32, %c0_i32_0 : i32, i32
  }
  func.func @transform_3(%arg0: i32) -> (i32, i32) {
    %c0_i32 = arith.constant 0 : i32
    %c0_i32_0 = arith.constant 0 : i32
    %c0_i32_1 = arith.constant 0 : i32
    return %c0_i32, %c0_i32_0 : i32, i32
  }
}

module attributes {stable_mosaic.version = 11 : i64} {
  func.func @_pool_pos_kernel(%arg0: i32, %arg1: memref<50x64xf32, #tpu.memory_space<vmem>>, %arg2: memref<1x64xf32, #tpu.memory_space<vmem>>, %arg3: memref<1x64xf32, #tpu.memory_space<vmem>>, %arg4: memref<10x50xf32, #tpu.memory_space<vmem>>, %arg5: memref<10x64xf32, #tpu.memory_space<vmem>>, %arg6: memref<10x64xf32, #tpu.memory_space<vmem>>) attributes {dimension_semantics = [#tpu.dimension_semantics<arbitrary>], iteration_bounds = array<i64: 1>, scalar_prefetch = 0 : i64, scratch_operands = 0 : i64, tpu.core_type = #tpu.core_type<tc>, window_params = [{pipeline_mode = #tpu.pipeline_mode<synchronous>, transform_indices = @transform_0, window_bounds = array<i64: 50, 64>}, {pipeline_mode = #tpu.pipeline_mode<synchronous>, transform_indices = @transform_1, window_bounds = array<i64: 1, 64>}, {pipeline_mode = #tpu.pipeline_mode<synchronous>, transform_indices = @transform_2, window_bounds = array<i64: 1, 64>}, {pipeline_mode = #tpu.pipeline_mode<synchronous>, transform_indices = @transform_3, window_bounds = array<i64: 10, 50>}, {pipeline_mode = #tpu.pipeline_mode<synchronous>, transform_indices = @transform_4, window_bounds = array<i64: 10, 64>}, {pipeline_mode = #tpu.pipeline_mode<synchronous>, transform_indices = @transform_5, window_bounds = array<i64: 10, 64>}]} {
    %c0 = arith.constant 0 : index
    %c0_0 = arith.constant 0 : index
    %0 = vector.load %arg1[%c0, %c0_0] : memref<50x64xf32, #tpu.memory_space<vmem>>, vector<50x64xf32>
    %c0_1 = arith.constant 0 : index
    %c0_2 = arith.constant 0 : index
    %1 = vector.load %arg2[%c0_1, %c0_2] : memref<1x64xf32, #tpu.memory_space<vmem>>, vector<1x64xf32>
    %c0_3 = arith.constant 0 : index
    %c0_4 = arith.constant 0 : index
    %2 = vector.load %arg3[%c0_3, %c0_4] : memref<1x64xf32, #tpu.memory_space<vmem>>, vector<1x64xf32>
    %cst = arith.constant dense<0.000000e+00> : vector<50xf32>
    %3 = vector.multi_reduction <add>, %0, %cst [1] : vector<50x64xf32> to vector<50xf32>
    %4 = vector.shape_cast %3 : vector<50xf32> to vector<50x1xf32>
    %cst_5 = arith.constant 6.400000e+01 : f32
    %5 = vector.broadcast %cst_5 : f32 to vector<50x1xf32>
    %6 = arith.divf %4, %5 : vector<50x1xf32>
    %7 = vector.broadcast %6 : vector<50x1xf32> to vector<50x64xf32>
    %8 = arith.subf %0, %7 : vector<50x64xf32>
    %9 = arith.mulf %8, %8 : vector<50x64xf32>
    %cst_6 = arith.constant dense<0.000000e+00> : vector<50xf32>
    %10 = vector.multi_reduction <add>, %9, %cst_6 [1] : vector<50x64xf32> to vector<50xf32>
    %11 = vector.shape_cast %10 : vector<50xf32> to vector<50x1xf32>
    %cst_7 = arith.constant 6.400000e+01 : f32
    %12 = vector.broadcast %cst_7 : f32 to vector<50x1xf32>
    %13 = arith.divf %11, %12 : vector<50x1xf32>
    %cst_8 = arith.constant 9.99999997E-7 : f32
    %14 = vector.broadcast %cst_8 : f32 to vector<50x1xf32>
    %15 = arith.addf %13, %14 : vector<50x1xf32>
    %16 = math.rsqrt %15 : vector<50x1xf32>
    %17 = vector.broadcast %16 : vector<50x1xf32> to vector<50x64xf32>
    %18 = arith.mulf %8, %17 : vector<50x64xf32>
    %19 = vector.broadcast %1 : vector<1x64xf32> to vector<50x64xf32>
    %20 = arith.mulf %18, %19 : vector<50x64xf32>
    %21 = vector.broadcast %2 : vector<1x64xf32> to vector<50x64xf32>
    %22 = arith.addf %20, %21 : vector<50x64xf32>
    %c0_9 = arith.constant 0 : index
    %c0_10 = arith.constant 0 : index
    %23 = vector.load %arg4[%c0_9, %c0_10] : memref<10x50xf32, #tpu.memory_space<vmem>>, vector<10x50xf32>
    %cst_11 = arith.constant dense<0.000000e+00> : vector<10x64xf32>
    %24 = tpu.matmul %23, %22, %cst_11 {dimension_numbers = #tpu.dot_dimension_numbers<[1], [0], [0], [1], [0, 0, 1, 1], [], []>} : vector<10x50xf32>, vector<50x64xf32>, vector<10x64xf32> -> vector<10x64xf32>
    %c0_12 = arith.constant 0 : index
    %c0_13 = arith.constant 0 : index
    %25 = vector.load %arg5[%c0_12, %c0_13] : memref<10x64xf32, #tpu.memory_space<vmem>>, vector<10x64xf32>
    %26 = arith.addf %24, %25 : vector<10x64xf32>
    %c0_14 = arith.constant 0 : index
    %c0_15 = arith.constant 0 : index
    %27 = vector.load %arg6[%c0_14, %c0_15] : memref<10x64xf32, #tpu.memory_space<vmem>>, vector<10x64xf32>
    tpu.vector_store %arg6[%c0_14, %c0_15], %26 {strides = array<i32>} : memref<10x64xf32, #tpu.memory_space<vmem>>, vector<10x64xf32>,
    return
  }
  func.func @transform_0(%arg0: i32) -> (i32, i32) {
    %c0_i32 = arith.constant 0 : i32
    %c0_i32_0 = arith.constant 0 : i32
    %c0_i32_1 = arith.constant 0 : i32
    return %c0_i32, %c0_i32_0 : i32, i32
  }
  func.func @transform_1(%arg0: i32) -> (i32, i32) {
    %c0_i32 = arith.constant 0 : i32
    %c0_i32_0 = arith.constant 0 : i32
    %c0_i32_1 = arith.constant 0 : i32
    return %c0_i32, %c0_i32_0 : i32, i32
  }
  func.func @transform_2(%arg0: i32) -> (i32, i32) {
    %c0_i32 = arith.constant 0 : i32
    %c0_i32_0 = arith.constant 0 : i32
    %c0_i32_1 = arith.constant 0 : i32
    return %c0_i32, %c0_i32_0 : i32, i32
  }
  func.func @transform_3(%arg0: i32) -> (i32, i32) {
    %c0_i32 = arith.constant 0 : i32
    %c0_i32_0 = arith.constant 0 : i32
    %c0_i32_1 = arith.constant 0 : i32
    return %c0_i32, %c0_i32_0 : i32, i32
  }
  func.func @transform_4(%arg0: i32) -> (i32, i32) {
    %c0_i32 = arith.constant 0 : i32
    %c0_i32_0 = arith.constant 0 : i32
    %c0_i32_1 = arith.constant 0 : i32
    return %c0_i32, %c0_i32_0 : i32, i32
  }
  func.func @transform_5(%arg0: i32) -> (i32, i32) {
    %c0_i32 = arith.constant 0 : i32
    %c0_i32_0 = arith.constant 0 : i32
    %c0_i32_1 = arith.constant 0 : i32
    return %c0_i32, %c0_i32_0 : i32, i32
  }
}

module attributes {stable_mosaic.version = 11 : i64} {
  func.func @_stack_kernel(%arg0: i32, %arg1: memref<50x64xf32, #tpu.memory_space<vmem>>, %arg2: memref<50x50xf32, #tpu.memory_space<vmem>>, %arg3: memref<1x1x64xf32, #tpu.memory_space<vmem>>, %arg4: memref<1x1x64xf32, #tpu.memory_space<vmem>>, %arg5: memref<1x3x4x64x16xbf16, #tpu.memory_space<vmem>>, %arg6: memref<1x3x4x1x16xf32, #tpu.memory_space<vmem>>, %arg7: memref<1x4x16x64xbf16, #tpu.memory_space<vmem>>, %arg8: memref<1x1x64xf32, #tpu.memory_space<vmem>>, %arg9: memref<1x1x64xf32, #tpu.memory_space<vmem>>, %arg10: memref<1x1x64xf32, #tpu.memory_space<vmem>>, %arg11: memref<1x64x256xbf16, #tpu.memory_space<vmem>>, %arg12: memref<1x1x256xf32, #tpu.memory_space<vmem>>, %arg13: memref<1x256x64xbf16, #tpu.memory_space<vmem>>, %arg14: memref<1x1x64xf32, #tpu.memory_space<vmem>>, %arg15: memref<50x64xf32, #tpu.memory_space<vmem>>) attributes {dimension_semantics = [#tpu.dimension_semantics<arbitrary>], iteration_bounds = array<i64: 2>, scalar_prefetch = 0 : i64, scratch_operands = 0 : i64, tpu.core_type = #tpu.core_type<tc>, window_params = [{pipeline_mode = #tpu.pipeline_mode<synchronous>, transform_indices = @transform_0, window_bounds = array<i64: 50, 64>}, {pipeline_mode = #tpu.pipeline_mode<synchronous>, transform_indices = @transform_1, window_bounds = array<i64: 50, 50>}, {transform_indices = @transform_2, window_bounds = array<i64: 1, 1, 64>}, {transform_indices = @transform_3, window_bounds = array<i64: 1, 1, 64>}, {transform_indices = @transform_4, window_bounds = array<i64: 1, 3, 4, 64, 16>}, {transform_indices = @transform_5, window_bounds = array<i64: 1, 3, 4, 1, 16>}, {transform_indices = @transform_6, window_bounds = array<i64: 1, 4, 16, 64>}, {transform_indices = @transform_7, window_bounds = array<i64: 1, 1, 64>}, {transform_indices = @transform_8, window_bounds = array<i64: 1, 1, 64>}, {transform_indices = @transform_9, window_bounds = array<i64: 1, 1, 64>}, {transform_indices = @transform_10, window_bounds = array<i64: 1, 64, 256>}, {transform_indices = @transform_11, window_bounds = array<i64: 1, 1, 256>}, {transform_indices = @transform_12, window_bounds = array<i64: 1, 256, 64>}, {transform_indices = @transform_13, window_bounds = array<i64: 1, 1, 64>}, {pipeline_mode = #tpu.pipeline_mode<synchronous>, transform_indices = @transform_14, window_bounds = array<i64: 50, 64>}]} {
    %c0_i32 = arith.constant 0 : i32
    %0 = arith.cmpi eq, %arg0, %c0_i32 : i32
    %1 = arith.extui %0 : i1 to i32
    %c0_i32_0 = arith.constant 0 : i32
    %2 = arith.cmpi ne, %1, %c0_i32_0 : i32
    scf.if %2 {
      %c0_218 = arith.constant 0 : index
      %c0_219 = arith.constant 0 : index
      %271 = vector.load %arg1[%c0_218, %c0_219] : memref<50x64xf32, #tpu.memory_space<vmem>>, vector<50x64xf32>
      %c0_220 = arith.constant 0 : index
      %c0_221 = arith.constant 0 : index
      %272 = vector.load %arg15[%c0_220, %c0_221] : memref<50x64xf32, #tpu.memory_space<vmem>>, vector<50x64xf32>
      tpu.vector_store %arg15[%c0_220, %c0_221], %271 {strides = array<i32>} : memref<50x64xf32, #tpu.memory_space<vmem>>, vector<50x64xf32>,
    } else {
    }
    %c0 = arith.constant 0 : index
    %c0_1 = arith.constant 0 : index
    %3 = vector.load %arg15[%c0, %c0_1] : memref<50x64xf32, #tpu.memory_space<vmem>>, vector<50x64xf32>
    %c0_2 = arith.constant 0 : index
    %c0_3 = arith.constant 0 : index
    %4 = vector.load %arg2[%c0_2, %c0_3] : memref<50x50xf32, #tpu.memory_space<vmem>>, vector<50x50xf32>
    %c0_4 = arith.constant 0 : index
    %c0_5 = arith.constant 0 : index
    %c0_6 = arith.constant 0 : index
    %5 = vector.load %arg3[%c0_4, %c0_5, %c0_6] : memref<1x1x64xf32, #tpu.memory_space<vmem>>, vector<1x1x64xf32>
    %6 = vector.shape_cast %5 : vector<1x1x64xf32> to vector<1x64xf32>
    %c0_7 = arith.constant 0 : index
    %c0_8 = arith.constant 0 : index
    %c0_9 = arith.constant 0 : index
    %7 = vector.load %arg4[%c0_7, %c0_8, %c0_9] : memref<1x1x64xf32, #tpu.memory_space<vmem>>, vector<1x1x64xf32>
    %8 = vector.shape_cast %7 : vector<1x1x64xf32> to vector<1x64xf32>
    %cst = arith.constant dense<0.000000e+00> : vector<50xf32>
    %9 = vector.multi_reduction <add>, %3, %cst [1] : vector<50x64xf32> to vector<50xf32>
    %10 = vector.shape_cast %9 : vector<50xf32> to vector<50x1xf32>
    %cst_10 = arith.constant 6.400000e+01 : f32
    %11 = vector.broadcast %cst_10 : f32 to vector<50x1xf32>
    %12 = arith.divf %10, %11 : vector<50x1xf32>
    %13 = vector.broadcast %12 : vector<50x1xf32> to vector<50x64xf32>
    %14 = arith.subf %3, %13 : vector<50x64xf32>
    %15 = arith.mulf %14, %14 : vector<50x64xf32>
    %cst_11 = arith.constant dense<0.000000e+00> : vector<50xf32>
    %16 = vector.multi_reduction <add>, %15, %cst_11 [1] : vector<50x64xf32> to vector<50xf32>
    %17 = vector.shape_cast %16 : vector<50xf32> to vector<50x1xf32>
    %cst_12 = arith.constant 6.400000e+01 : f32
    %18 = vector.broadcast %cst_12 : f32 to vector<50x1xf32>
    %19 = arith.divf %17, %18 : vector<50x1xf32>
    %cst_13 = arith.constant 9.99999997E-7 : f32
    %20 = vector.broadcast %cst_13 : f32 to vector<50x1xf32>
    %21 = arith.addf %19, %20 : vector<50x1xf32>
    %22 = math.rsqrt %21 : vector<50x1xf32>
    %23 = vector.broadcast %22 : vector<50x1xf32> to vector<50x64xf32>
    %24 = arith.mulf %14, %23 : vector<50x64xf32>
    %25 = vector.broadcast %6 : vector<1x64xf32> to vector<50x64xf32>
    %26 = arith.mulf %24, %25 : vector<50x64xf32>
    %27 = vector.broadcast %8 : vector<1x64xf32> to vector<50x64xf32>
    %28 = arith.addf %26, %27 : vector<50x64xf32>
    %29 = arith.truncf %28 : vector<50x64xf32> to vector<50x64xbf16>
    %cst_14 = arith.constant 0.000000e+00 : f32
    %30 = vector.broadcast %cst_14 : f32 to vector<50x64xf32>
    %c0_15 = arith.constant 0 : index
    %c0_16 = arith.constant 0 : index
    %c0_17 = arith.constant 0 : index
    %c0_18 = arith.constant 0 : index
    %c0_19 = arith.constant 0 : index
    %31 = vector.load %arg5[%c0_15, %c0_16, %c0_17, %c0_18, %c0_19] : memref<1x3x4x64x16xbf16, #tpu.memory_space<vmem>>, vector<1x1x1x64x16xbf16>
    %32 = vector.shape_cast %31 : vector<1x1x1x64x16xbf16> to vector<64x16xbf16>
    %cst_20 = arith.constant dense<0.000000e+00> : vector<50x16xf32>
    %33 = tpu.matmul %29, %32, %cst_20 {dimension_numbers = #tpu.dot_dimension_numbers<[1], [0], [0], [1], [0, 0, 1, 1], [], []>} : vector<50x64xbf16>, vector<64x16xbf16>, vector<50x16xf32> -> vector<50x16xf32>
    %c0_21 = arith.constant 0 : index
    %c0_22 = arith.constant 0 : index
    %c0_23 = arith.constant 0 : index
    %c0_24 = arith.constant 0 : index
    %c0_25 = arith.constant 0 : index
    %34 = vector.load %arg6[%c0_21, %c0_22, %c0_23, %c0_24, %c0_25] : memref<1x3x4x1x16xf32, #tpu.memory_space<vmem>>, vector<1x1x1x1x16xf32>
    %35 = vector.shape_cast %34 : vector<1x1x1x1x16xf32> to vector<1x16xf32>
    %36 = vector.broadcast %35 : vector<1x16xf32> to vector<50x16xf32>
    %37 = arith.addf %33, %36 : vector<50x16xf32>
    %c0_26 = arith.constant 0 : index
    %c1 = arith.constant 1 : index
    %c0_27 = arith.constant 0 : index
    %c0_28 = arith.constant 0 : index
    %c0_29 = arith.constant 0 : index
    %38 = vector.load %arg5[%c0_26, %c1, %c0_27, %c0_28, %c0_29] : memref<1x3x4x64x16xbf16, #tpu.memory_space<vmem>>, vector<1x1x1x64x16xbf16>
    %39 = vector.shape_cast %38 : vector<1x1x1x64x16xbf16> to vector<64x16xbf16>
    %cst_30 = arith.constant dense<0.000000e+00> : vector<50x16xf32>
    %40 = tpu.matmul %29, %39, %cst_30 {dimension_numbers = #tpu.dot_dimension_numbers<[1], [0], [0], [1], [0, 0, 1, 1], [], []>} : vector<50x64xbf16>, vector<64x16xbf16>, vector<50x16xf32> -> vector<50x16xf32>
    %c0_31 = arith.constant 0 : index
    %c1_32 = arith.constant 1 : index
    %c0_33 = arith.constant 0 : index
    %c0_34 = arith.constant 0 : index
    %c0_35 = arith.constant 0 : index
    %41 = vector.load %arg6[%c0_31, %c1_32, %c0_33, %c0_34, %c0_35] : memref<1x3x4x1x16xf32, #tpu.memory_space<vmem>>, vector<1x1x1x1x16xf32>
    %42 = vector.shape_cast %41 : vector<1x1x1x1x16xf32> to vector<1x16xf32>
    %43 = vector.broadcast %42 : vector<1x16xf32> to vector<50x16xf32>
    %44 = arith.addf %40, %43 : vector<50x16xf32>
    %c0_36 = arith.constant 0 : index
    %c2 = arith.constant 2 : index
    %c0_37 = arith.constant 0 : index
    %c0_38 = arith.constant 0 : index
    %c0_39 = arith.constant 0 : index
    %45 = vector.load %arg5[%c0_36, %c2, %c0_37, %c0_38, %c0_39] : memref<1x3x4x64x16xbf16, #tpu.memory_space<vmem>>, vector<1x1x1x64x16xbf16>
    %46 = vector.shape_cast %45 : vector<1x1x1x64x16xbf16> to vector<64x16xbf16>
    %cst_40 = arith.constant dense<0.000000e+00> : vector<50x16xf32>
    %47 = tpu.matmul %29, %46, %cst_40 {dimension_numbers = #tpu.dot_dimension_numbers<[1], [0], [0], [1], [0, 0, 1, 1], [], []>} : vector<50x64xbf16>, vector<64x16xbf16>, vector<50x16xf32> -> vector<50x16xf32>
    %c0_41 = arith.constant 0 : index
    %c2_42 = arith.constant 2 : index
    %c0_43 = arith.constant 0 : index
    %c0_44 = arith.constant 0 : index
    %c0_45 = arith.constant 0 : index
    %48 = vector.load %arg6[%c0_41, %c2_42, %c0_43, %c0_44, %c0_45] : memref<1x3x4x1x16xf32, #tpu.memory_space<vmem>>, vector<1x1x1x1x16xf32>
    %49 = vector.shape_cast %48 : vector<1x1x1x1x16xf32> to vector<1x16xf32>
    %50 = vector.broadcast %49 : vector<1x16xf32> to vector<50x16xf32>
    %51 = arith.addf %47, %50 : vector<50x16xf32>
    %cst_46 = arith.constant 2.500000e-01 : f32
    %52 = vector.broadcast %cst_46 : f32 to vector<50x16xf32>
    %53 = arith.mulf %37, %52 : vector<50x16xf32>
    %54 = arith.truncf %53 : vector<50x16xf32> to vector<50x16xbf16>
    %55 = arith.truncf %44 : vector<50x16xf32> to vector<50x16xbf16>
    %cst_47 = arith.constant dense<0.000000e+00> : vector<50x50xf32>
    %56 = tpu.matmul %54, %55, %cst_47 {dimension_numbers = #tpu.dot_dimension_numbers<[1], [1], [0], [0], [0, 0, 1, 0], [], []>} : vector<50x16xbf16>, vector<50x16xbf16>, vector<50x50xf32> -> vector<50x50xf32>
    %57 = arith.addf %56, %4 : vector<50x50xf32>
    %cst_48 = arith.constant dense<0xFF800000> : vector<50xf32>
    %58 = vector.multi_reduction <maximumf>, %57, %cst_48 [1] : vector<50x50xf32> to vector<50xf32>
    %59 = vector.shape_cast %58 : vector<50xf32> to vector<50x1xf32>
    %60 = vector.broadcast %59 : vector<50x1xf32> to vector<50x50xf32>
    %61 = arith.subf %57, %60 : vector<50x50xf32>
    %62 = math.exp %61 : vector<50x50xf32>
    %cst_49 = arith.constant dense<0.000000e+00> : vector<50xf32>
    %63 = vector.multi_reduction <add>, %62, %cst_49 [1] : vector<50x50xf32> to vector<50xf32>
    %64 = vector.shape_cast %63 : vector<50xf32> to vector<50x1xf32>
    %65 = tpu.reciprocal %64 {approx = true} : vector<50x1xf32> -> vector<50x1xf32>
    %66 = vector.broadcast %65 : vector<50x1xf32> to vector<50x50xf32>
    %67 = arith.mulf %62, %66 : vector<50x50xf32>
    %68 = arith.truncf %67 : vector<50x50xf32> to vector<50x50xbf16>
    %69 = arith.truncf %51 : vector<50x16xf32> to vector<50x16xbf16>
    %cst_50 = arith.constant dense<0.000000e+00> : vector<50x16xf32>
    %70 = tpu.matmul %68, %69, %cst_50 {dimension_numbers = #tpu.dot_dimension_numbers<[1], [0], [0], [1], [0, 0, 1, 1], [], []>} : vector<50x50xbf16>, vector<50x16xbf16>, vector<50x16xf32> -> vector<50x16xf32>
    %c0_51 = arith.constant 0 : index
    %c0_52 = arith.constant 0 : index
    %c0_53 = arith.constant 0 : index
    %c0_54 = arith.constant 0 : index
    %71 = vector.load %arg7[%c0_51, %c0_52, %c0_53, %c0_54] : memref<1x4x16x64xbf16, #tpu.memory_space<vmem>>, vector<1x1x16x64xbf16>
    %72 = vector.shape_cast %71 : vector<1x1x16x64xbf16> to vector<16x64xbf16>
    %73 = arith.truncf %70 : vector<50x16xf32> to vector<50x16xbf16>
    %cst_55 = arith.constant dense<0.000000e+00> : vector<50x64xf32>
    %74 = tpu.matmul %73, %72, %cst_55 {dimension_numbers = #tpu.dot_dimension_numbers<[1], [0], [0], [1], [0, 0, 1, 1], [], []>} : vector<50x16xbf16>, vector<16x64xbf16>, vector<50x64xf32> -> vector<50x64xf32>
    %75 = arith.addf %30, %74 : vector<50x64xf32>
    %c0_56 = arith.constant 0 : index
    %c0_57 = arith.constant 0 : index
    %c1_58 = arith.constant 1 : index
    %c0_59 = arith.constant 0 : index
    %c0_60 = arith.constant 0 : index
    %76 = vector.load %arg5[%c0_56, %c0_57, %c1_58, %c0_59, %c0_60] : memref<1x3x4x64x16xbf16, #tpu.memory_space<vmem>>, vector<1x1x1x64x16xbf16>
    %77 = vector.shape_cast %76 : vector<1x1x1x64x16xbf16> to vector<64x16xbf16>
    %cst_61 = arith.constant dense<0.000000e+00> : vector<50x16xf32>
    %78 = tpu.matmul %29, %77, %cst_61 {dimension_numbers = #tpu.dot_dimension_numbers<[1], [0], [0], [1], [0, 0, 1, 1], [], []>} : vector<50x64xbf16>, vector<64x16xbf16>, vector<50x16xf32> -> vector<50x16xf32>
    %c0_62 = arith.constant 0 : index
    %c0_63 = arith.constant 0 : index
    %c1_64 = arith.constant 1 : index
    %c0_65 = arith.constant 0 : index
    %c0_66 = arith.constant 0 : index
    %79 = vector.load %arg6[%c0_62, %c0_63, %c1_64, %c0_65, %c0_66] : memref<1x3x4x1x16xf32, #tpu.memory_space<vmem>>, vector<1x1x1x1x16xf32>
    %80 = vector.shape_cast %79 : vector<1x1x1x1x16xf32> to vector<1x16xf32>
    %81 = vector.broadcast %80 : vector<1x16xf32> to vector<50x16xf32>
    %82 = arith.addf %78, %81 : vector<50x16xf32>
    %c0_67 = arith.constant 0 : index
    %c1_68 = arith.constant 1 : index
    %c1_69 = arith.constant 1 : index
    %c0_70 = arith.constant 0 : index
    %c0_71 = arith.constant 0 : index
    %83 = vector.load %arg5[%c0_67, %c1_68, %c1_69, %c0_70, %c0_71] : memref<1x3x4x64x16xbf16, #tpu.memory_space<vmem>>, vector<1x1x1x64x16xbf16>
    %84 = vector.shape_cast %83 : vector<1x1x1x64x16xbf16> to vector<64x16xbf16>
    %cst_72 = arith.constant dense<0.000000e+00> : vector<50x16xf32>
    %85 = tpu.matmul %29, %84, %cst_72 {dimension_numbers = #tpu.dot_dimension_numbers<[1], [0], [0], [1], [0, 0, 1, 1], [], []>} : vector<50x64xbf16>, vector<64x16xbf16>, vector<50x16xf32> -> vector<50x16xf32>
    %c0_73 = arith.constant 0 : index
    %c1_74 = arith.constant 1 : index
    %c1_75 = arith.constant 1 : index
    %c0_76 = arith.constant 0 : index
    %c0_77 = arith.constant 0 : index
    %86 = vector.load %arg6[%c0_73, %c1_74, %c1_75, %c0_76, %c0_77] : memref<1x3x4x1x16xf32, #tpu.memory_space<vmem>>, vector<1x1x1x1x16xf32>
    %87 = vector.shape_cast %86 : vector<1x1x1x1x16xf32> to vector<1x16xf32>
    %88 = vector.broadcast %87 : vector<1x16xf32> to vector<50x16xf32>
    %89 = arith.addf %85, %88 : vector<50x16xf32>
    %c0_78 = arith.constant 0 : index
    %c2_79 = arith.constant 2 : index
    %c1_80 = arith.constant 1 : index
    %c0_81 = arith.constant 0 : index
    %c0_82 = arith.constant 0 : index
    %90 = vector.load %arg5[%c0_78, %c2_79, %c1_80, %c0_81, %c0_82] : memref<1x3x4x64x16xbf16, #tpu.memory_space<vmem>>, vector<1x1x1x64x16xbf16>
    %91 = vector.shape_cast %90 : vector<1x1x1x64x16xbf16> to vector<64x16xbf16>
    %cst_83 = arith.constant dense<0.000000e+00> : vector<50x16xf32>
    %92 = tpu.matmul %29, %91, %cst_83 {dimension_numbers = #tpu.dot_dimension_numbers<[1], [0], [0], [1], [0, 0, 1, 1], [], []>} : vector<50x64xbf16>, vector<64x16xbf16>, vector<50x16xf32> -> vector<50x16xf32>
    %c0_84 = arith.constant 0 : index
    %c2_85 = arith.constant 2 : index
    %c1_86 = arith.constant 1 : index
    %c0_87 = arith.constant 0 : index
    %c0_88 = arith.constant 0 : index
    %93 = vector.load %arg6[%c0_84, %c2_85, %c1_86, %c0_87, %c0_88] : memref<1x3x4x1x16xf32, #tpu.memory_space<vmem>>, vector<1x1x1x1x16xf32>
    %94 = vector.shape_cast %93 : vector<1x1x1x1x16xf32> to vector<1x16xf32>
    %95 = vector.broadcast %94 : vector<1x16xf32> to vector<50x16xf32>
    %96 = arith.addf %92, %95 : vector<50x16xf32>
    %cst_89 = arith.constant 2.500000e-01 : f32
    %97 = vector.broadcast %cst_89 : f32 to vector<50x16xf32>
    %98 = arith.mulf %82, %97 : vector<50x16xf32>
    %99 = arith.truncf %98 : vector<50x16xf32> to vector<50x16xbf16>
    %100 = arith.truncf %89 : vector<50x16xf32> to vector<50x16xbf16>
    %cst_90 = arith.constant dense<0.000000e+00> : vector<50x50xf32>
    %101 = tpu.matmul %99, %100, %cst_90 {dimension_numbers = #tpu.dot_dimension_numbers<[1], [1], [0], [0], [0, 0, 1, 0], [], []>} : vector<50x16xbf16>, vector<50x16xbf16>, vector<50x50xf32> -> vector<50x50xf32>
    %102 = arith.addf %101, %4 : vector<50x50xf32>
    %cst_91 = arith.constant dense<0xFF800000> : vector<50xf32>
    %103 = vector.multi_reduction <maximumf>, %102, %cst_91 [1] : vector<50x50xf32> to vector<50xf32>
    %104 = vector.shape_cast %103 : vector<50xf32> to vector<50x1xf32>
    %105 = vector.broadcast %104 : vector<50x1xf32> to vector<50x50xf32>
    %106 = arith.subf %102, %105 : vector<50x50xf32>
    %107 = math.exp %106 : vector<50x50xf32>
    %cst_92 = arith.constant dense<0.000000e+00> : vector<50xf32>
    %108 = vector.multi_reduction <add>, %107, %cst_92 [1] : vector<50x50xf32> to vector<50xf32>
    %109 = vector.shape_cast %108 : vector<50xf32> to vector<50x1xf32>
    %110 = tpu.reciprocal %109 {approx = true} : vector<50x1xf32> -> vector<50x1xf32>
    %111 = vector.broadcast %110 : vector<50x1xf32> to vector<50x50xf32>
    %112 = arith.mulf %107, %111 : vector<50x50xf32>
    %113 = arith.truncf %112 : vector<50x50xf32> to vector<50x50xbf16>
    %114 = arith.truncf %96 : vector<50x16xf32> to vector<50x16xbf16>
    %cst_93 = arith.constant dense<0.000000e+00> : vector<50x16xf32>
    %115 = tpu.matmul %113, %114, %cst_93 {dimension_numbers = #tpu.dot_dimension_numbers<[1], [0], [0], [1], [0, 0, 1, 1], [], []>} : vector<50x50xbf16>, vector<50x16xbf16>, vector<50x16xf32> -> vector<50x16xf32>
    %c0_94 = arith.constant 0 : index
    %c1_95 = arith.constant 1 : index
    %c0_96 = arith.constant 0 : index
    %c0_97 = arith.constant 0 : index
    %116 = vector.load %arg7[%c0_94, %c1_95, %c0_96, %c0_97] : memref<1x4x16x64xbf16, #tpu.memory_space<vmem>>, vector<1x1x16x64xbf16>
    %117 = vector.shape_cast %116 : vector<1x1x16x64xbf16> to vector<16x64xbf16>
    %118 = arith.truncf %115 : vector<50x16xf32> to vector<50x16xbf16>
    %cst_98 = arith.constant dense<0.000000e+00> : vector<50x64xf32>
    %119 = tpu.matmul %118, %117, %cst_98 {dimension_numbers = #tpu.dot_dimension_numbers<[1], [0], [0], [1], [0, 0, 1, 1], [], []>} : vector<50x16xbf16>, vector<16x64xbf16>, vector<50x64xf32> -> vector<50x64xf32>
    %120 = arith.addf %75, %119 : vector<50x64xf32>
    %c0_99 = arith.constant 0 : index
    %c0_100 = arith.constant 0 : index
    %c2_101 = arith.constant 2 : index
    %c0_102 = arith.constant 0 : index
    %c0_103 = arith.constant 0 : index
    %121 = vector.load %arg5[%c0_99, %c0_100, %c2_101, %c0_102, %c0_103] : memref<1x3x4x64x16xbf16, #tpu.memory_space<vmem>>, vector<1x1x1x64x16xbf16>
    %122 = vector.shape_cast %121 : vector<1x1x1x64x16xbf16> to vector<64x16xbf16>
    %cst_104 = arith.constant dense<0.000000e+00> : vector<50x16xf32>
    %123 = tpu.matmul %29, %122, %cst_104 {dimension_numbers = #tpu.dot_dimension_numbers<[1], [0], [0], [1], [0, 0, 1, 1], [], []>} : vector<50x64xbf16>, vector<64x16xbf16>, vector<50x16xf32> -> vector<50x16xf32>
    %c0_105 = arith.constant 0 : index
    %c0_106 = arith.constant 0 : index
    %c2_107 = arith.constant 2 : index
    %c0_108 = arith.constant 0 : index
    %c0_109 = arith.constant 0 : index
    %124 = vector.load %arg6[%c0_105, %c0_106, %c2_107, %c0_108, %c0_109] : memref<1x3x4x1x16xf32, #tpu.memory_space<vmem>>, vector<1x1x1x1x16xf32>
    %125 = vector.shape_cast %124 : vector<1x1x1x1x16xf32> to vector<1x16xf32>
    %126 = vector.broadcast %125 : vector<1x16xf32> to vector<50x16xf32>
    %127 = arith.addf %123, %126 : vector<50x16xf32>
    %c0_110 = arith.constant 0 : index
    %c1_111 = arith.constant 1 : index
    %c2_112 = arith.constant 2 : index
    %c0_113 = arith.constant 0 : index
    %c0_114 = arith.constant 0 : index
    %128 = vector.load %arg5[%c0_110, %c1_111, %c2_112, %c0_113, %c0_114] : memref<1x3x4x64x16xbf16, #tpu.memory_space<vmem>>, vector<1x1x1x64x16xbf16>
    %129 = vector.shape_cast %128 : vector<1x1x1x64x16xbf16> to vector<64x16xbf16>
    %cst_115 = arith.constant dense<0.000000e+00> : vector<50x16xf32>
    %130 = tpu.matmul %29, %129, %cst_115 {dimension_numbers = #tpu.dot_dimension_numbers<[1], [0], [0], [1], [0, 0, 1, 1], [], []>} : vector<50x64xbf16>, vector<64x16xbf16>, vector<50x16xf32> -> vector<50x16xf32>
    %c0_116 = arith.constant 0 : index
    %c1_117 = arith.constant 1 : index
    %c2_118 = arith.constant 2 : index
    %c0_119 = arith.constant 0 : index
    %c0_120 = arith.constant 0 : index
    %131 = vector.load %arg6[%c0_116, %c1_117, %c2_118, %c0_119, %c0_120] : memref<1x3x4x1x16xf32, #tpu.memory_space<vmem>>, vector<1x1x1x1x16xf32>
    %132 = vector.shape_cast %131 : vector<1x1x1x1x16xf32> to vector<1x16xf32>
    %133 = vector.broadcast %132 : vector<1x16xf32> to vector<50x16xf32>
    %134 = arith.addf %130, %133 : vector<50x16xf32>
    %c0_121 = arith.constant 0 : index
    %c2_122 = arith.constant 2 : index
    %c2_123 = arith.constant 2 : index
    %c0_124 = arith.constant 0 : index
    %c0_125 = arith.constant 0 : index
    %135 = vector.load %arg5[%c0_121, %c2_122, %c2_123, %c0_124, %c0_125] : memref<1x3x4x64x16xbf16, #tpu.memory_space<vmem>>, vector<1x1x1x64x16xbf16>
    %136 = vector.shape_cast %135 : vector<1x1x1x64x16xbf16> to vector<64x16xbf16>
    %cst_126 = arith.constant dense<0.000000e+00> : vector<50x16xf32>
    %137 = tpu.matmul %29, %136, %cst_126 {dimension_numbers = #tpu.dot_dimension_numbers<[1], [0], [0], [1], [0, 0, 1, 1], [], []>} : vector<50x64xbf16>, vector<64x16xbf16>, vector<50x16xf32> -> vector<50x16xf32>
    %c0_127 = arith.constant 0 : index
    %c2_128 = arith.constant 2 : index
    %c2_129 = arith.constant 2 : index
    %c0_130 = arith.constant 0 : index
    %c0_131 = arith.constant 0 : index
    %138 = vector.load %arg6[%c0_127, %c2_128, %c2_129, %c0_130, %c0_131] : memref<1x3x4x1x16xf32, #tpu.memory_space<vmem>>, vector<1x1x1x1x16xf32>
    %139 = vector.shape_cast %138 : vector<1x1x1x1x16xf32> to vector<1x16xf32>
    %140 = vector.broadcast %139 : vector<1x16xf32> to vector<50x16xf32>
    %141 = arith.addf %137, %140 : vector<50x16xf32>
    %cst_132 = arith.constant 2.500000e-01 : f32
    %142 = vector.broadcast %cst_132 : f32 to vector<50x16xf32>
    %143 = arith.mulf %127, %142 : vector<50x16xf32>
    %144 = arith.truncf %143 : vector<50x16xf32> to vector<50x16xbf16>
    %145 = arith.truncf %134 : vector<50x16xf32> to vector<50x16xbf16>
    %cst_133 = arith.constant dense<0.000000e+00> : vector<50x50xf32>
    %146 = tpu.matmul %144, %145, %cst_133 {dimension_numbers = #tpu.dot_dimension_numbers<[1], [1], [0], [0], [0, 0, 1, 0], [], []>} : vector<50x16xbf16>, vector<50x16xbf16>, vector<50x50xf32> -> vector<50x50xf32>
    %147 = arith.addf %146, %4 : vector<50x50xf32>
    %cst_134 = arith.constant dense<0xFF800000> : vector<50xf32>
    %148 = vector.multi_reduction <maximumf>, %147, %cst_134 [1] : vector<50x50xf32> to vector<50xf32>
    %149 = vector.shape_cast %148 : vector<50xf32> to vector<50x1xf32>
    %150 = vector.broadcast %149 : vector<50x1xf32> to vector<50x50xf32>
    %151 = arith.subf %147, %150 : vector<50x50xf32>
    %152 = math.exp %151 : vector<50x50xf32>
    %cst_135 = arith.constant dense<0.000000e+00> : vector<50xf32>
    %153 = vector.multi_reduction <add>, %152, %cst_135 [1] : vector<50x50xf32> to vector<50xf32>
    %154 = vector.shape_cast %153 : vector<50xf32> to vector<50x1xf32>
    %155 = tpu.reciprocal %154 {approx = true} : vector<50x1xf32> -> vector<50x1xf32>
    %156 = vector.broadcast %155 : vector<50x1xf32> to vector<50x50xf32>
    %157 = arith.mulf %152, %156 : vector<50x50xf32>
    %158 = arith.truncf %157 : vector<50x50xf32> to vector<50x50xbf16>
    %159 = arith.truncf %141 : vector<50x16xf32> to vector<50x16xbf16>
    %cst_136 = arith.constant dense<0.000000e+00> : vector<50x16xf32>
    %160 = tpu.matmul %158, %159, %cst_136 {dimension_numbers = #tpu.dot_dimension_numbers<[1], [0], [0], [1], [0, 0, 1, 1], [], []>} : vector<50x50xbf16>, vector<50x16xbf16>, vector<50x16xf32> -> vector<50x16xf32>
    %c0_137 = arith.constant 0 : index
    %c2_138 = arith.constant 2 : index
    %c0_139 = arith.constant 0 : index
    %c0_140 = arith.constant 0 : index
    %161 = vector.load %arg7[%c0_137, %c2_138, %c0_139, %c0_140] : memref<1x4x16x64xbf16, #tpu.memory_space<vmem>>, vector<1x1x16x64xbf16>
    %162 = vector.shape_cast %161 : vector<1x1x16x64xbf16> to vector<16x64xbf16>
    %163 = arith.truncf %160 : vector<50x16xf32> to vector<50x16xbf16>
    %cst_141 = arith.constant dense<0.000000e+00> : vector<50x64xf32>
    %164 = tpu.matmul %163, %162, %cst_141 {dimension_numbers = #tpu.dot_dimension_numbers<[1], [0], [0], [1], [0, 0, 1, 1], [], []>} : vector<50x16xbf16>, vector<16x64xbf16>, vector<50x64xf32> -> vector<50x64xf32>
    %165 = arith.addf %120, %164 : vector<50x64xf32>
    %c0_142 = arith.constant 0 : index
    %c0_143 = arith.constant 0 : index
    %c3 = arith.constant 3 : index
    %c0_144 = arith.constant 0 : index
    %c0_145 = arith.constant 0 : index
    %166 = vector.load %arg5[%c0_142, %c0_143, %c3, %c0_144, %c0_145] : memref<1x3x4x64x16xbf16, #tpu.memory_space<vmem>>, vector<1x1x1x64x16xbf16>
    %167 = vector.shape_cast %166 : vector<1x1x1x64x16xbf16> to vector<64x16xbf16>
    %cst_146 = arith.constant dense<0.000000e+00> : vector<50x16xf32>
    %168 = tpu.matmul %29, %167, %cst_146 {dimension_numbers = #tpu.dot_dimension_numbers<[1], [0], [0], [1], [0, 0, 1, 1], [], []>} : vector<50x64xbf16>, vector<64x16xbf16>, vector<50x16xf32> -> vector<50x16xf32>
    %c0_147 = arith.constant 0 : index
    %c0_148 = arith.constant 0 : index
    %c3_149 = arith.constant 3 : index
    %c0_150 = arith.constant 0 : index
    %c0_151 = arith.constant 0 : index
    %169 = vector.load %arg6[%c0_147, %c0_148, %c3_149, %c0_150, %c0_151] : memref<1x3x4x1x16xf32, #tpu.memory_space<vmem>>, vector<1x1x1x1x16xf32>
    %170 = vector.shape_cast %169 : vector<1x1x1x1x16xf32> to vector<1x16xf32>
    %171 = vector.broadcast %170 : vector<1x16xf32> to vector<50x16xf32>
    %172 = arith.addf %168, %171 : vector<50x16xf32>
    %c0_152 = arith.constant 0 : index
    %c1_153 = arith.constant 1 : index
    %c3_154 = arith.constant 3 : index
    %c0_155 = arith.constant 0 : index
    %c0_156 = arith.constant 0 : index
    %173 = vector.load %arg5[%c0_152, %c1_153, %c3_154, %c0_155, %c0_156] : memref<1x3x4x64x16xbf16, #tpu.memory_space<vmem>>, vector<1x1x1x64x16xbf16>
    %174 = vector.shape_cast %173 : vector<1x1x1x64x16xbf16> to vector<64x16xbf16>
    %cst_157 = arith.constant dense<0.000000e+00> : vector<50x16xf32>
    %175 = tpu.matmul %29, %174, %cst_157 {dimension_numbers = #tpu.dot_dimension_numbers<[1], [0], [0], [1], [0, 0, 1, 1], [], []>} : vector<50x64xbf16>, vector<64x16xbf16>, vector<50x16xf32> -> vector<50x16xf32>
    %c0_158 = arith.constant 0 : index
    %c1_159 = arith.constant 1 : index
    %c3_160 = arith.constant 3 : index
    %c0_161 = arith.constant 0 : index
    %c0_162 = arith.constant 0 : index
    %176 = vector.load %arg6[%c0_158, %c1_159, %c3_160, %c0_161, %c0_162] : memref<1x3x4x1x16xf32, #tpu.memory_space<vmem>>, vector<1x1x1x1x16xf32>
    %177 = vector.shape_cast %176 : vector<1x1x1x1x16xf32> to vector<1x16xf32>
    %178 = vector.broadcast %177 : vector<1x16xf32> to vector<50x16xf32>
    %179 = arith.addf %175, %178 : vector<50x16xf32>
    %c0_163 = arith.constant 0 : index
    %c2_164 = arith.constant 2 : index
    %c3_165 = arith.constant 3 : index
    %c0_166 = arith.constant 0 : index
    %c0_167 = arith.constant 0 : index
    %180 = vector.load %arg5[%c0_163, %c2_164, %c3_165, %c0_166, %c0_167] : memref<1x3x4x64x16xbf16, #tpu.memory_space<vmem>>, vector<1x1x1x64x16xbf16>
    %181 = vector.shape_cast %180 : vector<1x1x1x64x16xbf16> to vector<64x16xbf16>
    %cst_168 = arith.constant dense<0.000000e+00> : vector<50x16xf32>
    %182 = tpu.matmul %29, %181, %cst_168 {dimension_numbers = #tpu.dot_dimension_numbers<[1], [0], [0], [1], [0, 0, 1, 1], [], []>} : vector<50x64xbf16>, vector<64x16xbf16>, vector<50x16xf32> -> vector<50x16xf32>
    %c0_169 = arith.constant 0 : index
    %c2_170 = arith.constant 2 : index
    %c3_171 = arith.constant 3 : index
    %c0_172 = arith.constant 0 : index
    %c0_173 = arith.constant 0 : index
    %183 = vector.load %arg6[%c0_169, %c2_170, %c3_171, %c0_172, %c0_173] : memref<1x3x4x1x16xf32, #tpu.memory_space<vmem>>, vector<1x1x1x1x16xf32>
    %184 = vector.shape_cast %183 : vector<1x1x1x1x16xf32> to vector<1x16xf32>
    %185 = vector.broadcast %184 : vector<1x16xf32> to vector<50x16xf32>
    %186 = arith.addf %182, %185 : vector<50x16xf32>
    %cst_174 = arith.constant 2.500000e-01 : f32
    %187 = vector.broadcast %cst_174 : f32 to vector<50x16xf32>
    %188 = arith.mulf %172, %187 : vector<50x16xf32>
    %189 = arith.truncf %188 : vector<50x16xf32> to vector<50x16xbf16>
    %190 = arith.truncf %179 : vector<50x16xf32> to vector<50x16xbf16>
    %cst_175 = arith.constant dense<0.000000e+00> : vector<50x50xf32>
    %191 = tpu.matmul %189, %190, %cst_175 {dimension_numbers = #tpu.dot_dimension_numbers<[1], [1], [0], [0], [0, 0, 1, 0], [], []>} : vector<50x16xbf16>, vector<50x16xbf16>, vector<50x50xf32> -> vector<50x50xf32>
    %192 = arith.addf %191, %4 : vector<50x50xf32>
    %cst_176 = arith.constant dense<0xFF800000> : vector<50xf32>
    %193 = vector.multi_reduction <maximumf>, %192, %cst_176 [1] : vector<50x50xf32> to vector<50xf32>
    %194 = vector.shape_cast %193 : vector<50xf32> to vector<50x1xf32>
    %195 = vector.broadcast %194 : vector<50x1xf32> to vector<50x50xf32>
    %196 = arith.subf %192, %195 : vector<50x50xf32>
    %197 = math.exp %196 : vector<50x50xf32>
    %cst_177 = arith.constant dense<0.000000e+00> : vector<50xf32>
    %198 = vector.multi_reduction <add>, %197, %cst_177 [1] : vector<50x50xf32> to vector<50xf32>
    %199 = vector.shape_cast %198 : vector<50xf32> to vector<50x1xf32>
    %200 = tpu.reciprocal %199 {approx = true} : vector<50x1xf32> -> vector<50x1xf32>
    %201 = vector.broadcast %200 : vector<50x1xf32> to vector<50x50xf32>
    %202 = arith.mulf %197, %201 : vector<50x50xf32>
    %203 = arith.truncf %202 : vector<50x50xf32> to vector<50x50xbf16>
    %204 = arith.truncf %186 : vector<50x16xf32> to vector<50x16xbf16>
    %cst_178 = arith.constant dense<0.000000e+00> : vector<50x16xf32>
    %205 = tpu.matmul %203, %204, %cst_178 {dimension_numbers = #tpu.dot_dimension_numbers<[1], [0], [0], [1], [0, 0, 1, 1], [], []>} : vector<50x50xbf16>, vector<50x16xbf16>, vector<50x16xf32> -> vector<50x16xf32>
    %c0_179 = arith.constant 0 : index
    %c3_180 = arith.constant 3 : index
    %c0_181 = arith.constant 0 : index
    %c0_182 = arith.constant 0 : index
    %206 = vector.load %arg7[%c0_179, %c3_180, %c0_181, %c0_182] : memref<1x4x16x64xbf16, #tpu.memory_space<vmem>>, vector<1x1x16x64xbf16>
    %207 = vector.shape_cast %206 : vector<1x1x16x64xbf16> to vector<16x64xbf16>
    %208 = arith.truncf %205 : vector<50x16xf32> to vector<50x16xbf16>
    %cst_183 = arith.constant dense<0.000000e+00> : vector<50x64xf32>
    %209 = tpu.matmul %208, %207, %cst_183 {dimension_numbers = #tpu.dot_dimension_numbers<[1], [0], [0], [1], [0, 0, 1, 1], [], []>} : vector<50x16xbf16>, vector<16x64xbf16>, vector<50x64xf32> -> vector<50x64xf32>
    %210 = arith.addf %165, %209 : vector<50x64xf32>
    %211 = arith.addf %3, %210 : vector<50x64xf32>
    %c0_184 = arith.constant 0 : index
    %c0_185 = arith.constant 0 : index
    %c0_186 = arith.constant 0 : index
    %212 = vector.load %arg8[%c0_184, %c0_185, %c0_186] : memref<1x1x64xf32, #tpu.memory_space<vmem>>, vector<1x1x64xf32>
    %213 = vector.shape_cast %212 : vector<1x1x64xf32> to vector<1x64xf32>
    %214 = vector.broadcast %213 : vector<1x64xf32> to vector<50x64xf32>
    %215 = arith.addf %211, %214 : vector<50x64xf32>
    %c0_187 = arith.constant 0 : index
    %c0_188 = arith.constant 0 : index
    %c0_189 = arith.constant 0 : index
    %216 = vector.load %arg9[%c0_187, %c0_188, %c0_189] : memref<1x1x64xf32, #tpu.memory_space<vmem>>, vector<1x1x64xf32>
    %217 = vector.shape_cast %216 : vector<1x1x64xf32> to vector<1x64xf32>
    %c0_190 = arith.constant 0 : index
    %c0_191 = arith.constant 0 : index
    %c0_192 = arith.constant 0 : index
    %218 = vector.load %arg10[%c0_190, %c0_191, %c0_192] : memref<1x1x64xf32, #tpu.memory_space<vmem>>, vector<1x1x64xf32>
    %219 = vector.shape_cast %218 : vector<1x1x64xf32> to vector<1x64xf32>
    %cst_193 = arith.constant dense<0.000000e+00> : vector<50xf32>
    %220 = vector.multi_reduction <add>, %215, %cst_193 [1] : vector<50x64xf32> to vector<50xf32>
    %221 = vector.shape_cast %220 : vector<50xf32> to vector<50x1xf32>
    %cst_194 = arith.constant 6.400000e+01 : f32
    %222 = vector.broadcast %cst_194 : f32 to vector<50x1xf32>
    %223 = arith.divf %221, %222 : vector<50x1xf32>
    %224 = vector.broadcast %223 : vector<50x1xf32> to vector<50x64xf32>
    %225 = arith.subf %215, %224 : vector<50x64xf32>
    %226 = arith.mulf %225, %225 : vector<50x64xf32>
    %cst_195 = arith.constant dense<0.000000e+00> : vector<50xf32>
    %227 = vector.multi_reduction <add>, %226, %cst_195 [1] : vector<50x64xf32> to vector<50xf32>
    %228 = vector.shape_cast %227 : vector<50xf32> to vector<50x1xf32>
    %cst_196 = arith.constant 6.400000e+01 : f32
    %229 = vector.broadcast %cst_196 : f32 to vector<50x1xf32>
    %230 = arith.divf %228, %229 : vector<50x1xf32>
    %cst_197 = arith.constant 9.99999997E-7 : f32
    %231 = vector.broadcast %cst_197 : f32 to vector<50x1xf32>
    %232 = arith.addf %230, %231 : vector<50x1xf32>
    %233 = math.rsqrt %232 : vector<50x1xf32>
    %234 = vector.broadcast %233 : vector<50x1xf32> to vector<50x64xf32>
    %235 = arith.mulf %225, %234 : vector<50x64xf32>
    %236 = vector.broadcast %217 : vector<1x64xf32> to vector<50x64xf32>
    %237 = arith.mulf %235, %236 : vector<50x64xf32>
    %238 = vector.broadcast %219 : vector<1x64xf32> to vector<50x64xf32>
    %239 = arith.addf %237, %238 : vector<50x64xf32>
    %c0_198 = arith.constant 0 : index
    %c0_199 = arith.constant 0 : index
    %c0_200 = arith.constant 0 : index
    %240 = vector.load %arg11[%c0_198, %c0_199, %c0_200] : memref<1x64x256xbf16, #tpu.memory_space<vmem>>, vector<1x64x256xbf16>
    %241 = vector.shape_cast %240 : vector<1x64x256xbf16> to vector<64x256xbf16>
    %242 = arith.truncf %239 : vector<50x64xf32> to vector<50x64xbf16>
    %cst_201 = arith.constant dense<0.000000e+00> : vector<50x256xf32>
    %243 = tpu.matmul %242, %241, %cst_201 {dimension_numbers = #tpu.dot_dimension_numbers<[1], [0], [0], [1], [0, 0, 1, 1], [], []>} : vector<50x64xbf16>, vector<64x256xbf16>, vector<50x256xf32> -> vector<50x256xf32>
    %c0_202 = arith.constant 0 : index
    %c0_203 = arith.constant 0 : index
    %c0_204 = arith.constant 0 : index
    %244 = vector.load %arg12[%c0_202, %c0_203, %c0_204] : memref<1x1x256xf32, #tpu.memory_space<vmem>>, vector<1x1x256xf32>
    %245 = vector.shape_cast %244 : vector<1x1x256xf32> to vector<1x256xf32>
    %246 = vector.broadcast %245 : vector<1x256xf32> to vector<50x256xf32>
    %247 = arith.addf %243, %246 : vector<50x256xf32>
    %248 = arith.mulf %247, %247 : vector<50x256xf32>
    %249 = arith.mulf %247, %248 : vector<50x256xf32>
    %cst_205 = arith.constant 4.471500e-02 : f32
    %250 = vector.broadcast %cst_205 : f32 to vector<50x256xf32>
    %251 = arith.mulf %250, %249 : vector<50x256xf32>
    %252 = arith.addf %247, %251 : vector<50x256xf32>
    %cst_206 = arith.constant 0.797884583 : f32
    %253 = vector.broadcast %cst_206 : f32 to vector<50x256xf32>
    %254 = arith.mulf %253, %252 : vector<50x256xf32>
    %255 = math.tanh %254 : vector<50x256xf32>
    %cst_207 = arith.constant 1.000000e+00 : f32
    %256 = vector.broadcast %cst_207 : f32 to vector<50x256xf32>
    %257 = arith.addf %256, %255 : vector<50x256xf32>
    %cst_208 = arith.constant 5.000000e-01 : f32
    %258 = vector.broadcast %cst_208 : f32 to vector<50x256xf32>
    %259 = arith.mulf %258, %257 : vector<50x256xf32>
    %260 = arith.mulf %247, %259 : vector<50x256xf32>
    %c0_209 = arith.constant 0 : index
    %c0_210 = arith.constant 0 : index
    %c0_211 = arith.constant 0 : index
    %261 = vector.load %arg13[%c0_209, %c0_210, %c0_211] : memref<1x256x64xbf16, #tpu.memory_space<vmem>>, vector<1x256x64xbf16>
    %262 = vector.shape_cast %261 : vector<1x256x64xbf16> to vector<256x64xbf16>
    %263 = arith.truncf %260 : vector<50x256xf32> to vector<50x256xbf16>
    %cst_212 = arith.constant dense<0.000000e+00> : vector<50x64xf32>
    %264 = tpu.matmul %263, %262, %cst_212 {dimension_numbers = #tpu.dot_dimension_numbers<[1], [0], [0], [1], [0, 0, 1, 1], [], []>} : vector<50x256xbf16>, vector<256x64xbf16>, vector<50x64xf32> -> vector<50x64xf32>
    %c0_213 = arith.constant 0 : index
    %c0_214 = arith.constant 0 : index
    %c0_215 = arith.constant 0 : index
    %265 = vector.load %arg14[%c0_213, %c0_214, %c0_215] : memref<1x1x64xf32, #tpu.memory_space<vmem>>, vector<1x1x64xf32>
    %266 = vector.shape_cast %265 : vector<1x1x64xf32> to vector<1x64xf32>
    %267 = vector.broadcast %266 : vector<1x64xf32> to vector<50x64xf32>
    %268 = arith.addf %264, %267 : vector<50x64xf32>
    %269 = arith.addf %215, %268 : vector<50x64xf32>
    %c0_216 = arith.constant 0 : index
    %c0_217 = arith.constant 0 : index
    %270 = vector.load %arg15[%c0_216, %c0_217] : memref<50x64xf32, #tpu.memory_space<vmem>>, vector<50x64xf32>
    tpu.vector_store %arg15[%c0_216, %c0_217], %269 {strides = array<i32>} : memref<50x64xf32, #tpu.memory_space<vmem>>, vector<50x64xf32>,
    return
  }
  func.func @transform_0(%arg0: i32) -> (i32, i32) {
    %c0_i32 = arith.constant 0 : i32
    %c0_i32_0 = arith.constant 0 : i32
    %c0_i32_1 = arith.constant 0 : i32
    return %c0_i32, %c0_i32_0 : i32, i32
  }
  func.func @transform_1(%arg0: i32) -> (i32, i32) {
    %c0_i32 = arith.constant 0 : i32
    %c0_i32_0 = arith.constant 0 : i32
    %c0_i32_1 = arith.constant 0 : i32
    return %c0_i32, %c0_i32_0 : i32, i32
  }
  func.func @transform_2(%arg0: i32) -> (i32, i32, i32) {
    %c0_i32 = arith.constant 0 : i32
    %c0_i32_0 = arith.constant 0 : i32
    %c0_i32_1 = arith.constant 0 : i32
    return %arg0, %c0_i32, %c0_i32_0 : i32, i32, i32
  }
  func.func @transform_3(%arg0: i32) -> (i32, i32, i32) {
    %c0_i32 = arith.constant 0 : i32
    %c0_i32_0 = arith.constant 0 : i32
    %c0_i32_1 = arith.constant 0 : i32
    return %arg0, %c0_i32, %c0_i32_0 : i32, i32, i32
  }
  func.func @transform_4(%arg0: i32) -> (i32, i32, i32, i32, i32) {
    %c0_i32 = arith.constant 0 : i32
    %c0_i32_0 = arith.constant 0 : i32
    %c0_i32_1 = arith.constant 0 : i32
    %c0_i32_2 = arith.constant 0 : i32
    %c0_i32_3 = arith.constant 0 : i32
    return %arg0, %c0_i32, %c0_i32_0, %c0_i32_1, %c0_i32_2 : i32, i32, i32, i32, i32
  }
  func.func @transform_5(%arg0: i32) -> (i32, i32, i32, i32, i32) {
    %c0_i32 = arith.constant 0 : i32
    %c0_i32_0 = arith.constant 0 : i32
    %c0_i32_1 = arith.constant 0 : i32
    %c0_i32_2 = arith.constant 0 : i32
    %c0_i32_3 = arith.constant 0 : i32
    return %arg0, %c0_i32, %c0_i32_0, %c0_i32_1, %c0_i32_2 : i32, i32, i32, i32, i32
  }
  func.func @transform_6(%arg0: i32) -> (i32, i32, i32, i32) {
    %c0_i32 = arith.constant 0 : i32
    %c0_i32_0 = arith.constant 0 : i32
    %c0_i32_1 = arith.constant 0 : i32
    %c0_i32_2 = arith.constant 0 : i32
    return %arg0, %c0_i32, %c0_i32_0, %c0_i32_1 : i32, i32, i32, i32
  }
  func.func @transform_7(%arg0: i32) -> (i32, i32, i32) {
    %c0_i32 = arith.constant 0 : i32
    %c0_i32_0 = arith.constant 0 : i32
    %c0_i32_1 = arith.constant 0 : i32
    return %arg0, %c0_i32, %c0_i32_0 : i32, i32, i32
  }
  func.func @transform_8(%arg0: i32) -> (i32, i32, i32) {
    %c0_i32 = arith.constant 0 : i32
    %c0_i32_0 = arith.constant 0 : i32
    %c0_i32_1 = arith.constant 0 : i32
    return %arg0, %c0_i32, %c0_i32_0 : i32, i32, i32
  }
  func.func @transform_9(%arg0: i32) -> (i32, i32, i32) {
    %c0_i32 = arith.constant 0 : i32
    %c0_i32_0 = arith.constant 0 : i32
    %c0_i32_1 = arith.constant 0 : i32
    return %arg0, %c0_i32, %c0_i32_0 : i32, i32, i32
  }
  func.func @transform_10(%arg0: i32) -> (i32, i32, i32) {
    %c0_i32 = arith.constant 0 : i32
    %c0_i32_0 = arith.constant 0 : i32
    %c0_i32_1 = arith.constant 0 : i32
    return %arg0, %c0_i32, %c0_i32_0 : i32, i32, i32
  }
  func.func @transform_11(%arg0: i32) -> (i32, i32, i32) {
    %c0_i32 = arith.constant 0 : i32
    %c0_i32_0 = arith.constant 0 : i32
    %c0_i32_1 = arith.constant 0 : i32
    return %arg0, %c0_i32, %c0_i32_0 : i32, i32, i32
  }
  func.func @transform_12(%arg0: i32) -> (i32, i32, i32) {
    %c0_i32 = arith.constant 0 : i32
    %c0_i32_0 = arith.constant 0 : i32
    %c0_i32_1 = arith.constant 0 : i32
    return %arg0, %c0_i32, %c0_i32_0 : i32, i32, i32
  }
  func.func @transform_13(%arg0: i32) -> (i32, i32, i32) {
    %c0_i32 = arith.constant 0 : i32
    %c0_i32_0 = arith.constant 0 : i32
    %c0_i32_1 = arith.constant 0 : i32
    return %arg0, %c0_i32, %c0_i32_0 : i32, i32, i32
  }
  func.func @transform_14(%arg0: i32) -> (i32, i32) {
    %c0_i32 = arith.constant 0 : i32
    %c0_i32_0 = arith.constant 0 : i32
    %c0_i32_1 = arith.constant 0 : i32
    return %c0_i32, %c0_i32_0 : i32, i32
  }
}

module attributes {stable_mosaic.version = 11 : i64} {
  func.func @_stack_kernel(%arg0: i32, %arg1: memref<10x64xf32, #tpu.memory_space<vmem>>, %arg2: memref<10x10xf32, #tpu.memory_space<vmem>>, %arg3: memref<1x1x64xf32, #tpu.memory_space<vmem>>, %arg4: memref<1x1x64xf32, #tpu.memory_space<vmem>>, %arg5: memref<1x3x4x64x16xbf16, #tpu.memory_space<vmem>>, %arg6: memref<1x3x4x1x16xf32, #tpu.memory_space<vmem>>, %arg7: memref<1x4x16x64xbf16, #tpu.memory_space<vmem>>, %arg8: memref<1x1x64xf32, #tpu.memory_space<vmem>>, %arg9: memref<1x1x64xf32, #tpu.memory_space<vmem>>, %arg10: memref<1x1x64xf32, #tpu.memory_space<vmem>>, %arg11: memref<1x64x64xbf16, #tpu.memory_space<vmem>>, %arg12: memref<1x1x64xf32, #tpu.memory_space<vmem>>, %arg13: memref<1x64x64xbf16, #tpu.memory_space<vmem>>, %arg14: memref<1x1x64xf32, #tpu.memory_space<vmem>>, %arg15: memref<10x64xf32, #tpu.memory_space<vmem>>) attributes {dimension_semantics = [#tpu.dimension_semantics<arbitrary>], iteration_bounds = array<i64: 1>, scalar_prefetch = 0 : i64, scratch_operands = 0 : i64, tpu.core_type = #tpu.core_type<tc>, window_params = [{pipeline_mode = #tpu.pipeline_mode<synchronous>, transform_indices = @transform_0, window_bounds = array<i64: 10, 64>}, {pipeline_mode = #tpu.pipeline_mode<synchronous>, transform_indices = @transform_1, window_bounds = array<i64: 10, 10>}, {transform_indices = @transform_2, window_bounds = array<i64: 1, 1, 64>}, {transform_indices = @transform_3, window_bounds = array<i64: 1, 1, 64>}, {transform_indices = @transform_4, window_bounds = array<i64: 1, 3, 4, 64, 16>}, {transform_indices = @transform_5, window_bounds = array<i64: 1, 3, 4, 1, 16>}, {transform_indices = @transform_6, window_bounds = array<i64: 1, 4, 16, 64>}, {transform_indices = @transform_7, window_bounds = array<i64: 1, 1, 64>}, {transform_indices = @transform_8, window_bounds = array<i64: 1, 1, 64>}, {transform_indices = @transform_9, window_bounds = array<i64: 1, 1, 64>}, {transform_indices = @transform_10, window_bounds = array<i64: 1, 64, 64>}, {transform_indices = @transform_11, window_bounds = array<i64: 1, 1, 64>}, {transform_indices = @transform_12, window_bounds = array<i64: 1, 64, 64>}, {transform_indices = @transform_13, window_bounds = array<i64: 1, 1, 64>}, {pipeline_mode = #tpu.pipeline_mode<synchronous>, transform_indices = @transform_14, window_bounds = array<i64: 10, 64>}]} {
    %c0_i32 = arith.constant 0 : i32
    %0 = arith.cmpi eq, %arg0, %c0_i32 : i32
    %1 = arith.extui %0 : i1 to i32
    %c0_i32_0 = arith.constant 0 : i32
    %2 = arith.cmpi ne, %1, %c0_i32_0 : i32
    scf.if %2 {
      %c0_218 = arith.constant 0 : index
      %c0_219 = arith.constant 0 : index
      %271 = vector.load %arg1[%c0_218, %c0_219] : memref<10x64xf32, #tpu.memory_space<vmem>>, vector<10x64xf32>
      %c0_220 = arith.constant 0 : index
      %c0_221 = arith.constant 0 : index
      %272 = vector.load %arg15[%c0_220, %c0_221] : memref<10x64xf32, #tpu.memory_space<vmem>>, vector<10x64xf32>
      tpu.vector_store %arg15[%c0_220, %c0_221], %271 {strides = array<i32>} : memref<10x64xf32, #tpu.memory_space<vmem>>, vector<10x64xf32>,
    } else {
    }
    %c0 = arith.constant 0 : index
    %c0_1 = arith.constant 0 : index
    %3 = vector.load %arg15[%c0, %c0_1] : memref<10x64xf32, #tpu.memory_space<vmem>>, vector<10x64xf32>
    %c0_2 = arith.constant 0 : index
    %c0_3 = arith.constant 0 : index
    %4 = vector.load %arg2[%c0_2, %c0_3] : memref<10x10xf32, #tpu.memory_space<vmem>>, vector<10x10xf32>
    %c0_4 = arith.constant 0 : index
    %c0_5 = arith.constant 0 : index
    %c0_6 = arith.constant 0 : index
    %5 = vector.load %arg3[%c0_4, %c0_5, %c0_6] : memref<1x1x64xf32, #tpu.memory_space<vmem>>, vector<1x1x64xf32>
    %6 = vector.shape_cast %5 : vector<1x1x64xf32> to vector<1x64xf32>
    %c0_7 = arith.constant 0 : index
    %c0_8 = arith.constant 0 : index
    %c0_9 = arith.constant 0 : index
    %7 = vector.load %arg4[%c0_7, %c0_8, %c0_9] : memref<1x1x64xf32, #tpu.memory_space<vmem>>, vector<1x1x64xf32>
    %8 = vector.shape_cast %7 : vector<1x1x64xf32> to vector<1x64xf32>
    %cst = arith.constant dense<0.000000e+00> : vector<10xf32>
    %9 = vector.multi_reduction <add>, %3, %cst [1] : vector<10x64xf32> to vector<10xf32>
    %10 = vector.shape_cast %9 : vector<10xf32> to vector<10x1xf32>
    %cst_10 = arith.constant 6.400000e+01 : f32
    %11 = vector.broadcast %cst_10 : f32 to vector<10x1xf32>
    %12 = arith.divf %10, %11 : vector<10x1xf32>
    %13 = vector.broadcast %12 : vector<10x1xf32> to vector<10x64xf32>
    %14 = arith.subf %3, %13 : vector<10x64xf32>
    %15 = arith.mulf %14, %14 : vector<10x64xf32>
    %cst_11 = arith.constant dense<0.000000e+00> : vector<10xf32>
    %16 = vector.multi_reduction <add>, %15, %cst_11 [1] : vector<10x64xf32> to vector<10xf32>
    %17 = vector.shape_cast %16 : vector<10xf32> to vector<10x1xf32>
    %cst_12 = arith.constant 6.400000e+01 : f32
    %18 = vector.broadcast %cst_12 : f32 to vector<10x1xf32>
    %19 = arith.divf %17, %18 : vector<10x1xf32>
    %cst_13 = arith.constant 9.99999997E-7 : f32
    %20 = vector.broadcast %cst_13 : f32 to vector<10x1xf32>
    %21 = arith.addf %19, %20 : vector<10x1xf32>
    %22 = math.rsqrt %21 : vector<10x1xf32>
    %23 = vector.broadcast %22 : vector<10x1xf32> to vector<10x64xf32>
    %24 = arith.mulf %14, %23 : vector<10x64xf32>
    %25 = vector.broadcast %6 : vector<1x64xf32> to vector<10x64xf32>
    %26 = arith.mulf %24, %25 : vector<10x64xf32>
    %27 = vector.broadcast %8 : vector<1x64xf32> to vector<10x64xf32>
    %28 = arith.addf %26, %27 : vector<10x64xf32>
    %29 = arith.truncf %28 : vector<10x64xf32> to vector<10x64xbf16>
    %cst_14 = arith.constant 0.000000e+00 : f32
    %30 = vector.broadcast %cst_14 : f32 to vector<10x64xf32>
    %c0_15 = arith.constant 0 : index
    %c0_16 = arith.constant 0 : index
    %c0_17 = arith.constant 0 : index
    %c0_18 = arith.constant 0 : index
    %c0_19 = arith.constant 0 : index
    %31 = vector.load %arg5[%c0_15, %c0_16, %c0_17, %c0_18, %c0_19] : memref<1x3x4x64x16xbf16, #tpu.memory_space<vmem>>, vector<1x1x1x64x16xbf16>
    %32 = vector.shape_cast %31 : vector<1x1x1x64x16xbf16> to vector<64x16xbf16>
    %cst_20 = arith.constant dense<0.000000e+00> : vector<10x16xf32>
    %33 = tpu.matmul %29, %32, %cst_20 {dimension_numbers = #tpu.dot_dimension_numbers<[1], [0], [0], [1], [0, 0, 1, 1], [], []>} : vector<10x64xbf16>, vector<64x16xbf16>, vector<10x16xf32> -> vector<10x16xf32>
    %c0_21 = arith.constant 0 : index
    %c0_22 = arith.constant 0 : index
    %c0_23 = arith.constant 0 : index
    %c0_24 = arith.constant 0 : index
    %c0_25 = arith.constant 0 : index
    %34 = vector.load %arg6[%c0_21, %c0_22, %c0_23, %c0_24, %c0_25] : memref<1x3x4x1x16xf32, #tpu.memory_space<vmem>>, vector<1x1x1x1x16xf32>
    %35 = vector.shape_cast %34 : vector<1x1x1x1x16xf32> to vector<1x16xf32>
    %36 = vector.broadcast %35 : vector<1x16xf32> to vector<10x16xf32>
    %37 = arith.addf %33, %36 : vector<10x16xf32>
    %c0_26 = arith.constant 0 : index
    %c1 = arith.constant 1 : index
    %c0_27 = arith.constant 0 : index
    %c0_28 = arith.constant 0 : index
    %c0_29 = arith.constant 0 : index
    %38 = vector.load %arg5[%c0_26, %c1, %c0_27, %c0_28, %c0_29] : memref<1x3x4x64x16xbf16, #tpu.memory_space<vmem>>, vector<1x1x1x64x16xbf16>
    %39 = vector.shape_cast %38 : vector<1x1x1x64x16xbf16> to vector<64x16xbf16>
    %cst_30 = arith.constant dense<0.000000e+00> : vector<10x16xf32>
    %40 = tpu.matmul %29, %39, %cst_30 {dimension_numbers = #tpu.dot_dimension_numbers<[1], [0], [0], [1], [0, 0, 1, 1], [], []>} : vector<10x64xbf16>, vector<64x16xbf16>, vector<10x16xf32> -> vector<10x16xf32>
    %c0_31 = arith.constant 0 : index
    %c1_32 = arith.constant 1 : index
    %c0_33 = arith.constant 0 : index
    %c0_34 = arith.constant 0 : index
    %c0_35 = arith.constant 0 : index
    %41 = vector.load %arg6[%c0_31, %c1_32, %c0_33, %c0_34, %c0_35] : memref<1x3x4x1x16xf32, #tpu.memory_space<vmem>>, vector<1x1x1x1x16xf32>
    %42 = vector.shape_cast %41 : vector<1x1x1x1x16xf32> to vector<1x16xf32>
    %43 = vector.broadcast %42 : vector<1x16xf32> to vector<10x16xf32>
    %44 = arith.addf %40, %43 : vector<10x16xf32>
    %c0_36 = arith.constant 0 : index
    %c2 = arith.constant 2 : index
    %c0_37 = arith.constant 0 : index
    %c0_38 = arith.constant 0 : index
    %c0_39 = arith.constant 0 : index
    %45 = vector.load %arg5[%c0_36, %c2, %c0_37, %c0_38, %c0_39] : memref<1x3x4x64x16xbf16, #tpu.memory_space<vmem>>, vector<1x1x1x64x16xbf16>
    %46 = vector.shape_cast %45 : vector<1x1x1x64x16xbf16> to vector<64x16xbf16>
    %cst_40 = arith.constant dense<0.000000e+00> : vector<10x16xf32>
    %47 = tpu.matmul %29, %46, %cst_40 {dimension_numbers = #tpu.dot_dimension_numbers<[1], [0], [0], [1], [0, 0, 1, 1], [], []>} : vector<10x64xbf16>, vector<64x16xbf16>, vector<10x16xf32> -> vector<10x16xf32>
    %c0_41 = arith.constant 0 : index
    %c2_42 = arith.constant 2 : index
    %c0_43 = arith.constant 0 : index
    %c0_44 = arith.constant 0 : index
    %c0_45 = arith.constant 0 : index
    %48 = vector.load %arg6[%c0_41, %c2_42, %c0_43, %c0_44, %c0_45] : memref<1x3x4x1x16xf32, #tpu.memory_space<vmem>>, vector<1x1x1x1x16xf32>
    %49 = vector.shape_cast %48 : vector<1x1x1x1x16xf32> to vector<1x16xf32>
    %50 = vector.broadcast %49 : vector<1x16xf32> to vector<10x16xf32>
    %51 = arith.addf %47, %50 : vector<10x16xf32>
    %cst_46 = arith.constant 2.500000e-01 : f32
    %52 = vector.broadcast %cst_46 : f32 to vector<10x16xf32>
    %53 = arith.mulf %37, %52 : vector<10x16xf32>
    %54 = arith.truncf %53 : vector<10x16xf32> to vector<10x16xbf16>
    %55 = arith.truncf %44 : vector<10x16xf32> to vector<10x16xbf16>
    %cst_47 = arith.constant dense<0.000000e+00> : vector<10x10xf32>
    %56 = tpu.matmul %54, %55, %cst_47 {dimension_numbers = #tpu.dot_dimension_numbers<[1], [1], [0], [0], [0, 0, 1, 0], [], []>} : vector<10x16xbf16>, vector<10x16xbf16>, vector<10x10xf32> -> vector<10x10xf32>
    %57 = arith.addf %56, %4 : vector<10x10xf32>
    %cst_48 = arith.constant dense<0xFF800000> : vector<10xf32>
    %58 = vector.multi_reduction <maximumf>, %57, %cst_48 [1] : vector<10x10xf32> to vector<10xf32>
    %59 = vector.shape_cast %58 : vector<10xf32> to vector<10x1xf32>
    %60 = vector.broadcast %59 : vector<10x1xf32> to vector<10x10xf32>
    %61 = arith.subf %57, %60 : vector<10x10xf32>
    %62 = math.exp %61 : vector<10x10xf32>
    %cst_49 = arith.constant dense<0.000000e+00> : vector<10xf32>
    %63 = vector.multi_reduction <add>, %62, %cst_49 [1] : vector<10x10xf32> to vector<10xf32>
    %64 = vector.shape_cast %63 : vector<10xf32> to vector<10x1xf32>
    %65 = tpu.reciprocal %64 {approx = true} : vector<10x1xf32> -> vector<10x1xf32>
    %66 = vector.broadcast %65 : vector<10x1xf32> to vector<10x10xf32>
    %67 = arith.mulf %62, %66 : vector<10x10xf32>
    %68 = arith.truncf %67 : vector<10x10xf32> to vector<10x10xbf16>
    %69 = arith.truncf %51 : vector<10x16xf32> to vector<10x16xbf16>
    %cst_50 = arith.constant dense<0.000000e+00> : vector<10x16xf32>
    %70 = tpu.matmul %68, %69, %cst_50 {dimension_numbers = #tpu.dot_dimension_numbers<[1], [0], [0], [1], [0, 0, 1, 1], [], []>} : vector<10x10xbf16>, vector<10x16xbf16>, vector<10x16xf32> -> vector<10x16xf32>
    %c0_51 = arith.constant 0 : index
    %c0_52 = arith.constant 0 : index
    %c0_53 = arith.constant 0 : index
    %c0_54 = arith.constant 0 : index
    %71 = vector.load %arg7[%c0_51, %c0_52, %c0_53, %c0_54] : memref<1x4x16x64xbf16, #tpu.memory_space<vmem>>, vector<1x1x16x64xbf16>
    %72 = vector.shape_cast %71 : vector<1x1x16x64xbf16> to vector<16x64xbf16>
    %73 = arith.truncf %70 : vector<10x16xf32> to vector<10x16xbf16>
    %cst_55 = arith.constant dense<0.000000e+00> : vector<10x64xf32>
    %74 = tpu.matmul %73, %72, %cst_55 {dimension_numbers = #tpu.dot_dimension_numbers<[1], [0], [0], [1], [0, 0, 1, 1], [], []>} : vector<10x16xbf16>, vector<16x64xbf16>, vector<10x64xf32> -> vector<10x64xf32>
    %75 = arith.addf %30, %74 : vector<10x64xf32>
    %c0_56 = arith.constant 0 : index
    %c0_57 = arith.constant 0 : index
    %c1_58 = arith.constant 1 : index
    %c0_59 = arith.constant 0 : index
    %c0_60 = arith.constant 0 : index
    %76 = vector.load %arg5[%c0_56, %c0_57, %c1_58, %c0_59, %c0_60] : memref<1x3x4x64x16xbf16, #tpu.memory_space<vmem>>, vector<1x1x1x64x16xbf16>
    %77 = vector.shape_cast %76 : vector<1x1x1x64x16xbf16> to vector<64x16xbf16>
    %cst_61 = arith.constant dense<0.000000e+00> : vector<10x16xf32>
    %78 = tpu.matmul %29, %77, %cst_61 {dimension_numbers = #tpu.dot_dimension_numbers<[1], [0], [0], [1], [0, 0, 1, 1], [], []>} : vector<10x64xbf16>, vector<64x16xbf16>, vector<10x16xf32> -> vector<10x16xf32>
    %c0_62 = arith.constant 0 : index
    %c0_63 = arith.constant 0 : index
    %c1_64 = arith.constant 1 : index
    %c0_65 = arith.constant 0 : index
    %c0_66 = arith.constant 0 : index
    %79 = vector.load %arg6[%c0_62, %c0_63, %c1_64, %c0_65, %c0_66] : memref<1x3x4x1x16xf32, #tpu.memory_space<vmem>>, vector<1x1x1x1x16xf32>
    %80 = vector.shape_cast %79 : vector<1x1x1x1x16xf32> to vector<1x16xf32>
    %81 = vector.broadcast %80 : vector<1x16xf32> to vector<10x16xf32>
    %82 = arith.addf %78, %81 : vector<10x16xf32>
    %c0_67 = arith.constant 0 : index
    %c1_68 = arith.constant 1 : index
    %c1_69 = arith.constant 1 : index
    %c0_70 = arith.constant 0 : index
    %c0_71 = arith.constant 0 : index
    %83 = vector.load %arg5[%c0_67, %c1_68, %c1_69, %c0_70, %c0_71] : memref<1x3x4x64x16xbf16, #tpu.memory_space<vmem>>, vector<1x1x1x64x16xbf16>
    %84 = vector.shape_cast %83 : vector<1x1x1x64x16xbf16> to vector<64x16xbf16>
    %cst_72 = arith.constant dense<0.000000e+00> : vector<10x16xf32>
    %85 = tpu.matmul %29, %84, %cst_72 {dimension_numbers = #tpu.dot_dimension_numbers<[1], [0], [0], [1], [0, 0, 1, 1], [], []>} : vector<10x64xbf16>, vector<64x16xbf16>, vector<10x16xf32> -> vector<10x16xf32>
    %c0_73 = arith.constant 0 : index
    %c1_74 = arith.constant 1 : index
    %c1_75 = arith.constant 1 : index
    %c0_76 = arith.constant 0 : index
    %c0_77 = arith.constant 0 : index
    %86 = vector.load %arg6[%c0_73, %c1_74, %c1_75, %c0_76, %c0_77] : memref<1x3x4x1x16xf32, #tpu.memory_space<vmem>>, vector<1x1x1x1x16xf32>
    %87 = vector.shape_cast %86 : vector<1x1x1x1x16xf32> to vector<1x16xf32>
    %88 = vector.broadcast %87 : vector<1x16xf32> to vector<10x16xf32>
    %89 = arith.addf %85, %88 : vector<10x16xf32>
    %c0_78 = arith.constant 0 : index
    %c2_79 = arith.constant 2 : index
    %c1_80 = arith.constant 1 : index
    %c0_81 = arith.constant 0 : index
    %c0_82 = arith.constant 0 : index
    %90 = vector.load %arg5[%c0_78, %c2_79, %c1_80, %c0_81, %c0_82] : memref<1x3x4x64x16xbf16, #tpu.memory_space<vmem>>, vector<1x1x1x64x16xbf16>
    %91 = vector.shape_cast %90 : vector<1x1x1x64x16xbf16> to vector<64x16xbf16>
    %cst_83 = arith.constant dense<0.000000e+00> : vector<10x16xf32>
    %92 = tpu.matmul %29, %91, %cst_83 {dimension_numbers = #tpu.dot_dimension_numbers<[1], [0], [0], [1], [0, 0, 1, 1], [], []>} : vector<10x64xbf16>, vector<64x16xbf16>, vector<10x16xf32> -> vector<10x16xf32>
    %c0_84 = arith.constant 0 : index
    %c2_85 = arith.constant 2 : index
    %c1_86 = arith.constant 1 : index
    %c0_87 = arith.constant 0 : index
    %c0_88 = arith.constant 0 : index
    %93 = vector.load %arg6[%c0_84, %c2_85, %c1_86, %c0_87, %c0_88] : memref<1x3x4x1x16xf32, #tpu.memory_space<vmem>>, vector<1x1x1x1x16xf32>
    %94 = vector.shape_cast %93 : vector<1x1x1x1x16xf32> to vector<1x16xf32>
    %95 = vector.broadcast %94 : vector<1x16xf32> to vector<10x16xf32>
    %96 = arith.addf %92, %95 : vector<10x16xf32>
    %cst_89 = arith.constant 2.500000e-01 : f32
    %97 = vector.broadcast %cst_89 : f32 to vector<10x16xf32>
    %98 = arith.mulf %82, %97 : vector<10x16xf32>
    %99 = arith.truncf %98 : vector<10x16xf32> to vector<10x16xbf16>
    %100 = arith.truncf %89 : vector<10x16xf32> to vector<10x16xbf16>
    %cst_90 = arith.constant dense<0.000000e+00> : vector<10x10xf32>
    %101 = tpu.matmul %99, %100, %cst_90 {dimension_numbers = #tpu.dot_dimension_numbers<[1], [1], [0], [0], [0, 0, 1, 0], [], []>} : vector<10x16xbf16>, vector<10x16xbf16>, vector<10x10xf32> -> vector<10x10xf32>
    %102 = arith.addf %101, %4 : vector<10x10xf32>
    %cst_91 = arith.constant dense<0xFF800000> : vector<10xf32>
    %103 = vector.multi_reduction <maximumf>, %102, %cst_91 [1] : vector<10x10xf32> to vector<10xf32>
    %104 = vector.shape_cast %103 : vector<10xf32> to vector<10x1xf32>
    %105 = vector.broadcast %104 : vector<10x1xf32> to vector<10x10xf32>
    %106 = arith.subf %102, %105 : vector<10x10xf32>
    %107 = math.exp %106 : vector<10x10xf32>
    %cst_92 = arith.constant dense<0.000000e+00> : vector<10xf32>
    %108 = vector.multi_reduction <add>, %107, %cst_92 [1] : vector<10x10xf32> to vector<10xf32>
    %109 = vector.shape_cast %108 : vector<10xf32> to vector<10x1xf32>
    %110 = tpu.reciprocal %109 {approx = true} : vector<10x1xf32> -> vector<10x1xf32>
    %111 = vector.broadcast %110 : vector<10x1xf32> to vector<10x10xf32>
    %112 = arith.mulf %107, %111 : vector<10x10xf32>
    %113 = arith.truncf %112 : vector<10x10xf32> to vector<10x10xbf16>
    %114 = arith.truncf %96 : vector<10x16xf32> to vector<10x16xbf16>
    %cst_93 = arith.constant dense<0.000000e+00> : vector<10x16xf32>
    %115 = tpu.matmul %113, %114, %cst_93 {dimension_numbers = #tpu.dot_dimension_numbers<[1], [0], [0], [1], [0, 0, 1, 1], [], []>} : vector<10x10xbf16>, vector<10x16xbf16>, vector<10x16xf32> -> vector<10x16xf32>
    %c0_94 = arith.constant 0 : index
    %c1_95 = arith.constant 1 : index
    %c0_96 = arith.constant 0 : index
    %c0_97 = arith.constant 0 : index
    %116 = vector.load %arg7[%c0_94, %c1_95, %c0_96, %c0_97] : memref<1x4x16x64xbf16, #tpu.memory_space<vmem>>, vector<1x1x16x64xbf16>
    %117 = vector.shape_cast %116 : vector<1x1x16x64xbf16> to vector<16x64xbf16>
    %118 = arith.truncf %115 : vector<10x16xf32> to vector<10x16xbf16>
    %cst_98 = arith.constant dense<0.000000e+00> : vector<10x64xf32>
    %119 = tpu.matmul %118, %117, %cst_98 {dimension_numbers = #tpu.dot_dimension_numbers<[1], [0], [0], [1], [0, 0, 1, 1], [], []>} : vector<10x16xbf16>, vector<16x64xbf16>, vector<10x64xf32> -> vector<10x64xf32>
    %120 = arith.addf %75, %119 : vector<10x64xf32>
    %c0_99 = arith.constant 0 : index
    %c0_100 = arith.constant 0 : index
    %c2_101 = arith.constant 2 : index
    %c0_102 = arith.constant 0 : index
    %c0_103 = arith.constant 0 : index
    %121 = vector.load %arg5[%c0_99, %c0_100, %c2_101, %c0_102, %c0_103] : memref<1x3x4x64x16xbf16, #tpu.memory_space<vmem>>, vector<1x1x1x64x16xbf16>
    %122 = vector.shape_cast %121 : vector<1x1x1x64x16xbf16> to vector<64x16xbf16>
    %cst_104 = arith.constant dense<0.000000e+00> : vector<10x16xf32>
    %123 = tpu.matmul %29, %122, %cst_104 {dimension_numbers = #tpu.dot_dimension_numbers<[1], [0], [0], [1], [0, 0, 1, 1], [], []>} : vector<10x64xbf16>, vector<64x16xbf16>, vector<10x16xf32> -> vector<10x16xf32>
    %c0_105 = arith.constant 0 : index
    %c0_106 = arith.constant 0 : index
    %c2_107 = arith.constant 2 : index
    %c0_108 = arith.constant 0 : index
    %c0_109 = arith.constant 0 : index
    %124 = vector.load %arg6[%c0_105, %c0_106, %c2_107, %c0_108, %c0_109] : memref<1x3x4x1x16xf32, #tpu.memory_space<vmem>>, vector<1x1x1x1x16xf32>
    %125 = vector.shape_cast %124 : vector<1x1x1x1x16xf32> to vector<1x16xf32>
    %126 = vector.broadcast %125 : vector<1x16xf32> to vector<10x16xf32>
    %127 = arith.addf %123, %126 : vector<10x16xf32>
    %c0_110 = arith.constant 0 : index
    %c1_111 = arith.constant 1 : index
    %c2_112 = arith.constant 2 : index
    %c0_113 = arith.constant 0 : index
    %c0_114 = arith.constant 0 : index
    %128 = vector.load %arg5[%c0_110, %c1_111, %c2_112, %c0_113, %c0_114] : memref<1x3x4x64x16xbf16, #tpu.memory_space<vmem>>, vector<1x1x1x64x16xbf16>
    %129 = vector.shape_cast %128 : vector<1x1x1x64x16xbf16> to vector<64x16xbf16>
    %cst_115 = arith.constant dense<0.000000e+00> : vector<10x16xf32>
    %130 = tpu.matmul %29, %129, %cst_115 {dimension_numbers = #tpu.dot_dimension_numbers<[1], [0], [0], [1], [0, 0, 1, 1], [], []>} : vector<10x64xbf16>, vector<64x16xbf16>, vector<10x16xf32> -> vector<10x16xf32>
    %c0_116 = arith.constant 0 : index
    %c1_117 = arith.constant 1 : index
    %c2_118 = arith.constant 2 : index
    %c0_119 = arith.constant 0 : index
    %c0_120 = arith.constant 0 : index
    %131 = vector.load %arg6[%c0_116, %c1_117, %c2_118, %c0_119, %c0_120] : memref<1x3x4x1x16xf32, #tpu.memory_space<vmem>>, vector<1x1x1x1x16xf32>
    %132 = vector.shape_cast %131 : vector<1x1x1x1x16xf32> to vector<1x16xf32>
    %133 = vector.broadcast %132 : vector<1x16xf32> to vector<10x16xf32>
    %134 = arith.addf %130, %133 : vector<10x16xf32>
    %c0_121 = arith.constant 0 : index
    %c2_122 = arith.constant 2 : index
    %c2_123 = arith.constant 2 : index
    %c0_124 = arith.constant 0 : index
    %c0_125 = arith.constant 0 : index
    %135 = vector.load %arg5[%c0_121, %c2_122, %c2_123, %c0_124, %c0_125] : memref<1x3x4x64x16xbf16, #tpu.memory_space<vmem>>, vector<1x1x1x64x16xbf16>
    %136 = vector.shape_cast %135 : vector<1x1x1x64x16xbf16> to vector<64x16xbf16>
    %cst_126 = arith.constant dense<0.000000e+00> : vector<10x16xf32>
    %137 = tpu.matmul %29, %136, %cst_126 {dimension_numbers = #tpu.dot_dimension_numbers<[1], [0], [0], [1], [0, 0, 1, 1], [], []>} : vector<10x64xbf16>, vector<64x16xbf16>, vector<10x16xf32> -> vector<10x16xf32>
    %c0_127 = arith.constant 0 : index
    %c2_128 = arith.constant 2 : index
    %c2_129 = arith.constant 2 : index
    %c0_130 = arith.constant 0 : index
    %c0_131 = arith.constant 0 : index
    %138 = vector.load %arg6[%c0_127, %c2_128, %c2_129, %c0_130, %c0_131] : memref<1x3x4x1x16xf32, #tpu.memory_space<vmem>>, vector<1x1x1x1x16xf32>
    %139 = vector.shape_cast %138 : vector<1x1x1x1x16xf32> to vector<1x16xf32>
    %140 = vector.broadcast %139 : vector<1x16xf32> to vector<10x16xf32>
    %141 = arith.addf %137, %140 : vector<10x16xf32>
    %cst_132 = arith.constant 2.500000e-01 : f32
    %142 = vector.broadcast %cst_132 : f32 to vector<10x16xf32>
    %143 = arith.mulf %127, %142 : vector<10x16xf32>
    %144 = arith.truncf %143 : vector<10x16xf32> to vector<10x16xbf16>
    %145 = arith.truncf %134 : vector<10x16xf32> to vector<10x16xbf16>
    %cst_133 = arith.constant dense<0.000000e+00> : vector<10x10xf32>
    %146 = tpu.matmul %144, %145, %cst_133 {dimension_numbers = #tpu.dot_dimension_numbers<[1], [1], [0], [0], [0, 0, 1, 0], [], []>} : vector<10x16xbf16>, vector<10x16xbf16>, vector<10x10xf32> -> vector<10x10xf32>
    %147 = arith.addf %146, %4 : vector<10x10xf32>
    %cst_134 = arith.constant dense<0xFF800000> : vector<10xf32>
    %148 = vector.multi_reduction <maximumf>, %147, %cst_134 [1] : vector<10x10xf32> to vector<10xf32>
    %149 = vector.shape_cast %148 : vector<10xf32> to vector<10x1xf32>
    %150 = vector.broadcast %149 : vector<10x1xf32> to vector<10x10xf32>
    %151 = arith.subf %147, %150 : vector<10x10xf32>
    %152 = math.exp %151 : vector<10x10xf32>
    %cst_135 = arith.constant dense<0.000000e+00> : vector<10xf32>
    %153 = vector.multi_reduction <add>, %152, %cst_135 [1] : vector<10x10xf32> to vector<10xf32>
    %154 = vector.shape_cast %153 : vector<10xf32> to vector<10x1xf32>
    %155 = tpu.reciprocal %154 {approx = true} : vector<10x1xf32> -> vector<10x1xf32>
    %156 = vector.broadcast %155 : vector<10x1xf32> to vector<10x10xf32>
    %157 = arith.mulf %152, %156 : vector<10x10xf32>
    %158 = arith.truncf %157 : vector<10x10xf32> to vector<10x10xbf16>
    %159 = arith.truncf %141 : vector<10x16xf32> to vector<10x16xbf16>
    %cst_136 = arith.constant dense<0.000000e+00> : vector<10x16xf32>
    %160 = tpu.matmul %158, %159, %cst_136 {dimension_numbers = #tpu.dot_dimension_numbers<[1], [0], [0], [1], [0, 0, 1, 1], [], []>} : vector<10x10xbf16>, vector<10x16xbf16>, vector<10x16xf32> -> vector<10x16xf32>
    %c0_137 = arith.constant 0 : index
    %c2_138 = arith.constant 2 : index
    %c0_139 = arith.constant 0 : index
    %c0_140 = arith.constant 0 : index
    %161 = vector.load %arg7[%c0_137, %c2_138, %c0_139, %c0_140] : memref<1x4x16x64xbf16, #tpu.memory_space<vmem>>, vector<1x1x16x64xbf16>
    %162 = vector.shape_cast %161 : vector<1x1x16x64xbf16> to vector<16x64xbf16>
    %163 = arith.truncf %160 : vector<10x16xf32> to vector<10x16xbf16>
    %cst_141 = arith.constant dense<0.000000e+00> : vector<10x64xf32>
    %164 = tpu.matmul %163, %162, %cst_141 {dimension_numbers = #tpu.dot_dimension_numbers<[1], [0], [0], [1], [0, 0, 1, 1], [], []>} : vector<10x16xbf16>, vector<16x64xbf16>, vector<10x64xf32> -> vector<10x64xf32>
    %165 = arith.addf %120, %164 : vector<10x64xf32>
    %c0_142 = arith.constant 0 : index
    %c0_143 = arith.constant 0 : index
    %c3 = arith.constant 3 : index
    %c0_144 = arith.constant 0 : index
    %c0_145 = arith.constant 0 : index
    %166 = vector.load %arg5[%c0_142, %c0_143, %c3, %c0_144, %c0_145] : memref<1x3x4x64x16xbf16, #tpu.memory_space<vmem>>, vector<1x1x1x64x16xbf16>
    %167 = vector.shape_cast %166 : vector<1x1x1x64x16xbf16> to vector<64x16xbf16>
    %cst_146 = arith.constant dense<0.000000e+00> : vector<10x16xf32>
    %168 = tpu.matmul %29, %167, %cst_146 {dimension_numbers = #tpu.dot_dimension_numbers<[1], [0], [0], [1], [0, 0, 1, 1], [], []>} : vector<10x64xbf16>, vector<64x16xbf16>, vector<10x16xf32> -> vector<10x16xf32>
    %c0_147 = arith.constant 0 : index
    %c0_148 = arith.constant 0 : index
    %c3_149 = arith.constant 3 : index
    %c0_150 = arith.constant 0 : index
    %c0_151 = arith.constant 0 : index
    %169 = vector.load %arg6[%c0_147, %c0_148, %c3_149, %c0_150, %c0_151] : memref<1x3x4x1x16xf32, #tpu.memory_space<vmem>>, vector<1x1x1x1x16xf32>
    %170 = vector.shape_cast %169 : vector<1x1x1x1x16xf32> to vector<1x16xf32>
    %171 = vector.broadcast %170 : vector<1x16xf32> to vector<10x16xf32>
    %172 = arith.addf %168, %171 : vector<10x16xf32>
    %c0_152 = arith.constant 0 : index
    %c1_153 = arith.constant 1 : index
    %c3_154 = arith.constant 3 : index
    %c0_155 = arith.constant 0 : index
    %c0_156 = arith.constant 0 : index
    %173 = vector.load %arg5[%c0_152, %c1_153, %c3_154, %c0_155, %c0_156] : memref<1x3x4x64x16xbf16, #tpu.memory_space<vmem>>, vector<1x1x1x64x16xbf16>
    %174 = vector.shape_cast %173 : vector<1x1x1x64x16xbf16> to vector<64x16xbf16>
    %cst_157 = arith.constant dense<0.000000e+00> : vector<10x16xf32>
    %175 = tpu.matmul %29, %174, %cst_157 {dimension_numbers = #tpu.dot_dimension_numbers<[1], [0], [0], [1], [0, 0, 1, 1], [], []>} : vector<10x64xbf16>, vector<64x16xbf16>, vector<10x16xf32> -> vector<10x16xf32>
    %c0_158 = arith.constant 0 : index
    %c1_159 = arith.constant 1 : index
    %c3_160 = arith.constant 3 : index
    %c0_161 = arith.constant 0 : index
    %c0_162 = arith.constant 0 : index
    %176 = vector.load %arg6[%c0_158, %c1_159, %c3_160, %c0_161, %c0_162] : memref<1x3x4x1x16xf32, #tpu.memory_space<vmem>>, vector<1x1x1x1x16xf32>
    %177 = vector.shape_cast %176 : vector<1x1x1x1x16xf32> to vector<1x16xf32>
    %178 = vector.broadcast %177 : vector<1x16xf32> to vector<10x16xf32>
    %179 = arith.addf %175, %178 : vector<10x16xf32>
    %c0_163 = arith.constant 0 : index
    %c2_164 = arith.constant 2 : index
    %c3_165 = arith.constant 3 : index
    %c0_166 = arith.constant 0 : index
    %c0_167 = arith.constant 0 : index
    %180 = vector.load %arg5[%c0_163, %c2_164, %c3_165, %c0_166, %c0_167] : memref<1x3x4x64x16xbf16, #tpu.memory_space<vmem>>, vector<1x1x1x64x16xbf16>
    %181 = vector.shape_cast %180 : vector<1x1x1x64x16xbf16> to vector<64x16xbf16>
    %cst_168 = arith.constant dense<0.000000e+00> : vector<10x16xf32>
    %182 = tpu.matmul %29, %181, %cst_168 {dimension_numbers = #tpu.dot_dimension_numbers<[1], [0], [0], [1], [0, 0, 1, 1], [], []>} : vector<10x64xbf16>, vector<64x16xbf16>, vector<10x16xf32> -> vector<10x16xf32>
    %c0_169 = arith.constant 0 : index
    %c2_170 = arith.constant 2 : index
    %c3_171 = arith.constant 3 : index
    %c0_172 = arith.constant 0 : index
    %c0_173 = arith.constant 0 : index
    %183 = vector.load %arg6[%c0_169, %c2_170, %c3_171, %c0_172, %c0_173] : memref<1x3x4x1x16xf32, #tpu.memory_space<vmem>>, vector<1x1x1x1x16xf32>
    %184 = vector.shape_cast %183 : vector<1x1x1x1x16xf32> to vector<1x16xf32>
    %185 = vector.broadcast %184 : vector<1x16xf32> to vector<10x16xf32>
    %186 = arith.addf %182, %185 : vector<10x16xf32>
    %cst_174 = arith.constant 2.500000e-01 : f32
    %187 = vector.broadcast %cst_174 : f32 to vector<10x16xf32>
    %188 = arith.mulf %172, %187 : vector<10x16xf32>
    %189 = arith.truncf %188 : vector<10x16xf32> to vector<10x16xbf16>
    %190 = arith.truncf %179 : vector<10x16xf32> to vector<10x16xbf16>
    %cst_175 = arith.constant dense<0.000000e+00> : vector<10x10xf32>
    %191 = tpu.matmul %189, %190, %cst_175 {dimension_numbers = #tpu.dot_dimension_numbers<[1], [1], [0], [0], [0, 0, 1, 0], [], []>} : vector<10x16xbf16>, vector<10x16xbf16>, vector<10x10xf32> -> vector<10x10xf32>
    %192 = arith.addf %191, %4 : vector<10x10xf32>
    %cst_176 = arith.constant dense<0xFF800000> : vector<10xf32>
    %193 = vector.multi_reduction <maximumf>, %192, %cst_176 [1] : vector<10x10xf32> to vector<10xf32>
    %194 = vector.shape_cast %193 : vector<10xf32> to vector<10x1xf32>
    %195 = vector.broadcast %194 : vector<10x1xf32> to vector<10x10xf32>
    %196 = arith.subf %192, %195 : vector<10x10xf32>
    %197 = math.exp %196 : vector<10x10xf32>
    %cst_177 = arith.constant dense<0.000000e+00> : vector<10xf32>
    %198 = vector.multi_reduction <add>, %197, %cst_177 [1] : vector<10x10xf32> to vector<10xf32>
    %199 = vector.shape_cast %198 : vector<10xf32> to vector<10x1xf32>
    %200 = tpu.reciprocal %199 {approx = true} : vector<10x1xf32> -> vector<10x1xf32>
    %201 = vector.broadcast %200 : vector<10x1xf32> to vector<10x10xf32>
    %202 = arith.mulf %197, %201 : vector<10x10xf32>
    %203 = arith.truncf %202 : vector<10x10xf32> to vector<10x10xbf16>
    %204 = arith.truncf %186 : vector<10x16xf32> to vector<10x16xbf16>
    %cst_178 = arith.constant dense<0.000000e+00> : vector<10x16xf32>
    %205 = tpu.matmul %203, %204, %cst_178 {dimension_numbers = #tpu.dot_dimension_numbers<[1], [0], [0], [1], [0, 0, 1, 1], [], []>} : vector<10x10xbf16>, vector<10x16xbf16>, vector<10x16xf32> -> vector<10x16xf32>
    %c0_179 = arith.constant 0 : index
    %c3_180 = arith.constant 3 : index
    %c0_181 = arith.constant 0 : index
    %c0_182 = arith.constant 0 : index
    %206 = vector.load %arg7[%c0_179, %c3_180, %c0_181, %c0_182] : memref<1x4x16x64xbf16, #tpu.memory_space<vmem>>, vector<1x1x16x64xbf16>
    %207 = vector.shape_cast %206 : vector<1x1x16x64xbf16> to vector<16x64xbf16>
    %208 = arith.truncf %205 : vector<10x16xf32> to vector<10x16xbf16>
    %cst_183 = arith.constant dense<0.000000e+00> : vector<10x64xf32>
    %209 = tpu.matmul %208, %207, %cst_183 {dimension_numbers = #tpu.dot_dimension_numbers<[1], [0], [0], [1], [0, 0, 1, 1], [], []>} : vector<10x16xbf16>, vector<16x64xbf16>, vector<10x64xf32> -> vector<10x64xf32>
    %210 = arith.addf %165, %209 : vector<10x64xf32>
    %211 = arith.addf %3, %210 : vector<10x64xf32>
    %c0_184 = arith.constant 0 : index
    %c0_185 = arith.constant 0 : index
    %c0_186 = arith.constant 0 : index
    %212 = vector.load %arg8[%c0_184, %c0_185, %c0_186] : memref<1x1x64xf32, #tpu.memory_space<vmem>>, vector<1x1x64xf32>
    %213 = vector.shape_cast %212 : vector<1x1x64xf32> to vector<1x64xf32>
    %214 = vector.broadcast %213 : vector<1x64xf32> to vector<10x64xf32>
    %215 = arith.addf %211, %214 : vector<10x64xf32>
    %c0_187 = arith.constant 0 : index
    %c0_188 = arith.constant 0 : index
    %c0_189 = arith.constant 0 : index
    %216 = vector.load %arg9[%c0_187, %c0_188, %c0_189] : memref<1x1x64xf32, #tpu.memory_space<vmem>>, vector<1x1x64xf32>
    %217 = vector.shape_cast %216 : vector<1x1x64xf32> to vector<1x64xf32>
    %c0_190 = arith.constant 0 : index
    %c0_191 = arith.constant 0 : index
    %c0_192 = arith.constant 0 : index
    %218 = vector.load %arg10[%c0_190, %c0_191, %c0_192] : memref<1x1x64xf32, #tpu.memory_space<vmem>>, vector<1x1x64xf32>
    %219 = vector.shape_cast %218 : vector<1x1x64xf32> to vector<1x64xf32>
    %cst_193 = arith.constant dense<0.000000e+00> : vector<10xf32>
    %220 = vector.multi_reduction <add>, %215, %cst_193 [1] : vector<10x64xf32> to vector<10xf32>
    %221 = vector.shape_cast %220 : vector<10xf32> to vector<10x1xf32>
    %cst_194 = arith.constant 6.400000e+01 : f32
    %222 = vector.broadcast %cst_194 : f32 to vector<10x1xf32>
    %223 = arith.divf %221, %222 : vector<10x1xf32>
    %224 = vector.broadcast %223 : vector<10x1xf32> to vector<10x64xf32>
    %225 = arith.subf %215, %224 : vector<10x64xf32>
    %226 = arith.mulf %225, %225 : vector<10x64xf32>
    %cst_195 = arith.constant dense<0.000000e+00> : vector<10xf32>
    %227 = vector.multi_reduction <add>, %226, %cst_195 [1] : vector<10x64xf32> to vector<10xf32>
    %228 = vector.shape_cast %227 : vector<10xf32> to vector<10x1xf32>
    %cst_196 = arith.constant 6.400000e+01 : f32
    %229 = vector.broadcast %cst_196 : f32 to vector<10x1xf32>
    %230 = arith.divf %228, %229 : vector<10x1xf32>
    %cst_197 = arith.constant 9.99999997E-7 : f32
    %231 = vector.broadcast %cst_197 : f32 to vector<10x1xf32>
    %232 = arith.addf %230, %231 : vector<10x1xf32>
    %233 = math.rsqrt %232 : vector<10x1xf32>
    %234 = vector.broadcast %233 : vector<10x1xf32> to vector<10x64xf32>
    %235 = arith.mulf %225, %234 : vector<10x64xf32>
    %236 = vector.broadcast %217 : vector<1x64xf32> to vector<10x64xf32>
    %237 = arith.mulf %235, %236 : vector<10x64xf32>
    %238 = vector.broadcast %219 : vector<1x64xf32> to vector<10x64xf32>
    %239 = arith.addf %237, %238 : vector<10x64xf32>
    %c0_198 = arith.constant 0 : index
    %c0_199 = arith.constant 0 : index
    %c0_200 = arith.constant 0 : index
    %240 = vector.load %arg11[%c0_198, %c0_199, %c0_200] : memref<1x64x64xbf16, #tpu.memory_space<vmem>>, vector<1x64x64xbf16>
    %241 = vector.shape_cast %240 : vector<1x64x64xbf16> to vector<64x64xbf16>
    %242 = arith.truncf %239 : vector<10x64xf32> to vector<10x64xbf16>
    %cst_201 = arith.constant dense<0.000000e+00> : vector<10x64xf32>
    %243 = tpu.matmul %242, %241, %cst_201 {dimension_numbers = #tpu.dot_dimension_numbers<[1], [0], [0], [1], [0, 0, 1, 1], [], []>} : vector<10x64xbf16>, vector<64x64xbf16>, vector<10x64xf32> -> vector<10x64xf32>
    %c0_202 = arith.constant 0 : index
    %c0_203 = arith.constant 0 : index
    %c0_204 = arith.constant 0 : index
    %244 = vector.load %arg12[%c0_202, %c0_203, %c0_204] : memref<1x1x64xf32, #tpu.memory_space<vmem>>, vector<1x1x64xf32>
    %245 = vector.shape_cast %244 : vector<1x1x64xf32> to vector<1x64xf32>
    %246 = vector.broadcast %245 : vector<1x64xf32> to vector<10x64xf32>
    %247 = arith.addf %243, %246 : vector<10x64xf32>
    %248 = arith.mulf %247, %247 : vector<10x64xf32>
    %249 = arith.mulf %247, %248 : vector<10x64xf32>
    %cst_205 = arith.constant 4.471500e-02 : f32
    %250 = vector.broadcast %cst_205 : f32 to vector<10x64xf32>
    %251 = arith.mulf %250, %249 : vector<10x64xf32>
    %252 = arith.addf %247, %251 : vector<10x64xf32>
    %cst_206 = arith.constant 0.797884583 : f32
    %253 = vector.broadcast %cst_206 : f32 to vector<10x64xf32>
    %254 = arith.mulf %253, %252 : vector<10x64xf32>
    %255 = math.tanh %254 : vector<10x64xf32>
    %cst_207 = arith.constant 1.000000e+00 : f32
    %256 = vector.broadcast %cst_207 : f32 to vector<10x64xf32>
    %257 = arith.addf %256, %255 : vector<10x64xf32>
    %cst_208 = arith.constant 5.000000e-01 : f32
    %258 = vector.broadcast %cst_208 : f32 to vector<10x64xf32>
    %259 = arith.mulf %258, %257 : vector<10x64xf32>
    %260 = arith.mulf %247, %259 : vector<10x64xf32>
    %c0_209 = arith.constant 0 : index
    %c0_210 = arith.constant 0 : index
    %c0_211 = arith.constant 0 : index
    %261 = vector.load %arg13[%c0_209, %c0_210, %c0_211] : memref<1x64x64xbf16, #tpu.memory_space<vmem>>, vector<1x64x64xbf16>
    %262 = vector.shape_cast %261 : vector<1x64x64xbf16> to vector<64x64xbf16>
    %263 = arith.truncf %260 : vector<10x64xf32> to vector<10x64xbf16>
    %cst_212 = arith.constant dense<0.000000e+00> : vector<10x64xf32>
    %264 = tpu.matmul %263, %262, %cst_212 {dimension_numbers = #tpu.dot_dimension_numbers<[1], [0], [0], [1], [0, 0, 1, 1], [], []>} : vector<10x64xbf16>, vector<64x64xbf16>, vector<10x64xf32> -> vector<10x64xf32>
    %c0_213 = arith.constant 0 : index
    %c0_214 = arith.constant 0 : index
    %c0_215 = arith.constant 0 : index
    %265 = vector.load %arg14[%c0_213, %c0_214, %c0_215] : memref<1x1x64xf32, #tpu.memory_space<vmem>>, vector<1x1x64xf32>
    %266 = vector.shape_cast %265 : vector<1x1x64xf32> to vector<1x64xf32>
    %267 = vector.broadcast %266 : vector<1x64xf32> to vector<10x64xf32>
    %268 = arith.addf %264, %267 : vector<10x64xf32>
    %269 = arith.addf %215, %268 : vector<10x64xf32>
    %c0_216 = arith.constant 0 : index
    %c0_217 = arith.constant 0 : index
    %270 = vector.load %arg15[%c0_216, %c0_217] : memref<10x64xf32, #tpu.memory_space<vmem>>, vector<10x64xf32>
    tpu.vector_store %arg15[%c0_216, %c0_217], %269 {strides = array<i32>} : memref<10x64xf32, #tpu.memory_space<vmem>>, vector<10x64xf32>,
    return
  }
  func.func @transform_0(%arg0: i32) -> (i32, i32) {
    %c0_i32 = arith.constant 0 : i32
    %c0_i32_0 = arith.constant 0 : i32
    %c0_i32_1 = arith.constant 0 : i32
    return %c0_i32, %c0_i32_0 : i32, i32
  }
  func.func @transform_1(%arg0: i32) -> (i32, i32) {
    %c0_i32 = arith.constant 0 : i32
    %c0_i32_0 = arith.constant 0 : i32
    %c0_i32_1 = arith.constant 0 : i32
    return %c0_i32, %c0_i32_0 : i32, i32
  }
  func.func @transform_2(%arg0: i32) -> (i32, i32, i32) {
    %c0_i32 = arith.constant 0 : i32
    %c0_i32_0 = arith.constant 0 : i32
    %c0_i32_1 = arith.constant 0 : i32
    return %arg0, %c0_i32, %c0_i32_0 : i32, i32, i32
  }
  func.func @transform_3(%arg0: i32) -> (i32, i32, i32) {
    %c0_i32 = arith.constant 0 : i32
    %c0_i32_0 = arith.constant 0 : i32
    %c0_i32_1 = arith.constant 0 : i32
    return %arg0, %c0_i32, %c0_i32_0 : i32, i32, i32
  }
  func.func @transform_4(%arg0: i32) -> (i32, i32, i32, i32, i32) {
    %c0_i32 = arith.constant 0 : i32
    %c0_i32_0 = arith.constant 0 : i32
    %c0_i32_1 = arith.constant 0 : i32
    %c0_i32_2 = arith.constant 0 : i32
    %c0_i32_3 = arith.constant 0 : i32
    return %arg0, %c0_i32, %c0_i32_0, %c0_i32_1, %c0_i32_2 : i32, i32, i32, i32, i32
  }
  func.func @transform_5(%arg0: i32) -> (i32, i32, i32, i32, i32) {
    %c0_i32 = arith.constant 0 : i32
    %c0_i32_0 = arith.constant 0 : i32
    %c0_i32_1 = arith.constant 0 : i32
    %c0_i32_2 = arith.constant 0 : i32
    %c0_i32_3 = arith.constant 0 : i32
    return %arg0, %c0_i32, %c0_i32_0, %c0_i32_1, %c0_i32_2 : i32, i32, i32, i32, i32
  }
  func.func @transform_6(%arg0: i32) -> (i32, i32, i32, i32) {
    %c0_i32 = arith.constant 0 : i32
    %c0_i32_0 = arith.constant 0 : i32
    %c0_i32_1 = arith.constant 0 : i32
    %c0_i32_2 = arith.constant 0 : i32
    return %arg0, %c0_i32, %c0_i32_0, %c0_i32_1 : i32, i32, i32, i32
  }
  func.func @transform_7(%arg0: i32) -> (i32, i32, i32) {
    %c0_i32 = arith.constant 0 : i32
    %c0_i32_0 = arith.constant 0 : i32
    %c0_i32_1 = arith.constant 0 : i32
    return %arg0, %c0_i32, %c0_i32_0 : i32, i32, i32
  }
  func.func @transform_8(%arg0: i32) -> (i32, i32, i32) {
    %c0_i32 = arith.constant 0 : i32
    %c0_i32_0 = arith.constant 0 : i32
    %c0_i32_1 = arith.constant 0 : i32
    return %arg0, %c0_i32, %c0_i32_0 : i32, i32, i32
  }
  func.func @transform_9(%arg0: i32) -> (i32, i32, i32) {
    %c0_i32 = arith.constant 0 : i32
    %c0_i32_0 = arith.constant 0 : i32
    %c0_i32_1 = arith.constant 0 : i32
    return %arg0, %c0_i32, %c0_i32_0 : i32, i32, i32
  }
  func.func @transform_10(%arg0: i32) -> (i32, i32, i32) {
    %c0_i32 = arith.constant 0 : i32
    %c0_i32_0 = arith.constant 0 : i32
    %c0_i32_1 = arith.constant 0 : i32
    return %arg0, %c0_i32, %c0_i32_0 : i32, i32, i32
  }
  func.func @transform_11(%arg0: i32) -> (i32, i32, i32) {
    %c0_i32 = arith.constant 0 : i32
    %c0_i32_0 = arith.constant 0 : i32
    %c0_i32_1 = arith.constant 0 : i32
    return %arg0, %c0_i32, %c0_i32_0 : i32, i32, i32
  }
  func.func @transform_12(%arg0: i32) -> (i32, i32, i32) {
    %c0_i32 = arith.constant 0 : i32
    %c0_i32_0 = arith.constant 0 : i32
    %c0_i32_1 = arith.constant 0 : i32
    return %arg0, %c0_i32, %c0_i32_0 : i32, i32, i32
  }
  func.func @transform_13(%arg0: i32) -> (i32, i32, i32) {
    %c0_i32 = arith.constant 0 : i32
    %c0_i32_0 = arith.constant 0 : i32
    %c0_i32_1 = arith.constant 0 : i32
    return %arg0, %c0_i32, %c0_i32_0 : i32, i32, i32
  }
  func.func @transform_14(%arg0: i32) -> (i32, i32) {
    %c0_i32 = arith.constant 0 : i32
    %c0_i32_0 = arith.constant 0 : i32
    %c0_i32_1 = arith.constant 0 : i32
    return %c0_i32, %c0_i32_0 : i32, i32
  }
}

module attributes {stable_mosaic.version = 11 : i64} {
  func.func @_epilogue_kernel(%arg0: i32, %arg1: memref<10x64xf32, #tpu.memory_space<vmem>>, %arg2: memref<1x64xf32, #tpu.memory_space<vmem>>, %arg3: memref<1x64xf32, #tpu.memory_space<vmem>>, %arg4: memref<2x10xf32, #tpu.memory_space<vmem>>, %arg5: memref<3x64x32xf32, #tpu.memory_space<vmem>>, %arg6: memref<3x1x32xf32, #tpu.memory_space<vmem>>, %arg7: memref<3x32x16xf32, #tpu.memory_space<vmem>>, %arg8: memref<3x1x16xf32, #tpu.memory_space<vmem>>, %arg9: memref<3x16x5xf32, #tpu.memory_space<vmem>>, %arg10: memref<3x1x5xf32, #tpu.memory_space<vmem>>, %arg11: memref<3x2x5xf32, #tpu.memory_space<vmem>>) attributes {dimension_semantics = [#tpu.dimension_semantics<arbitrary>], iteration_bounds = array<i64: 1>, scalar_prefetch = 0 : i64, scratch_operands = 0 : i64, tpu.core_type = #tpu.core_type<tc>, window_params = [{pipeline_mode = #tpu.pipeline_mode<synchronous>, transform_indices = @transform_0, window_bounds = array<i64: 10, 64>}, {pipeline_mode = #tpu.pipeline_mode<synchronous>, transform_indices = @transform_1, window_bounds = array<i64: 1, 64>}, {pipeline_mode = #tpu.pipeline_mode<synchronous>, transform_indices = @transform_2, window_bounds = array<i64: 1, 64>}, {pipeline_mode = #tpu.pipeline_mode<synchronous>, transform_indices = @transform_3, window_bounds = array<i64: 2, 10>}, {pipeline_mode = #tpu.pipeline_mode<synchronous>, transform_indices = @transform_4, window_bounds = array<i64: 3, 64, 32>}, {pipeline_mode = #tpu.pipeline_mode<synchronous>, transform_indices = @transform_5, window_bounds = array<i64: 3, 1, 32>}, {pipeline_mode = #tpu.pipeline_mode<synchronous>, transform_indices = @transform_6, window_bounds = array<i64: 3, 32, 16>}, {pipeline_mode = #tpu.pipeline_mode<synchronous>, transform_indices = @transform_7, window_bounds = array<i64: 3, 1, 16>}, {pipeline_mode = #tpu.pipeline_mode<synchronous>, transform_indices = @transform_8, window_bounds = array<i64: 3, 16, 5>}, {pipeline_mode = #tpu.pipeline_mode<synchronous>, transform_indices = @transform_9, window_bounds = array<i64: 3, 1, 5>}, {pipeline_mode = #tpu.pipeline_mode<synchronous>, transform_indices = @transform_10, window_bounds = array<i64: 3, 2, 5>}]} {
    %c0 = arith.constant 0 : index
    %c0_0 = arith.constant 0 : index
    %0 = vector.load %arg1[%c0, %c0_0] : memref<10x64xf32, #tpu.memory_space<vmem>>, vector<10x64xf32>
    %c0_1 = arith.constant 0 : index
    %c0_2 = arith.constant 0 : index
    %1 = vector.load %arg2[%c0_1, %c0_2] : memref<1x64xf32, #tpu.memory_space<vmem>>, vector<1x64xf32>
    %c0_3 = arith.constant 0 : index
    %c0_4 = arith.constant 0 : index
    %2 = vector.load %arg3[%c0_3, %c0_4] : memref<1x64xf32, #tpu.memory_space<vmem>>, vector<1x64xf32>
    %cst = arith.constant dense<0.000000e+00> : vector<10xf32>
    %3 = vector.multi_reduction <add>, %0, %cst [1] : vector<10x64xf32> to vector<10xf32>
    %4 = vector.shape_cast %3 : vector<10xf32> to vector<10x1xf32>
    %cst_5 = arith.constant 6.400000e+01 : f32
    %5 = vector.broadcast %cst_5 : f32 to vector<10x1xf32>
    %6 = arith.divf %4, %5 : vector<10x1xf32>
    %7 = vector.broadcast %6 : vector<10x1xf32> to vector<10x64xf32>
    %8 = arith.subf %0, %7 : vector<10x64xf32>
    %9 = arith.mulf %8, %8 : vector<10x64xf32>
    %cst_6 = arith.constant dense<0.000000e+00> : vector<10xf32>
    %10 = vector.multi_reduction <add>, %9, %cst_6 [1] : vector<10x64xf32> to vector<10xf32>
    %11 = vector.shape_cast %10 : vector<10xf32> to vector<10x1xf32>
    %cst_7 = arith.constant 6.400000e+01 : f32
    %12 = vector.broadcast %cst_7 : f32 to vector<10x1xf32>
    %13 = arith.divf %11, %12 : vector<10x1xf32>
    %cst_8 = arith.constant 9.99999997E-7 : f32
    %14 = vector.broadcast %cst_8 : f32 to vector<10x1xf32>
    %15 = arith.addf %13, %14 : vector<10x1xf32>
    %16 = math.rsqrt %15 : vector<10x1xf32>
    %17 = vector.broadcast %16 : vector<10x1xf32> to vector<10x64xf32>
    %18 = arith.mulf %8, %17 : vector<10x64xf32>
    %19 = vector.broadcast %1 : vector<1x64xf32> to vector<10x64xf32>
    %20 = arith.mulf %18, %19 : vector<10x64xf32>
    %21 = vector.broadcast %2 : vector<1x64xf32> to vector<10x64xf32>
    %22 = arith.addf %20, %21 : vector<10x64xf32>
    %c0_9 = arith.constant 0 : index
    %c0_10 = arith.constant 0 : index
    %23 = vector.load %arg4[%c0_9, %c0_10] : memref<2x10xf32, #tpu.memory_space<vmem>>, vector<2x10xf32>
    %cst_11 = arith.constant dense<0.000000e+00> : vector<2x64xf32>
    %24 = tpu.matmul %23, %22, %cst_11 {dimension_numbers = #tpu.dot_dimension_numbers<[1], [0], [0], [1], [0, 0, 1, 1], [], []>} : vector<2x10xf32>, vector<10x64xf32>, vector<2x64xf32> -> vector<2x64xf32>
    %c0_12 = arith.constant 0 : index
    %c0_13 = arith.constant 0 : index
    %c0_14 = arith.constant 0 : index
    %25 = vector.load %arg5[%c0_12, %c0_13, %c0_14] : memref<3x64x32xf32, #tpu.memory_space<vmem>>, vector<1x64x32xf32>
    %26 = vector.shape_cast %25 : vector<1x64x32xf32> to vector<64x32xf32>
    %cst_15 = arith.constant dense<0.000000e+00> : vector<2x32xf32>
    %27 = tpu.matmul %24, %26, %cst_15 {dimension_numbers = #tpu.dot_dimension_numbers<[1], [0], [0], [1], [0, 0, 1, 1], [], []>} : vector<2x64xf32>, vector<64x32xf32>, vector<2x32xf32> -> vector<2x32xf32>
    %c0_16 = arith.constant 0 : index
    %c0_17 = arith.constant 0 : index
    %c0_18 = arith.constant 0 : index
    %28 = vector.load %arg6[%c0_16, %c0_17, %c0_18] : memref<3x1x32xf32, #tpu.memory_space<vmem>>, vector<1x1x32xf32>
    %29 = vector.shape_cast %28 : vector<1x1x32xf32> to vector<1x32xf32>
    %30 = vector.broadcast %29 : vector<1x32xf32> to vector<2x32xf32>
    %31 = arith.addf %27, %30 : vector<2x32xf32>
    %32 = arith.mulf %31, %31 : vector<2x32xf32>
    %33 = arith.mulf %31, %32 : vector<2x32xf32>
    %cst_19 = arith.constant 4.471500e-02 : f32
    %34 = vector.broadcast %cst_19 : f32 to vector<2x32xf32>
    %35 = arith.mulf %34, %33 : vector<2x32xf32>
    %36 = arith.addf %31, %35 : vector<2x32xf32>
    %cst_20 = arith.constant 0.797884583 : f32
    %37 = vector.broadcast %cst_20 : f32 to vector<2x32xf32>
    %38 = arith.mulf %37, %36 : vector<2x32xf32>
    %39 = math.tanh %38 : vector<2x32xf32>
    %cst_21 = arith.constant 1.000000e+00 : f32
    %40 = vector.broadcast %cst_21 : f32 to vector<2x32xf32>
    %41 = arith.addf %40, %39 : vector<2x32xf32>
    %cst_22 = arith.constant 5.000000e-01 : f32
    %42 = vector.broadcast %cst_22 : f32 to vector<2x32xf32>
    %43 = arith.mulf %42, %41 : vector<2x32xf32>
    %44 = arith.mulf %31, %43 : vector<2x32xf32>
    %c0_23 = arith.constant 0 : index
    %c0_24 = arith.constant 0 : index
    %c0_25 = arith.constant 0 : index
    %45 = vector.load %arg7[%c0_23, %c0_24, %c0_25] : memref<3x32x16xf32, #tpu.memory_space<vmem>>, vector<1x32x16xf32>
    %46 = vector.shape_cast %45 : vector<1x32x16xf32> to vector<32x16xf32>
    %cst_26 = arith.constant dense<0.000000e+00> : vector<2x16xf32>
    %47 = tpu.matmul %44, %46, %cst_26 {dimension_numbers = #tpu.dot_dimension_numbers<[1], [0], [0], [1], [0, 0, 1, 1], [], []>} : vector<2x32xf32>, vector<32x16xf32>, vector<2x16xf32> -> vector<2x16xf32>
    %c0_27 = arith.constant 0 : index
    %c0_28 = arith.constant 0 : index
    %c0_29 = arith.constant 0 : index
    %48 = vector.load %arg8[%c0_27, %c0_28, %c0_29] : memref<3x1x16xf32, #tpu.memory_space<vmem>>, vector<1x1x16xf32>
    %49 = vector.shape_cast %48 : vector<1x1x16xf32> to vector<1x16xf32>
    %50 = vector.broadcast %49 : vector<1x16xf32> to vector<2x16xf32>
    %51 = arith.addf %47, %50 : vector<2x16xf32>
    %52 = arith.mulf %51, %51 : vector<2x16xf32>
    %53 = arith.mulf %51, %52 : vector<2x16xf32>
    %cst_30 = arith.constant 4.471500e-02 : f32
    %54 = vector.broadcast %cst_30 : f32 to vector<2x16xf32>
    %55 = arith.mulf %54, %53 : vector<2x16xf32>
    %56 = arith.addf %51, %55 : vector<2x16xf32>
    %cst_31 = arith.constant 0.797884583 : f32
    %57 = vector.broadcast %cst_31 : f32 to vector<2x16xf32>
    %58 = arith.mulf %57, %56 : vector<2x16xf32>
    %59 = math.tanh %58 : vector<2x16xf32>
    %cst_32 = arith.constant 1.000000e+00 : f32
    %60 = vector.broadcast %cst_32 : f32 to vector<2x16xf32>
    %61 = arith.addf %60, %59 : vector<2x16xf32>
    %cst_33 = arith.constant 5.000000e-01 : f32
    %62 = vector.broadcast %cst_33 : f32 to vector<2x16xf32>
    %63 = arith.mulf %62, %61 : vector<2x16xf32>
    %64 = arith.mulf %51, %63 : vector<2x16xf32>
    %c0_34 = arith.constant 0 : index
    %c0_35 = arith.constant 0 : index
    %c0_36 = arith.constant 0 : index
    %65 = vector.load %arg9[%c0_34, %c0_35, %c0_36] : memref<3x16x5xf32, #tpu.memory_space<vmem>>, vector<1x16x5xf32>
    %66 = vector.shape_cast %65 : vector<1x16x5xf32> to vector<16x5xf32>
    %cst_37 = arith.constant dense<0.000000e+00> : vector<2x5xf32>
    %67 = tpu.matmul %64, %66, %cst_37 {dimension_numbers = #tpu.dot_dimension_numbers<[1], [0], [0], [1], [0, 0, 1, 1], [], []>} : vector<2x16xf32>, vector<16x5xf32>, vector<2x5xf32> -> vector<2x5xf32>
    %c0_38 = arith.constant 0 : index
    %c0_39 = arith.constant 0 : index
    %c0_40 = arith.constant 0 : index
    %68 = vector.load %arg10[%c0_38, %c0_39, %c0_40] : memref<3x1x5xf32, #tpu.memory_space<vmem>>, vector<1x1x5xf32>
    %69 = vector.shape_cast %68 : vector<1x1x5xf32> to vector<1x5xf32>
    %70 = vector.broadcast %69 : vector<1x5xf32> to vector<2x5xf32>
    %71 = arith.addf %67, %70 : vector<2x5xf32>
    %c0_41 = arith.constant 0 : index
    %c0_42 = arith.constant 0 : index
    %c0_43 = arith.constant 0 : index
    %72 = vector.load %arg11[%c0_41, %c0_42, %c0_43] : memref<3x2x5xf32, #tpu.memory_space<vmem>>, vector<1x2x5xf32>
    %73 = vector.shape_cast %72 : vector<1x2x5xf32> to vector<2x5xf32>
    %74 = vector.shape_cast %71 : vector<2x5xf32> to vector<1x2x5xf32>
    tpu.vector_store %arg11[%c0_41, %c0_42, %c0_43], %74 {strides = array<i32>} : memref<3x2x5xf32, #tpu.memory_space<vmem>>, vector<1x2x5xf32>,
    %c1 = arith.constant 1 : index
    %c0_44 = arith.constant 0 : index
    %c0_45 = arith.constant 0 : index
    %75 = vector.load %arg5[%c1, %c0_44, %c0_45] : memref<3x64x32xf32, #tpu.memory_space<vmem>>, vector<1x64x32xf32>
    %76 = vector.shape_cast %75 : vector<1x64x32xf32> to vector<64x32xf32>
    %cst_46 = arith.constant dense<0.000000e+00> : vector<2x32xf32>
    %77 = tpu.matmul %24, %76, %cst_46 {dimension_numbers = #tpu.dot_dimension_numbers<[1], [0], [0], [1], [0, 0, 1, 1], [], []>} : vector<2x64xf32>, vector<64x32xf32>, vector<2x32xf32> -> vector<2x32xf32>
    %c1_47 = arith.constant 1 : index
    %c0_48 = arith.constant 0 : index
    %c0_49 = arith.constant 0 : index
    %78 = vector.load %arg6[%c1_47, %c0_48, %c0_49] : memref<3x1x32xf32, #tpu.memory_space<vmem>>, vector<1x1x32xf32>
    %79 = vector.shape_cast %78 : vector<1x1x32xf32> to vector<1x32xf32>
    %80 = vector.broadcast %79 : vector<1x32xf32> to vector<2x32xf32>
    %81 = arith.addf %77, %80 : vector<2x32xf32>
    %82 = arith.mulf %81, %81 : vector<2x32xf32>
    %83 = arith.mulf %81, %82 : vector<2x32xf32>
    %cst_50 = arith.constant 4.471500e-02 : f32
    %84 = vector.broadcast %cst_50 : f32 to vector<2x32xf32>
    %85 = arith.mulf %84, %83 : vector<2x32xf32>
    %86 = arith.addf %81, %85 : vector<2x32xf32>
    %cst_51 = arith.constant 0.797884583 : f32
    %87 = vector.broadcast %cst_51 : f32 to vector<2x32xf32>
    %88 = arith.mulf %87, %86 : vector<2x32xf32>
    %89 = math.tanh %88 : vector<2x32xf32>
    %cst_52 = arith.constant 1.000000e+00 : f32
    %90 = vector.broadcast %cst_52 : f32 to vector<2x32xf32>
    %91 = arith.addf %90, %89 : vector<2x32xf32>
    %cst_53 = arith.constant 5.000000e-01 : f32
    %92 = vector.broadcast %cst_53 : f32 to vector<2x32xf32>
    %93 = arith.mulf %92, %91 : vector<2x32xf32>
    %94 = arith.mulf %81, %93 : vector<2x32xf32>
    %c1_54 = arith.constant 1 : index
    %c0_55 = arith.constant 0 : index
    %c0_56 = arith.constant 0 : index
    %95 = vector.load %arg7[%c1_54, %c0_55, %c0_56] : memref<3x32x16xf32, #tpu.memory_space<vmem>>, vector<1x32x16xf32>
    %96 = vector.shape_cast %95 : vector<1x32x16xf32> to vector<32x16xf32>
    %cst_57 = arith.constant dense<0.000000e+00> : vector<2x16xf32>
    %97 = tpu.matmul %94, %96, %cst_57 {dimension_numbers = #tpu.dot_dimension_numbers<[1], [0], [0], [1], [0, 0, 1, 1], [], []>} : vector<2x32xf32>, vector<32x16xf32>, vector<2x16xf32> -> vector<2x16xf32>
    %c1_58 = arith.constant 1 : index
    %c0_59 = arith.constant 0 : index
    %c0_60 = arith.constant 0 : index
    %98 = vector.load %arg8[%c1_58, %c0_59, %c0_60] : memref<3x1x16xf32, #tpu.memory_space<vmem>>, vector<1x1x16xf32>
    %99 = vector.shape_cast %98 : vector<1x1x16xf32> to vector<1x16xf32>
    %100 = vector.broadcast %99 : vector<1x16xf32> to vector<2x16xf32>
    %101 = arith.addf %97, %100 : vector<2x16xf32>
    %102 = arith.mulf %101, %101 : vector<2x16xf32>
    %103 = arith.mulf %101, %102 : vector<2x16xf32>
    %cst_61 = arith.constant 4.471500e-02 : f32
    %104 = vector.broadcast %cst_61 : f32 to vector<2x16xf32>
    %105 = arith.mulf %104, %103 : vector<2x16xf32>
    %106 = arith.addf %101, %105 : vector<2x16xf32>
    %cst_62 = arith.constant 0.797884583 : f32
    %107 = vector.broadcast %cst_62 : f32 to vector<2x16xf32>
    %108 = arith.mulf %107, %106 : vector<2x16xf32>
    %109 = math.tanh %108 : vector<2x16xf32>
    %cst_63 = arith.constant 1.000000e+00 : f32
    %110 = vector.broadcast %cst_63 : f32 to vector<2x16xf32>
    %111 = arith.addf %110, %109 : vector<2x16xf32>
    %cst_64 = arith.constant 5.000000e-01 : f32
    %112 = vector.broadcast %cst_64 : f32 to vector<2x16xf32>
    %113 = arith.mulf %112, %111 : vector<2x16xf32>
    %114 = arith.mulf %101, %113 : vector<2x16xf32>
    %c1_65 = arith.constant 1 : index
    %c0_66 = arith.constant 0 : index
    %c0_67 = arith.constant 0 : index
    %115 = vector.load %arg9[%c1_65, %c0_66, %c0_67] : memref<3x16x5xf32, #tpu.memory_space<vmem>>, vector<1x16x5xf32>
    %116 = vector.shape_cast %115 : vector<1x16x5xf32> to vector<16x5xf32>
    %cst_68 = arith.constant dense<0.000000e+00> : vector<2x5xf32>
    %117 = tpu.matmul %114, %116, %cst_68 {dimension_numbers = #tpu.dot_dimension_numbers<[1], [0], [0], [1], [0, 0, 1, 1], [], []>} : vector<2x16xf32>, vector<16x5xf32>, vector<2x5xf32> -> vector<2x5xf32>
    %c1_69 = arith.constant 1 : index
    %c0_70 = arith.constant 0 : index
    %c0_71 = arith.constant 0 : index
    %118 = vector.load %arg10[%c1_69, %c0_70, %c0_71] : memref<3x1x5xf32, #tpu.memory_space<vmem>>, vector<1x1x5xf32>
    %119 = vector.shape_cast %118 : vector<1x1x5xf32> to vector<1x5xf32>
    %120 = vector.broadcast %119 : vector<1x5xf32> to vector<2x5xf32>
    %121 = arith.addf %117, %120 : vector<2x5xf32>
    %c1_72 = arith.constant 1 : index
    %c0_73 = arith.constant 0 : index
    %c0_74 = arith.constant 0 : index
    %122 = vector.load %arg11[%c1_72, %c0_73, %c0_74] : memref<3x2x5xf32, #tpu.memory_space<vmem>>, vector<1x2x5xf32>
    %123 = vector.shape_cast %122 : vector<1x2x5xf32> to vector<2x5xf32>
    %124 = vector.shape_cast %121 : vector<2x5xf32> to vector<1x2x5xf32>
    tpu.vector_store %arg11[%c1_72, %c0_73, %c0_74], %124 {strides = array<i32>} : memref<3x2x5xf32, #tpu.memory_space<vmem>>, vector<1x2x5xf32>,
    %c2 = arith.constant 2 : index
    %c0_75 = arith.constant 0 : index
    %c0_76 = arith.constant 0 : index
    %125 = vector.load %arg5[%c2, %c0_75, %c0_76] : memref<3x64x32xf32, #tpu.memory_space<vmem>>, vector<1x64x32xf32>
    %126 = vector.shape_cast %125 : vector<1x64x32xf32> to vector<64x32xf32>
    %cst_77 = arith.constant dense<0.000000e+00> : vector<2x32xf32>
    %127 = tpu.matmul %24, %126, %cst_77 {dimension_numbers = #tpu.dot_dimension_numbers<[1], [0], [0], [1], [0, 0, 1, 1], [], []>} : vector<2x64xf32>, vector<64x32xf32>, vector<2x32xf32> -> vector<2x32xf32>
    %c2_78 = arith.constant 2 : index
    %c0_79 = arith.constant 0 : index
    %c0_80 = arith.constant 0 : index
    %128 = vector.load %arg6[%c2_78, %c0_79, %c0_80] : memref<3x1x32xf32, #tpu.memory_space<vmem>>, vector<1x1x32xf32>
    %129 = vector.shape_cast %128 : vector<1x1x32xf32> to vector<1x32xf32>
    %130 = vector.broadcast %129 : vector<1x32xf32> to vector<2x32xf32>
    %131 = arith.addf %127, %130 : vector<2x32xf32>
    %132 = arith.mulf %131, %131 : vector<2x32xf32>
    %133 = arith.mulf %131, %132 : vector<2x32xf32>
    %cst_81 = arith.constant 4.471500e-02 : f32
    %134 = vector.broadcast %cst_81 : f32 to vector<2x32xf32>
    %135 = arith.mulf %134, %133 : vector<2x32xf32>
    %136 = arith.addf %131, %135 : vector<2x32xf32>
    %cst_82 = arith.constant 0.797884583 : f32
    %137 = vector.broadcast %cst_82 : f32 to vector<2x32xf32>
    %138 = arith.mulf %137, %136 : vector<2x32xf32>
    %139 = math.tanh %138 : vector<2x32xf32>
    %cst_83 = arith.constant 1.000000e+00 : f32
    %140 = vector.broadcast %cst_83 : f32 to vector<2x32xf32>
    %141 = arith.addf %140, %139 : vector<2x32xf32>
    %cst_84 = arith.constant 5.000000e-01 : f32
    %142 = vector.broadcast %cst_84 : f32 to vector<2x32xf32>
    %143 = arith.mulf %142, %141 : vector<2x32xf32>
    %144 = arith.mulf %131, %143 : vector<2x32xf32>
    %c2_85 = arith.constant 2 : index
    %c0_86 = arith.constant 0 : index
    %c0_87 = arith.constant 0 : index
    %145 = vector.load %arg7[%c2_85, %c0_86, %c0_87] : memref<3x32x16xf32, #tpu.memory_space<vmem>>, vector<1x32x16xf32>
    %146 = vector.shape_cast %145 : vector<1x32x16xf32> to vector<32x16xf32>
    %cst_88 = arith.constant dense<0.000000e+00> : vector<2x16xf32>
    %147 = tpu.matmul %144, %146, %cst_88 {dimension_numbers = #tpu.dot_dimension_numbers<[1], [0], [0], [1], [0, 0, 1, 1], [], []>} : vector<2x32xf32>, vector<32x16xf32>, vector<2x16xf32> -> vector<2x16xf32>
    %c2_89 = arith.constant 2 : index
    %c0_90 = arith.constant 0 : index
    %c0_91 = arith.constant 0 : index
    %148 = vector.load %arg8[%c2_89, %c0_90, %c0_91] : memref<3x1x16xf32, #tpu.memory_space<vmem>>, vector<1x1x16xf32>
    %149 = vector.shape_cast %148 : vector<1x1x16xf32> to vector<1x16xf32>
    %150 = vector.broadcast %149 : vector<1x16xf32> to vector<2x16xf32>
    %151 = arith.addf %147, %150 : vector<2x16xf32>
    %152 = arith.mulf %151, %151 : vector<2x16xf32>
    %153 = arith.mulf %151, %152 : vector<2x16xf32>
    %cst_92 = arith.constant 4.471500e-02 : f32
    %154 = vector.broadcast %cst_92 : f32 to vector<2x16xf32>
    %155 = arith.mulf %154, %153 : vector<2x16xf32>
    %156 = arith.addf %151, %155 : vector<2x16xf32>
    %cst_93 = arith.constant 0.797884583 : f32
    %157 = vector.broadcast %cst_93 : f32 to vector<2x16xf32>
    %158 = arith.mulf %157, %156 : vector<2x16xf32>
    %159 = math.tanh %158 : vector<2x16xf32>
    %cst_94 = arith.constant 1.000000e+00 : f32
    %160 = vector.broadcast %cst_94 : f32 to vector<2x16xf32>
    %161 = arith.addf %160, %159 : vector<2x16xf32>
    %cst_95 = arith.constant 5.000000e-01 : f32
    %162 = vector.broadcast %cst_95 : f32 to vector<2x16xf32>
    %163 = arith.mulf %162, %161 : vector<2x16xf32>
    %164 = arith.mulf %151, %163 : vector<2x16xf32>
    %c2_96 = arith.constant 2 : index
    %c0_97 = arith.constant 0 : index
    %c0_98 = arith.constant 0 : index
    %165 = vector.load %arg9[%c2_96, %c0_97, %c0_98] : memref<3x16x5xf32, #tpu.memory_space<vmem>>, vector<1x16x5xf32>
    %166 = vector.shape_cast %165 : vector<1x16x5xf32> to vector<16x5xf32>
    %cst_99 = arith.constant dense<0.000000e+00> : vector<2x5xf32>
    %167 = tpu.matmul %164, %166, %cst_99 {dimension_numbers = #tpu.dot_dimension_numbers<[1], [0], [0], [1], [0, 0, 1, 1], [], []>} : vector<2x16xf32>, vector<16x5xf32>, vector<2x5xf32> -> vector<2x5xf32>
    %c2_100 = arith.constant 2 : index
    %c0_101 = arith.constant 0 : index
    %c0_102 = arith.constant 0 : index
    %168 = vector.load %arg10[%c2_100, %c0_101, %c0_102] : memref<3x1x5xf32, #tpu.memory_space<vmem>>, vector<1x1x5xf32>
    %169 = vector.shape_cast %168 : vector<1x1x5xf32> to vector<1x5xf32>
    %170 = vector.broadcast %169 : vector<1x5xf32> to vector<2x5xf32>
    %171 = arith.addf %167, %170 : vector<2x5xf32>
    %c2_103 = arith.constant 2 : index
    %c0_104 = arith.constant 0 : index
    %c0_105 = arith.constant 0 : index
    %172 = vector.load %arg11[%c2_103, %c0_104, %c0_105] : memref<3x2x5xf32, #tpu.memory_space<vmem>>, vector<1x2x5xf32>
    %173 = vector.shape_cast %172 : vector<1x2x5xf32> to vector<2x5xf32>
    %174 = vector.shape_cast %171 : vector<2x5xf32> to vector<1x2x5xf32>
    tpu.vector_store %arg11[%c2_103, %c0_104, %c0_105], %174 {strides = array<i32>} : memref<3x2x5xf32, #tpu.memory_space<vmem>>, vector<1x2x5xf32>,
    return
  }
  func.func @transform_0(%arg0: i32) -> (i32, i32) {
    %c0_i32 = arith.constant 0 : i32
    %c0_i32_0 = arith.constant 0 : i32
    %c0_i32_1 = arith.constant 0 : i32
    return %c0_i32, %c0_i32_0 : i32, i32
  }
  func.func @transform_1(%arg0: i32) -> (i32, i32) {
    %c0_i32 = arith.constant 0 : i32
    %c0_i32_0 = arith.constant 0 : i32
    %c0_i32_1 = arith.constant 0 : i32
    return %c0_i32, %c0_i32_0 : i32, i32
  }
  func.func @transform_2(%arg0: i32) -> (i32, i32) {
    %c0_i32 = arith.constant 0 : i32
    %c0_i32_0 = arith.constant 0 : i32
    %c0_i32_1 = arith.constant 0 : i32
    return %c0_i32, %c0_i32_0 : i32, i32
  }
  func.func @transform_3(%arg0: i32) -> (i32, i32) {
    %c0_i32 = arith.constant 0 : i32
    %c0_i32_0 = arith.constant 0 : i32
    %c0_i32_1 = arith.constant 0 : i32
    return %c0_i32, %c0_i32_0 : i32, i32
  }
  func.func @transform_4(%arg0: i32) -> (i32, i32, i32) {
    %c0_i32 = arith.constant 0 : i32
    %c0_i32_0 = arith.constant 0 : i32
    %c0_i32_1 = arith.constant 0 : i32
    %c0_i32_2 = arith.constant 0 : i32
    return %c0_i32, %c0_i32_0, %c0_i32_1 : i32, i32, i32
  }
  func.func @transform_5(%arg0: i32) -> (i32, i32, i32) {
    %c0_i32 = arith.constant 0 : i32
    %c0_i32_0 = arith.constant 0 : i32
    %c0_i32_1 = arith.constant 0 : i32
    %c0_i32_2 = arith.constant 0 : i32
    return %c0_i32, %c0_i32_0, %c0_i32_1 : i32, i32, i32
  }
  func.func @transform_6(%arg0: i32) -> (i32, i32, i32) {
    %c0_i32 = arith.constant 0 : i32
    %c0_i32_0 = arith.constant 0 : i32
    %c0_i32_1 = arith.constant 0 : i32
    %c0_i32_2 = arith.constant 0 : i32
    return %c0_i32, %c0_i32_0, %c0_i32_1 : i32, i32, i32
  }
  func.func @transform_7(%arg0: i32) -> (i32, i32, i32) {
    %c0_i32 = arith.constant 0 : i32
    %c0_i32_0 = arith.constant 0 : i32
    %c0_i32_1 = arith.constant 0 : i32
    %c0_i32_2 = arith.constant 0 : i32
    return %c0_i32, %c0_i32_0, %c0_i32_1 : i32, i32, i32
  }
  func.func @transform_8(%arg0: i32) -> (i32, i32, i32) {
    %c0_i32 = arith.constant 0 : i32
    %c0_i32_0 = arith.constant 0 : i32
    %c0_i32_1 = arith.constant 0 : i32
    %c0_i32_2 = arith.constant 0 : i32
    return %c0_i32, %c0_i32_0, %c0_i32_1 : i32, i32, i32
  }
  func.func @transform_9(%arg0: i32) -> (i32, i32, i32) {
    %c0_i32 = arith.constant 0 : i32
    %c0_i32_0 = arith.constant 0 : i32
    %c0_i32_1 = arith.constant 0 : i32
    %c0_i32_2 = arith.constant 0 : i32
    return %c0_i32, %c0_i32_0, %c0_i32_1 : i32, i32, i32
  }
  func.func @transform_10(%arg0: i32) -> (i32, i32, i32) {
    %c0_i32 = arith.constant 0 : i32
    %c0_i32_0 = arith.constant 0 : i32
    %c0_i32_1 = arith.constant 0 : i32
    %c0_i32_2 = arith.constant 0 : i32
    return %c0_i32, %c0_i32_0, %c0_i32_1 : i32, i32, i32
  }
}

</mosaic_0001>

<llo_original>
// kernel: _lambda_.6
$region0: #{_lambda_.6}
  #allocation0 [shape = 'u32[]', space=smem, size = 0x4, offset = 0x4, fixed_abs, tag = 'smem constant byte address 0x4 - core index']
  #allocation1 [shape = 'u32[144,128]{1,0:T(1,128)}', space=vmem, size = 0x12000, scoped, tag = 'internal scratch']
  %s0 = inlined_call_operand.vmem [shape: f32[6,64,64], index: 0, kind: input, shape index: {}]
  %s1 = inlined_call_operand.vmem [shape: f32[32,64], index: 1, kind: input, shape index: {}]
  %s2 = inlined_call_operand.vmem [shape: f32[64,32], index: 2, kind: input, shape index: {}]
  %s3 = inlined_call_operand.vmem [shape: f32[6,32,32], index: 3, kind: output, shape index: {}]
  %s4 = sld [smem:[#allocation0]]
  $region22: #{_lambda_.6} parent=0
    _
  %s6 = ssub.s32 1, %s4
  %s7 = scalar_select 0, %s6, %s4
  // Predicated region
  $region2: #{_lambda_.6} parent=0 // pred_check
    _
  $region3: #{_lambda_.6} parent=0 // pred_check_branch
    %9 = sbr.rel (0) target = $region5
  $region4: #{_lambda_.6} parent=0 // pred_region
    _
  $region5: #{_lambda_.6} parent=0 // pred_fallthru
    _
  // Predicated region
  $region6: #{_lambda_.6} parent=0 // pred_check
    _
  $region7: #{_lambda_.6} parent=0 // pred_check_branch
    %11 = sbr.rel (0) target = $region9
  $region8: #{_lambda_.6} parent=0 // pred_region
    _
  $region9: #{_lambda_.6} parent=0 // pred_fallthru
    _
  // Predicated region
  $region10: #{_lambda_.6} parent=0 // pred_check
    _
  $region11: #{_lambda_.6} parent=0 // pred_check_branch
    %13 = sbr.rel (0) target = $region13
  $region12: #{_lambda_.6} parent=0 // pred_region
    _
  $region13: #{_lambda_.6} parent=0 // pred_fallthru
    _
  %v14 = vld [vmem:[%s1] sm:$0xff]
  %v15 = vld [vmem:[%s1 + $0x8] sm:$0xff]
  %v16 = vld [vmem:[%s1 + $0x10] sm:$0xff]
  %v17 = vld [vmem:[%s1 + $0x18] sm:$0xff]
  %v18 = vld [vmem:[%s2] sm:$0xff]
  %v19 = vld [vmem:[%s2 + $0x8] sm:$0xff]
  %v20 = vld [vmem:[%s2 + $0x10] sm:$0xff]
  %v21 = vld [vmem:[%s2 + $0x18] sm:$0xff]
  %v22 = vld [vmem:[%s2 + $0x20] sm:$0xff]
  %v23 = vld [vmem:[%s2 + $0x28] sm:$0xff]
  %v24 = vld [vmem:[%s2 + $0x30] sm:$0xff]
  %v25 = vld [vmem:[%s2 + $0x38] sm:$0xff]
  %v26 = vld [vmem:[%s0] sm:$0xff]
  %v27 = vld [vmem:[%s0 + $0x8] sm:$0xff]
  %v28 = vld [vmem:[%s0 + $0x10] sm:$0xff]
  %v29 = vld [vmem:[%s0 + $0x18] sm:$0xff]
  %v30 = vld [vmem:[%s0 + $0x20] sm:$0xff]
  %v31 = vld [vmem:[%s0 + $0x28] sm:$0xff]
  %v32 = vld [vmem:[%s0 + $0x30] sm:$0xff]
  %v33 = vld [vmem:[%s0 + $0x38] sm:$0xff]
  %vm34 = vcmask 523264
  %v36 = vsel %vm34, %v14, 0
  %v39 = vsel %vm34, %v15, 0
  %v42 = vsel %vm34, %v16, 0
  %v45 = vsel %vm34, %v17, 0
  %47 = vmatprep.subr.mxu0 0.0
  %48 = vmatpush1.msra.mxu0 %v26
  %49 = vmatprep.subr.mxu0 0.0
  %50 = vmatpush1.msra.mxu0 %v27
  %51 = vmatprep.subr.mxu0 0.0
  %52 = vmatpush1.msra.mxu0 %v28
  %53 = vmatprep.subr.mxu0 0.0
  %54 = vmatpush1.msra.mxu0 %v29
  %55 = vmatprep.subr.mxu0 0.0
  %56 = vmatpush1.msra.mxu0 %v30
  %57 = vmatprep.subr.mxu0 0.0
  %58 = vmatpush1.msra.mxu0 %v31
  %59 = vmatprep.subr.mxu0 0.0
  %60 = vmatpush1.msra.mxu0 %v32
  %61 = vmatprep.subr.mxu0 0.0
  %62 = vmatpush1.msra.mxu0 %v33
  %63 = vmatprep.subr.mxu0 0.0
  %64 = vmatpush1.msra.mxu0 0.0
  %65 = vmatprep.subr.mxu0 0.0
  %66 = vmatpush1.msra.mxu0 0.0
  %67 = vmatprep.subr.mxu0 0.0
  %68 = vmatpush1.msra.mxu0 0.0
  %69 = vmatprep.subr.mxu0 0.0
  %70 = vmatpush1.msra.mxu0 0.0
  %71 = vmatprep.subr.mxu0 0.0
  %72 = vmatpush1.msra.mxu0 0.0
  %73 = vmatprep.subr.mxu0 0.0
  %74 = vmatpush1.msra.mxu0 0.0
  %75 = vmatprep.subr.mxu0 0.0
  %76 = vmatpush1.msra.mxu0 0.0
  %77 = vmatprep.subr.mxu0 0.0
  %78 = vmatpush1.msra.mxu0 0.0
  %79 = vmatprep.subr.mxu0 0.0
  %80 = vmatpush1.msra.mxu0 0.0
  %81 = vmatprep.subr.mxu0 0.0
  %82 = vmatpush1.msra.mxu0 0.0
  %83 = vmatprep.subr.mxu0 0.0
  %84 = vmatpush1.msra.mxu0 0.0
  %85 = vmatprep.subr.mxu0 0.0
  %86 = vmatpush1.msra.mxu0 0.0
  %87 = vmatprep.subr.mxu0 0.0
  %88 = vmatpush1.msra.mxu0 0.0
  %89 = vmatprep.subr.mxu0 0.0
  %90 = vmatpush1.msra.mxu0 0.0
  %91 = vmatprep.subr.mxu0 0.0
  %92 = vmatpush1.msra.mxu0 0.0
  %93 = vmatprep.subr.mxu0 0.0
  %94 = vmatpush1.msra.mxu0 0.0
  %95 = vmatprep.subr.mxu0 0.0
  %96 = vmatpush1.msra.mxu0 0.0
  %97 = vmatprep.subr.mxu0 0.0
  %98 = vmatpush1.msra.mxu0 0.0
  %99 = vmatprep.subr.mxu0 0.0
  %100 = vmatpush1.msra.mxu0 0.0
  %101 = vmatprep.subr.mxu0 0.0
  %102 = vmatpush1.msra.mxu0 0.0
  %103 = vmatprep.subr.mxu0 0.0
  %104 = vmatpush1.msra.mxu0 0.0
  %105 = vmatprep.subr.mxu0 0.0
  %106 = vmatpush1.msra.mxu0 0.0
  %107 = vmatprep.subr.mxu0 0.0
  %108 = vmatpush1.msra.mxu0 0.0
  %109 = vmatprep.subr.mxu0 0.0
  %110 = vmatpush1.msra.mxu0 0.0
  %111 = vmatprep.mubr.f32.mxu0 0.0
  %112 = vmatmul.mubr.f32.gmra.mrb[0].mxu0 %v36
  %v113 = vpop.f32.mrb[0].mxu0
  %v114 = vadd.f32 0.0, %v113
  %v115 = vpop.f32.mrb[0].mxu0
  %116 = vmatprep.mubr.f32.mxu0 0.0
  %117 = vmatmul.mubr.f32.gmra.mrb[0].mxu0 %v39
  %v118 = vpop.f32.mrb[0].mxu0
  %v119 = vadd.f32 0.0, %v118
  %v120 = vpop.f32.mrb[0].mxu0
  %121 = vmatprep.mubr.f32.mxu0 0.0
  %122 = vmatmul.mubr.f32.gmra.mrb[0].mxu0 %v42
  %v123 = vpop.f32.mrb[0].mxu0
  %v124 = vadd.f32 0.0, %v123
  %v125 = vpop.f32.mrb[0].mxu0
  %126 = vmatprep.mubr.f32.mxu0 0.0
  %127 = vmatmul.mubr.f32.gmra.mrb[0].mxu0 %v45
  %v128 = vpop.f32.mrb[0].mxu0
  %v129 = vadd.f32 0.0, %v128
  %v130 = vpop.f32.mrb[0].mxu0
  %131 = vdwg.mxu0
  %v133 = vsel %vm34, %v114, 0
  %v136 = vsel %vm34, %v119, 0
  %v139 = vsel %vm34, %v124, 0
  %v142 = vsel %vm34, %v129, 0
  %144 = vmatprep.subr.mxu0 0.0
  %145 = vmatpush1.msra.mxu0 %v18
  %146 = vmatprep.subr.mxu0 0.0
  %147 = vmatpush1.msra.mxu0 %v19
  %148 = vmatprep.subr.mxu0 0.0
  %149 = vmatpush1.msra.mxu0 %v20
  %150 = vmatprep.subr.mxu0 0.0
  %151 = vmatpush1.msra.mxu0 %v21
  %152 = vmatprep.subr.mxu0 0.0
  %153 = vmatpush1.msra.mxu0 %v22
  %154 = vmatprep.subr.mxu0 0.0
  %155 = vmatpush1.msra.mxu0 %v23
  %156 = vmatprep.subr.mxu0 0.0
  %157 = vmatpush1.msra.mxu0 %v24
  %158 = vmatprep.subr.mxu0 0.0
  %159 = vmatpush1.msra.mxu0 %v25
  %160 = vmatprep.subr.mxu0 0.0
  %161 = vmatpush1.msra.mxu0 0.0
  %162 = vmatprep.subr.mxu0 0.0
  %163 = vmatpush1.msra.mxu0 0.0
  %164 = vmatprep.subr.mxu0 0.0
  %165 = vmatpush1.msra.mxu0 0.0
  %166 = vmatprep.subr.mxu0 0.0
  %167 = vmatpush1.msra.mxu0 0.0
  %168 = vmatprep.subr.mxu0 0.0
  %169 = vmatpush1.msra.mxu0 0.0
  %170 = vmatprep.subr.mxu0 0.0
  %171 = vmatpush1.msra.mxu0 0.0
  %172 = vmatprep.subr.mxu0 0.0
  %173 = vmatpush1.msra.mxu0 0.0
  %174 = vmatprep.subr.mxu0 0.0
  %175 = vmatpush1.msra.mxu0 0.0
  %176 = vmatprep.subr.mxu0 0.0
  %177 = vmatpush1.msra.mxu0 0.0
  %178 = vmatprep.subr.mxu0 0.0
  %179 = vmatpush1.msra.mxu0 0.0
  %180 = vmatprep.subr.mxu0 0.0
  %181 = vmatpush1.msra.mxu0 0.0
  %182 = vmatprep.subr.mxu0 0.0
  %183 = vmatpush1.msra.mxu0 0.0
  %184 = vmatprep.subr.mxu0 0.0
  %185 = vmatpush1.msra.mxu0 0.0
  %186 = vmatprep.subr.mxu0 0.0
  %187 = vmatpush1.msra.mxu0 0.0
  %188 = vmatprep.subr.mxu0 0.0
  %189 = vmatpush1.msra.mxu0 0.0
  %190 = vmatprep.subr.mxu0 0.0
  %191 = vmatpush1.msra.mxu0 0.0
  %192 = vmatprep.subr.mxu0 0.0
  %193 = vmatpush1.msra.mxu0 0.0
  %194 = vmatprep.subr.mxu0 0.0
  %195 = vmatpush1.msra.mxu0 0.0
  %196 = vmatprep.subr.mxu0 0.0
  %197 = vmatpush1.msra.mxu0 0.0
  %198 = vmatprep.subr.mxu0 0.0
  %199 = vmatpush1.msra.mxu0 0.0
  %200 = vmatprep.subr.mxu0 0.0
  %201 = vmatpush1.msra.mxu0 0.0
  %202 = vmatprep.subr.mxu0 0.0
  %203 = vmatpush1.msra.mxu0 0.0
  %204 = vmatprep.subr.mxu0 0.0
  %205 = vmatpush1.msra.mxu0 0.0
  %206 = vmatprep.subr.mxu0 0.0
  %207 = vmatpush1.msra.mxu0 0.0
  %208 = vmatprep.mubr.f32.mxu0 0.0
  %209 = vmatmul.mubr.f32.gmra.mrb[0].mxu0 %v133
  %v210 = vpop.f32.mrb[0].mxu0
  %v211 = vadd.f32 0.0, %v210
  %v212 = vpop.f32.mrb[0].mxu0
  %213 = vmatprep.mubr.f32.mxu0 0.0
  %214 = vmatmul.mubr.f32.gmra.mrb[0].mxu0 %v136
  %v215 = vpop.f32.mrb[0].mxu0
  %v216 = vadd.f32 0.0, %v215
  %v217 = vpop.f32.mrb[0].mxu0
  %218 = vmatprep.mubr.f32.mxu0 0.0
  %219 = vmatmul.mubr.f32.gmra.mrb[0].mxu0 %v139
  %v220 = vpop.f32.mrb[0].mxu0
  %v221 = vadd.f32 0.0, %v220
  %v222 = vpop.f32.mrb[0].mxu0
  %223 = vmatprep.mubr.f32.mxu0 0.0
  %224 = vmatmul.mubr.f32.gmra.mrb[0].mxu0 %v142
  %v225 = vpop.f32.mrb[0].mxu0
  %v226 = vadd.f32 0.0, %v225
  %v227 = vpop.f32.mrb[0].mxu0
  %228 = vdwg.mxu0
  %vm229 = vcmask 261120
  %230 = vst.msk [vmem:[%s3] sm:$0xff] %vm229, %v211
  %231 = vst.msk [vmem:[%s3 + $0x8] sm:$0xff] %vm229, %v216
  %232 = vst.msk [vmem:[%s3 + $0x10] sm:$0xff] %vm229, %v221
  %233 = vst.msk [vmem:[%s3 + $0x18] sm:$0xff] %vm229, %v226
  %s234 = scalar_lea.vmem %s0, 64
  %v235 = vld [vmem:[%s234] sm:$0xff]
  %v236 = vld [vmem:[%s234 + $0x8] sm:$0xff]
  %v237 = vld [vmem:[%s234 + $0x10] sm:$0xff]
  %v238 = vld [vmem:[%s234 + $0x18] sm:$0xff]
  %v239 = vld [vmem:[%s234 + $0x20] sm:$0xff]
  %v240 = vld [vmem:[%s234 + $0x28] sm:$0xff]
  %v241 = vld [vmem:[%s234 + $0x30] sm:$0xff]
  %v242 = vld [vmem:[%s234 + $0x38] sm:$0xff]
  %243 = vmatprep.subr.mxu0 0.0
  %244 = vmatpush1.msra.mxu0 %v235
  %245 = vmatprep.subr.mxu0 0.0
  %246 = vmatpush1.msra.mxu0 %v236
  %247 = vmatprep.subr.mxu0 0.0
  %248 = vmatpush1.msra.mxu0 %v237
  %249 = vmatprep.subr.mxu0 0.0
  %250 = vmatpush1.msra.mxu0 %v238
  %251 = vmatprep.subr.mxu0 0.0
  %252 = vmatpush1.msra.mxu0 %v239
  %253 = vmatprep.subr.mxu0 0.0
  %254 = vmatpush1.msra.mxu0 %v240
  %255 = vmatprep.subr.mxu0 0.0
  %256 = vmatpush1.msra.mxu0 %v241
  %257 = vmatprep.subr.mxu0 0.0
  %258 = vmatpush1.msra.mxu0 %v242
  %259 = vmatprep.subr.mxu0 0.0
  %260 = vmatpush1.msra.mxu0 0.0
  %261 = vmatprep.subr.mxu0 0.0
  %262 = vmatpush1.msra.mxu0 0.0
  %263 = vmatprep.subr.mxu0 0.0
  %264 = vmatpush1.msra.mxu0 0.0
  %265 = vmatprep.subr.mxu0 0.0
  %266 = vmatpush1.msra.mxu0 0.0
  %267 = vmatprep.subr.mxu0 0.0
  %268 = vmatpush1.msra.mxu0 0.0
  %269 = vmatprep.subr.mxu0 0.0
  %270 = vmatpush1.msra.mxu0 0.0
  %271 = vmatprep.subr.mxu0 0.0
  %272 = vmatpush1.msra.mxu0 0.0
  %273 = vmatprep.subr.mxu0 0.0
  %274 = vmatpush1.msra.mxu0 0.0
  %275 = vmatprep.subr.mxu0 0.0
  %276 = vmatpush1.msra.mxu0 0.0
  %277 = vmatprep.subr.mxu0 0.0
  %278 = vmatpush1.msra.mxu0 0.0
  %279 = vmatprep.subr.mxu0 0.0
  %280 = vmatpush1.msra.mxu0 0.0
  %281 = vmatprep.subr.mxu0 0.0
  %282 = vmatpush1.msra.mxu0 0.0
  %283 = vmatprep.subr.mxu0 0.0
  %284 = vmatpush1.msra.mxu0 0.0
  %285 = vmatprep.subr.mxu0 0.0
  %286 = vmatpush1.msra.mxu0 0.0
  %287 = vmatprep.subr.mxu0 0.0
  %288 = vmatpush1.msra.mxu0 0.0
  %289 = vmatprep.subr.mxu0 0.0
  %290 = vmatpush1.msra.mxu0 0.0
  %291 = vmatprep.subr.mxu0 0.0
  %292 = vmatpush1.msra.mxu0 0.0
  %293 = vmatprep.subr.mxu0 0.0
  %294 = vmatpush1.msra.mxu0 0.0
  %295 = vmatprep.subr.mxu0 0.0
  %296 = vmatpush1.msra.mxu0 0.0
  %297 = vmatprep.subr.mxu0 0.0
  %298 = vmatpush1.msra.mxu0 0.0
  %299 = vmatprep.subr.mxu0 0.0
  %300 = vmatpush1.msra.mxu0 0.0
  %301 = vmatprep.subr.mxu0 0.0
  %302 = vmatpush1.msra.mxu0 0.0
  %303 = vmatprep.subr.mxu0 0.0
  %304 = vmatpush1.msra.mxu0 0.0
  %305 = vmatprep.subr.mxu0 0.0
  %306 = vmatpush1.msra.mxu0 0.0
  %307 = vmatprep.mubr.f32.mxu0 0.0
  %308 = vmatmul.mubr.f32.gmra.mrb[0].mxu0 %v36
  %v309 = vpop.f32.mrb[0].mxu0
  %v310 = vadd.f32 0.0, %v309
  %v311 = vpop.f32.mrb[0].mxu0
  %312 = vmatprep.mubr.f32.mxu0 0.0
  %313 = vmatmul.mubr.f32.gmra.mrb[0].mxu0 %v39
  %v314 = vpop.f32.mrb[0].mxu0
  %v315 = vadd.f32 0.0, %v314
  %v316 = vpop.f32.mrb[0].mxu0
  %317 = vmatprep.mubr.f32.mxu0 0.0
  %318 = vmatmul.mubr.f32.gmra.mrb[0].mxu0 %v42
  %v319 = vpop.f32.mrb[0].mxu0
  %v320 = vadd.f32 0.0, %v319
  %v321 = vpop.f32.mrb[0].mxu0
  %322 = vmatprep.mubr.f32.mxu0 0.0
  %323 = vmatmul.mubr.f32.gmra.mrb[0].mxu0 %v45
  %v324 = vpop.f32.mrb[0].mxu0
  %v325 = vadd.f32 0.0, %v324
  %v326 = vpop.f32.mrb[0].mxu0
  %327 = vdwg.mxu0
  %v329 = vsel %vm34, %v310, 0
  %v332 = vsel %vm34, %v315, 0
  %v335 = vsel %vm34, %v320, 0
  %v338 = vsel %vm34, %v325, 0
  %340 = vmatprep.subr.mxu0 0.0
  %341 = vmatpush1.msra.mxu0 %v18
  %342 = vmatprep.subr.mxu0 0.0
  %343 = vmatpush1.msra.mxu0 %v19
  %344 = vmatprep.subr.mxu0 0.0
  %345 = vmatpush1.msra.mxu0 %v20
  %346 = vmatprep.subr.mxu0 0.0
  %347 = vmatpush1.msra.mxu0 %v21
  %348 = vmatprep.subr.mxu0 0.0
  %349 = vmatpush1.msra.mxu0 %v22
  %350 = vmatprep.subr.mxu0 0.0
  %351 = vmatpush1.msra.mxu0 %v23
  %352 = vmatprep.subr.mxu0 0.0
  %353 = vmatpush1.msra.mxu0 %v24
  %354 = vmatprep.subr.mxu0 0.0
  %355 = vmatpush1.msra.mxu0 %v25
  %356 = vmatprep.subr.mxu0 0.0
  %357 = vmatpush1.msra.mxu0 0.0
  %358 = vmatprep.subr.mxu0 0.0
  %359 = vmatpush1.msra.mxu0 0.0
  %360 = vmatprep.subr.mxu0 0.0
  %361 = vmatpush1.msra.mxu0 0.0
  %362 = vmatprep.subr.mxu0 0.0
  %363 = vmatpush1.msra.mxu0 0.0
  %364 = vmatprep.subr.mxu0 0.0
  %365 = vmatpush1.msra.mxu0 0.0
  %366 = vmatprep.subr.mxu0 0.0
  %367 = vmatpush1.msra.mxu0 0.0
  %368 = vmatprep.subr.mxu0 0.0
  %369 = vmatpush1.msra.mxu0 0.0
  %370 = vmatprep.subr.mxu0 0.0
  %371 = vmatpush1.msra.mxu0 0.0
  %372 = vmatprep.subr.mxu0 0.0
  %373 = vmatpush1.msra.mxu0 0.0
  %374 = vmatprep.subr.mxu0 0.0
  %375 = vmatpush1.msra.mxu0 0.0
  %376 = vmatprep.subr.mxu0 0.0
  %377 = vmatpush1.msra.mxu0 0.0
  %378 = vmatprep.subr.mxu0 0.0
  %379 = vmatpush1.msra.mxu0 0.0
  %380 = vmatprep.subr.mxu0 0.0
  %381 = vmatpush1.msra.mxu0 0.0
  %382 = vmatprep.subr.mxu0 0.0
  %383 = vmatpush1.msra.mxu0 0.0
  %384 = vmatprep.subr.mxu0 0.0
  %385 = vmatpush1.msra.mxu0 0.0
  %386 = vmatprep.subr.mxu0 0.0
  %387 = vmatpush1.msra.mxu0 0.0
  %388 = vmatprep.subr.mxu0 0.0
  %389 = vmatpush1.msra.mxu0 0.0
  %390 = vmatprep.subr.mxu0 0.0
  %391 = vmatpush1.msra.mxu0 0.0
  %392 = vmatprep.subr.mxu0 0.0
  %393 = vmatpush1.msra.mxu0 0.0
  %394 = vmatprep.subr.mxu0 0.0
  %395 = vmatpush1.msra.mxu0 0.0
  %396 = vmatprep.subr.mxu0 0.0
  %397 = vmatpush1.msra.mxu0 0.0
  %398 = vmatprep.subr.mxu0 0.0
  %399 = vmatpush1.msra.mxu0 0.0
  %400 = vmatprep.subr.mxu0 0.0
  %401 = vmatpush1.msra.mxu0 0.0
  %402 = vmatprep.subr.mxu0 0.0
  %403 = vmatpush1.msra.mxu0 0.0
  %404 = vmatprep.mubr.f32.mxu0 0.0
  %405 = vmatmul.mubr.f32.gmra.mrb[0].mxu0 %v329
  %v406 = vpop.f32.mrb[0].mxu0
  %v407 = vadd.f32 0.0, %v406
  %v408 = vpop.f32.mrb[0].mxu0
  %409 = vmatprep.mubr.f32.mxu0 0.0
  %410 = vmatmul.mubr.f32.gmra.mrb[0].mxu0 %v332
  %v411 = vpop.f32.mrb[0].mxu0
  %v412 = vadd.f32 0.0, %v411
  %v413 = vpop.f32.mrb[0].mxu0
  %414 = vmatprep.mubr.f32.mxu0 0.0
  %415 = vmatmul.mubr.f32.gmra.mrb[0].mxu0 %v335
  %v416 = vpop.f32.mrb[0].mxu0
  %v417 = vadd.f32 0.0, %v416
  %v418 = vpop.f32.mrb[0].mxu0
  %419 = vmatprep.mubr.f32.mxu0 0.0
  %420 = vmatmul.mubr.f32.gmra.mrb[0].mxu0 %v338
  %v421 = vpop.f32.mrb[0].mxu0
  %v422 = vadd.f32 0.0, %v421
  %v423 = vpop.f32.mrb[0].mxu0
  %424 = vdwg.mxu0
  %s425 = scalar_lea.vmem %s3, 32
  %426 = vst.msk [vmem:[%s425] sm:$0xff] %vm229, %v407
  %427 = vst.msk [vmem:[%s425 + $0x8] sm:$0xff] %vm229, %v412
  %428 = vst.msk [vmem:[%s425 + $0x10] sm:$0xff] %vm229, %v417
  %429 = vst.msk [vmem:[%s425 + $0x18] sm:$0xff] %vm229, %v422
  %s430 = scalar_lea.vmem %s0, 128
  %v431 = vld [vmem:[%s430] sm:$0xff]
  %v432 = vld [vmem:[%s430 + $0x8] sm:$0xff]
  %v433 = vld [vmem:[%s430 + $0x10] sm:$0xff]
  %v434 = vld [vmem:[%s430 + $0x18] sm:$0xff]
  %v435 = vld [vmem:[%s430 + $0x20] sm:$0xff]
  %v436 = vld [vmem:[%s430 + $0x28] sm:$0xff]
  %v437 = vld [vmem:[%s430 + $0x30] sm:$0xff]
  %v438 = vld [vmem:[%s430 + $0x38] sm:$0xff]
  %439 = vmatprep.subr.mxu0 0.0
  %440 = vmatpush1.msra.mxu0 %v431
  %441 = vmatprep.subr.mxu0 0.0
  %442 = vmatpush1.msra.mxu0 %v432
  %443 = vmatprep.subr.mxu0 0.0
  %444 = vmatpush1.msra.mxu0 %v433
  %445 = vmatprep.subr.mxu0 0.0
  %446 = vmatpush1.msra.mxu0 %v434
  %447 = vmatprep.subr.mxu0 0.0
  %448 = vmatpush1.msra.mxu0 %v435
  %449 = vmatprep.subr.mxu0 0.0
  %450 = vmatpush1.msra.mxu0 %v436
  %451 = vmatprep.subr.mxu0 0.0
  %452 = vmatpush1.msra.mxu0 %v437
  %453 = vmatprep.subr.mxu0 0.0
  %454 = vmatpush1.msra.mxu0 %v438
  %455 = vmatprep.subr.mxu0 0.0
  %456 = vmatpush1.msra.mxu0 0.0
  %457 = vmatprep.subr.mxu0 0.0
  %458 = vmatpush1.msra.mxu0 0.0
  %459 = vmatprep.subr.mxu0 0.0
  %460 = vmatpush1.msra.mxu0 0.0
  %461 = vmatprep.subr.mxu0 0.0
  %462 = vmatpush1.msra.mxu0 0.0
  %463 = vmatprep.subr.mxu0 0.0
  %464 = vmatpush1.msra.mxu0 0.0
  %465 = vmatprep.subr.mxu0 0.0
  %466 = vmatpush1.msra.mxu0 0.0
  %467 = vmatprep.subr.mxu0 0.0
  %468 = vmatpush1.msra.mxu0 0.0
  %469 = vmatprep.subr.mxu0 0.0
  %470 = vmatpush1.msra.mxu0 0.0
  %471 = vmatprep.subr.mxu0 0.0
  %472 = vmatpush1.msra.mxu0 0.0
  %473 = vmatprep.subr.mxu0 0.0
  %474 = vmatpush1.msra.mxu0 0.0
  %475 = vmatprep.subr.mxu0 0.0
  %476 = vmatpush1.msra.mxu0 0.0
  %477 = vmatprep.subr.mxu0 0.0
  %478 = vmatpush1.msra.mxu0 0.0
  %479 = vmatprep.subr.mxu0 0.0
  %480 = vmatpush1.msra.mxu0 0.0
  %481 = vmatprep.subr.mxu0 0.0
  %482 = vmatpush1.msra.mxu0 0.0
  %483 = vmatprep.subr.mxu0 0.0
  %484 = vmatpush1.msra.mxu0 0.0
  %485 = vmatprep.subr.mxu0 0.0
  %486 = vmatpush1.msra.mxu0 0.0
  %487 = vmatprep.subr.mxu0 0.0
  %488 = vmatpush1.msra.mxu0 0.0
  %489 = vmatprep.subr.mxu0 0.0
  %490 = vmatpush1.msra.mxu0 0.0
  %491 = vmatprep.subr.mxu0 0.0
  %492 = vmatpush1.msra.mxu0 0.0
  %493 = vmatprep.subr.mxu0 0.0
  %494 = vmatpush1.msra.mxu0 0.0
  %495 = vmatprep.subr.mxu0 0.0
  %496 = vmatpush1.msra.mxu0 0.0
  %497 = vmatprep.subr.mxu0 0.0
  %498 = vmatpush1.msra.mxu0 0.0
  %499 = vmatprep.subr.mxu0 0.0
  %500 = vmatpush1.msra.mxu0 0.0
  %501 = vmatprep.subr.mxu0 0.0
  %502 = vmatpush1.msra.mxu0 0.0
  %503 = vmatprep.mubr.f32.mxu0 0.0
  %504 = vmatmul.mubr.f32.gmra.mrb[0].mxu0 %v36
  %v505 = vpop.f32.mrb[0].mxu0
  %v506 = vadd.f32 0.0, %v505
  %v507 = vpop.f32.mrb[0].mxu0
  %508 = vmatprep.mubr.f32.mxu0 0.0
  %509 = vmatmul.mubr.f32.gmra.mrb[0].mxu0 %v39
  %v510 = vpop.f32.mrb[0].mxu0
  %v511 = vadd.f32 0.0, %v510
  %v512 = vpop.f32.mrb[0].mxu0
  %513 = vmatprep.mubr.f32.mxu0 0.0
  %514 = vmatmul.mubr.f32.gmra.mrb[0].mxu0 %v42
  %v515 = vpop.f32.mrb[0].mxu0
  %v516 = vadd.f32 0.0, %v515
  %v517 = vpop.f32.mrb[0].mxu0
  %518 = vmatprep.mubr.f32.mxu0 0.0
  %519 = vmatmul.mubr.f32.gmra.mrb[0].mxu0 %v45
  %v520 = vpop.f32.mrb[0].mxu0
  %v521 = vadd.f32 0.0, %v520
  %v522 = vpop.f32.mrb[0].mxu0
  %523 = vdwg.mxu0
  %v525 = vsel %vm34, %v506, 0
  %v528 = vsel %vm34, %v511, 0
  %v531 = vsel %vm34, %v516, 0
  %v534 = vsel %vm34, %v521, 0
  %536 = vmatprep.subr.mxu0 0.0
  %537 = vmatpush1.msra.mxu0 %v18
  %538 = vmatprep.subr.mxu0 0.0
  %539 = vmatpush1.msra.mxu0 %v19
  %540 = vmatprep.subr.mxu0 0.0
  %541 = vmatpush1.msra.mxu0 %v20
  %542 = vmatprep.subr.mxu0 0.0
  %543 = vmatpush1.msra.mxu0 %v21
  %544 = vmatprep.subr.mxu0 0.0
  %545 = vmatpush1.msra.mxu0 %v22
  %546 = vmatprep.subr.mxu0 0.0
  %547 = vmatpush1.msra.mxu0 %v23
  %548 = vmatprep.subr.mxu0 0.0
  %549 = vmatpush1.msra.mxu0 %v24
  %550 = vmatprep.subr.mxu0 0.0
  %551 = vmatpush1.msra.mxu0 %v25
  %552 = vmatprep.subr.mxu0 0.0
  %553 = vmatpush1.msra.mxu0 0.0
  %554 = vmatprep.subr.mxu0 0.0
  %555 = vmatpush1.msra.mxu0 0.0
  %556 = vmatprep.subr.mxu0 0.0
  %557 = vmatpush1.msra.mxu0 0.0
  %558 = vmatprep.subr.mxu0 0.0
  %559 = vmatpush1.msra.mxu0 0.0
  %560 = vmatprep.subr.mxu0 0.0
  %561 = vmatpush1.msra.mxu0 0.0
  %562 = vmatprep.subr.mxu0 0.0
  %563 = vmatpush1.msra.mxu0 0.0
  %564 = vmatprep.subr.mxu0 0.0
  %565 = vmatpush1.msra.mxu0 0.0
  %566 = vmatprep.subr.mxu0 0.0
  %567 = vmatpush1.msra.mxu0 0.0
  %568 = vmatprep.subr.mxu0 0.0
  %569 = vmatpush1.msra.mxu0 0.0
  %570 = vmatprep.subr.mxu0 0.0
  %571 = vmatpush1.msra.mxu0 0.0
  %572 = vmatprep.subr.mxu0 0.0
  %573 = vmatpush1.msra.mxu0 0.0
  %574 = vmatprep.subr.mxu0 0.0
  %575 = vmatpush1.msra.mxu0 0.0
  %576 = vmatprep.subr.mxu0 0.0
  %577 = vmatpush1.msra.mxu0 0.0
  %578 = vmatprep.subr.mxu0 0.0
  %579 = vmatpush1.msra.mxu0 0.0
  %580 = vmatprep.subr.mxu0 0.0
  %581 = vmatpush1.msra.mxu0 0.0
  %582 = vmatprep.subr.mxu0 0.0
  %583 = vmatpush1.msra.mxu0 0.0
  %584 = vmatprep.subr.mxu0 0.0
  %585 = vmatpush1.msra.mxu0 0.0
  %586 = vmatprep.subr.mxu0 0.0
  %587 = vmatpush1.msra.mxu0 0.0
  %588 = vmatprep.subr.mxu0 0.0
  %589 = vmatpush1.msra.mxu0 0.0
  %590 = vmatprep.subr.mxu0 0.0
  %591 = vmatpush1.msra.mxu0 0.0
  %592 = vmatprep.subr.mxu0 0.0
  %593 = vmatpush1.msra.mxu0 0.0
  %594 = vmatprep.subr.mxu0 0.0
  %595 = vmatpush1.msra.mxu0 0.0
  %596 = vmatprep.subr.mxu0 0.0
  %597 = vmatpush1.msra.mxu0 0.0
  %598 = vmatprep.subr.mxu0 0.0
  %599 = vmatpush1.msra.mxu0 0.0
  %600 = vmatprep.mubr.f32.mxu0 0.0
  %601 = vmatmul.mubr.f32.gmra.mrb[0].mxu0 %v525
  %v602 = vpop.f32.mrb[0].mxu0
  %v603 = vadd.f32 0.0, %v602
  %v604 = vpop.f32.mrb[0].mxu0
  %605 = vmatprep.mubr.f32.mxu0 0.0
  %606 = vmatmul.mubr.f32.gmra.mrb[0].mxu0 %v528
  %v607 = vpop.f32.mrb[0].mxu0
  %v608 = vadd.f32 0.0, %v607
  %v609 = vpop.f32.mrb[0].mxu0
  %610 = vmatprep.mubr.f32.mxu0 0.0
  %611 = vmatmul.mubr.f32.gmra.mrb[0].mxu0 %v531
  %v612 = vpop.f32.mrb[0].mxu0
  %v613 = vadd.f32 0.0, %v612
  %v614 = vpop.f32.mrb[0].mxu0
  %615 = vmatprep.mubr.f32.mxu0 0.0
  %616 = vmatmul.mubr.f32.gmra.mrb[0].mxu0 %v534
  %v617 = vpop.f32.mrb[0].mxu0
  %v618 = vadd.f32 0.0, %v617
  %v619 = vpop.f32.mrb[0].mxu0
  %620 = vdwg.mxu0
  %s621 = scalar_lea.vmem %s3, 64
  %622 = vst.msk [vmem:[%s621] sm:$0xff] %vm229, %v603
  %623 = vst.msk [vmem:[%s621 + $0x8] sm:$0xff] %vm229, %v608
  %624 = vst.msk [vmem:[%s621 + $0x10] sm:$0xff] %vm229, %v613
  %625 = vst.msk [vmem:[%s621 + $0x18] sm:$0xff] %vm229, %v618
  %s626 = scalar_lea.vmem %s0, 192
  %v627 = vld [vmem:[%s626] sm:$0xff]
  %v628 = vld [vmem:[%s626 + $0x8] sm:$0xff]
  %v629 = vld [vmem:[%s626 + $0x10] sm:$0xff]
  %v630 = vld [vmem:[%s626 + $0x18] sm:$0xff]
  %v631 = vld [vmem:[%s626 + $0x20] sm:$0xff]
  %v632 = vld [vmem:[%s626 + $0x28] sm:$0xff]
  %v633 = vld [vmem:[%s626 + $0x30] sm:$0xff]
  %v634 = vld [vmem:[%s626 + $0x38] sm:$0xff]
  %635 = vmatprep.subr.mxu0 0.0
  %636 = vmatpush1.msra.mxu0 %v627
  %637 = vmatprep.subr.mxu0 0.0
  %638 = vmatpush1.msra.mxu0 %v628
  %639 = vmatprep.subr.mxu0 0.0
  %640 = vmatpush1.msra.mxu0 %v629
  %641 = vmatprep.subr.mxu0 0.0
  %642 = vmatpush1.msra.mxu0 %v630
  %643 = vmatprep.subr.mxu0 0.0
  %644 = vmatpush1.msra.mxu0 %v631
  %645 = vmatprep.subr.mxu0 0.0
  %646 = vmatpush1.msra.mxu0 %v632
  %647 = vmatprep.subr.mxu0 0.0
  %648 = vmatpush1.msra.mxu0 %v633
  %649 = vmatprep.subr.mxu0 0.0
  %650 = vmatpush1.msra.mxu0 %v634
  %651 = vmatprep.subr.mxu0 0.0
  %652 = vmatpush1.msra.mxu0 0.0
  %653 = vmatprep.subr.mxu0 0.0
  %654 = vmatpush1.msra.mxu0 0.0
  %655 = vmatprep.subr.mxu0 0.0
  %656 = vmatpush1.msra.mxu0 0.0
  %657 = vmatprep.subr.mxu0 0.0
  %658 = vmatpush1.msra.mxu0 0.0
  %659 = vmatprep.subr.mxu0 0.0
  %660 = vmatpush1.msra.mxu0 0.0
  %661 = vmatprep.subr.mxu0 0.0
  %662 = vmatpush1.msra.mxu0 0.0
  %663 = vmatprep.subr.mxu0 0.0
  %664 = vmatpush1.msra.mxu0 0.0
  %665 = vmatprep.subr.mxu0 0.0
  %666 = vmatpush1.msra.mxu0 0.0
  %667 = vmatprep.subr.mxu0 0.0
  %668 = vmatpush1.msra.mxu0 0.0
  %669 = vmatprep.subr.mxu0 0.0
  %670 = vmatpush1.msra.mxu0 0.0
  %671 = vmatprep.subr.mxu0 0.0
  %672 = vmatpush1.msra.mxu0 0.0
  %673 = vmatprep.subr.mxu0 0.0
  %674 = vmatpush1.msra.mxu0 0.0
  %675 = vmatprep.subr.mxu0 0.0
  %676 = vmatpush1.msra.mxu0 0.0
  %677 = vmatprep.subr.mxu0 0.0
  %678 = vmatpush1.msra.mxu0 0.0
  %679 = vmatprep.subr.mxu0 0.0
  %680 = vmatpush1.msra.mxu0 0.0
  %681 = vmatprep.subr.mxu0 0.0
  %682 = vmatpush1.msra.mxu0 0.0
  %683 = vmatprep.subr.mxu0 0.0
  %684 = vmatpush1.msra.mxu0 0.0
  %685 = vmatprep.subr.mxu0 0.0
  %686 = vmatpush1.msra.mxu0 0.0
  %687 = vmatprep.subr.mxu0 0.0
  %688 = vmatpush1.msra.mxu0 0.0
  %689 = vmatprep.subr.mxu0 0.0
  %690 = vmatpush1.msra.mxu0 0.0
  %691 = vmatprep.subr.mxu0 0.0
  %692 = vmatpush1.msra.mxu0 0.0
  %693 = vmatprep.subr.mxu0 0.0
  %694 = vmatpush1.msra.mxu0 0.0
  %695 = vmatprep.subr.mxu0 0.0
  %696 = vmatpush1.msra.mxu0 0.0
  %697 = vmatprep.subr.mxu0 0.0
  %698 = vmatpush1.msra.mxu0 0.0
  %699 = vmatprep.mubr.f32.mxu0 0.0
  %700 = vmatmul.mubr.f32.gmra.mrb[0].mxu0 %v36
  %v701 = vpop.f32.mrb[0].mxu0
  %v702 = vadd.f32 0.0, %v701
  %v703 = vpop.f32.mrb[0].mxu0
  %704 = vmatprep.mubr.f32.mxu0 0.0
  %705 = vmatmul.mubr.f32.gmra.mrb[0].mxu0 %v39
  %v706 = vpop.f32.mrb[0].mxu0
  %v707 = vadd.f32 0.0, %v706
  %v708 = vpop.f32.mrb[0].mxu0
  %709 = vmatprep.mubr.f32.mxu0 0.0
  %710 = vmatmul.mubr.f32.gmra.mrb[0].mxu0 %v42
  %v711 = vpop.f32.mrb[0].mxu0
  %v712 = vadd.f32 0.0, %v711
  %v713 = vpop.f32.mrb[0].mxu0
  %714 = vmatprep.mubr.f32.mxu0 0.0
  %715 = vmatmul.mubr.f32.gmra.mrb[0].mxu0 %v45
  %v716 = vpop.f32.mrb[0].mxu0
  %v717 = vadd.f32 0.0, %v716
  %v718 = vpop.f32.mrb[0].mxu0
  %719 = vdwg.mxu0
  %v721 = vsel %vm34, %v702, 0
  %v724 = vsel %vm34, %v707, 0
  %v727 = vsel %vm34, %v712, 0
  %v730 = vsel %vm34, %v717, 0
  %732 = vmatprep.subr.mxu0 0.0
  %733 = vmatpush1.msra.mxu0 %v18
  %734 = vmatprep.subr.mxu0 0.0
  %735 = vmatpush1.msra.mxu0 %v19
  %736 = vmatprep.subr.mxu0 0.0
  %737 = vmatpush1.msra.mxu0 %v20
  %738 = vmatprep.subr.mxu0 0.0
  %739 = vmatpush1.msra.mxu0 %v21
  %740 = vmatprep.subr.mxu0 0.0
  %741 = vmatpush1.msra.mxu0 %v22
  %742 = vmatprep.subr.mxu0 0.0
  %743 = vmatpush1.msra.mxu0 %v23
  %744 = vmatprep.subr.mxu0 0.0
  %745 = vmatpush1.msra.mxu0 %v24
  %746 = vmatprep.subr.mxu0 0.0
  %747 = vmatpush1.msra.mxu0 %v25
  %748 = vmatprep.subr.mxu0 0.0
  %749 = vmatpush1.msra.mxu0 0.0
  %750 = vmatprep.subr.mxu0 0.0
  %751 = vmatpush1.msra.mxu0 0.0
  %752 = vmatprep.subr.mxu0 0.0
  %753 = vmatpush1.msra.mxu0 0.0
  %754 = vmatprep.subr.mxu0 0.0
  %755 = vmatpush1.msra.mxu0 0.0
  %756 = vmatprep.subr.mxu0 0.0
  %757 = vmatpush1.msra.mxu0 0.0
  %758 = vmatprep.subr.mxu0 0.0
  %759 = vmatpush1.msra.mxu0 0.0
  %760 = vmatprep.subr.mxu0 0.0
  %761 = vmatpush1.msra.mxu0 0.0
  %762 = vmatprep.subr.mxu0 0.0
  %763 = vmatpush1.msra.mxu0 0.0
  %764 = vmatprep.subr.mxu0 0.0
  %765 = vmatpush1.msra.mxu0 0.0
  %766 = vmatprep.subr.mxu0 0.0
  %767 = vmatpush1.msra.mxu0 0.0
  %768 = vmatprep.subr.mxu0 0.0
  %769 = vmatpush1.msra.mxu0 0.0
  %770 = vmatprep.subr.mxu0 0.0
  %771 = vmatpush1.msra.mxu0 0.0
  %772 = vmatprep.subr.mxu0 0.0
  %773 = vmatpush1.msra.mxu0 0.0
  %774 = vmatprep.subr.mxu0 0.0
  %775 = vmatpush1.msra.mxu0 0.0
  %776 = vmatprep.subr.mxu0 0.0
  %777 = vmatpush1.msra.mxu0 0.0
  %778 = vmatprep.subr.mxu0 0.0
  %779 = vmatpush1.msra.mxu0 0.0
  %780 = vmatprep.subr.mxu0 0.0
  %781 = vmatpush1.msra.mxu0 0.0
  %782 = vmatprep.subr.mxu0 0.0
  %783 = vmatpush1.msra.mxu0 0.0
  %784 = vmatprep.subr.mxu0 0.0
  %785 = vmatpush1.msra.mxu0 0.0
  %786 = vmatprep.subr.mxu0 0.0
  %787 = vmatpush1.msra.mxu0 0.0
  %788 = vmatprep.subr.mxu0 0.0
  %789 = vmatpush1.msra.mxu0 0.0
  %790 = vmatprep.subr.mxu0 0.0
  %791 = vmatpush1.msra.mxu0 0.0
  %792 = vmatprep.subr.mxu0 0.0
  %793 = vmatpush1.msra.mxu0 0.0
  %794 = vmatprep.subr.mxu0 0.0
  %795 = vmatpush1.msra.mxu0 0.0
  %796 = vmatprep.mubr.f32.mxu0 0.0
  %797 = vmatmul.mubr.f32.gmra.mrb[0].mxu0 %v721
  %v798 = vpop.f32.mrb[0].mxu0
  %v799 = vadd.f32 0.0, %v798
  %v800 = vpop.f32.mrb[0].mxu0
  %801 = vmatprep.mubr.f32.mxu0 0.0
  %802 = vmatmul.mubr.f32.gmra.mrb[0].mxu0 %v724
  %v803 = vpop.f32.mrb[0].mxu0
  %v804 = vadd.f32 0.0, %v803
  %v805 = vpop.f32.mrb[0].mxu0
  %806 = vmatprep.mubr.f32.mxu0 0.0
  %807 = vmatmul.mubr.f32.gmra.mrb[0].mxu0 %v727
  %v808 = vpop.f32.mrb[0].mxu0
  %v809 = vadd.f32 0.0, %v808
  %v810 = vpop.f32.mrb[0].mxu0
  %811 = vmatprep.mubr.f32.mxu0 0.0
  %812 = vmatmul.mubr.f32.gmra.mrb[0].mxu0 %v730
  %v813 = vpop.f32.mrb[0].mxu0
  %v814 = vadd.f32 0.0, %v813
  %v815 = vpop.f32.mrb[0].mxu0
  %816 = vdwg.mxu0
  %s817 = scalar_lea.vmem %s3, 96
  %818 = vst.msk [vmem:[%s817] sm:$0xff] %vm229, %v799
  %819 = vst.msk [vmem:[%s817 + $0x8] sm:$0xff] %vm229, %v804
  %820 = vst.msk [vmem:[%s817 + $0x10] sm:$0xff] %vm229, %v809
  %821 = vst.msk [vmem:[%s817 + $0x18] sm:$0xff] %vm229, %v814
  %s822 = scalar_lea.vmem %s0, 256
  %v823 = vld [vmem:[%s822] sm:$0xff]
  %v824 = vld [vmem:[%s822 + $0x8] sm:$0xff]
  %v825 = vld [vmem:[%s822 + $0x10] sm:$0xff]
  %v826 = vld [vmem:[%s822 + $0x18] sm:$0xff]
  %v827 = vld [vmem:[%s822 + $0x20] sm:$0xff]
  %v828 = vld [vmem:[%s822 + $0x28] sm:$0xff]
  %v829 = vld [vmem:[%s822 + $0x30] sm:$0xff]
  %v830 = vld [vmem:[%s822 + $0x38] sm:$0xff]
  %831 = vmatprep.subr.mxu0 0.0
  %832 = vmatpush1.msra.mxu0 %v823
  %833 = vmatprep.subr.mxu0 0.0
  %834 = vmatpush1.msra.mxu0 %v824
  %835 = vmatprep.subr.mxu0 0.0
  %836 = vmatpush1.msra.mxu0 %v825
  %837 = vmatprep.subr.mxu0 0.0
  %838 = vmatpush1.msra.mxu0 %v826
  %839 = vmatprep.subr.mxu0 0.0
  %840 = vmatpush1.msra.mxu0 %v827
  %841 = vmatprep.subr.mxu0 0.0
  %842 = vmatpush1.msra.mxu0 %v828
  %843 = vmatprep.subr.mxu0 0.0
  %844 = vmatpush1.msra.mxu0 %v829
  %845 = vmatprep.subr.mxu0 0.0
  %846 = vmatpush1.msra.mxu0 %v830
  %847 = vmatprep.subr.mxu0 0.0
  %848 = vmatpush1.msra.mxu0 0.0
  %849 = vmatprep.subr.mxu0 0.0
  %850 = vmatpush1.msra.mxu0 0.0
  %851 = vmatprep.subr.mxu0 0.0
  %852 = vmatpush1.msra.mxu0 0.0
  %853 = vmatprep.subr.mxu0 0.0
  %854 = vmatpush1.msra.mxu0 0.0
  %855 = vmatprep.subr.mxu0 0.0
  %856 = vmatpush1.msra.mxu0 0.0
  %857 = vmatprep.subr.mxu0 0.0
  %858 = vmatpush1.msra.mxu0 0.0
  %859 = vmatprep.subr.mxu0 0.0
  %860 = vmatpush1.msra.mxu0 0.0
  %861 = vmatprep.subr.mxu0 0.0
  %862 = vmatpush1.msra.mxu0 0.0
  %863 = vmatprep.subr.mxu0 0.0
  %864 = vmatpush1.msra.mxu0 0.0
  %865 = vmatprep.subr.mxu0 0.0
  %866 = vmatpush1.msra.mxu0 0.0
  %867 = vmatprep.subr.mxu0 0.0
  %868 = vmatpush1.msra.mxu0 0.0
  %869 = vmatprep.subr.mxu0 0.0
  %870 = vmatpush1.msra.mxu0 0.0
  %871 = vmatprep.subr.mxu0 0.0
  %872 = vmatpush1.msra.mxu0 0.0
  %873 = vmatprep.subr.mxu0 0.0
  %874 = vmatpush1.msra.mxu0 0.0
  %875 = vmatprep.subr.mxu0 0.0
  %876 = vmatpush1.msra.mxu0 0.0
  %877 = vmatprep.subr.mxu0 0.0
  %878 = vmatpush1.msra.mxu0 0.0
  %879 = vmatprep.subr.mxu0 0.0
  %880 = vmatpush1.msra.mxu0 0.0
  %881 = vmatprep.subr.mxu0 0.0
  %882 = vmatpush1.msra.mxu0 0.0
  %883 = vmatprep.subr.mxu0 0.0
  %884 = vmatpush1.msra.mxu0 0.0
  %885 = vmatprep.subr.mxu0 0.0
  %886 = vmatpush1.msra.mxu0 0.0
  %887 = vmatprep.subr.mxu0 0.0
  %888 = vmatpush1.msra.mxu0 0.0
  %889 = vmatprep.subr.mxu0 0.0
  %890 = vmatpush1.msra.mxu0 0.0
  %891 = vmatprep.subr.mxu0 0.0
  %892 = vmatpush1.msra.mxu0 0.0
  %893 = vmatprep.subr.mxu0 0.0
  %894 = vmatpush1.msra.mxu0 0.0
  %895 = vmatprep.mubr.f32.mxu0 0.0
  %896 = vmatmul.mubr.f32.gmra.mrb[0].mxu0 %v36
  %v897 = vpop.f32.mrb[0].mxu0
  %v898 = vadd.f32 0.0, %v897
  %v899 = vpop.f32.mrb[0].mxu0
  %900 = vmatprep.mubr.f32.mxu0 0.0
  %901 = vmatmul.mubr.f32.gmra.mrb[0].mxu0 %v39
  %v902 = vpop.f32.mrb[0].mxu0
  %v903 = vadd.f32 0.0, %v902
  %v904 = vpop.f32.mrb[0].mxu0
  %905 = vmatprep.mubr.f32.mxu0 0.0
  %906 = vmatmul.mubr.f32.gmra.mrb[0].mxu0 %v42
  %v907 = vpop.f32.mrb[0].mxu0
  %v908 = vadd.f32 0.0, %v907
  %v909 = vpop.f32.mrb[0].mxu0
  %910 = vmatprep.mubr.f32.mxu0 0.0
  %911 = vmatmul.mubr.f32.gmra.mrb[0].mxu0 %v45
  %v912 = vpop.f32.mrb[0].mxu0
  %v913 = vadd.f32 0.0, %v912
  %v914 = vpop.f32.mrb[0].mxu0
  %915 = vdwg.mxu0
  %v917 = vsel %vm34, %v898, 0
  %v920 = vsel %vm34, %v903, 0
  %v923 = vsel %vm34, %v908, 0
  %v926 = vsel %vm34, %v913, 0
  %928 = vmatprep.subr.mxu0 0.0
  %929 = vmatpush1.msra.mxu0 %v18
  %930 = vmatprep.subr.mxu0 0.0
  %931 = vmatpush1.msra.mxu0 %v19
  %932 = vmatprep.subr.mxu0 0.0
  %933 = vmatpush1.msra.mxu0 %v20
  %934 = vmatprep.subr.mxu0 0.0
  %935 = vmatpush1.msra.mxu0 %v21
  %936 = vmatprep.subr.mxu0 0.0
  %937 = vmatpush1.msra.mxu0 %v22
  %938 = vmatprep.subr.mxu0 0.0
  %939 = vmatpush1.msra.mxu0 %v23
  %940 = vmatprep.subr.mxu0 0.0
  %941 = vmatpush1.msra.mxu0 %v24
  %942 = vmatprep.subr.mxu0 0.0
  %943 = vmatpush1.msra.mxu0 %v25
  %944 = vmatprep.subr.mxu0 0.0
  %945 = vmatpush1.msra.mxu0 0.0
  %946 = vmatprep.subr.mxu0 0.0
  %947 = vmatpush1.msra.mxu0 0.0
  %948 = vmatprep.subr.mxu0 0.0
  %949 = vmatpush1.msra.mxu0 0.0
  %950 = vmatprep.subr.mxu0 0.0
  %951 = vmatpush1.msra.mxu0 0.0
  %952 = vmatprep.subr.mxu0 0.0
  %953 = vmatpush1.msra.mxu0 0.0
  %954 = vmatprep.subr.mxu0 0.0
  %955 = vmatpush1.msra.mxu0 0.0
  %956 = vmatprep.subr.mxu0 0.0
  %957 = vmatpush1.msra.mxu0 0.0
  %958 = vmatprep.subr.mxu0 0.0
  %959 = vmatpush1.msra.mxu0 0.0
  %960 = vmatprep.subr.mxu0 0.0
  %961 = vmatpush1.msra.mxu0 0.0
  %962 = vmatprep.subr.mxu0 0.0
  %963 = vmatpush1.msra.mxu0 0.0
  %964 = vmatprep.subr.mxu0 0.0
  %965 = vmatpush1.msra.mxu0 0.0
  %966 = vmatprep.subr.mxu0 0.0
  %967 = vmatpush1.msra.mxu0 0.0
  %968 = vmatprep.subr.mxu0 0.0
  %969 = vmatpush1.msra.mxu0 0.0
  %970 = vmatprep.subr.mxu0 0.0
  %971 = vmatpush1.msra.mxu0 0.0
  %972 = vmatprep.subr.mxu0 0.0
  %973 = vmatpush1.msra.mxu0 0.0
  %974 = vmatprep.subr.mxu0 0.0
  %975 = vmatpush1.msra.mxu0 0.0
  %976 = vmatprep.subr.mxu0 0.0
  %977 = vmatpush1.msra.mxu0 0.0
  %978 = vmatprep.subr.mxu0 0.0
  %979 = vmatpush1.msra.mxu0 0.0
  %980 = vmatprep.subr.mxu0 0.0
  %981 = vmatpush1.msra.mxu0 0.0
  %982 = vmatprep.subr.mxu0 0.0
  %983 = vmatpush1.msra.mxu0 0.0
  %984 = vmatprep.subr.mxu0 0.0
  %985 = vmatpush1.msra.mxu0 0.0
  %986 = vmatprep.subr.mxu0 0.0
  %987 = vmatpush1.msra.mxu0 0.0
  %988 = vmatprep.subr.mxu0 0.0
  %989 = vmatpush1.msra.mxu0 0.0
  %990 = vmatprep.subr.mxu0 0.0
  %991 = vmatpush1.msra.mxu0 0.0
  %992 = vmatprep.mubr.f32.mxu0 0.0
  %993 = vmatmul.mubr.f32.gmra.mrb[0].mxu0 %v917
  %v994 = vpop.f32.mrb[0].mxu0
  %v995 = vadd.f32 0.0, %v994
  %v996 = vpop.f32.mrb[0].mxu0
  %997 = vmatprep.mubr.f32.mxu0 0.0
  %998 = vmatmul.mubr.f32.gmra.mrb[0].mxu0 %v920
  %v999 = vpop.f32.mrb[0].mxu0
  %v1000 = vadd.f32 0.0, %v999
  %v1001 = vpop.f32.mrb[0].mxu0
  %1002 = vmatprep.mubr.f32.mxu0 0.0
  %1003 = vmatmul.mubr.f32.gmra.mrb[0].mxu0 %v923
  %v1004 = vpop.f32.mrb[0].mxu0
  %v1005 = vadd.f32 0.0, %v1004
  %v1006 = vpop.f32.mrb[0].mxu0
  %1007 = vmatprep.mubr.f32.mxu0 0.0
  %1008 = vmatmul.mubr.f32.gmra.mrb[0].mxu0 %v926
  %v1009 = vpop.f32.mrb[0].mxu0
  %v1010 = vadd.f32 0.0, %v1009
  %v1011 = vpop.f32.mrb[0].mxu0
  %1012 = vdwg.mxu0
  %s1013 = scalar_lea.vmem %s3, 128
  %1014 = vst.msk [vmem:[%s1013] sm:$0xff] %vm229, %v995
  %1015 = vst.msk [vmem:[%s1013 + $0x8] sm:$0xff] %vm229, %v1000
  %1016 = vst.msk [vmem:[%s1013 + $0x10] sm:$0xff] %vm229, %v1005
  %1017 = vst.msk [vmem:[%s1013 + $0x18] sm:$0xff] %vm229, %v1010
  %s1018 = scalar_lea.vmem %s0, 320
  %v1019 = vld [vmem:[%s1018] sm:$0xff]
  %v1020 = vld [vmem:[%s1018 + $0x8] sm:$0xff]
  %v1021 = vld [vmem:[%s1018 + $0x10] sm:$0xff]
  %v1022 = vld [vmem:[%s1018 + $0x18] sm:$0xff]
  %v1023 = vld [vmem:[%s1018 + $0x20] sm:$0xff]
  %v1024 = vld [vmem:[%s1018 + $0x28] sm:$0xff]
  %v1025 = vld [vmem:[%s1018 + $0x30] sm:$0xff]
  %v1026 = vld [vmem:[%s1018 + $0x38] sm:$0xff]
  %1027 = vmatprep.subr.mxu0 0.0
  %1028 = vmatpush1.msra.mxu0 %v1019
  %1029 = vmatprep.subr.mxu0 0.0
  %1030 = vmatpush1.msra.mxu0 %v1020
  %1031 = vmatprep.subr.mxu0 0.0
  %1032 = vmatpush1.msra.mxu0 %v1021
  %1033 = vmatprep.subr.mxu0 0.0
  %1034 = vmatpush1.msra.mxu0 %v1022
  %1035 = vmatprep.subr.mxu0 0.0
  %1036 = vmatpush1.msra.mxu0 %v1023
  %1037 = vmatprep.subr.mxu0 0.0
  %1038 = vmatpush1.msra.mxu0 %v1024
  %1039 = vmatprep.subr.mxu0 0.0
  %1040 = vmatpush1.msra.mxu0 %v1025
  %1041 = vmatprep.subr.mxu0 0.0
  %1042 = vmatpush1.msra.mxu0 %v1026
  %1043 = vmatprep.subr.mxu0 0.0
  %1044 = vmatpush1.msra.mxu0 0.0
  %1045 = vmatprep.subr.mxu0 0.0
  %1046 = vmatpush1.msra.mxu0 0.0
  %1047 = vmatprep.subr.mxu0 0.0
  %1048 = vmatpush1.msra.mxu0 0.0
  %1049 = vmatprep.subr.mxu0 0.0
  %1050 = vmatpush1.msra.mxu0 0.0
  %1051 = vmatprep.subr.mxu0 0.0
  %1052 = vmatpush1.msra.mxu0 0.0
  %1053 = vmatprep.subr.mxu0 0.0
  %1054 = vmatpush1.msra.mxu0 0.0
  %1055 = vmatprep.subr.mxu0 0.0
  %1056 = vmatpush1.msra.mxu0 0.0
  %1057 = vmatprep.subr.mxu0 0.0
  %1058 = vmatpush1.msra.mxu0 0.0
  %1059 = vmatprep.subr.mxu0 0.0
  %1060 = vmatpush1.msra.mxu0 0.0
  %1061 = vmatprep.subr.mxu0 0.0
  %1062 = vmatpush1.msra.mxu0 0.0
  %1063 = vmatprep.subr.mxu0 0.0
  %1064 = vmatpush1.msra.mxu0 0.0
  %1065 = vmatprep.subr.mxu0 0.0
  %1066 = vmatpush1.msra.mxu0 0.0
  %1067 = vmatprep.subr.mxu0 0.0
  %1068 = vmatpush1.msra.mxu0 0.0
  %1069 = vmatprep.subr.mxu0 0.0
  %1070 = vmatpush1.msra.mxu0 0.0
  %1071 = vmatprep.subr.mxu0 0.0
  %1072 = vmatpush1.msra.mxu0 0.0
  %1073 = vmatprep.subr.mxu0 0.0
  %1074 = vmatpush1.msra.mxu0 0.0
  %1075 = vmatprep.subr.mxu0 0.0
  %1076 = vmatpush1.msra.mxu0 0.0
  %1077 = vmatprep.subr.mxu0 0.0
  %1078 = vmatpush1.msra.mxu0 0.0
  %1079 = vmatprep.subr.mxu0 0.0
  %1080 = vmatpush1.msra.mxu0 0.0
  %1081 = vmatprep.subr.mxu0 0.0
  %1082 = vmatpush1.msra.mxu0 0.0
  %1083 = vmatprep.subr.mxu0 0.0
  %1084 = vmatpush1.msra.mxu0 0.0
  %1085 = vmatprep.subr.mxu0 0.0
  %1086 = vmatpush1.msra.mxu0 0.0
  %1087 = vmatprep.subr.mxu0 0.0
  %1088 = vmatpush1.msra.mxu0 0.0
  %1089 = vmatprep.subr.mxu0 0.0
  %1090 = vmatpush1.msra.mxu0 0.0
  %1091 = vmatprep.mubr.f32.mxu0 0.0
  %1092 = vmatmul.mubr.f32.gmra.mrb[0].mxu0 %v36
  %v1093 = vpop.f32.mrb[0].mxu0
  %v1094 = vadd.f32 0.0, %v1093
  %v1095 = vpop.f32.mrb[0].mxu0
  %1096 = vmatprep.mubr.f32.mxu0 0.0
  %1097 = vmatmul.mubr.f32.gmra.mrb[0].mxu0 %v39
  %v1098 = vpop.f32.mrb[0].mxu0
  %v1099 = vadd.f32 0.0, %v1098
  %v1100 = vpop.f32.mrb[0].mxu0
  %1101 = vmatprep.mubr.f32.mxu0 0.0
  %1102 = vmatmul.mubr.f32.gmra.mrb[0].mxu0 %v42
  %v1103 = vpop.f32.mrb[0].mxu0
  %v1104 = vadd.f32 0.0, %v1103
  %v1105 = vpop.f32.mrb[0].mxu0
  %1106 = vmatprep.mubr.f32.mxu0 0.0
  %1107 = vmatmul.mubr.f32.gmra.mrb[0].mxu0 %v45
  %v1108 = vpop.f32.mrb[0].mxu0
  %v1109 = vadd.f32 0.0, %v1108
  %v1110 = vpop.f32.mrb[0].mxu0
  %1111 = vdwg.mxu0
  %v1113 = vsel %vm34, %v1094, 0
  %v1116 = vsel %vm34, %v1099, 0
  %v1119 = vsel %vm34, %v1104, 0
  %v1122 = vsel %vm34, %v1109, 0
  %1124 = vmatprep.subr.mxu0 0.0
  %1125 = vmatpush1.msra.mxu0 %v18
  %1126 = vmatprep.subr.mxu0 0.0
  %1127 = vmatpush1.msra.mxu0 %v19
  %1128 = vmatprep.subr.mxu0 0.0
  %1129 = vmatpush1.msra.mxu0 %v20
  %1130 = vmatprep.subr.mxu0 0.0
  %1131 = vmatpush1.msra.mxu0 %v21
  %1132 = vmatprep.subr.mxu0 0.0
  %1133 = vmatpush1.msra.mxu0 %v22
  %1134 = vmatprep.subr.mxu0 0.0
  %1135 = vmatpush1.msra.mxu0 %v23
  %1136 = vmatprep.subr.mxu0 0.0
  %1137 = vmatpush1.msra.mxu0 %v24
  %1138 = vmatprep.subr.mxu0 0.0
  %1139 = vmatpush1.msra.mxu0 %v25
  %1140 = vmatprep.subr.mxu0 0.0
  %1141 = vmatpush1.msra.mxu0 0.0
  %1142 = vmatprep.subr.mxu0 0.0
  %1143 = vmatpush1.msra.mxu0 0.0
  %1144 = vmatprep.subr.mxu0 0.0
  %1145 = vmatpush1.msra.mxu0 0.0
  %1146 = vmatprep.subr.mxu0 0.0
  %1147 = vmatpush1.msra.mxu0 0.0
  %1148 = vmatprep.subr.mxu0 0.0
  %1149 = vmatpush1.msra.mxu0 0.0
  %1150 = vmatprep.subr.mxu0 0.0
  %1151 = vmatpush1.msra.mxu0 0.0
  %1152 = vmatprep.subr.mxu0 0.0
  %1153 = vmatpush1.msra.mxu0 0.0
  %1154 = vmatprep.subr.mxu0 0.0
  %1155 = vmatpush1.msra.mxu0 0.0
  %1156 = vmatprep.subr.mxu0 0.0
  %1157 = vmatpush1.msra.mxu0 0.0
  %1158 = vmatprep.subr.mxu0 0.0
  %1159 = vmatpush1.msra.mxu0 0.0
  %1160 = vmatprep.subr.mxu0 0.0
  %1161 = vmatpush1.msra.mxu0 0.0
  %1162 = vmatprep.subr.mxu0 0.0
  %1163 = vmatpush1.msra.mxu0 0.0
  %1164 = vmatprep.subr.mxu0 0.0
  %1165 = vmatpush1.msra.mxu0 0.0
  %1166 = vmatprep.subr.mxu0 0.0
  %1167 = vmatpush1.msra.mxu0 0.0
  %1168 = vmatprep.subr.mxu0 0.0
  %1169 = vmatpush1.msra.mxu0 0.0
  %1170 = vmatprep.subr.mxu0 0.0
  %1171 = vmatpush1.msra.mxu0 0.0
  %1172 = vmatprep.subr.mxu0 0.0
  %1173 = vmatpush1.msra.mxu0 0.0
  %1174 = vmatprep.subr.mxu0 0.0
  %1175 = vmatpush1.msra.mxu0 0.0
  %1176 = vmatprep.subr.mxu0 0.0
  %1177 = vmatpush1.msra.mxu0 0.0
  %1178 = vmatprep.subr.mxu0 0.0
  %1179 = vmatpush1.msra.mxu0 0.0
  %1180 = vmatprep.subr.mxu0 0.0
  %1181 = vmatpush1.msra.mxu0 0.0
  %1182 = vmatprep.subr.mxu0 0.0
  %1183 = vmatpush1.msra.mxu0 0.0
  %1184 = vmatprep.subr.mxu0 0.0
  %1185 = vmatpush1.msra.mxu0 0.0
  %1186 = vmatprep.subr.mxu0 0.0
  %1187 = vmatpush1.msra.mxu0 0.0
  %1188 = vmatprep.mubr.f32.mxu0 0.0
  %1189 = vmatmul.mubr.f32.gmra.mrb[0].mxu0 %v1113
  %v1190 = vpop.f32.mrb[0].mxu0
  %v1191 = vadd.f32 0.0, %v1190
  %v1192 = vpop.f32.mrb[0].mxu0
  %1193 = vmatprep.mubr.f32.mxu0 0.0
  %1194 = vmatmul.mubr.f32.gmra.mrb[0].mxu0 %v1116
  %v1195 = vpop.f32.mrb[0].mxu0
  %v1196 = vadd.f32 0.0, %v1195
  %v1197 = vpop.f32.mrb[0].mxu0
  %1198 = vmatprep.mubr.f32.mxu0 0.0
  %1199 = vmatmul.mubr.f32.gmra.mrb[0].mxu0 %v1119
  %v1200 = vpop.f32.mrb[0].mxu0
  %v1201 = vadd.f32 0.0, %v1200
  %v1202 = vpop.f32.mrb[0].mxu0
  %1203 = vmatprep.mubr.f32.mxu0 0.0
  %1204 = vmatmul.mubr.f32.gmra.mrb[0].mxu0 %v1122
  %v1205 = vpop.f32.mrb[0].mxu0
  %v1206 = vadd.f32 0.0, %v1205
  %v1207 = vpop.f32.mrb[0].mxu0
  %1208 = vdwg.mxu0
  %s1209 = scalar_lea.vmem %s3, 160
  %1210 = vst.msk [vmem:[%s1209] sm:$0xff] %vm229, %v1191
  %1211 = vst.msk [vmem:[%s1209 + $0x8] sm:$0xff] %vm229, %v1196
  %1212 = vst.msk [vmem:[%s1209 + $0x10] sm:$0xff] %vm229, %v1201
  %1213 = vst.msk [vmem:[%s1209 + $0x18] sm:$0xff] %vm229, %v1206
  // Predicated region
  $region14: #{_lambda_.6} parent=0 // pred_check
    _
  $region15: #{_lambda_.6} parent=0 // pred_check_branch
    %1215 = sbr.rel (0) target = $region17
  $region16: #{_lambda_.6} parent=0 // pred_region
    _
  $region17: #{_lambda_.6} parent=0 // pred_fallthru
    _
  // Predicated region
  $region18: #{_lambda_.6} parent=0 // pred_check
    _
  $region19: #{_lambda_.6} parent=0 // pred_check_branch
    %1217 = sbr.rel (0) target = $region21
  $region20: #{_lambda_.6} parent=0 // pred_region
    _
  $region21: #{_lambda_.6} parent=0 // pred_fallthru
    _

// kernel: _lambda_.7
$region0: #{_lambda_.7}
  #allocation0 [shape = 'u32[]', space=smem, size = 0x4, offset = 0x4, fixed_abs, tag = 'smem constant byte address 0x4 - core index']
  #allocation1 [shape = 'u32[144,128]{1,0:T(1,128)}', space=vmem, size = 0x12000, scoped, tag = 'internal scratch']
  %s0 = inlined_call_operand.vmem [shape: f32[40,768], index: 0, kind: input, shape index: {}]
  %s1 = inlined_call_operand.vmem [shape: bf16[768,64], index: 1, kind: input, shape index: {}]
  %s2 = inlined_call_operand.vmem [shape: f32[1,64], index: 2, kind: input, shape index: {}]
  %s3 = inlined_call_operand.vmem [shape: f32[40,64], index: 3, kind: output, shape index: {}]
  %s4 = sld [smem:[#allocation0]]
  $region22: #{_lambda_.7} parent=0
    _
  %s6 = ssub.s32 1, %s4
  %s7 = scalar_select 0, %s6, %s4
  // Predicated region
  $region2: #{_lambda_.7} parent=0 // pred_check
    _
  $region3: #{_lambda_.7} parent=0 // pred_check_branch
    %9 = sbr.rel (0) target = $region5
  $region4: #{_lambda_.7} parent=0 // pred_region
    _
  $region5: #{_lambda_.7} parent=0 // pred_fallthru
    _
  // Predicated region
  $region6: #{_lambda_.7} parent=0 // pred_check
    _
  $region7: #{_lambda_.7} parent=0 // pred_check_branch
    %11 = sbr.rel (0) target = $region9
  $region8: #{_lambda_.7} parent=0 // pred_region
    _
  $region9: #{_lambda_.7} parent=0 // pred_fallthru
    _
  // Predicated region
  $region10: #{_lambda_.7} parent=0 // pred_check
    _
  $region11: #{_lambda_.7} parent=0 // pred_check_branch
    %13 = sbr.rel (0) target = $region13
  $region12: #{_lambda_.7} parent=0 // pred_region
    _
  $region13: #{_lambda_.7} parent=0 // pred_fallthru
    _
  %v15 = vld [vmem:[%s0] sm:$0xff]
  %v16 = vld [vmem:[%s0 + $0x8] sm:$0xff]
  %v17 = vld [vmem:[%s0 + $0x10] sm:$0xff]
  %v18 = vld [vmem:[%s0 + $0x18] sm:$0xff]
  %v19 = vld [vmem:[%s0 + $0x20] sm:$0xff]
  %v20 = vld [vmem:[%s0 + $0x28] sm:$0xff]
  %v21 = vld [vmem:[%s0 + $0x30] sm:$0xff]
  %v22 = vld [vmem:[%s0 + $0x38] sm:$0xff]
  %v23 = vld [vmem:[%s0 + $0x40] sm:$0xff]
  %v24 = vld [vmem:[%s0 + $0x48] sm:$0xff]
  %v25 = vld [vmem:[%s0 + $0x50] sm:$0xff]
  %v26 = vld [vmem:[%s0 + $0x58] sm:$0xff]
  %v27 = vld [vmem:[%s0 + $0x60] sm:$0xff]
  %v28 = vld [vmem:[%s0 + $0x68] sm:$0xff]
  %v29 = vld [vmem:[%s0 + $0x70] sm:$0xff]
  %v30 = vld [vmem:[%s0 + $0x78] sm:$0xff]
  %v31 = vld [vmem:[%s0 + $0x80] sm:$0xff]
  %v32 = vld [vmem:[%s0 + $0x88] sm:$0xff]
  %v33 = vld [vmem:[%s0 + $0x90] sm:$0xff]
  %v34 = vld [vmem:[%s0 + $0x98] sm:$0xff]
  %v35 = vld [vmem:[%s0 + $0xa0] sm:$0xff]
  %v36 = vld [vmem:[%s0 + $0xa8] sm:$0xff]
  %v37 = vld [vmem:[%s0 + $0xb0] sm:$0xff]
  %v38 = vld [vmem:[%s0 + $0xb8] sm:$0xff]
  %v39 = vld [vmem:[%s0 + $0xc0] sm:$0xff]
  %v40 = vld [vmem:[%s0 + $0xc8] sm:$0xff]
  %v41 = vld [vmem:[%s0 + $0xd0] sm:$0xff]
  %v42 = vld [vmem:[%s0 + $0xd8] sm:$0xff]
  %v43 = vld [vmem:[%s0 + $0xe0] sm:$0xff]
  %v44 = vld [vmem:[%s0 + $0xe8] sm:$0xff]
  %v45 = vld [vmem:[%s1] sm:$0xf]
  %v46 = vld [vmem:[%s1 + $0x4] sm:$0xf]
  %v47 = vld [vmem:[%s1 + $0x8] sm:$0xf]
  %v48 = vld [vmem:[%s1 + $0xc] sm:$0xf]
  %v49 = vld [vmem:[%s1 + $0x10] sm:$0xf]
  %v50 = vld [vmem:[%s1 + $0x14] sm:$0xf]
  %v51 = vld [vmem:[%s1 + $0x18] sm:$0xf]
  %v52 = vld [vmem:[%s1 + $0x1c] sm:$0xf]
  %v53 = vld [vmem:[%s1 + $0x20] sm:$0xf]
  %v54 = vld [vmem:[%s1 + $0x24] sm:$0xf]
  %v55 = vld [vmem:[%s1 + $0x28] sm:$0xf]
  %v56 = vld [vmem:[%s1 + $0x2c] sm:$0xf]
  %v57 = vld [vmem:[%s1 + $0x30] sm:$0xf]
  %v58 = vld [vmem:[%s1 + $0x34] sm:$0xf]
  %v59 = vld [vmem:[%s1 + $0x38] sm:$0xf]
  %v60 = vld [vmem:[%s1 + $0x3c] sm:$0xf]
  %v61 = vld [vmem:[%s1 + $0x40] sm:$0xf]
  %v62 = vld [vmem:[%s1 + $0x44] sm:$0xf]
  %v63 = vld [vmem:[%s1 + $0x48] sm:$0xf]
  %v64 = vld [vmem:[%s1 + $0x4c] sm:$0xf]
  %v65 = vld [vmem:[%s1 + $0x50] sm:$0xf]
  %v66 = vld [vmem:[%s1 + $0x54] sm:$0xf]
  %v67 = vld [vmem:[%s1 + $0x58] sm:$0xf]
  %v68 = vld [vmem:[%s1 + $0x5c] sm:$0xf]
  %v69 = vld [vmem:[%s1 + $0x60] sm:$0xf]
  %v70 = vld [vmem:[%s1 + $0x64] sm:$0xf]
  %v71 = vld [vmem:[%s1 + $0x68] sm:$0xf]
  %v72 = vld [vmem:[%s1 + $0x6c] sm:$0xf]
  %v73 = vld [vmem:[%s1 + $0x70] sm:$0xf]
  %v74 = vld [vmem:[%s1 + $0x74] sm:$0xf]
  %v75 = vld [vmem:[%s1 + $0x78] sm:$0xf]
  %v76 = vld [vmem:[%s1 + $0x7c] sm:$0xf]
  %v77 = vld [vmem:[%s1 + $0x80] sm:$0xf]
  %v78 = vld [vmem:[%s1 + $0x84] sm:$0xf]
  %v79 = vld [vmem:[%s1 + $0x88] sm:$0xf]
  %v80 = vld [vmem:[%s1 + $0x8c] sm:$0xf]
  %v81 = vld [vmem:[%s1 + $0x90] sm:$0xf]
  %v82 = vld [vmem:[%s1 + $0x94] sm:$0xf]
  %v83 = vld [vmem:[%s1 + $0x98] sm:$0xf]
  %v84 = vld [vmem:[%s1 + $0x9c] sm:$0xf]
  %v85 = vld [vmem:[%s1 + $0xa0] sm:$0xf]
  %v86 = vld [vmem:[%s1 + $0xa4] sm:$0xf]
  %v87 = vld [vmem:[%s1 + $0xa8] sm:$0xf]
  %v88 = vld [vmem:[%s1 + $0xac] sm:$0xf]
  %v89 = vld [vmem:[%s1 + $0xb0] sm:$0xf]
  %v90 = vld [vmem:[%s1 + $0xb4] sm:$0xf]
  %v91 = vld [vmem:[%s1 + $0xb8] sm:$0xf]
  %v92 = vld [vmem:[%s1 + $0xbc] sm:$0xf]
  %v93 = vld [vmem:[%s1 + $0xc0] sm:$0xf]
  %v94 = vld [vmem:[%s1 + $0xc4] sm:$0xf]
  %v95 = vld [vmem:[%s1 + $0xc8] sm:$0xf]
  %v96 = vld [vmem:[%s1 + $0xcc] sm:$0xf]
  %v97 = vld [vmem:[%s1 + $0xd0] sm:$0xf]
  %v98 = vld [vmem:[%s1 + $0xd4] sm:$0xf]
  %v99 = vld [vmem:[%s1 + $0xd8] sm:$0xf]
  %v100 = vld [vmem:[%s1 + $0xdc] sm:$0xf]
  %v101 = vld [vmem:[%s1 + $0xe0] sm:$0xf]
  %v102 = vld [vmem:[%s1 + $0xe4] sm:$0xf]
  %v103 = vld [vmem:[%s1 + $0xe8] sm:$0xf]
  %v104 = vld [vmem:[%s1 + $0xec] sm:$0xf]
  %v105 = vld [vmem:[%s1 + $0xf0] sm:$0xf]
  %v106 = vld [vmem:[%s1 + $0xf4] sm:$0xf]
  %v107 = vld [vmem:[%s1 + $0xf8] sm:$0xf]
  %v108 = vld [vmem:[%s1 + $0xfc] sm:$0xf]
  %v109 = vld [vmem:[%s1 + $0x100] sm:$0xf]
  %v110 = vld [vmem:[%s1 + $0x104] sm:$0xf]
  %v111 = vld [vmem:[%s1 + $0x108] sm:$0xf]
  %v112 = vld [vmem:[%s1 + $0x10c] sm:$0xf]
  %v113 = vld [vmem:[%s1 + $0x110] sm:$0xf]
  %v114 = vld [vmem:[%s1 + $0x114] sm:$0xf]
  %v115 = vld [vmem:[%s1 + $0x118] sm:$0xf]
  %v116 = vld [vmem:[%s1 + $0x11c] sm:$0xf]
  %v117 = vld [vmem:[%s1 + $0x120] sm:$0xf]
  %v118 = vld [vmem:[%s1 + $0x124] sm:$0xf]
  %v119 = vld [vmem:[%s1 + $0x128] sm:$0xf]
  %v120 = vld [vmem:[%s1 + $0x12c] sm:$0xf]
  %v121 = vld [vmem:[%s1 + $0x130] sm:$0xf]
  %v122 = vld [vmem:[%s1 + $0x134] sm:$0xf]
  %v123 = vld [vmem:[%s1 + $0x138] sm:$0xf]
  %v124 = vld [vmem:[%s1 + $0x13c] sm:$0xf]
  %v125 = vld [vmem:[%s1 + $0x140] sm:$0xf]
  %v126 = vld [vmem:[%s1 + $0x144] sm:$0xf]
  %v127 = vld [vmem:[%s1 + $0x148] sm:$0xf]
  %v128 = vld [vmem:[%s1 + $0x14c] sm:$0xf]
  %v129 = vld [vmem:[%s1 + $0x150] sm:$0xf]
  %v130 = vld [vmem:[%s1 + $0x154] sm:$0xf]
  %v131 = vld [vmem:[%s1 + $0x158] sm:$0xf]
  %v132 = vld [vmem:[%s1 + $0x15c] sm:$0xf]
  %v133 = vld [vmem:[%s1 + $0x160] sm:$0xf]
  %v134 = vld [vmem:[%s1 + $0x164] sm:$0xf]
  %v135 = vld [vmem:[%s1 + $0x168] sm:$0xf]
  %v136 = vld [vmem:[%s1 + $0x16c] sm:$0xf]
  %v137 = vld [vmem:[%s1 + $0x170] sm:$0xf]
  %v138 = vld [vmem:[%s1 + $0x174] sm:$0xf]
  %v139 = vld [vmem:[%s1 + $0x178] sm:$0xf]
  %v140 = vld [vmem:[%s1 + $0x17c] sm:$0xf]
  %v141 = vpack.c.bf16 %v21, %v15
  %v142 = vpack.c.bf16 %v22, %v16
  %v143 = vpack.c.bf16 %v23, %v17
  %v144 = vpack.c.bf16 %v24, %v18
  %v145 = vpack.c.bf16 %v25, %v19
  %v146 = vpack.c.bf16 %v26, %v20
  %v147 = vpack.c.bf16 %v33, %v27
  %v148 = vpack.c.bf16 %v34, %v28
  %v149 = vpack.c.bf16 %v35, %v29
  %v150 = vpack.c.bf16 %v36, %v30
  %v151 = vpack.c.bf16 %v37, %v31
  %v152 = vpack.c.bf16 %v38, %v32
  %v153 = vpack.c.bf16 %v39, %v39
  %v154 = vpack.c.bf16 %v40, %v40
  %v155 = vpack.c.bf16 %v41, %v41
  %v156 = vpack.c.bf16 %v42, %v42
  %v157 = vpack.c.bf16 %v43, %v43
  %v158 = vpack.c.bf16 %v44, %v44
  %v159 = vld [vmem:[%s2] sm:$0x1]
  %v161 = vlaneseq
  %v162 = vshrl.u32 %v161, 7
  %v163 = vsub.s32 0, %v162
  %v164 = vrot.slane %v159, %v163
  %v262 = vunpack.c.l.b16 %v45
  %v263 = vunpack.c.l.b16 %v46
  %v264 = vunpack.c.l.b16 %v47
  %v265 = vunpack.c.l.b16 %v48
  %v266 = vunpack.c.l.b16 %v49
  %v267 = vunpack.c.l.b16 %v50
  %v268 = vunpack.c.l.b16 %v51
  %v269 = vunpack.c.l.b16 %v52
  %v270 = vunpack.c.l.b16 %v53
  %v271 = vunpack.c.l.b16 %v54
  %v272 = vunpack.c.l.b16 %v55
  %v273 = vunpack.c.l.b16 %v56
  %v274 = vunpack.c.l.b16 %v57
  %v275 = vunpack.c.l.b16 %v58
  %v276 = vunpack.c.l.b16 %v59
  %v277 = vunpack.c.l.b16 %v60
  %v278 = vunpack.c.l.b16 %v61
  %v279 = vunpack.c.l.b16 %v62
  %v280 = vunpack.c.l.b16 %v63
  %v281 = vunpack.c.l.b16 %v64
  %v282 = vunpack.c.l.b16 %v65
  %v283 = vunpack.c.l.b16 %v66
  %v284 = vunpack.c.l.b16 %v67
  %v285 = vunpack.c.l.b16 %v68
  %v286 = vunpack.c.l.b16 %v69
  %v287 = vunpack.c.l.b16 %v70
  %v288 = vunpack.c.l.b16 %v71
  %v289 = vunpack.c.l.b16 %v72
  %v290 = vunpack.c.l.b16 %v73
  %v291 = vunpack.c.l.b16 %v74
  %v292 = vunpack.c.l.b16 %v75
  %v293 = vunpack.c.l.b16 %v76
  %v294 = vunpack.c.l.b16 %v77
  %v295 = vunpack.c.l.b16 %v78
  %v296 = vunpack.c.l.b16 %v79
  %v297 = vunpack.c.l.b16 %v80
  %v298 = vunpack.c.l.b16 %v81
  %v299 = vunpack.c.l.b16 %v82
  %v300 = vunpack.c.l.b16 %v83
  %v301 = vunpack.c.l.b16 %v84
  %v302 = vunpack.c.l.b16 %v85
  %v303 = vunpack.c.l.b16 %v86
  %v304 = vunpack.c.l.b16 %v87
  %v305 = vunpack.c.l.b16 %v88
  %v306 = vunpack.c.l.b16 %v89
  %v307 = vunpack.c.l.b16 %v90
  %v308 = vunpack.c.l.b16 %v91
  %v309 = vunpack.c.l.b16 %v92
  %v310 = vunpack.c.l.b16 %v93
  %v311 = vunpack.c.l.b16 %v94
  %v312 = vunpack.c.l.b16 %v95
  %v313 = vunpack.c.l.b16 %v96
  %v314 = vunpack.c.l.b16 %v97
  %v315 = vunpack.c.l.b16 %v98
  %v316 = vunpack.c.l.b16 %v99
  %v317 = vunpack.c.l.b16 %v100
  %v318 = vunpack.c.l.b16 %v101
  %v319 = vunpack.c.l.b16 %v102
  %v320 = vunpack.c.l.b16 %v103
  %v321 = vunpack.c.l.b16 %v104
  %v322 = vunpack.c.l.b16 %v105
  %v323 = vunpack.c.l.b16 %v106
  %v324 = vunpack.c.l.b16 %v107
  %v325 = vunpack.c.l.b16 %v108
  %v326 = vunpack.c.l.b16 %v109
  %v327 = vunpack.c.l.b16 %v110
  %v328 = vunpack.c.l.b16 %v111
  %v329 = vunpack.c.l.b16 %v112
  %v330 = vunpack.c.l.b16 %v113
  %v331 = vunpack.c.l.b16 %v114
  %v332 = vunpack.c.l.b16 %v115
  %v333 = vunpack.c.l.b16 %v116
  %v334 = vunpack.c.l.b16 %v117
  %v335 = vunpack.c.l.b16 %v118
  %v336 = vunpack.c.l.b16 %v119
  %v337 = vunpack.c.l.b16 %v120
  %v338 = vunpack.c.l.b16 %v121
  %v339 = vunpack.c.l.b16 %v122
  %v340 = vunpack.c.l.b16 %v123
  %v341 = vunpack.c.l.b16 %v124
  %v342 = vunpack.c.l.b16 %v125
  %v343 = vunpack.c.l.b16 %v126
  %v344 = vunpack.c.l.b16 %v127
  %v345 = vunpack.c.l.b16 %v128
  %v346 = vunpack.c.l.b16 %v129
  %v347 = vunpack.c.l.b16 %v130
  %v348 = vunpack.c.l.b16 %v131
  %v349 = vunpack.c.l.b16 %v132
  %v350 = vunpack.c.l.b16 %v133
  %v351 = vunpack.c.l.b16 %v134
  %v352 = vunpack.c.l.b16 %v135
  %v353 = vunpack.c.l.b16 %v136
  %v354 = vunpack.c.l.b16 %v137
  %v355 = vunpack.c.l.b16 %v138
  %v356 = vunpack.c.l.b16 %v139
  %v357 = vunpack.c.l.b16 %v140
  %v358 = vpack.c.b16 %v263, %v262
  %v359 = vpack.c.b16 %v265, %v264
  %v360 = vpack.c.b16 %v267, %v266
  %v361 = vpack.c.b16 %v269, %v268
  %v362 = vpack.c.b16 %v271, %v270
  %v363 = vpack.c.b16 %v273, %v272
  %v364 = vpack.c.b16 %v275, %v274
  %v365 = vpack.c.b16 %v277, %v276
  %v366 = vpack.c.b16 %v279, %v278
  %v367 = vpack.c.b16 %v281, %v280
  %v368 = vpack.c.b16 %v283, %v282
  %v369 = vpack.c.b16 %v285, %v284
  %v370 = vpack.c.b16 %v287, %v286
  %v371 = vpack.c.b16 %v289, %v288
  %v372 = vpack.c.b16 %v291, %v290
  %v373 = vpack.c.b16 %v293, %v292
  %v374 = vpack.c.b16 %v295, %v294
  %v375 = vpack.c.b16 %v297, %v296
  %v376 = vpack.c.b16 %v299, %v298
  %v377 = vpack.c.b16 %v301, %v300
  %v378 = vpack.c.b16 %v303, %v302
  %v379 = vpack.c.b16 %v305, %v304
  %v380 = vpack.c.b16 %v307, %v306
  %v381 = vpack.c.b16 %v309, %v308
  %v382 = vpack.c.b16 %v311, %v310
  %v383 = vpack.c.b16 %v313, %v312
  %v384 = vpack.c.b16 %v315, %v314
  %v385 = vpack.c.b16 %v317, %v316
  %v386 = vpack.c.b16 %v319, %v318
  %v387 = vpack.c.b16 %v321, %v320
  %v388 = vpack.c.b16 %v323, %v322
  %v389 = vpack.c.b16 %v325, %v324
  %v390 = vpack.c.b16 %v327, %v326
  %v391 = vpack.c.b16 %v329, %v328
  %v392 = vpack.c.b16 %v331, %v330
  %v393 = vpack.c.b16 %v333, %v332
  %v394 = vpack.c.b16 %v335, %v334
  %v395 = vpack.c.b16 %v337, %v336
  %v396 = vpack.c.b16 %v339, %v338
  %v397 = vpack.c.b16 %v341, %v340
  %v398 = vpack.c.b16 %v343, %v342
  %v399 = vpack.c.b16 %v345, %v344
  %v400 = vpack.c.b16 %v347, %v346
  %v401 = vpack.c.b16 %v349, %v348
  %v402 = vpack.c.b16 %v351, %v350
  %v403 = vpack.c.b16 %v353, %v352
  %v404 = vpack.c.b16 %v355, %v354
  %v405 = vpack.c.b16 %v357, %v356
  %454 = vmatprep.subr.bf16.mxu0 0
  %455 = vmatpush1.bf16.msra.mxu0 %v358
  %456 = vmatprep.subr.bf16.mxu0 0
  %457 = vmatpush1.bf16.msra.mxu0 %v359
  %458 = vmatprep.subr.bf16.mxu0 0
  %459 = vmatpush1.bf16.msra.mxu0 %v360
  %460 = vmatprep.subr.bf16.mxu0 0
  %461 = vmatpush1.bf16.msra.mxu0 %v361
  %462 = vmatprep.subr.bf16.mxu0 0
  %463 = vmatpush1.bf16.msra.mxu0 %v362
  %464 = vmatprep.subr.bf16.mxu0 0
  %465 = vmatpush1.bf16.msra.mxu0 %v363
  %466 = vmatprep.subr.bf16.mxu0 0
  %467 = vmatpush1.bf16.msra.mxu0 %v364
  %468 = vmatprep.subr.bf16.mxu0 0
  %469 = vmatpush1.bf16.msra.mxu0 %v365
  %470 = vmatprep.subr.bf16.mxu0 0
  %471 = vmatpush1.bf16.msra.mxu0 %v366
  %472 = vmatprep.subr.bf16.mxu0 0
  %473 = vmatpush1.bf16.msra.mxu0 %v367
  %474 = vmatprep.subr.bf16.mxu0 0
  %475 = vmatpush1.bf16.msra.mxu0 %v368
  %476 = vmatprep.subr.bf16.mxu0 0
  %477 = vmatpush1.bf16.msra.mxu0 %v369
  %478 = vmatprep.subr.bf16.mxu0 0
  %479 = vmatpush1.bf16.msra.mxu0 %v370
  %480 = vmatprep.subr.bf16.mxu0 0
  %481 = vmatpush1.bf16.msra.mxu0 %v371
  %482 = vmatprep.subr.bf16.mxu0 0
  %483 = vmatpush1.bf16.msra.mxu0 %v372
  %484 = vmatprep.subr.bf16.mxu0 0
  %485 = vmatpush1.bf16.msra.mxu0 %v373
  %486 = vmatprep.mubr.bf16.mxu0 %v142
  %487 = vmatmul.mubr.bf16.gmra.mrb[0].mxu0 %v141
  %v488 = vpop.f32.mrb[0].mxu0
  %v489 = vadd.f32 %v164, %v488
  %v490 = vpop.f32.mrb[0].mxu0
  %v491 = vpop.f32.mrb[0].mxu0
  %v492 = vadd.f32 %v164, %v491
  %v493 = vpop.f32.mrb[0].mxu0
  %494 = vmatprep.mubr.bf16.mxu0 %v148
  %495 = vmatmul.mubr.bf16.gmra.mrb[0].mxu0 %v147
  %v496 = vpop.f32.mrb[0].mxu0
  %v497 = vadd.f32 %v164, %v496
  %v498 = vpop.f32.mrb[0].mxu0
  %v499 = vpop.f32.mrb[0].mxu0
  %v500 = vadd.f32 %v164, %v499
  %v501 = vpop.f32.mrb[0].mxu0
  %502 = vmatprep.mubr.bf16.mxu0 %v154
  %503 = vmatmul.mubr.bf16.gmra.mrb[0].mxu0 %v153
  %v504 = vpop.f32.mrb[0].mxu0
  %v505 = vadd.f32 %v164, %v504
  %v506 = vpop.f32.mrb[0].mxu0
  %v507 = vpop.f32.mrb[0].mxu0
  %v508 = vpop.f32.mrb[0].mxu0
  %509 = vdwg.mxu0
  %510 = vmatprep.subr.bf16.mxu0 0
  %511 = vmatpush1.bf16.msra.mxu0 %v374
  %512 = vmatprep.subr.bf16.mxu0 0
  %513 = vmatpush1.bf16.msra.mxu0 %v375
  %514 = vmatprep.subr.bf16.mxu0 0
  %515 = vmatpush1.bf16.msra.mxu0 %v376
  %516 = vmatprep.subr.bf16.mxu0 0
  %517 = vmatpush1.bf16.msra.mxu0 %v377
  %518 = vmatprep.subr.bf16.mxu0 0
  %519 = vmatpush1.bf16.msra.mxu0 %v378
  %520 = vmatprep.subr.bf16.mxu0 0
  %521 = vmatpush1.bf16.msra.mxu0 %v379
  %522 = vmatprep.subr.bf16.mxu0 0
  %523 = vmatpush1.bf16.msra.mxu0 %v380
  %524 = vmatprep.subr.bf16.mxu0 0
  %525 = vmatpush1.bf16.msra.mxu0 %v381
  %526 = vmatprep.subr.bf16.mxu0 0
  %527 = vmatpush1.bf16.msra.mxu0 %v382
  %528 = vmatprep.subr.bf16.mxu0 0
  %529 = vmatpush1.bf16.msra.mxu0 %v383
  %530 = vmatprep.subr.bf16.mxu0 0
  %531 = vmatpush1.bf16.msra.mxu0 %v384
  %532 = vmatprep.subr.bf16.mxu0 0
  %533 = vmatpush1.bf16.msra.mxu0 %v385
  %534 = vmatprep.subr.bf16.mxu0 0
  %535 = vmatpush1.bf16.msra.mxu0 %v386
  %536 = vmatprep.subr.bf16.mxu0 0
  %537 = vmatpush1.bf16.msra.mxu0 %v387
  %538 = vmatprep.subr.bf16.mxu0 0
  %539 = vmatpush1.bf16.msra.mxu0 %v388
  %540 = vmatprep.subr.bf16.mxu0 0
  %541 = vmatpush1.bf16.msra.mxu0 %v389
  %542 = vmatprep.mubr.bf16.mxu0 %v144
  %543 = vmatmul.mubr.bf16.gmra.mrb[0].mxu0 %v143
  %v544 = vpop.f32.mrb[0].mxu0
  %v545 = vadd.f32 %v489, %v544
  %v546 = vpop.f32.mrb[0].mxu0
  %v547 = vpop.f32.mrb[0].mxu0
  %v548 = vadd.f32 %v492, %v547
  %v549 = vpop.f32.mrb[0].mxu0
  %550 = vmatprep.mubr.bf16.mxu0 %v150
  %551 = vmatmul.mubr.bf16.gmra.mrb[0].mxu0 %v149
  %v552 = vpop.f32.mrb[0].mxu0
  %v553 = vadd.f32 %v497, %v552
  %v554 = vpop.f32.mrb[0].mxu0
  %v555 = vpop.f32.mrb[0].mxu0
  %v556 = vadd.f32 %v500, %v555
  %v557 = vpop.f32.mrb[0].mxu0
  %558 = vmatprep.mubr.bf16.mxu0 %v156
  %559 = vmatmul.mubr.bf16.gmra.mrb[0].mxu0 %v155
  %v560 = vpop.f32.mrb[0].mxu0
  %v561 = vadd.f32 %v505, %v560
  %v562 = vpop.f32.mrb[0].mxu0
  %v563 = vpop.f32.mrb[0].mxu0
  %v564 = vpop.f32.mrb[0].mxu0
  %565 = vdwg.mxu0
  %566 = vmatprep.subr.bf16.mxu0 0
  %567 = vmatpush1.bf16.msra.mxu0 %v390
  %568 = vmatprep.subr.bf16.mxu0 0
  %569 = vmatpush1.bf16.msra.mxu0 %v391
  %570 = vmatprep.subr.bf16.mxu0 0
  %571 = vmatpush1.bf16.msra.mxu0 %v392
  %572 = vmatprep.subr.bf16.mxu0 0
  %573 = vmatpush1.bf16.msra.mxu0 %v393
  %574 = vmatprep.subr.bf16.mxu0 0
  %575 = vmatpush1.bf16.msra.mxu0 %v394
  %576 = vmatprep.subr.bf16.mxu0 0
  %577 = vmatpush1.bf16.msra.mxu0 %v395
  %578 = vmatprep.subr.bf16.mxu0 0
  %579 = vmatpush1.bf16.msra.mxu0 %v396
  %580 = vmatprep.subr.bf16.mxu0 0
  %581 = vmatpush1.bf16.msra.mxu0 %v397
  %582 = vmatprep.subr.bf16.mxu0 0
  %583 = vmatpush1.bf16.msra.mxu0 %v398
  %584 = vmatprep.subr.bf16.mxu0 0
  %585 = vmatpush1.bf16.msra.mxu0 %v399
  %586 = vmatprep.subr.bf16.mxu0 0
  %587 = vmatpush1.bf16.msra.mxu0 %v400
  %588 = vmatprep.subr.bf16.mxu0 0
  %589 = vmatpush1.bf16.msra.mxu0 %v401
  %590 = vmatprep.subr.bf16.mxu0 0
  %591 = vmatpush1.bf16.msra.mxu0 %v402
  %592 = vmatprep.subr.bf16.mxu0 0
  %593 = vmatpush1.bf16.msra.mxu0 %v403
  %594 = vmatprep.subr.bf16.mxu0 0
  %595 = vmatpush1.bf16.msra.mxu0 %v404
  %596 = vmatprep.subr.bf16.mxu0 0
  %597 = vmatpush1.bf16.msra.mxu0 %v405
  %598 = vmatprep.mubr.bf16.mxu0 %v146
  %599 = vmatmul.mubr.bf16.gmra.mrb[0].mxu0 %v145
  %v600 = vpop.f32.mrb[0].mxu0
  %v601 = vadd.f32 %v545, %v600
  %v602 = vpop.f32.mrb[0].mxu0
  %v603 = vpop.f32.mrb[0].mxu0
  %v604 = vadd.f32 %v548, %v603
  %v605 = vpop.f32.mrb[0].mxu0
  %606 = vmatprep.mubr.bf16.mxu0 %v152
  %607 = vmatmul.mubr.bf16.gmra.mrb[0].mxu0 %v151
  %v608 = vpop.f32.mrb[0].mxu0
  %v609 = vadd.f32 %v553, %v608
  %v610 = vpop.f32.mrb[0].mxu0
  %v611 = vpop.f32.mrb[0].mxu0
  %v612 = vadd.f32 %v556, %v611
  %v613 = vpop.f32.mrb[0].mxu0
  %614 = vmatprep.mubr.bf16.mxu0 %v158
  %615 = vmatmul.mubr.bf16.gmra.mrb[0].mxu0 %v157
  %v616 = vpop.f32.mrb[0].mxu0
  %v617 = vadd.f32 %v561, %v616
  %v618 = vpop.f32.mrb[0].mxu0
  %v619 = vpop.f32.mrb[0].mxu0
  %v620 = vpop.f32.mrb[0].mxu0
  %621 = vdwg.mxu0
  %vm622 = vcmask 523264
  %623 = vst.msk [vmem:[%s3] sm:$0xff] %vm622, %v601
  %624 = vst.msk [vmem:[%s3 + $0x8] sm:$0xff] %vm622, %v604
  %625 = vst.msk [vmem:[%s3 + $0x10] sm:$0xff] %vm622, %v609
  %626 = vst.msk [vmem:[%s3 + $0x18] sm:$0xff] %vm622, %v612
  %627 = vst.msk [vmem:[%s3 + $0x20] sm:$0xff] %vm622, %v617
  // Predicated region
  $region14: #{_lambda_.7} parent=0 // pred_check
    _
  $region15: #{_lambda_.7} parent=0 // pred_check_branch
    %629 = sbr.rel (0) target = $region17
  $region16: #{_lambda_.7} parent=0 // pred_region
    _
  $region17: #{_lambda_.7} parent=0 // pred_fallthru
    _
  // Predicated region
  $region18: #{_lambda_.7} parent=0 // pred_check
    _
  $region19: #{_lambda_.7} parent=0 // pred_check_branch
    %631 = sbr.rel (0) target = $region21
  $region20: #{_lambda_.7} parent=0 // pred_region
    _
  $region21: #{_lambda_.7} parent=0 // pred_fallthru
    _

// kernel: tile.7
$region0: #{tile.7}
  %s0 = inlined_call_operand.vmem [shape: f32[2,5,64], index: 0, kind: input, shape index: {}]
  %s1 = inlined_call_operand.vmem [shape: f32[10,64], index: 1, kind: output, shape index: {}]
  %v2 = vld [vmem:[%s0] sm:$0x1f]
  %vm3 = vcmask 523264
  %4 = vst.msk [vmem:[%s1] sm:$0x1f] %vm3, %v2
  %s5 = scalar_lea.vmem %s0, 8
  %v6 = vld [vmem:[%s5] sm:$0x1f]
  %vm7 = vcmask 523264
  %s8 = scalar_lea.vmem %s1, 5
  %9 = vst.msk [vmem:[%s8] sm:$0x1f] %vm7, %v6

// kernel: _lambda_.9
$region0: #{_lambda_.9}
  #allocation0 [shape = 'u32[]', space=smem, size = 0x4, offset = 0x4, fixed_abs, tag = 'smem constant byte address 0x4 - core index']
  #allocation1 [shape = 'u32[144,128]{1,0:T(1,128)}', space=vmem, size = 0x12000, scoped, tag = 'internal scratch']
  %s0 = inlined_call_operand.vmem [shape: f32[50,64], index: 0, kind: input, shape index: {}]
  %s1 = inlined_call_operand.vmem [shape: f32[1,64], index: 1, kind: input, shape index: {}]
  %s2 = inlined_call_operand.vmem [shape: f32[1,64], index: 2, kind: input, shape index: {}]
  %s3 = inlined_call_operand.vmem [shape: f32[10,50], index: 3, kind: input, shape index: {}]
  %s4 = inlined_call_operand.vmem [shape: f32[10,64], index: 4, kind: input, shape index: {}]
  %s5 = inlined_call_operand.vmem [shape: f32[10,64], index: 5, kind: output, shape index: {}]
  %s6 = sld [smem:[#allocation0]]
  $region30: #{_lambda_.9} parent=0
    _
  %s8 = ssub.s32 1, %s6
  %s9 = scalar_select 0, %s8, %s6
  // Predicated region
  $region2: #{_lambda_.9} parent=0 // pred_check
    _
  $region3: #{_lambda_.9} parent=0 // pred_check_branch
    %11 = sbr.rel (0) target = $region5
  $region4: #{_lambda_.9} parent=0 // pred_region
    _
  $region5: #{_lambda_.9} parent=0 // pred_fallthru
    _
  // Predicated region
  $region6: #{_lambda_.9} parent=0 // pred_check
    _
  $region7: #{_lambda_.9} parent=0 // pred_check_branch
    %13 = sbr.rel (0) target = $region9
  $region8: #{_lambda_.9} parent=0 // pred_region
    _
  $region9: #{_lambda_.9} parent=0 // pred_fallthru
    _
  // Predicated region
  $region10: #{_lambda_.9} parent=0 // pred_check
    _
  $region11: #{_lambda_.9} parent=0 // pred_check_branch
    %15 = sbr.rel (0) target = $region13
  $region12: #{_lambda_.9} parent=0 // pred_region
    _
  $region13: #{_lambda_.9} parent=0 // pred_fallthru
    _
  // Predicated region
  $region14: #{_lambda_.9} parent=0 // pred_check
    _
  $region15: #{_lambda_.9} parent=0 // pred_check_branch
    %17 = sbr.rel (0) target = $region17
  $region16: #{_lambda_.9} parent=0 // pred_region
    _
  $region17: #{_lambda_.9} parent=0 // pred_fallthru
    _
  // Predicated region
  $region18: #{_lambda_.9} parent=0 // pred_check
    _
  $region19: #{_lambda_.9} parent=0 // pred_check_branch
    %19 = sbr.rel (0) target = $region21
  $region20: #{_lambda_.9} parent=0 // pred_region
    _
  $region21: #{_lambda_.9} parent=0 // pred_fallthru
    _
  %v20 = vld [vmem:[%s0] sm:$0xff]
  %v21 = vld [vmem:[%s0 + $0x8] sm:$0xff]
  %v22 = vld [vmem:[%s0 + $0x10] sm:$0xff]
  %v23 = vld [vmem:[%s0 + $0x18] sm:$0xff]
  %v24 = vld [vmem:[%s0 + $0x20] sm:$0xff]
  %v25 = vld [vmem:[%s0 + $0x28] sm:$0xff]
  %v26 = vld [vmem:[%s0 + $0x30] sm:$0x3]
  %v27 = vld [vmem:[%s1] sm:$0x1]
  %v28 = vld [vmem:[%s2] sm:$0x1]
  %vm29 = vcmask 523264
  %v30 = vsel %vm29, %v20, 0.0
  %31 = vadd.xlane.f32.xlu0 %v30
  %v32 = vpop.xlane.xlu0 %31
  %v33 = vsel %vm29, %v21, 0.0
  %34 = vadd.xlane.f32.xlu0 %v33
  %v35 = vpop.xlane.xlu0 %34
  %v36 = vsel %vm29, %v22, 0.0
  %37 = vadd.xlane.f32.xlu0 %v36
  %v38 = vpop.xlane.xlu0 %37
  %v39 = vsel %vm29, %v23, 0.0
  %40 = vadd.xlane.f32.xlu0 %v39
  %v41 = vpop.xlane.xlu0 %40
  %v42 = vsel %vm29, %v24, 0.0
  %43 = vadd.xlane.f32.xlu0 %v42
  %v44 = vpop.xlane.xlu0 %43
  %v45 = vsel %vm29, %v25, 0.0
  %46 = vadd.xlane.f32.xlu0 %v45
  %v47 = vpop.xlane.xlu0 %46
  %vm48 = vcmask 517120
  %v49 = vsel %vm48, %v26, 0.0
  %50 = vadd.xlane.f32.xlu0 %v49
  %v51 = vpop.xlane.xlu0 %50
  %v52 = vrcp.pop 64.0
  %v53 = vmul.f32 %v32, %v52
  %v54 = vmul.f32 %v35, %v52
  %v55 = vmul.f32 %v38, %v52
  %v56 = vmul.f32 %v41, %v52
  %v57 = vmul.f32 %v44, %v52
  %v58 = vmul.f32 %v47, %v52
  %v59 = vmul.f32 %v51, %v52
  %v60 = vsub.f32 %v20, %v53
  %v61 = vsub.f32 %v21, %v54
  %v62 = vsub.f32 %v22, %v55
  %v63 = vsub.f32 %v23, %v56
  %v64 = vsub.f32 %v24, %v57
  %v65 = vsub.f32 %v25, %v58
  %v66 = vsub.f32 %v26, %v59
  %v67 = vmul.f32 %v60, %v60
  %v68 = vmul.f32 %v61, %v61
  %v69 = vmul.f32 %v62, %v62
  %v70 = vmul.f32 %v63, %v63
  %v71 = vmul.f32 %v64, %v64
  %v72 = vmul.f32 %v65, %v65
  %v73 = vmul.f32 %v66, %v66
  %v74 = vsel %vm29, %v67, 0.0
  %75 = vadd.xlane.f32.xlu0 %v74
  %v76 = vpop.xlane.xlu0 %75
  %v77 = vsel %vm29, %v68, 0.0
  %78 = vadd.xlane.f32.xlu0 %v77
  %v79 = vpop.xlane.xlu0 %78
  %v80 = vsel %vm29, %v69, 0.0
  %81 = vadd.xlane.f32.xlu0 %v80
  %v82 = vpop.xlane.xlu0 %81
  %v83 = vsel %vm29, %v70, 0.0
  %84 = vadd.xlane.f32.xlu0 %v83
  %v85 = vpop.xlane.xlu0 %84
  %v86 = vsel %vm29, %v71, 0.0
  %87 = vadd.xlane.f32.xlu0 %v86
  %v88 = vpop.xlane.xlu0 %87
  %v89 = vsel %vm29, %v72, 0.0
  %90 = vadd.xlane.f32.xlu0 %v89
  %v91 = vpop.xlane.xlu0 %90
  %v92 = vsel %vm48, %v73, 0.0
  %93 = vadd.xlane.f32.xlu0 %v92
  %v94 = vpop.xlane.xlu0 %93
  %v95 = vmul.f32 %v76, %v52
  %v96 = vmul.f32 %v79, %v52
  %v97 = vmul.f32 %v82, %v52
  %v98 = vmul.f32 %v85, %v52
  %v99 = vmul.f32 %v88, %v52
  %v100 = vmul.f32 %v91, %v52
  %v101 = vmul.f32 %v94, %v52
  %v102 = vadd.f32 %v95, 1e-06
  %v103 = vadd.f32 %v96, 1e-06
  %v104 = vadd.f32 %v97, 1e-06
  %v105 = vadd.f32 %v98, 1e-06
  %v106 = vadd.f32 %v99, 1e-06
  %v107 = vadd.f32 %v100, 1e-06
  %v108 = vadd.f32 %v101, 1e-06
  %v109 = vrsqrt.pop %v102
  %v110 = vrsqrt.pop %v103
  %v111 = vrsqrt.pop %v104
  %v112 = vrsqrt.pop %v105
  %v113 = vrsqrt.pop %v106
  %v114 = vrsqrt.pop %v107
  %v115 = vrsqrt.pop %v108
  %v116 = vmul.f32 %v60, %v109
  %v117 = vmul.f32 %v61, %v110
  %v118 = vmul.f32 %v62, %v111
  %v119 = vmul.f32 %v63, %v112
  %v120 = vmul.f32 %v64, %v113
  %v121 = vmul.f32 %v65, %v114
  %v122 = vmul.f32 %v66, %v115
  %v124 = vlaneseq
  %v125 = vshrl.u32 %v124, 7
  %v126 = vsub.s32 0, %v125
  %v127 = vrot.slane %v27, %v126
  %v129 = vmul.f32 %v116, %v127
  %v130 = vmul.f32 %v117, %v127
  %v131 = vmul.f32 %v118, %v127
  %v132 = vmul.f32 %v119, %v127
  %v133 = vmul.f32 %v120, %v127
  %v134 = vmul.f32 %v121, %v127
  %v135 = vmul.f32 %v122, %v127
  %v137 = vlaneseq
  %v138 = vshrl.u32 %v137, 7
  %v139 = vsub.s32 0, %v138
  %v140 = vrot.slane %v28, %v139
  %v142 = vadd.f32 %v129, %v140
  %v143 = vadd.f32 %v130, %v140
  %v144 = vadd.f32 %v131, %v140
  %v145 = vadd.f32 %v132, %v140
  %v146 = vadd.f32 %v133, %v140
  %v147 = vadd.f32 %v134, %v140
  %v148 = vadd.f32 %v135, %v140
  %v149 = vld [vmem:[%s3] sm:$0xff]
  %v150 = vld [vmem:[%s3 + $0x8] sm:$0x3]
  %v151 = vld [vmem:[%s4] sm:$0xff]
  %v152 = vld [vmem:[%s4 + $0x8] sm:$0x3]
  %vm153 = vcmask 408576
  %v155 = vsel %vm153, %v149, 0
  %v158 = vsel %vm153, %v150, 0
  %vm160 = vcmask 1041408
  %v162 = vsel %vm160, %v148, 0
  %164 = vmatprep.subr.mxu0 0.0
  %165 = vmatpush1.msra.mxu0 %v142
  %166 = vmatprep.subr.mxu0 0.0
  %167 = vmatpush1.msra.mxu0 %v143
  %168 = vmatprep.subr.mxu0 0.0
  %169 = vmatpush1.msra.mxu0 %v144
  %170 = vmatprep.subr.mxu0 0.0
  %171 = vmatpush1.msra.mxu0 %v145
  %172 = vmatprep.subr.mxu0 0.0
  %173 = vmatpush1.msra.mxu0 %v146
  %174 = vmatprep.subr.mxu0 0.0
  %175 = vmatpush1.msra.mxu0 %v147
  %176 = vmatprep.subr.mxu0 0.0
  %177 = vmatpush1.msra.mxu0 %v162
  %178 = vmatprep.subr.mxu0 0.0
  %179 = vmatpush1.msra.mxu0 0.0
  %180 = vmatprep.subr.mxu0 0.0
  %181 = vmatpush1.msra.mxu0 0.0
  %182 = vmatprep.subr.mxu0 0.0
  %183 = vmatpush1.msra.mxu0 0.0
  %184 = vmatprep.subr.mxu0 0.0
  %185 = vmatpush1.msra.mxu0 0.0
  %186 = vmatprep.subr.mxu0 0.0
  %187 = vmatpush1.msra.mxu0 0.0
  %188 = vmatprep.subr.mxu0 0.0
  %189 = vmatpush1.msra.mxu0 0.0
  %190 = vmatprep.subr.mxu0 0.0
  %191 = vmatpush1.msra.mxu0 0.0
  %192 = vmatprep.subr.mxu0 0.0
  %193 = vmatpush1.msra.mxu0 0.0
  %194 = vmatprep.subr.mxu0 0.0
  %195 = vmatpush1.msra.mxu0 0.0
  %196 = vmatprep.subr.mxu0 0.0
  %197 = vmatpush1.msra.mxu0 0.0
  %198 = vmatprep.subr.mxu0 0.0
  %199 = vmatpush1.msra.mxu0 0.0
  %200 = vmatprep.subr.mxu0 0.0
  %201 = vmatpush1.msra.mxu0 0.0
  %202 = vmatprep.subr.mxu0 0.0
  %203 = vmatpush1.msra.mxu0 0.0
  %204 = vmatprep.subr.mxu0 0.0
  %205 = vmatpush1.msra.mxu0 0.0
  %206 = vmatprep.subr.mxu0 0.0
  %207 = vmatpush1.msra.mxu0 0.0
  %208 = vmatprep.subr.mxu0 0.0
  %209 = vmatpush1.msra.mxu0 0.0
  %210 = vmatprep.subr.mxu0 0.0
  %211 = vmatpush1.msra.mxu0 0.0
  %212 = vmatprep.subr.mxu0 0.0
  %213 = vmatpush1.msra.mxu0 0.0
  %214 = vmatprep.subr.mxu0 0.0
  %215 = vmatpush1.msra.mxu0 0.0
  %216 = vmatprep.subr.mxu0 0.0
  %217 = vmatpush1.msra.mxu0 0.0
  %218 = vmatprep.subr.mxu0 0.0
  %219 = vmatpush1.msra.mxu0 0.0
  %220 = vmatprep.subr.mxu0 0.0
  %221 = vmatpush1.msra.mxu0 0.0
  %222 = vmatprep.subr.mxu0 0.0
  %223 = vmatpush1.msra.mxu0 0.0
  %224 = vmatprep.subr.mxu0 0.0
  %225 = vmatpush1.msra.mxu0 0.0
  %226 = vmatprep.subr.mxu0 0.0
  %227 = vmatpush1.msra.mxu0 0.0
  %228 = vmatprep.mubr.f32.mxu0 0.0
  %229 = vmatmul.mubr.f32.gmra.mrb[0].mxu0 %v155
  %v230 = vpop.f32.mrb[0].mxu0
  %v231 = vadd.f32 %v151, %v230
  %v232 = vpop.f32.mrb[0].mxu0
  %233 = vmatprep.mubr.f32.mxu0 0.0
  %234 = vmatmul.mubr.f32.gmra.mrb[0].mxu0 %v158
  %v235 = vpop.f32.mrb[0].mxu0
  %v236 = vadd.f32 %v152, %v235
  %v237 = vpop.f32.mrb[0].mxu0
  %238 = vdwg.mxu0
  %239 = vst.msk [vmem:[%s5] sm:$0xff] %vm29, %v231
  %240 = vst.msk [vmem:[%s5 + $0x8] sm:$0x3] %vm48, %v236
  // Predicated region
  $region22: #{_lambda_.9} parent=0 // pred_check
    _
  $region23: #{_lambda_.9} parent=0 // pred_check_branch
    %242 = sbr.rel (0) target = $region25
  $region24: #{_lambda_.9} parent=0 // pred_region
    _
  $region25: #{_lambda_.9} parent=0 // pred_fallthru
    _
  // Predicated region
  $region26: #{_lambda_.9} parent=0 // pred_check
    _
  $region27: #{_lambda_.9} parent=0 // pred_check_branch
    %244 = sbr.rel (0) target = $region29
  $region28: #{_lambda_.9} parent=0 // pred_region
    _
  $region29: #{_lambda_.9} parent=0 // pred_fallthru
    _

// kernel: _lambda_.11
$region0: #{_lambda_.11}
  #allocation0 [shape = 'u32[]', space=smem, size = 0x4, offset = 0x4, fixed_abs, tag = 'smem constant byte address 0x4 - core index']
  #allocation1 [shape = 'u32[144,128]{1,0:T(1,128)}', space=vmem, size = 0x12000, scoped, tag = 'internal scratch']
  %s0 = inlined_call_operand.vmem [shape: f32[10,64], index: 0, kind: input, shape index: {}]
  %s1 = inlined_call_operand.vmem [shape: f32[1,64], index: 1, kind: input, shape index: {}]
  %s2 = inlined_call_operand.vmem [shape: f32[1,64], index: 2, kind: input, shape index: {}]
  %s3 = inlined_call_operand.vmem [shape: f32[2,10], index: 3, kind: input, shape index: {}]
  %s4 = inlined_call_operand.vmem [shape: f32[3,64,32], index: 4, kind: input, shape index: {}]
  %s5 = inlined_call_operand.vmem [shape: f32[3,1,32], index: 5, kind: input, shape index: {}]
  %s6 = inlined_call_operand.vmem [shape: f32[3,32,16], index: 6, kind: input, shape index: {}]
  %s7 = inlined_call_operand.vmem [shape: f32[3,1,16], index: 7, kind: input, shape index: {}]
  %s8 = inlined_call_operand.vmem [shape: f32[3,16,5], index: 8, kind: input, shape index: {}]
  %s9 = inlined_call_operand.vmem [shape: f32[3,1,5], index: 9, kind: input, shape index: {}]
  %s10 = inlined_call_operand.vmem [shape: f32[3,2,5], index: 10, kind: output, shape index: {}]
  %s11 = sld [smem:[#allocation0]]
  $region50: #{_lambda_.11} parent=0
    _
  %s13 = ssub.s32 1, %s11
  %s14 = scalar_select 0, %s13, %s11
  // Predicated region
  $region2: #{_lambda_.11} parent=0 // pred_check
    _
  $region3: #{_lambda_.11} parent=0 // pred_check_branch
    %16 = sbr.rel (0) target = $region5
  $region4: #{_lambda_.11} parent=0 // pred_region
    _
  $region5: #{_lambda_.11} parent=0 // pred_fallthru
    _
  // Predicated region
  $region6: #{_lambda_.11} parent=0 // pred_check
    _
  $region7: #{_lambda_.11} parent=0 // pred_check_branch
    %18 = sbr.rel (0) target = $region9
  $region8: #{_lambda_.11} parent=0 // pred_region
    _
  $region9: #{_lambda_.11} parent=0 // pred_fallthru
    _
  // Predicated region
  $region10: #{_lambda_.11} parent=0 // pred_check
    _
  $region11: #{_lambda_.11} parent=0 // pred_check_branch
    %20 = sbr.rel (0) target = $region13
  $region12: #{_lambda_.11} parent=0 // pred_region
    _
  $region13: #{_lambda_.11} parent=0 // pred_fallthru
    _
  // Predicated region
  $region14: #{_lambda_.11} parent=0 // pred_check
    _
  $region15: #{_lambda_.11} parent=0 // pred_check_branch
    %22 = sbr.rel (0) target = $region17
  $region16: #{_lambda_.11} parent=0 // pred_region
    _
  $region17: #{_lambda_.11} parent=0 // pred_fallthru
    _
  // Predicated region
  $region18: #{_lambda_.11} parent=0 // pred_check
    _
  $region19: #{_lambda_.11} parent=0 // pred_check_branch
    %24 = sbr.rel (0) target = $region21
  $region20: #{_lambda_.11} parent=0 // pred_region
    _
  $region21: #{_lambda_.11} parent=0 // pred_fallthru
    _
  // Predicated region
  $region22: #{_lambda_.11} parent=0 // pred_check
    _
  $region23: #{_lambda_.11} parent=0 // pred_check_branch
    %26 = sbr.rel (0) target = $region25
  $region24: #{_lambda_.11} parent=0 // pred_region
    _
  $region25: #{_lambda_.11} parent=0 // pred_fallthru
    _
  // Predicated region
  $region26: #{_lambda_.11} parent=0 // pred_check
    _
  $region27: #{_lambda_.11} parent=0 // pred_check_branch
    %28 = sbr.rel (0) target = $region29
  $region28: #{_lambda_.11} parent=0 // pred_region
    _
  $region29: #{_lambda_.11} parent=0 // pred_fallthru
    _
  // Predicated region
  $region30: #{_lambda_.11} parent=0 // pred_check
    _
  $region31: #{_lambda_.11} parent=0 // pred_check_branch
    %30 = sbr.rel (0) target = $region33
  $region32: #{_lambda_.11} parent=0 // pred_region
    _
  $region33: #{_lambda_.11} parent=0 // pred_fallthru
    _
  // Predicated region
  $region34: #{_lambda_.11} parent=0 // pred_check
    _
  $region35: #{_lambda_.11} parent=0 // pred_check_branch
    %32 = sbr.rel (0) target = $region37
  $region36: #{_lambda_.11} parent=0 // pred_region
    _
  $region37: #{_lambda_.11} parent=0 // pred_fallthru
    _
  // Predicated region
  $region38: #{_lambda_.11} parent=0 // pred_check
    _
  $region39: #{_lambda_.11} parent=0 // pred_check_branch
    %34 = sbr.rel (0) target = $region41
  $region40: #{_lambda_.11} parent=0 // pred_region
    _
  $region41: #{_lambda_.11} parent=0 // pred_fallthru
    _
  %v35 = vld [vmem:[%s0] sm:$0xff]
  %v36 = vld [vmem:[%s0 + $0x8] sm:$0x3]
  %v37 = vld [vmem:[%s1] sm:$0x1]
  %v38 = vld [vmem:[%s2] sm:$0x1]
  %vm39 = vcmask 523264
  %v40 = vsel %vm39, %v35, 0.0
  %41 = vadd.xlane.f32.xlu0 %v40
  %v42 = vpop.xlane.xlu0 %41
  %vm43 = vcmask 517120
  %v44 = vsel %vm43, %v36, 0.0
  %45 = vadd.xlane.f32.xlu0 %v44
  %v46 = vpop.xlane.xlu0 %45
  %v47 = vrcp.pop 64.0
  %v48 = vmul.f32 %v42, %v47
  %v49 = vmul.f32 %v46, %v47
  %v50 = vsub.f32 %v35, %v48
  %v51 = vsub.f32 %v36, %v49
  %v52 = vmul.f32 %v50, %v50
  %v53 = vmul.f32 %v51, %v51
  %v54 = vsel %vm39, %v52, 0.0
  %55 = vadd.xlane.f32.xlu0 %v54
  %v56 = vpop.xlane.xlu0 %55
  %v57 = vsel %vm43, %v53, 0.0
  %58 = vadd.xlane.f32.xlu0 %v57
  %v59 = vpop.xlane.xlu0 %58
  %v60 = vmul.f32 %v56, %v47
  %v61 = vmul.f32 %v59, %v47
  %v62 = vadd.f32 %v60, 1e-06
  %v63 = vadd.f32 %v61, 1e-06
  %v64 = vrsqrt.pop %v62
  %v65 = vrsqrt.pop %v63
  %v66 = vmul.f32 %v50, %v64
  %v67 = vmul.f32 %v51, %v65
  %v69 = vlaneseq
  %v70 = vshrl.u32 %v69, 7
  %v71 = vsub.s32 0, %v70
  %v72 = vrot.slane %v37, %v71
  %v74 = vmul.f32 %v66, %v72
  %v75 = vmul.f32 %v67, %v72
  %v77 = vlaneseq
  %v78 = vshrl.u32 %v77, 7
  %v79 = vsub.s32 0, %v78
  %v80 = vrot.slane %v38, %v79
  %v82 = vadd.f32 %v74, %v80
  %v83 = vadd.f32 %v75, %v80
  %v84 = vld [vmem:[%s3] sm:$0x3]
  %vm85 = vcmask 80896
  %v87 = vsel %vm85, %v84, 0
  %vm89 = vcmask 1041408
  %v91 = vsel %vm89, %v83, 0
  %93 = vmatprep.subr.mxu0 0.0
  %94 = vmatpush1.msra.mxu0 %v82
  %95 = vmatprep.subr.mxu0 0.0
  %96 = vmatpush1.msra.mxu0 %v91
  %97 = vmatprep.subr.mxu0 0.0
  %98 = vmatpush1.msra.mxu0 0.0
  %99 = vmatprep.subr.mxu0 0.0
  %100 = vmatpush1.msra.mxu0 0.0
  %101 = vmatprep.subr.mxu0 0.0
  %102 = vmatpush1.msra.mxu0 0.0
  %103 = vmatprep.subr.mxu0 0.0
  %104 = vmatpush1.msra.mxu0 0.0
  %105 = vmatprep.subr.mxu0 0.0
  %106 = vmatpush1.msra.mxu0 0.0
  %107 = vmatprep.subr.mxu0 0.0
  %108 = vmatpush1.msra.mxu0 0.0
  %109 = vmatprep.subr.mxu0 0.0
  %110 = vmatpush1.msra.mxu0 0.0
  %111 = vmatprep.subr.mxu0 0.0
  %112 = vmatpush1.msra.mxu0 0.0
  %113 = vmatprep.subr.mxu0 0.0
  %114 = vmatpush1.msra.mxu0 0.0
  %115 = vmatprep.subr.mxu0 0.0
  %116 = vmatpush1.msra.mxu0 0.0
  %117 = vmatprep.subr.mxu0 0.0
  %118 = vmatpush1.msra.mxu0 0.0
  %119 = vmatprep.subr.mxu0 0.0
  %120 = vmatpush1.msra.mxu0 0.0
  %121 = vmatprep.subr.mxu0 0.0
  %122 = vmatpush1.msra.mxu0 0.0
  %123 = vmatprep.subr.mxu0 0.0
  %124 = vmatpush1.msra.mxu0 0.0
  %125 = vmatprep.subr.mxu0 0.0
  %126 = vmatpush1.msra.mxu0 0.0
  %127 = vmatprep.subr.mxu0 0.0
  %128 = vmatpush1.msra.mxu0 0.0
  %129 = vmatprep.subr.mxu0 0.0
  %130 = vmatpush1.msra.mxu0 0.0
  %131 = vmatprep.subr.mxu0 0.0
  %132 = vmatpush1.msra.mxu0 0.0
  %133 = vmatprep.subr.mxu0 0.0
  %134 = vmatpush1.msra.mxu0 0.0
  %135 = vmatprep.subr.mxu0 0.0
  %136 = vmatpush1.msra.mxu0 0.0
  %137 = vmatprep.subr.mxu0 0.0
  %138 = vmatpush1.msra.mxu0 0.0
  %139 = vmatprep.subr.mxu0 0.0
  %140 = vmatpush1.msra.mxu0 0.0
  %141 = vmatprep.subr.mxu0 0.0
  %142 = vmatpush1.msra.mxu0 0.0
  %143 = vmatprep.subr.mxu0 0.0
  %144 = vmatpush1.msra.mxu0 0.0
  %145 = vmatprep.subr.mxu0 0.0
  %146 = vmatpush1.msra.mxu0 0.0
  %147 = vmatprep.subr.mxu0 0.0
  %148 = vmatpush1.msra.mxu0 0.0
  %149 = vmatprep.subr.mxu0 0.0
  %150 = vmatpush1.msra.mxu0 0.0
  %151 = vmatprep.subr.mxu0 0.0
  %152 = vmatpush1.msra.mxu0 0.0
  %153 = vmatprep.subr.mxu0 0.0
  %154 = vmatpush1.msra.mxu0 0.0
  %155 = vmatprep.subr.mxu0 0.0
  %156 = vmatpush1.msra.mxu0 0.0
  %157 = vmatprep.mubr.f32.mxu0 0.0
  %158 = vmatmul.mubr.f32.gmra.mrb[0].mxu0 %v87
  %v159 = vpop.f32.mrb[0].mxu0
  %v160 = vadd.f32 0.0, %v159
  %v161 = vpop.f32.mrb[0].mxu0
  %162 = vdwg.mxu0
  %v163 = vld [vmem:[%s4] sm:$0xff]
  %v164 = vld [vmem:[%s4 + $0x8] sm:$0xff]
  %v165 = vld [vmem:[%s4 + $0x10] sm:$0xff]
  %v166 = vld [vmem:[%s4 + $0x18] sm:$0xff]
  %v167 = vld [vmem:[%s4 + $0x20] sm:$0xff]
  %v168 = vld [vmem:[%s4 + $0x28] sm:$0xff]
  %v169 = vld [vmem:[%s4 + $0x30] sm:$0xff]
  %v170 = vld [vmem:[%s4 + $0x38] sm:$0xff]
  %v171 = vld [vmem:[%s5] sm:$0x1]
  %v173 = vlaneseq
  %v174 = vshrl.u32 %v173, 7
  %v175 = vsub.s32 0, %v174
  %v176 = vrot.slane %v171, %v175
  %v179 = vsel %vm39, %v160, 0
  %181 = vmatprep.subr.mxu0 0.0
  %182 = vmatpush1.msra.mxu0 %v163
  %183 = vmatprep.subr.mxu0 0.0
  %184 = vmatpush1.msra.mxu0 %v164
  %185 = vmatprep.subr.mxu0 0.0
  %186 = vmatpush1.msra.mxu0 %v165
  %187 = vmatprep.subr.mxu0 0.0
  %188 = vmatpush1.msra.mxu0 %v166
  %189 = vmatprep.subr.mxu0 0.0
  %190 = vmatpush1.msra.mxu0 %v167
  %191 = vmatprep.subr.mxu0 0.0
  %192 = vmatpush1.msra.mxu0 %v168
  %193 = vmatprep.subr.mxu0 0.0
  %194 = vmatpush1.msra.mxu0 %v169
  %195 = vmatprep.subr.mxu0 0.0
  %196 = vmatpush1.msra.mxu0 %v170
  %197 = vmatprep.subr.mxu0 0.0
  %198 = vmatpush1.msra.mxu0 0.0
  %199 = vmatprep.subr.mxu0 0.0
  %200 = vmatpush1.msra.mxu0 0.0
  %201 = vmatprep.subr.mxu0 0.0
  %202 = vmatpush1.msra.mxu0 0.0
  %203 = vmatprep.subr.mxu0 0.0
  %204 = vmatpush1.msra.mxu0 0.0
  %205 = vmatprep.subr.mxu0 0.0
  %206 = vmatpush1.msra.mxu0 0.0
  %207 = vmatprep.subr.mxu0 0.0
  %208 = vmatpush1.msra.mxu0 0.0
  %209 = vmatprep.subr.mxu0 0.0
  %210 = vmatpush1.msra.mxu0 0.0
  %211 = vmatprep.subr.mxu0 0.0
  %212 = vmatpush1.msra.mxu0 0.0
  %213 = vmatprep.subr.mxu0 0.0
  %214 = vmatpush1.msra.mxu0 0.0
  %215 = vmatprep.subr.mxu0 0.0
  %216 = vmatpush1.msra.mxu0 0.0
  %217 = vmatprep.subr.mxu0 0.0
  %218 = vmatpush1.msra.mxu0 0.0
  %219 = vmatprep.subr.mxu0 0.0
  %220 = vmatpush1.msra.mxu0 0.0
  %221 = vmatprep.subr.mxu0 0.0
  %222 = vmatpush1.msra.mxu0 0.0
  %223 = vmatprep.subr.mxu0 0.0
  %224 = vmatpush1.msra.mxu0 0.0
  %225 = vmatprep.subr.mxu0 0.0
  %226 = vmatpush1.msra.mxu0 0.0
  %227 = vmatprep.subr.mxu0 0.0
  %228 = vmatpush1.msra.mxu0 0.0
  %229 = vmatprep.subr.mxu0 0.0
  %230 = vmatpush1.msra.mxu0 0.0
  %231 = vmatprep.subr.mxu0 0.0
  %232 = vmatpush1.msra.mxu0 0.0
  %233 = vmatprep.subr.mxu0 0.0
  %234 = vmatpush1.msra.mxu0 0.0
  %235 = vmatprep.subr.mxu0 0.0
  %236 = vmatpush1.msra.mxu0 0.0
  %237 = vmatprep.subr.mxu0 0.0
  %238 = vmatpush1.msra.mxu0 0.0
  %239 = vmatprep.subr.mxu0 0.0
  %240 = vmatpush1.msra.mxu0 0.0
  %241 = vmatprep.subr.mxu0 0.0
  %242 = vmatpush1.msra.mxu0 0.0
  %243 = vmatprep.subr.mxu0 0.0
  %244 = vmatpush1.msra.mxu0 0.0
  %245 = vmatprep.mubr.f32.mxu0 0.0
  %246 = vmatmul.mubr.f32.gmra.mrb[0].mxu0 %v179
  %v247 = vpop.f32.mrb[0].mxu0
  %v248 = vadd.f32 %v176, %v247
  %v249 = vpop.f32.mrb[0].mxu0
  %250 = vdwg.mxu0
  %v251 = vmul.f32 %v248, %v248
  %v252 = vmul.f32 %v248, %v251
  %v253 = vmul.f32 %v252, 0.044715
  %v254 = vadd.f32 %v248, %v253
  %v255 = vmul.f32 %v254, 0.7978846
  %v256 = vtanh.pop %v255
  %v257 = vadd.f32 %v256, 1.0
  %v258 = vmul.f32 %v257, 0.5
  %v259 = vmul.f32 %v248, %v258
  %v260 = vld [vmem:[%s6] sm:$0xff]
  %v261 = vld [vmem:[%s6 + $0x8] sm:$0xff]
  %v262 = vld [vmem:[%s6 + $0x10] sm:$0xff]
  %v263 = vld [vmem:[%s6 + $0x18] sm:$0xff]
  %v264 = vld [vmem:[%s7] sm:$0x1]
  %v266 = vlaneseq
  %v267 = vshrl.u32 %v266, 7
  %v268 = vsub.s32 0, %v267
  %v269 = vrot.slane %v264, %v268
  %vm271 = vcmask 261120
  %v273 = vsel %vm271, %v259, 0
  %275 = vmatprep.subr.mxu0 0.0
  %276 = vmatpush1.msra.mxu0 %v260
  %277 = vmatprep.subr.mxu0 0.0
  %278 = vmatpush1.msra.mxu0 %v261
  %279 = vmatprep.subr.mxu0 0.0
  %280 = vmatpush1.msra.mxu0 %v262
  %281 = vmatprep.subr.mxu0 0.0
  %282 = vmatpush1.msra.mxu0 %v263
  %283 = vmatprep.subr.mxu0 0.0
  %284 = vmatpush1.msra.mxu0 0.0
  %285 = vmatprep.subr.mxu0 0.0
  %286 = vmatpush1.msra.mxu0 0.0
  %287 = vmatprep.subr.mxu0 0.0
  %288 = vmatpush1.msra.mxu0 0.0
  %289 = vmatprep.subr.mxu0 0.0
  %290 = vmatpush1.msra.mxu0 0.0
  %291 = vmatprep.subr.mxu0 0.0
  %292 = vmatpush1.msra.mxu0 0.0
  %293 = vmatprep.subr.mxu0 0.0
  %294 = vmatpush1.msra.mxu0 0.0
  %295 = vmatprep.subr.mxu0 0.0
  %296 = vmatpush1.msra.mxu0 0.0
  %297 = vmatprep.subr.mxu0 0.0
  %298 = vmatpush1.msra.mxu0 0.0
  %299 = vmatprep.subr.mxu0 0.0
  %300 = vmatpush1.msra.mxu0 0.0
  %301 = vmatprep.subr.mxu0 0.0
  %302 = vmatpush1.msra.mxu0 0.0
  %303 = vmatprep.subr.mxu0 0.0
  %304 = vmatpush1.msra.mxu0 0.0
  %305 = vmatprep.subr.mxu0 0.0
  %306 = vmatpush1.msra.mxu0 0.0
  %307 = vmatprep.subr.mxu0 0.0
  %308 = vmatpush1.msra.mxu0 0.0
  %309 = vmatprep.subr.mxu0 0.0
  %310 = vmatpush1.msra.mxu0 0.0
  %311 = vmatprep.subr.mxu0 0.0
  %312 = vmatpush1.msra.mxu0 0.0
  %313 = vmatprep.subr.mxu0 0.0
  %314 = vmatpush1.msra.mxu0 0.0
  %315 = vmatprep.subr.mxu0 0.0
  %316 = vmatpush1.msra.mxu0 0.0
  %317 = vmatprep.subr.mxu0 0.0
  %318 = vmatpush1.msra.mxu0 0.0
  %319 = vmatprep.subr.mxu0 0.0
  %320 = vmatpush1.msra.mxu0 0.0
  %321 = vmatprep.subr.mxu0 0.0
  %322 = vmatpush1.msra.mxu0 0.0
  %323 = vmatprep.subr.mxu0 0.0
  %324 = vmatpush1.msra.mxu0 0.0
  %325 = vmatprep.subr.mxu0 0.0
  %326 = vmatpush1.msra.mxu0 0.0
  %327 = vmatprep.subr.mxu0 0.0
  %328 = vmatpush1.msra.mxu0 0.0
  %329 = vmatprep.subr.mxu0 0.0
  %330 = vmatpush1.msra.mxu0 0.0
  %331 = vmatprep.subr.mxu0 0.0
  %332 = vmatpush1.msra.mxu0 0.0
  %333 = vmatprep.subr.mxu0 0.0
  %334 = vmatpush1.msra.mxu0 0.0
  %335 = vmatprep.subr.mxu0 0.0
  %336 = vmatpush1.msra.mxu0 0.0
  %337 = vmatprep.subr.mxu0 0.0
  %338 = vmatpush1.msra.mxu0 0.0
  %339 = vmatprep.mubr.f32.mxu0 0.0
  %340 = vmatmul.mubr.f32.gmra.mrb[0].mxu0 %v273
  %v341 = vpop.f32.mrb[0].mxu0
  %v342 = vadd.f32 %v269, %v341
  %v343 = vpop.f32.mrb[0].mxu0
  %344 = vdwg.mxu0
  %v345 = vmul.f32 %v342, %v342
  %v346 = vmul.f32 %v342, %v345
  %v347 = vmul.f32 %v346, 0.044715
  %v348 = vadd.f32 %v342, %v347
  %v349 = vmul.f32 %v348, 0.7978846
  %v350 = vtanh.pop %v349
  %v351 = vadd.f32 %v350, 1.0
  %v352 = vmul.f32 %v351, 0.5
  %v353 = vmul.f32 %v342, %v352
  %v354 = vld [vmem:[%s8] sm:$0xff]
  %v355 = vld [vmem:[%s8 + $0x8] sm:$0xff]
  %v356 = vld [vmem:[%s9] sm:$0x1]
  %v358 = vlaneseq
  %v359 = vshrl.u32 %v358, 7
  %v360 = vsub.s32 0, %v359
  %v361 = vrot.slane %v356, %v360
  %vm363 = vcmask 130048
  %v365 = vsel %vm363, %v353, 0
  %367 = vmatprep.subr.mxu0 0.0
  %368 = vmatpush1.msra.mxu0 %v354
  %369 = vmatprep.subr.mxu0 0.0
  %370 = vmatpush1.msra.mxu0 %v355
  %371 = vmatprep.subr.mxu0 0.0
  %372 = vmatpush1.msra.mxu0 0.0
  %373 = vmatprep.subr.mxu0 0.0
  %374 = vmatpush1.msra.mxu0 0.0
  %375 = vmatprep.subr.mxu0 0.0
  %376 = vmatpush1.msra.mxu0 0.0
  %377 = vmatprep.subr.mxu0 0.0
  %378 = vmatpush1.msra.mxu0 0.0
  %379 = vmatprep.subr.mxu0 0.0
  %380 = vmatpush1.msra.mxu0 0.0
  %381 = vmatprep.subr.mxu0 0.0
  %382 = vmatpush1.msra.mxu0 0.0
  %383 = vmatprep.subr.mxu0 0.0
  %384 = vmatpush1.msra.mxu0 0.0
  %385 = vmatprep.subr.mxu0 0.0
  %386 = vmatpush1.msra.mxu0 0.0
  %387 = vmatprep.subr.mxu0 0.0
  %388 = vmatpush1.msra.mxu0 0.0
  %389 = vmatprep.subr.mxu0 0.0
  %390 = vmatpush1.msra.mxu0 0.0
  %391 = vmatprep.subr.mxu0 0.0
  %392 = vmatpush1.msra.mxu0 0.0
  %393 = vmatprep.subr.mxu0 0.0
  %394 = vmatpush1.msra.mxu0 0.0
  %395 = vmatprep.subr.mxu0 0.0
  %396 = vmatpush1.msra.mxu0 0.0
  %397 = vmatprep.subr.mxu0 0.0
  %398 = vmatpush1.msra.mxu0 0.0
  %399 = vmatprep.subr.mxu0 0.0
  %400 = vmatpush1.msra.mxu0 0.0
  %401 = vmatprep.subr.mxu0 0.0
  %402 = vmatpush1.msra.mxu0 0.0
  %403 = vmatprep.subr.mxu0 0.0
  %404 = vmatpush1.msra.mxu0 0.0
  %405 = vmatprep.subr.mxu0 0.0
  %406 = vmatpush1.msra.mxu0 0.0
  %407 = vmatprep.subr.mxu0 0.0
  %408 = vmatpush1.msra.mxu0 0.0
  %409 = vmatprep.subr.mxu0 0.0
  %410 = vmatpush1.msra.mxu0 0.0
  %411 = vmatprep.subr.mxu0 0.0
  %412 = vmatpush1.msra.mxu0 0.0
  %413 = vmatprep.subr.mxu0 0.0
  %414 = vmatpush1.msra.mxu0 0.0
  %415 = vmatprep.subr.mxu0 0.0
  %416 = vmatpush1.msra.mxu0 0.0
  %417 = vmatprep.subr.mxu0 0.0
  %418 = vmatpush1.msra.mxu0 0.0
  %419 = vmatprep.subr.mxu0 0.0
  %420 = vmatpush1.msra.mxu0 0.0
  %421 = vmatprep.subr.mxu0 0.0
  %422 = vmatpush1.msra.mxu0 0.0
  %423 = vmatprep.subr.mxu0 0.0
  %424 = vmatpush1.msra.mxu0 0.0
  %425 = vmatprep.subr.mxu0 0.0
  %426 = vmatpush1.msra.mxu0 0.0
  %427 = vmatprep.subr.mxu0 0.0
  %428 = vmatpush1.msra.mxu0 0.0
  %429 = vmatprep.subr.mxu0 0.0
  %430 = vmatpush1.msra.mxu0 0.0
  %431 = vmatprep.mubr.f32.mxu0 0.0
  %432 = vmatmul.mubr.f32.gmra.mrb[0].mxu0 %v365
  %v433 = vpop.f32.mrb[0].mxu0
  %v434 = vadd.f32 %v361, %v433
  %v435 = vpop.f32.mrb[0].mxu0
  %436 = vdwg.mxu0
  %vm437 = vcmask 33792
  %438 = vst.msk [vmem:[%s10] sm:$0x3] %vm437, %v434
  %s439 = scalar_lea.vmem %s4, 64
  %v440 = vld [vmem:[%s439] sm:$0xff]
  %v441 = vld [vmem:[%s439 + $0x8] sm:$0xff]
  %v442 = vld [vmem:[%s439 + $0x10] sm:$0xff]
  %v443 = vld [vmem:[%s439 + $0x18] sm:$0xff]
  %v444 = vld [vmem:[%s439 + $0x20] sm:$0xff]
  %v445 = vld [vmem:[%s439 + $0x28] sm:$0xff]
  %v446 = vld [vmem:[%s439 + $0x30] sm:$0xff]
  %v447 = vld [vmem:[%s439 + $0x38] sm:$0xff]
  %s448 = scalar_lea.vmem %s5, 1
  %v449 = vld [vmem:[%s448] sm:$0x1]
  %v451 = vlaneseq
  %v452 = vshrl.u32 %v451, 7
  %v453 = vsub.s32 0, %v452
  %v454 = vrot.slane %v449, %v453
  %456 = vmatprep.subr.mxu0 0.0
  %457 = vmatpush1.msra.mxu0 %v440
  %458 = vmatprep.subr.mxu0 0.0
  %459 = vmatpush1.msra.mxu0 %v441
  %460 = vmatprep.subr.mxu0 0.0
  %461 = vmatpush1.msra.mxu0 %v442
  %462 = vmatprep.subr.mxu0 0.0
  %463 = vmatpush1.msra.mxu0 %v443
  %464 = vmatprep.subr.mxu0 0.0
  %465 = vmatpush1.msra.mxu0 %v444
  %466 = vmatprep.subr.mxu0 0.0
  %467 = vmatpush1.msra.mxu0 %v445
  %468 = vmatprep.subr.mxu0 0.0
  %469 = vmatpush1.msra.mxu0 %v446
  %470 = vmatprep.subr.mxu0 0.0
  %471 = vmatpush1.msra.mxu0 %v447
  %472 = vmatprep.subr.mxu0 0.0
  %473 = vmatpush1.msra.mxu0 0.0
  %474 = vmatprep.subr.mxu0 0.0
  %475 = vmatpush1.msra.mxu0 0.0
  %476 = vmatprep.subr.mxu0 0.0
  %477 = vmatpush1.msra.mxu0 0.0
  %478 = vmatprep.subr.mxu0 0.0
  %479 = vmatpush1.msra.mxu0 0.0
  %480 = vmatprep.subr.mxu0 0.0
  %481 = vmatpush1.msra.mxu0 0.0
  %482 = vmatprep.subr.mxu0 0.0
  %483 = vmatpush1.msra.mxu0 0.0
  %484 = vmatprep.subr.mxu0 0.0
  %485 = vmatpush1.msra.mxu0 0.0
  %486 = vmatprep.subr.mxu0 0.0
  %487 = vmatpush1.msra.mxu0 0.0
  %488 = vmatprep.subr.mxu0 0.0
  %489 = vmatpush1.msra.mxu0 0.0
  %490 = vmatprep.subr.mxu0 0.0
  %491 = vmatpush1.msra.mxu0 0.0
  %492 = vmatprep.subr.mxu0 0.0
  %493 = vmatpush1.msra.mxu0 0.0
  %494 = vmatprep.subr.mxu0 0.0
  %495 = vmatpush1.msra.mxu0 0.0
  %496 = vmatprep.subr.mxu0 0.0
  %497 = vmatpush1.msra.mxu0 0.0
  %498 = vmatprep.subr.mxu0 0.0
  %499 = vmatpush1.msra.mxu0 0.0
  %500 = vmatprep.subr.mxu0 0.0
  %501 = vmatpush1.msra.mxu0 0.0
  %502 = vmatprep.subr.mxu0 0.0
  %503 = vmatpush1.msra.mxu0 0.0
  %504 = vmatprep.subr.mxu0 0.0
  %505 = vmatpush1.msra.mxu0 0.0
  %506 = vmatprep.subr.mxu0 0.0
  %507 = vmatpush1.msra.mxu0 0.0
  %508 = vmatprep.subr.mxu0 0.0
  %509 = vmatpush1.msra.mxu0 0.0
  %510 = vmatprep.subr.mxu0 0.0
  %511 = vmatpush1.msra.mxu0 0.0
  %512 = vmatprep.subr.mxu0 0.0
  %513 = vmatpush1.msra.mxu0 0.0
  %514 = vmatprep.subr.mxu0 0.0
  %515 = vmatpush1.msra.mxu0 0.0
  %516 = vmatprep.subr.mxu0 0.0
  %517 = vmatpush1.msra.mxu0 0.0
  %518 = vmatprep.subr.mxu0 0.0
  %519 = vmatpush1.msra.mxu0 0.0
  %520 = vmatprep.mubr.f32.mxu0 0.0
  %521 = vmatmul.mubr.f32.gmra.mrb[0].mxu0 %v179
  %v522 = vpop.f32.mrb[0].mxu0
  %v523 = vadd.f32 %v454, %v522
  %v524 = vpop.f32.mrb[0].mxu0
  %525 = vdwg.mxu0
  %v526 = vmul.f32 %v523, %v523
  %v527 = vmul.f32 %v523, %v526
  %v528 = vmul.f32 %v527, 0.044715
  %v529 = vadd.f32 %v523, %v528
  %v530 = vmul.f32 %v529, 0.7978846
  %v531 = vtanh.pop %v530
  %v532 = vadd.f32 %v531, 1.0
  %v533 = vmul.f32 %v532, 0.5
  %v534 = vmul.f32 %v523, %v533
  %s535 = scalar_lea.vmem %s6, 32
  %v536 = vld [vmem:[%s535] sm:$0xff]
  %v537 = vld [vmem:[%s535 + $0x8] sm:$0xff]
  %v538 = vld [vmem:[%s535 + $0x10] sm:$0xff]
  %v539 = vld [vmem:[%s535 + $0x18] sm:$0xff]
  %s540 = scalar_lea.vmem %s7, 1
  %v541 = vld [vmem:[%s540] sm:$0x1]
  %v543 = vlaneseq
  %v544 = vshrl.u32 %v543, 7
  %v545 = vsub.s32 0, %v544
  %v546 = vrot.slane %v541, %v545
  %v549 = vsel %vm271, %v534, 0
  %551 = vmatprep.subr.mxu0 0.0
  %552 = vmatpush1.msra.mxu0 %v536
  %553 = vmatprep.subr.mxu0 0.0
  %554 = vmatpush1.msra.mxu0 %v537
  %555 = vmatprep.subr.mxu0 0.0
  %556 = vmatpush1.msra.mxu0 %v538
  %557 = vmatprep.subr.mxu0 0.0
  %558 = vmatpush1.msra.mxu0 %v539
  %559 = vmatprep.subr.mxu0 0.0
  %560 = vmatpush1.msra.mxu0 0.0
  %561 = vmatprep.subr.mxu0 0.0
  %562 = vmatpush1.msra.mxu0 0.0
  %563 = vmatprep.subr.mxu0 0.0
  %564 = vmatpush1.msra.mxu0 0.0
  %565 = vmatprep.subr.mxu0 0.0
  %566 = vmatpush1.msra.mxu0 0.0
  %567 = vmatprep.subr.mxu0 0.0
  %568 = vmatpush1.msra.mxu0 0.0
  %569 = vmatprep.subr.mxu0 0.0
  %570 = vmatpush1.msra.mxu0 0.0
  %571 = vmatprep.subr.mxu0 0.0
  %572 = vmatpush1.msra.mxu0 0.0
  %573 = vmatprep.subr.mxu0 0.0
  %574 = vmatpush1.msra.mxu0 0.0
  %575 = vmatprep.subr.mxu0 0.0
  %576 = vmatpush1.msra.mxu0 0.0
  %577 = vmatprep.subr.mxu0 0.0
  %578 = vmatpush1.msra.mxu0 0.0
  %579 = vmatprep.subr.mxu0 0.0
  %580 = vmatpush1.msra.mxu0 0.0
  %581 = vmatprep.subr.mxu0 0.0
  %582 = vmatpush1.msra.mxu0 0.0
  %583 = vmatprep.subr.mxu0 0.0
  %584 = vmatpush1.msra.mxu0 0.0
  %585 = vmatprep.subr.mxu0 0.0
  %586 = vmatpush1.msra.mxu0 0.0
  %587 = vmatprep.subr.mxu0 0.0
  %588 = vmatpush1.msra.mxu0 0.0
  %589 = vmatprep.subr.mxu0 0.0
  %590 = vmatpush1.msra.mxu0 0.0
  %591 = vmatprep.subr.mxu0 0.0
  %592 = vmatpush1.msra.mxu0 0.0
  %593 = vmatprep.subr.mxu0 0.0
  %594 = vmatpush1.msra.mxu0 0.0
  %595 = vmatprep.subr.mxu0 0.0
  %596 = vmatpush1.msra.mxu0 0.0
  %597 = vmatprep.subr.mxu0 0.0
  %598 = vmatpush1.msra.mxu0 0.0
  %599 = vmatprep.subr.mxu0 0.0
  %600 = vmatpush1.msra.mxu0 0.0
  %601 = vmatprep.subr.mxu0 0.0
  %602 = vmatpush1.msra.mxu0 0.0
  %603 = vmatprep.subr.mxu0 0.0
  %604 = vmatpush1.msra.mxu0 0.0
  %605 = vmatprep.subr.mxu0 0.0
  %606 = vmatpush1.msra.mxu0 0.0
  %607 = vmatprep.subr.mxu0 0.0
  %608 = vmatpush1.msra.mxu0 0.0
  %609 = vmatprep.subr.mxu0 0.0
  %610 = vmatpush1.msra.mxu0 0.0
  %611 = vmatprep.subr.mxu0 0.0
  %612 = vmatpush1.msra.mxu0 0.0
  %613 = vmatprep.subr.mxu0 0.0
  %614 = vmatpush1.msra.mxu0 0.0
  %615 = vmatprep.mubr.f32.mxu0 0.0
  %616 = vmatmul.mubr.f32.gmra.mrb[0].mxu0 %v549
  %v617 = vpop.f32.mrb[0].mxu0
  %v618 = vadd.f32 %v546, %v617
  %v619 = vpop.f32.mrb[0].mxu0
  %620 = vdwg.mxu0
  %v621 = vmul.f32 %v618, %v618
  %v622 = vmul.f32 %v618, %v621
  %v623 = vmul.f32 %v622, 0.044715
  %v624 = vadd.f32 %v618, %v623
  %v625 = vmul.f32 %v624, 0.7978846
  %v626 = vtanh.pop %v625
  %v627 = vadd.f32 %v626, 1.0
  %v628 = vmul.f32 %v627, 0.5
  %v629 = vmul.f32 %v618, %v628
  %s630 = scalar_lea.vmem %s8, 16
  %v631 = vld [vmem:[%s630] sm:$0xff]
  %v632 = vld [vmem:[%s630 + $0x8] sm:$0xff]
  %s633 = scalar_lea.vmem %s9, 1
  %v634 = vld [vmem:[%s633] sm:$0x1]
  %v636 = vlaneseq
  %v637 = vshrl.u32 %v636, 7
  %v638 = vsub.s32 0, %v637
  %v639 = vrot.slane %v634, %v638
  %v642 = vsel %vm363, %v629, 0
  %644 = vmatprep.subr.mxu0 0.0
  %645 = vmatpush1.msra.mxu0 %v631
  %646 = vmatprep.subr.mxu0 0.0
  %647 = vmatpush1.msra.mxu0 %v632
  %648 = vmatprep.subr.mxu0 0.0
  %649 = vmatpush1.msra.mxu0 0.0
  %650 = vmatprep.subr.mxu0 0.0
  %651 = vmatpush1.msra.mxu0 0.0
  %652 = vmatprep.subr.mxu0 0.0
  %653 = vmatpush1.msra.mxu0 0.0
  %654 = vmatprep.subr.mxu0 0.0
  %655 = vmatpush1.msra.mxu0 0.0
  %656 = vmatprep.subr.mxu0 0.0
  %657 = vmatpush1.msra.mxu0 0.0
  %658 = vmatprep.subr.mxu0 0.0
  %659 = vmatpush1.msra.mxu0 0.0
  %660 = vmatprep.subr.mxu0 0.0
  %661 = vmatpush1.msra.mxu0 0.0
  %662 = vmatprep.subr.mxu0 0.0
  %663 = vmatpush1.msra.mxu0 0.0
  %664 = vmatprep.subr.mxu0 0.0
  %665 = vmatpush1.msra.mxu0 0.0
  %666 = vmatprep.subr.mxu0 0.0
  %667 = vmatpush1.msra.mxu0 0.0
  %668 = vmatprep.subr.mxu0 0.0
  %669 = vmatpush1.msra.mxu0 0.0
  %670 = vmatprep.subr.mxu0 0.0
  %671 = vmatpush1.msra.mxu0 0.0
  %672 = vmatprep.subr.mxu0 0.0
  %673 = vmatpush1.msra.mxu0 0.0
  %674 = vmatprep.subr.mxu0 0.0
  %675 = vmatpush1.msra.mxu0 0.0
  %676 = vmatprep.subr.mxu0 0.0
  %677 = vmatpush1.msra.mxu0 0.0
  %678 = vmatprep.subr.mxu0 0.0
  %679 = vmatpush1.msra.mxu0 0.0
  %680 = vmatprep.subr.mxu0 0.0
  %681 = vmatpush1.msra.mxu0 0.0
  %682 = vmatprep.subr.mxu0 0.0
  %683 = vmatpush1.msra.mxu0 0.0
  %684 = vmatprep.subr.mxu0 0.0
  %685 = vmatpush1.msra.mxu0 0.0
  %686 = vmatprep.subr.mxu0 0.0
  %687 = vmatpush1.msra.mxu0 0.0
  %688 = vmatprep.subr.mxu0 0.0
  %689 = vmatpush1.msra.mxu0 0.0
  %690 = vmatprep.subr.mxu0 0.0
  %691 = vmatpush1.msra.mxu0 0.0
  %692 = vmatprep.subr.mxu0 0.0
  %693 = vmatpush1.msra.mxu0 0.0
  %694 = vmatprep.subr.mxu0 0.0
  %695 = vmatpush1.msra.mxu0 0.0
  %696 = vmatprep.subr.mxu0 0.0
  %697 = vmatpush1.msra.mxu0 0.0
  %698 = vmatprep.subr.mxu0 0.0
  %699 = vmatpush1.msra.mxu0 0.0
  %700 = vmatprep.subr.mxu0 0.0
  %701 = vmatpush1.msra.mxu0 0.0
  %702 = vmatprep.subr.mxu0 0.0
  %703 = vmatpush1.msra.mxu0 0.0
  %704 = vmatprep.subr.mxu0 0.0
  %705 = vmatpush1.msra.mxu0 0.0
  %706 = vmatprep.subr.mxu0 0.0
  %707 = vmatpush1.msra.mxu0 0.0
  %708 = vmatprep.mubr.f32.mxu0 0.0
  %709 = vmatmul.mubr.f32.gmra.mrb[0].mxu0 %v642
  %v710 = vpop.f32.mrb[0].mxu0
  %v711 = vadd.f32 %v639, %v710
  %v712 = vpop.f32.mrb[0].mxu0
  %713 = vdwg.mxu0
  %s714 = scalar_lea.vmem %s10, 2
  %715 = vst.msk [vmem:[%s714] sm:$0x3] %vm437, %v711
  %s716 = scalar_lea.vmem %s4, 128
  %v717 = vld [vmem:[%s716] sm:$0xff]
  %v718 = vld [vmem:[%s716 + $0x8] sm:$0xff]
  %v719 = vld [vmem:[%s716 + $0x10] sm:$0xff]
  %v720 = vld [vmem:[%s716 + $0x18] sm:$0xff]
  %v721 = vld [vmem:[%s716 + $0x20] sm:$0xff]
  %v722 = vld [vmem:[%s716 + $0x28] sm:$0xff]
  %v723 = vld [vmem:[%s716 + $0x30] sm:$0xff]
  %v724 = vld [vmem:[%s716 + $0x38] sm:$0xff]
  %s725 = scalar_lea.vmem %s5, 2
  %v726 = vld [vmem:[%s725] sm:$0x1]
  %v728 = vlaneseq
  %v729 = vshrl.u32 %v728, 7
  %v730 = vsub.s32 0, %v729
  %v731 = vrot.slane %v726, %v730
  %733 = vmatprep.subr.mxu0 0.0
  %734 = vmatpush1.msra.mxu0 %v717
  %735 = vmatprep.subr.mxu0 0.0
  %736 = vmatpush1.msra.mxu0 %v718
  %737 = vmatprep.subr.mxu0 0.0
  %738 = vmatpush1.msra.mxu0 %v719
  %739 = vmatprep.subr.mxu0 0.0
  %740 = vmatpush1.msra.mxu0 %v720
  %741 = vmatprep.subr.mxu0 0.0
  %742 = vmatpush1.msra.mxu0 %v721
  %743 = vmatprep.subr.mxu0 0.0
  %744 = vmatpush1.msra.mxu0 %v722
  %745 = vmatprep.subr.mxu0 0.0
  %746 = vmatpush1.msra.mxu0 %v723
  %747 = vmatprep.subr.mxu0 0.0
  %748 = vmatpush1.msra.mxu0 %v724
  %749 = vmatprep.subr.mxu0 0.0
  %750 = vmatpush1.msra.mxu0 0.0
  %751 = vmatprep.subr.mxu0 0.0
  %752 = vmatpush1.msra.mxu0 0.0
  %753 = vmatprep.subr.mxu0 0.0
  %754 = vmatpush1.msra.mxu0 0.0
  %755 = vmatprep.subr.mxu0 0.0
  %756 = vmatpush1.msra.mxu0 0.0
  %757 = vmatprep.subr.mxu0 0.0
  %758 = vmatpush1.msra.mxu0 0.0
  %759 = vmatprep.subr.mxu0 0.0
  %760 = vmatpush1.msra.mxu0 0.0
  %761 = vmatprep.subr.mxu0 0.0
  %762 = vmatpush1.msra.mxu0 0.0
  %763 = vmatprep.subr.mxu0 0.0
  %764 = vmatpush1.msra.mxu0 0.0
  %765 = vmatprep.subr.mxu0 0.0
  %766 = vmatpush1.msra.mxu0 0.0
  %767 = vmatprep.subr.mxu0 0.0
  %768 = vmatpush1.msra.mxu0 0.0
  %769 = vmatprep.subr.mxu0 0.0
  %770 = vmatpush1.msra.mxu0 0.0
  %771 = vmatprep.subr.mxu0 0.0
  %772 = vmatpush1.msra.mxu0 0.0
  %773 = vmatprep.subr.mxu0 0.0
  %774 = vmatpush1.msra.mxu0 0.0
  %775 = vmatprep.subr.mxu0 0.0
  %776 = vmatpush1.msra.mxu0 0.0
  %777 = vmatprep.subr.mxu0 0.0
  %778 = vmatpush1.msra.mxu0 0.0
  %779 = vmatprep.subr.mxu0 0.0
  %780 = vmatpush1.msra.mxu0 0.0
  %781 = vmatprep.subr.mxu0 0.0
  %782 = vmatpush1.msra.mxu0 0.0
  %783 = vmatprep.subr.mxu0 0.0
  %784 = vmatpush1.msra.mxu0 0.0
  %785 = vmatprep.subr.mxu0 0.0
  %786 = vmatpush1.msra.mxu0 0.0
  %787 = vmatprep.subr.mxu0 0.0
  %788 = vmatpush1.msra.mxu0 0.0
  %789 = vmatprep.subr.mxu0 0.0
  %790 = vmatpush1.msra.mxu0 0.0
  %791 = vmatprep.subr.mxu0 0.0
  %792 = vmatpush1.msra.mxu0 0.0
  %793 = vmatprep.subr.mxu0 0.0
  %794 = vmatpush1.msra.mxu0 0.0
  %795 = vmatprep.subr.mxu0 0.0
  %796 = vmatpush1.msra.mxu0 0.0
  %797 = vmatprep.mubr.f32.mxu0 0.0
  %798 = vmatmul.mubr.f32.gmra.mrb[0].mxu0 %v179
  %v799 = vpop.f32.mrb[0].mxu0
  %v800 = vadd.f32 %v731, %v799
  %v801 = vpop.f32.mrb[0].mxu0
  %802 = vdwg.mxu0
  %v803 = vmul.f32 %v800, %v800
  %v804 = vmul.f32 %v800, %v803
  %v805 = vmul.f32 %v804, 0.044715
  %v806 = vadd.f32 %v800, %v805
  %v807 = vmul.f32 %v806, 0.7978846
  %v808 = vtanh.pop %v807
  %v809 = vadd.f32 %v808, 1.0
  %v810 = vmul.f32 %v809, 0.5
  %v811 = vmul.f32 %v800, %v810
  %s812 = scalar_lea.vmem %s6, 64
  %v813 = vld [vmem:[%s812] sm:$0xff]
  %v814 = vld [vmem:[%s812 + $0x8] sm:$0xff]
  %v815 = vld [vmem:[%s812 + $0x10] sm:$0xff]
  %v816 = vld [vmem:[%s812 + $0x18] sm:$0xff]
  %s817 = scalar_lea.vmem %s7, 2
  %v818 = vld [vmem:[%s817] sm:$0x1]
  %v820 = vlaneseq
  %v821 = vshrl.u32 %v820, 7
  %v822 = vsub.s32 0, %v821
  %v823 = vrot.slane %v818, %v822
  %v826 = vsel %vm271, %v811, 0
  %828 = vmatprep.subr.mxu0 0.0
  %829 = vmatpush1.msra.mxu0 %v813
  %830 = vmatprep.subr.mxu0 0.0
  %831 = vmatpush1.msra.mxu0 %v814
  %832 = vmatprep.subr.mxu0 0.0
  %833 = vmatpush1.msra.mxu0 %v815
  %834 = vmatprep.subr.mxu0 0.0
  %835 = vmatpush1.msra.mxu0 %v816
  %836 = vmatprep.subr.mxu0 0.0
  %837 = vmatpush1.msra.mxu0 0.0
  %838 = vmatprep.subr.mxu0 0.0
  %839 = vmatpush1.msra.mxu0 0.0
  %840 = vmatprep.subr.mxu0 0.0
  %841 = vmatpush1.msra.mxu0 0.0
  %842 = vmatprep.subr.mxu0 0.0
  %843 = vmatpush1.msra.mxu0 0.0
  %844 = vmatprep.subr.mxu0 0.0
  %845 = vmatpush1.msra.mxu0 0.0
  %846 = vmatprep.subr.mxu0 0.0
  %847 = vmatpush1.msra.mxu0 0.0
  %848 = vmatprep.subr.mxu0 0.0
  %849 = vmatpush1.msra.mxu0 0.0
  %850 = vmatprep.subr.mxu0 0.0
  %851 = vmatpush1.msra.mxu0 0.0
  %852 = vmatprep.subr.mxu0 0.0
  %853 = vmatpush1.msra.mxu0 0.0
  %854 = vmatprep.subr.mxu0 0.0
  %855 = vmatpush1.msra.mxu0 0.0
  %856 = vmatprep.subr.mxu0 0.0
  %857 = vmatpush1.msra.mxu0 0.0
  %858 = vmatprep.subr.mxu0 0.0
  %859 = vmatpush1.msra.mxu0 0.0
  %860 = vmatprep.subr.mxu0 0.0
  %861 = vmatpush1.msra.mxu0 0.0
  %862 = vmatprep.subr.mxu0 0.0
  %863 = vmatpush1.msra.mxu0 0.0
  %864 = vmatprep.subr.mxu0 0.0
  %865 = vmatpush1.msra.mxu0 0.0
  %866 = vmatprep.subr.mxu0 0.0
  %867 = vmatpush1.msra.mxu0 0.0
  %868 = vmatprep.subr.mxu0 0.0
  %869 = vmatpush1.msra.mxu0 0.0
  %870 = vmatprep.subr.mxu0 0.0
  %871 = vmatpush1.msra.mxu0 0.0
  %872 = vmatprep.subr.mxu0 0.0
  %873 = vmatpush1.msra.mxu0 0.0
  %874 = vmatprep.subr.mxu0 0.0
  %875 = vmatpush1.msra.mxu0 0.0
  %876 = vmatprep.subr.mxu0 0.0
  %877 = vmatpush1.msra.mxu0 0.0
  %878 = vmatprep.subr.mxu0 0.0
  %879 = vmatpush1.msra.mxu0 0.0
  %880 = vmatprep.subr.mxu0 0.0
  %881 = vmatpush1.msra.mxu0 0.0
  %882 = vmatprep.subr.mxu0 0.0
  %883 = vmatpush1.msra.mxu0 0.0
  %884 = vmatprep.subr.mxu0 0.0
  %885 = vmatpush1.msra.mxu0 0.0
  %886 = vmatprep.subr.mxu0 0.0
  %887 = vmatpush1.msra.mxu0 0.0
  %888 = vmatprep.subr.mxu0 0.0
  %889 = vmatpush1.msra.mxu0 0.0
  %890 = vmatprep.subr.mxu0 0.0
  %891 = vmatpush1.msra.mxu0 0.0
  %892 = vmatprep.mubr.f32.mxu0 0.0
  %893 = vmatmul.mubr.f32.gmra.mrb[0].mxu0 %v826
  %v894 = vpop.f32.mrb[0].mxu0
  %v895 = vadd.f32 %v823, %v894
  %v896 = vpop.f32.mrb[0].mxu0
  %897 = vdwg.mxu0
  %v898 = vmul.f32 %v895, %v895
  %v899 = vmul.f32 %v895, %v898
  %v900 = vmul.f32 %v899, 0.044715
  %v901 = vadd.f32 %v895, %v900
  %v902 = vmul.f32 %v901, 0.7978846
  %v903 = vtanh.pop %v902
  %v904 = vadd.f32 %v903, 1.0
  %v905 = vmul.f32 %v904, 0.5
  %v906 = vmul.f32 %v895, %v905
  %s907 = scalar_lea.vmem %s8, 32
  %v908 = vld [vmem:[%s907] sm:$0xff]
  %v909 = vld [vmem:[%s907 + $0x8] sm:$0xff]
  %s910 = scalar_lea.vmem %s9, 2
  %v911 = vld [vmem:[%s910] sm:$0x1]
  %v913 = vlaneseq
  %v914 = vshrl.u32 %v913, 7
  %v915 = vsub.s32 0, %v914
  %v916 = vrot.slane %v911, %v915
  %v919 = vsel %vm363, %v906, 0
  %921 = vmatprep.subr.mxu0 0.0
  %922 = vmatpush1.msra.mxu0 %v908
  %923 = vmatprep.subr.mxu0 0.0
  %924 = vmatpush1.msra.mxu0 %v909
  %925 = vmatprep.subr.mxu0 0.0
  %926 = vmatpush1.msra.mxu0 0.0
  %927 = vmatprep.subr.mxu0 0.0
  %928 = vmatpush1.msra.mxu0 0.0
  %929 = vmatprep.subr.mxu0 0.0
  %930 = vmatpush1.msra.mxu0 0.0
  %931 = vmatprep.subr.mxu0 0.0
  %932 = vmatpush1.msra.mxu0 0.0
  %933 = vmatprep.subr.mxu0 0.0
  %934 = vmatpush1.msra.mxu0 0.0
  %935 = vmatprep.subr.mxu0 0.0
  %936 = vmatpush1.msra.mxu0 0.0
  %937 = vmatprep.subr.mxu0 0.0
  %938 = vmatpush1.msra.mxu0 0.0
  %939 = vmatprep.subr.mxu0 0.0
  %940 = vmatpush1.msra.mxu0 0.0
  %941 = vmatprep.subr.mxu0 0.0
  %942 = vmatpush1.msra.mxu0 0.0
  %943 = vmatprep.subr.mxu0 0.0
  %944 = vmatpush1.msra.mxu0 0.0
  %945 = vmatprep.subr.mxu0 0.0
  %946 = vmatpush1.msra.mxu0 0.0
  %947 = vmatprep.subr.mxu0 0.0
  %948 = vmatpush1.msra.mxu0 0.0
  %949 = vmatprep.subr.mxu0 0.0
  %950 = vmatpush1.msra.mxu0 0.0
  %951 = vmatprep.subr.mxu0 0.0
  %952 = vmatpush1.msra.mxu0 0.0
  %953 = vmatprep.subr.mxu0 0.0
  %954 = vmatpush1.msra.mxu0 0.0
  %955 = vmatprep.subr.mxu0 0.0
  %956 = vmatpush1.msra.mxu0 0.0
  %957 = vmatprep.subr.mxu0 0.0
  %958 = vmatpush1.msra.mxu0 0.0
  %959 = vmatprep.subr.mxu0 0.0
  %960 = vmatpush1.msra.mxu0 0.0
  %961 = vmatprep.subr.mxu0 0.0
  %962 = vmatpush1.msra.mxu0 0.0
  %963 = vmatprep.subr.mxu0 0.0
  %964 = vmatpush1.msra.mxu0 0.0
  %965 = vmatprep.subr.mxu0 0.0
  %966 = vmatpush1.msra.mxu0 0.0
  %967 = vmatprep.subr.mxu0 0.0
  %968 = vmatpush1.msra.mxu0 0.0
  %969 = vmatprep.subr.mxu0 0.0
  %970 = vmatpush1.msra.mxu0 0.0
  %971 = vmatprep.subr.mxu0 0.0
  %972 = vmatpush1.msra.mxu0 0.0
  %973 = vmatprep.subr.mxu0 0.0
  %974 = vmatpush1.msra.mxu0 0.0
  %975 = vmatprep.subr.mxu0 0.0
  %976 = vmatpush1.msra.mxu0 0.0
  %977 = vmatprep.subr.mxu0 0.0
  %978 = vmatpush1.msra.mxu0 0.0
  %979 = vmatprep.subr.mxu0 0.0
  %980 = vmatpush1.msra.mxu0 0.0
  %981 = vmatprep.subr.mxu0 0.0
  %982 = vmatpush1.msra.mxu0 0.0
  %983 = vmatprep.subr.mxu0 0.0
  %984 = vmatpush1.msra.mxu0 0.0
  %985 = vmatprep.mubr.f32.mxu0 0.0
  %986 = vmatmul.mubr.f32.gmra.mrb[0].mxu0 %v919
  %v987 = vpop.f32.mrb[0].mxu0
  %v988 = vadd.f32 %v916, %v987
  %v989 = vpop.f32.mrb[0].mxu0
  %990 = vdwg.mxu0
  %s991 = scalar_lea.vmem %s10, 4
  %992 = vst.msk [vmem:[%s991] sm:$0x3] %vm437, %v988
  // Predicated region
  $region42: #{_lambda_.11} parent=0 // pred_check
    _
  $region43: #{_lambda_.11} parent=0 // pred_check_branch
    %994 = sbr.rel (0) target = $region45
  $region44: #{_lambda_.11} parent=0 // pred_region
    _
  $region45: #{_lambda_.11} parent=0 // pred_fallthru
    _
  // Predicated region
  $region46: #{_lambda_.11} parent=0 // pred_check
    _
  $region47: #{_lambda_.11} parent=0 // pred_check_branch
    %996 = sbr.rel (0) target = $region49
  $region48: #{_lambda_.11} parent=0 // pred_region
    _
  $region49: #{_lambda_.11} parent=0 // pred_fallthru
    _

// kernel: _lambda_.10
$region0: #{_lambda_.10}
  #allocation0 [shape = 'u32[]', space=smem, size = 0x4, offset = 0x4, fixed_abs, tag = 'smem constant byte address 0x4 - core index']
  #allocation1 [shape = 'u32[144,128]{1,0:T(1,128)}', space=vmem, size = 0x12000, scoped, tag = 'internal scratch']
  %s0 = inlined_call_operand.vmem [shape: f32[10,64], index: 0, kind: input, shape index: {}]
  %s1 = inlined_call_operand.vmem [shape: f32[10,10], index: 1, kind: input, shape index: {}]
  %s2 = inlined_call_operand.vmem [shape: f32[1,1,64], index: 2, kind: input, shape index: {}]
  %s3 = inlined_call_operand.vmem [shape: f32[1,1,64], index: 3, kind: input, shape index: {}]
  %s4 = inlined_call_operand.vmem [shape: bf16[1,3,4,64,16], index: 4, kind: input, shape index: {}]
  %s5 = inlined_call_operand.vmem [shape: f32[1,3,4,1,16], index: 5, kind: input, shape index: {}]
  %s6 = inlined_call_operand.vmem [shape: bf16[1,4,16,64], index: 6, kind: input, shape index: {}]
  %s7 = inlined_call_operand.vmem [shape: f32[1,1,64], index: 7, kind: input, shape index: {}]
  %s8 = inlined_call_operand.vmem [shape: f32[1,1,64], index: 8, kind: input, shape index: {}]
  %s9 = inlined_call_operand.vmem [shape: f32[1,1,64], index: 9, kind: input, shape index: {}]
  %s10 = inlined_call_operand.vmem [shape: bf16[1,64,64], index: 10, kind: input, shape index: {}]
  %s11 = inlined_call_operand.vmem [shape: f32[1,1,64], index: 11, kind: input, shape index: {}]
  %s12 = inlined_call_operand.vmem [shape: bf16[1,64,64], index: 12, kind: input, shape index: {}]
  %s13 = inlined_call_operand.vmem [shape: f32[1,1,64], index: 13, kind: input, shape index: {}]
  %s14 = inlined_call_operand.vmem [shape: f32[10,64], index: 14, kind: output, shape index: {}]
  %s15 = sld [smem:[#allocation0]]
  $region70: #{_lambda_.10} parent=0
    _
  %s17 = ssub.s32 1, %s15
  %s18 = scalar_select 0, %s17, %s15
  // Predicated region
  $region2: #{_lambda_.10} parent=0 // pred_check
    _
  $region3: #{_lambda_.10} parent=0 // pred_check_branch
    %20 = sbr.rel (0) target = $region5
  $region4: #{_lambda_.10} parent=0 // pred_region
    _
  $region5: #{_lambda_.10} parent=0 // pred_fallthru
    _
  // Predicated region
  $region6: #{_lambda_.10} parent=0 // pred_check
    _
  $region7: #{_lambda_.10} parent=0 // pred_check_branch
    %22 = sbr.rel (0) target = $region9
  $region8: #{_lambda_.10} parent=0 // pred_region
    _
  $region9: #{_lambda_.10} parent=0 // pred_fallthru
    _
  // Predicated region
  $region10: #{_lambda_.10} parent=0 // pred_check
    _
  $region11: #{_lambda_.10} parent=0 // pred_check_branch
    %24 = sbr.rel (0) target = $region13
  $region12: #{_lambda_.10} parent=0 // pred_region
    _
  $region13: #{_lambda_.10} parent=0 // pred_fallthru
    _
  // Predicated region
  $region14: #{_lambda_.10} parent=0 // pred_check
    _
  $region15: #{_lambda_.10} parent=0 // pred_check_branch
    %26 = sbr.rel (0) target = $region17
  $region16: #{_lambda_.10} parent=0 // pred_region
    _
  $region17: #{_lambda_.10} parent=0 // pred_fallthru
    _
  // Predicated region
  $region18: #{_lambda_.10} parent=0 // pred_check
    _
  $region19: #{_lambda_.10} parent=0 // pred_check_branch
    %28 = sbr.rel (0) target = $region21
  $region20: #{_lambda_.10} parent=0 // pred_region
    _
  $region21: #{_lambda_.10} parent=0 // pred_fallthru
    _
  // Predicated region
  $region22: #{_lambda_.10} parent=0 // pred_check
    _
  $region23: #{_lambda_.10} parent=0 // pred_check_branch
    %30 = sbr.rel (0) target = $region25
  $region24: #{_lambda_.10} parent=0 // pred_region
    _
  $region25: #{_lambda_.10} parent=0 // pred_fallthru
    _
  // Predicated region
  $region26: #{_lambda_.10} parent=0 // pred_check
    _
  $region27: #{_lambda_.10} parent=0 // pred_check_branch
    %32 = sbr.rel (0) target = $region29
  $region28: #{_lambda_.10} parent=0 // pred_region
    _
  $region29: #{_lambda_.10} parent=0 // pred_fallthru
    _
  // Predicated region
  $region30: #{_lambda_.10} parent=0 // pred_check
    _
  $region31: #{_lambda_.10} parent=0 // pred_check_branch
    %34 = sbr.rel (0) target = $region33
  $region32: #{_lambda_.10} parent=0 // pred_region
    _
  $region33: #{_lambda_.10} parent=0 // pred_fallthru
    _
  // Predicated region
  $region34: #{_lambda_.10} parent=0 // pred_check
    _
  $region35: #{_lambda_.10} parent=0 // pred_check_branch
    %36 = sbr.rel (0) target = $region37
  $region36: #{_lambda_.10} parent=0 // pred_region
    _
  $region37: #{_lambda_.10} parent=0 // pred_fallthru
    _
  // Predicated region
  $region38: #{_lambda_.10} parent=0 // pred_check
    _
  $region39: #{_lambda_.10} parent=0 // pred_check_branch
    %38 = sbr.rel (0) target = $region41
  $region40: #{_lambda_.10} parent=0 // pred_region
    _
  $region41: #{_lambda_.10} parent=0 // pred_fallthru
    _
  // Predicated region
  $region42: #{_lambda_.10} parent=0 // pred_check
    _
  $region43: #{_lambda_.10} parent=0 // pred_check_branch
    %40 = sbr.rel (0) target = $region45
  $region44: #{_lambda_.10} parent=0 // pred_region
    _
  $region45: #{_lambda_.10} parent=0 // pred_fallthru
    _
  // Predicated region
  $region46: #{_lambda_.10} parent=0 // pred_check
    _
  $region47: #{_lambda_.10} parent=0 // pred_check_branch
    %42 = sbr.rel (0) target = $region49
  $region48: #{_lambda_.10} parent=0 // pred_region
    _
  $region49: #{_lambda_.10} parent=0 // pred_fallthru
    _
  // Predicated region
  $region50: #{_lambda_.10} parent=0 // pred_check
    _
  $region51: #{_lambda_.10} parent=0 // pred_check_branch
    %44 = sbr.rel (0) target = $region53
  $region52: #{_lambda_.10} parent=0 // pred_region
    _
  $region53: #{_lambda_.10} parent=0 // pred_fallthru
    _
  // Predicated region
  $region54: #{_lambda_.10} parent=0 // pred_check
    _
  $region55: #{_lambda_.10} parent=0 // pred_check_branch
    %46 = sbr.rel (0) target = $region57
  $region56: #{_lambda_.10} parent=0 // pred_region
    _
  $region57: #{_lambda_.10} parent=0 // pred_fallthru
    _
  %p48 = scmp.eq.s32.totalorder 0, 0
  // Predicated region
  $region58: #{_lambda_.10} parent=0 // pred_check
    %p49 = pneg %p48
  $region59: #{_lambda_.10} parent=0 // pred_check_branch
    %51 = sbr.rel (%p49) target = $region61
  $region60: #{_lambda_.10} parent=0 // pred_region
    %v52 = vld [vmem:[%s0] sm:$0xff]
    %v53 = vld [vmem:[%s0 + $0x8] sm:$0x3]
    %vm54 = vcmask 523264
    %55 = vst.msk [vmem:[%s14] sm:$0xff] %vm54, %v52
    %vm56 = vcmask 517120
    %57 = vst.msk [vmem:[%s14 + $0x8] sm:$0x3] %vm56, %v53
  $region61: #{_lambda_.10} parent=0 // pred_fallthru
    _
  %v58 = vld [vmem:[%s14] sm:$0xff]
  %v59 = vld [vmem:[%s14 + $0x8] sm:$0x3]
  %v60 = vld [vmem:[%s1] sm:$0xff]
  %v61 = vld [vmem:[%s1 + $0x8] sm:$0x3]
  %v62 = vld [vmem:[%s2] sm:$0x1]
  %v63 = vld [vmem:[%s3] sm:$0x1]
  %vm64 = vcmask 523264
  %v65 = vsel %vm64, %v58, 0.0
  %66 = vadd.xlane.f32.xlu0 %v65
  %v67 = vpop.xlane.xlu0 %66
  %vm68 = vcmask 517120
  %v69 = vsel %vm68, %v59, 0.0
  %70 = vadd.xlane.f32.xlu0 %v69
  %v71 = vpop.xlane.xlu0 %70
  %v72 = vrcp.pop 64.0
  %v73 = vmul.f32 %v67, %v72
  %v74 = vmul.f32 %v71, %v72
  %v75 = vsub.f32 %v58, %v73
  %v76 = vsub.f32 %v59, %v74
  %v77 = vmul.f32 %v75, %v75
  %v78 = vmul.f32 %v76, %v76
  %v79 = vsel %vm64, %v77, 0.0
  %80 = vadd.xlane.f32.xlu0 %v79
  %v81 = vpop.xlane.xlu0 %80
  %v82 = vsel %vm68, %v78, 0.0
  %83 = vadd.xlane.f32.xlu0 %v82
  %v84 = vpop.xlane.xlu0 %83
  %v85 = vmul.f32 %v81, %v72
  %v86 = vmul.f32 %v84, %v72
  %v87 = vadd.f32 %v85, 1e-06
  %v88 = vadd.f32 %v86, 1e-06
  %v89 = vrsqrt.pop %v87
  %v90 = vrsqrt.pop %v88
  %v91 = vmul.f32 %v75, %v89
  %v92 = vmul.f32 %v76, %v90
  %v94 = vlaneseq
  %v95 = vshrl.u32 %v94, 7
  %v96 = vsub.s32 0, %v95
  %v97 = vrot.slane %v62, %v96
  %v99 = vmul.f32 %v91, %v97
  %v100 = vmul.f32 %v92, %v97
  %v102 = vlaneseq
  %v103 = vshrl.u32 %v102, 7
  %v104 = vsub.s32 0, %v103
  %v105 = vrot.slane %v63, %v104
  %v107 = vadd.f32 %v99, %v105
  %v108 = vadd.f32 %v100, %v105
  %v109 = vpack.c.bf16 %v108, %v107
  %v110 = vld [vmem:[%s4] sm:$0xf]
  %v111 = vld [vmem:[%s4 + $0x4] sm:$0xf]
  %v112 = vld [vmem:[%s4 + $0x8] sm:$0xf]
  %v113 = vld [vmem:[%s4 + $0xc] sm:$0xf]
  %v114 = vld [vmem:[%s4 + $0x10] sm:$0xf]
  %v115 = vld [vmem:[%s4 + $0x14] sm:$0xf]
  %v116 = vld [vmem:[%s4 + $0x18] sm:$0xf]
  %v117 = vld [vmem:[%s4 + $0x1c] sm:$0xf]
  %v118 = vld [vmem:[%s5] sm:$0x1]
  %v120 = vlaneseq
  %v121 = vshrl.u32 %v120, 7
  %v122 = vsub.s32 0, %v121
  %v123 = vrot.slane %v118, %v122
  %v133 = vunpack.c.l.b16 %v110
  %v134 = vunpack.c.l.b16 %v111
  %v135 = vunpack.c.l.b16 %v112
  %v136 = vunpack.c.l.b16 %v113
  %v137 = vunpack.c.l.b16 %v114
  %v138 = vunpack.c.l.b16 %v115
  %v139 = vunpack.c.l.b16 %v116
  %v140 = vunpack.c.l.b16 %v117
  %v141 = vpack.c.b16 %v134, %v133
  %v142 = vpack.c.b16 %v136, %v135
  %v143 = vpack.c.b16 %v138, %v137
  %v144 = vpack.c.b16 %v140, %v139
  %v150 = vsel %vm64, %v109, 0
  %152 = vmatprep.subr.bf16.mxu0 0
  %153 = vmatpush1.bf16.msra.mxu0 %v141
  %154 = vmatprep.subr.bf16.mxu0 0
  %155 = vmatpush1.bf16.msra.mxu0 %v142
  %156 = vmatprep.subr.bf16.mxu0 0
  %157 = vmatpush1.bf16.msra.mxu0 %v143
  %158 = vmatprep.subr.bf16.mxu0 0
  %159 = vmatpush1.bf16.msra.mxu0 %v144
  %160 = vmatprep.subr.bf16.mxu0 0
  %161 = vmatpush1.bf16.msra.mxu0 0
  %162 = vmatprep.subr.bf16.mxu0 0
  %163 = vmatpush1.bf16.msra.mxu0 0
  %164 = vmatprep.subr.bf16.mxu0 0
  %165 = vmatpush1.bf16.msra.mxu0 0
  %166 = vmatprep.subr.bf16.mxu0 0
  %167 = vmatpush1.bf16.msra.mxu0 0
  %168 = vmatprep.subr.bf16.mxu0 0
  %169 = vmatpush1.bf16.msra.mxu0 0
  %170 = vmatprep.subr.bf16.mxu0 0
  %171 = vmatpush1.bf16.msra.mxu0 0
  %172 = vmatprep.subr.bf16.mxu0 0
  %173 = vmatpush1.bf16.msra.mxu0 0
  %174 = vmatprep.subr.bf16.mxu0 0
  %175 = vmatpush1.bf16.msra.mxu0 0
  %176 = vmatprep.subr.bf16.mxu0 0
  %177 = vmatpush1.bf16.msra.mxu0 0
  %178 = vmatprep.subr.bf16.mxu0 0
  %179 = vmatpush1.bf16.msra.mxu0 0
  %180 = vmatprep.subr.bf16.mxu0 0
  %181 = vmatpush1.bf16.msra.mxu0 0
  %182 = vmatprep.subr.bf16.mxu0 0
  %183 = vmatpush1.bf16.msra.mxu0 0
  %184 = vmatprep.mubr.bf16.mxu0 0
  %185 = vmatmul.mubr.bf16.gmra.mrb[0].mxu0 %v150
  %v186 = vpop.f32.mrb[0].mxu0
  %v187 = vadd.f32 %v123, %v186
  %v188 = vpop.f32.mrb[0].mxu0
  %v189 = vpop.f32.mrb[0].mxu0
  %v190 = vadd.f32 %v123, %v189
  %v191 = vpop.f32.mrb[0].mxu0
  %192 = vdwg.mxu0
  %s193 = scalar_lea.vmem %s4, 128
  %v194 = vld [vmem:[%s193] sm:$0xf]
  %v195 = vld [vmem:[%s193 + $0x4] sm:$0xf]
  %v196 = vld [vmem:[%s193 + $0x8] sm:$0xf]
  %v197 = vld [vmem:[%s193 + $0xc] sm:$0xf]
  %v198 = vld [vmem:[%s193 + $0x10] sm:$0xf]
  %v199 = vld [vmem:[%s193 + $0x14] sm:$0xf]
  %v200 = vld [vmem:[%s193 + $0x18] sm:$0xf]
  %v201 = vld [vmem:[%s193 + $0x1c] sm:$0xf]
  %s202 = scalar_lea.vmem %s5, 4
  %v203 = vld [vmem:[%s202] sm:$0x1]
  %v205 = vlaneseq
  %v206 = vshrl.u32 %v205, 7
  %v207 = vsub.s32 0, %v206
  %v208 = vrot.slane %v203, %v207
  %v218 = vunpack.c.l.b16 %v194
  %v219 = vunpack.c.l.b16 %v195
  %v220 = vunpack.c.l.b16 %v196
  %v221 = vunpack.c.l.b16 %v197
  %v222 = vunpack.c.l.b16 %v198
  %v223 = vunpack.c.l.b16 %v199
  %v224 = vunpack.c.l.b16 %v200
  %v225 = vunpack.c.l.b16 %v201
  %v226 = vpack.c.b16 %v219, %v218
  %v227 = vpack.c.b16 %v221, %v220
  %v228 = vpack.c.b16 %v223, %v222
  %v229 = vpack.c.b16 %v225, %v224
  %234 = vmatprep.subr.bf16.mxu0 0
  %235 = vmatpush1.bf16.msra.mxu0 %v226
  %236 = vmatprep.subr.bf16.mxu0 0
  %237 = vmatpush1.bf16.msra.mxu0 %v227
  %238 = vmatprep.subr.bf16.mxu0 0
  %239 = vmatpush1.bf16.msra.mxu0 %v228
  %240 = vmatprep.subr.bf16.mxu0 0
  %241 = vmatpush1.bf16.msra.mxu0 %v229
  %242 = vmatprep.subr.bf16.mxu0 0
  %243 = vmatpush1.bf16.msra.mxu0 0
  %244 = vmatprep.subr.bf16.mxu0 0
  %245 = vmatpush1.bf16.msra.mxu0 0
  %246 = vmatprep.subr.bf16.mxu0 0
  %247 = vmatpush1.bf16.msra.mxu0 0
  %248 = vmatprep.subr.bf16.mxu0 0
  %249 = vmatpush1.bf16.msra.mxu0 0
  %250 = vmatprep.subr.bf16.mxu0 0
  %251 = vmatpush1.bf16.msra.mxu0 0
  %252 = vmatprep.subr.bf16.mxu0 0
  %253 = vmatpush1.bf16.msra.mxu0 0
  %254 = vmatprep.subr.bf16.mxu0 0
  %255 = vmatpush1.bf16.msra.mxu0 0
  %256 = vmatprep.subr.bf16.mxu0 0
  %257 = vmatpush1.bf16.msra.mxu0 0
  %258 = vmatprep.subr.bf16.mxu0 0
  %259 = vmatpush1.bf16.msra.mxu0 0
  %260 = vmatprep.subr.bf16.mxu0 0
  %261 = vmatpush1.bf16.msra.mxu0 0
  %262 = vmatprep.subr.bf16.mxu0 0
  %263 = vmatpush1.bf16.msra.mxu0 0
  %264 = vmatprep.subr.bf16.mxu0 0
  %265 = vmatpush1.bf16.msra.mxu0 0
  %266 = vmatprep.mubr.bf16.mxu0 0
  %267 = vmatmul.mubr.bf16.gmra.mrb[0].mxu0 %v150
  %v268 = vpop.f32.mrb[0].mxu0
  %v269 = vadd.f32 %v208, %v268
  %v270 = vpop.f32.mrb[0].mxu0
  %v271 = vpop.f32.mrb[0].mxu0
  %v272 = vadd.f32 %v208, %v271
  %v273 = vpop.f32.mrb[0].mxu0
  %274 = vdwg.mxu0
  %s275 = scalar_lea.vmem %s4, 256
  %v276 = vld [vmem:[%s275] sm:$0xf]
  %v277 = vld [vmem:[%s275 + $0x4] sm:$0xf]
  %v278 = vld [vmem:[%s275 + $0x8] sm:$0xf]
  %v279 = vld [vmem:[%s275 + $0xc] sm:$0xf]
  %v280 = vld [vmem:[%s275 + $0x10] sm:$0xf]
  %v281 = vld [vmem:[%s275 + $0x14] sm:$0xf]
  %v282 = vld [vmem:[%s275 + $0x18] sm:$0xf]
  %v283 = vld [vmem:[%s275 + $0x1c] sm:$0xf]
  %s284 = scalar_lea.vmem %s5, 8
  %v285 = vld [vmem:[%s284] sm:$0x1]
  %v287 = vlaneseq
  %v288 = vshrl.u32 %v287, 7
  %v289 = vsub.s32 0, %v288
  %v290 = vrot.slane %v285, %v289
  %v300 = vunpack.c.l.b16 %v276
  %v301 = vunpack.c.l.b16 %v277
  %v302 = vunpack.c.l.b16 %v278
  %v303 = vunpack.c.l.b16 %v279
  %v304 = vunpack.c.l.b16 %v280
  %v305 = vunpack.c.l.b16 %v281
  %v306 = vunpack.c.l.b16 %v282
  %v307 = vunpack.c.l.b16 %v283
  %v308 = vpack.c.b16 %v301, %v300
  %v309 = vpack.c.b16 %v303, %v302
  %v310 = vpack.c.b16 %v305, %v304
  %v311 = vpack.c.b16 %v307, %v306
  %316 = vmatprep.subr.bf16.mxu0 0
  %317 = vmatpush1.bf16.msra.mxu0 %v308
  %318 = vmatprep.subr.bf16.mxu0 0
  %319 = vmatpush1.bf16.msra.mxu0 %v309
  %320 = vmatprep.subr.bf16.mxu0 0
  %321 = vmatpush1.bf16.msra.mxu0 %v310
  %322 = vmatprep.subr.bf16.mxu0 0
  %323 = vmatpush1.bf16.msra.mxu0 %v311
  %324 = vmatprep.subr.bf16.mxu0 0
  %325 = vmatpush1.bf16.msra.mxu0 0
  %326 = vmatprep.subr.bf16.mxu0 0
  %327 = vmatpush1.bf16.msra.mxu0 0
  %328 = vmatprep.subr.bf16.mxu0 0
  %329 = vmatpush1.bf16.msra.mxu0 0
  %330 = vmatprep.subr.bf16.mxu0 0
  %331 = vmatpush1.bf16.msra.mxu0 0
  %332 = vmatprep.subr.bf16.mxu0 0
  %333 = vmatpush1.bf16.msra.mxu0 0
  %334 = vmatprep.subr.bf16.mxu0 0
  %335 = vmatpush1.bf16.msra.mxu0 0
  %336 = vmatprep.subr.bf16.mxu0 0
  %337 = vmatpush1.bf16.msra.mxu0 0
  %338 = vmatprep.subr.bf16.mxu0 0
  %339 = vmatpush1.bf16.msra.mxu0 0
  %340 = vmatprep.subr.bf16.mxu0 0
  %341 = vmatpush1.bf16.msra.mxu0 0
  %342 = vmatprep.subr.bf16.mxu0 0
  %343 = vmatpush1.bf16.msra.mxu0 0
  %344 = vmatprep.subr.bf16.mxu0 0
  %345 = vmatpush1.bf16.msra.mxu0 0
  %346 = vmatprep.subr.bf16.mxu0 0
  %347 = vmatpush1.bf16.msra.mxu0 0
  %348 = vmatprep.mubr.bf16.mxu0 0
  %349 = vmatmul.mubr.bf16.gmra.mrb[0].mxu0 %v150
  %v350 = vpop.f32.mrb[0].mxu0
  %v351 = vadd.f32 %v290, %v350
  %v352 = vpop.f32.mrb[0].mxu0
  %v353 = vpop.f32.mrb[0].mxu0
  %v354 = vadd.f32 %v290, %v353
  %v355 = vpop.f32.mrb[0].mxu0
  %356 = vdwg.mxu0
  %v357 = vmul.f32 %v187, 0.25
  %v358 = vmul.f32 %v190, 0.25
  %v359 = vpack.c.bf16 %v358, %v357
  %v360 = vpack.c.bf16 %v272, %v269
  %vm361 = vcmask 130048
  %v363 = vsel %vm361, %v359, 0
  %v366 = vsel %vm361, %v360, 0
  %368 = vmatprep.subr.bf16.mxu0 0
  %369 = vmatpush1.bf16.xpose.msra.mxu0 %v366
  %370 = vmatprep.subr.bf16.mxu0 0
  %371 = vmatpush1.bf16.xpose.msra.mxu0 0
  %372 = vmatprep.subr.bf16.mxu0 0
  %373 = vmatpush1.bf16.xpose.msra.mxu0 0
  %374 = vmatprep.subr.bf16.mxu0 0
  %375 = vmatpush1.bf16.xpose.msra.mxu0 0
  %376 = vmatprep.subr.bf16.mxu0 0
  %377 = vmatpush1.bf16.xpose.msra.mxu0 0
  %378 = vmatprep.subr.bf16.mxu0 0
  %379 = vmatpush1.bf16.xpose.msra.mxu0 0
  %380 = vmatprep.subr.bf16.mxu0 0
  %381 = vmatpush1.bf16.xpose.msra.mxu0 0
  %382 = vmatprep.subr.bf16.mxu0 0
  %383 = vmatpush1.bf16.xpose.msra.mxu0 0
  %384 = vmatprep.subr.bf16.mxu0 0
  %385 = vmatpush1.bf16.xpose.msra.mxu0 0
  %386 = vmatprep.subr.bf16.mxu0 0
  %387 = vmatpush1.bf16.xpose.msra.mxu0 0
  %388 = vmatprep.subr.bf16.mxu0 0
  %389 = vmatpush1.bf16.xpose.msra.mxu0 0
  %390 = vmatprep.subr.bf16.mxu0 0
  %391 = vmatpush1.bf16.xpose.msra.mxu0 0
  %392 = vmatprep.subr.bf16.mxu0 0
  %393 = vmatpush1.bf16.xpose.msra.mxu0 0
  %394 = vmatprep.subr.bf16.mxu0 0
  %395 = vmatpush1.bf16.xpose.msra.mxu0 0
  %396 = vmatprep.subr.bf16.mxu0 0
  %397 = vmatpush1.bf16.xpose.msra.mxu0 0
  %398 = vmatprep.subr.bf16.mxu0 0
  %399 = vmatpush1.bf16.xpose.msra.mxu0 0
  %400 = vmatprep.mubr.bf16.mxu0 0
  %401 = vmatmul.mubr.bf16.gmra.mrb[0].mxu0 %v363
  %v402 = vpop.f32.mrb[0].mxu0
  %v403 = vadd.f32 %v60, %v402
  %v404 = vpop.f32.mrb[0].mxu0
  %v405 = vpop.f32.mrb[0].mxu0
  %v406 = vadd.f32 %v61, %v405
  %v407 = vpop.f32.mrb[0].mxu0
  %408 = vdwg.mxu0
  %vm409 = vcmask 80896
  %v410 = vsel %vm409, %v403, -inf
  %411 = vmax.xlane.f32.xlu0 %v410
  %v412 = vpop.xlane.xlu0 %411
  %vm413 = vcmask 74752
  %v414 = vsel %vm413, %v406, -inf
  %415 = vmax.xlane.f32.xlu0 %v414
  %v416 = vpop.xlane.xlu0 %415
  %v417 = vsub.f32 %v403, %v412
  %v418 = vsub.f32 %v406, %v416
  %v419 = vmul.f32 %v417, 1.442695
  %v420 = vpow.pop %v419
  %v421 = vmul.f32 %v418, 1.442695
  %v422 = vpow.pop %v421
  %v423 = vsel %vm409, %v420, 0.0
  %424 = vadd.xlane.f32.xlu0 %v423
  %v425 = vpop.xlane.xlu0 %424
  %v426 = vsel %vm413, %v422, 0.0
  %427 = vadd.xlane.f32.xlu0 %v426
  %v428 = vpop.xlane.xlu0 %427
  %v429 = vrcp.pop %v425
  %v430 = vrcp.pop %v428
  %v431 = vmul.f32 %v420, %v429
  %v432 = vmul.f32 %v422, %v430
  %v433 = vpack.c.bf16 %v432, %v431
  %v434 = vpack.c.bf16 %v354, %v351
  %v436 = vsel %vm409, %v433, 0
  %vm438 = vcmask 1044480
  %v440 = vsel %vm438, %v434, 0
  %442 = vmatprep.subr.bf16.mxu0 0
  %443 = vmatpush1.bf16.msra.mxu0 %v440
  %444 = vmatprep.subr.bf16.mxu0 0
  %445 = vmatpush1.bf16.msra.mxu0 0
  %446 = vmatprep.subr.bf16.mxu0 0
  %447 = vmatpush1.bf16.msra.mxu0 0
  %448 = vmatprep.subr.bf16.mxu0 0
  %449 = vmatpush1.bf16.msra.mxu0 0
  %450 = vmatprep.subr.bf16.mxu0 0
  %451 = vmatpush1.bf16.msra.mxu0 0
  %452 = vmatprep.subr.bf16.mxu0 0
  %453 = vmatpush1.bf16.msra.mxu0 0
  %454 = vmatprep.subr.bf16.mxu0 0
  %455 = vmatpush1.bf16.msra.mxu0 0
  %456 = vmatprep.subr.bf16.mxu0 0
  %457 = vmatpush1.bf16.msra.mxu0 0
  %458 = vmatprep.subr.bf16.mxu0 0
  %459 = vmatpush1.bf16.msra.mxu0 0
  %460 = vmatprep.subr.bf16.mxu0 0
  %461 = vmatpush1.bf16.msra.mxu0 0
  %462 = vmatprep.subr.bf16.mxu0 0
  %463 = vmatpush1.bf16.msra.mxu0 0
  %464 = vmatprep.subr.bf16.mxu0 0
  %465 = vmatpush1.bf16.msra.mxu0 0
  %466 = vmatprep.subr.bf16.mxu0 0
  %467 = vmatpush1.bf16.msra.mxu0 0
  %468 = vmatprep.subr.bf16.mxu0 0
  %469 = vmatpush1.bf16.msra.mxu0 0
  %470 = vmatprep.subr.bf16.mxu0 0
  %471 = vmatpush1.bf16.msra.mxu0 0
  %472 = vmatprep.subr.bf16.mxu0 0
  %473 = vmatpush1.bf16.msra.mxu0 0
  %474 = vmatprep.mubr.bf16.mxu0 0
  %475 = vmatmul.mubr.bf16.gmra.mrb[0].mxu0 %v436
  %v476 = vpop.f32.mrb[0].mxu0
  %v477 = vadd.f32 0.0, %v476
  %v478 = vpop.f32.mrb[0].mxu0
  %v479 = vpop.f32.mrb[0].mxu0
  %v480 = vadd.f32 0.0, %v479
  %v481 = vpop.f32.mrb[0].mxu0
  %482 = vdwg.mxu0
  %v483 = vld [vmem:[%s6] sm:$0xf]
  %v484 = vld [vmem:[%s6 + $0x4] sm:$0xf]
  %v485 = vpack.c.bf16 %v480, %v477
  %s486 = scalar_lea.vmem %s4, 32
  %v487 = vld [vmem:[%s486] sm:$0xf]
  %v488 = vld [vmem:[%s486 + $0x4] sm:$0xf]
  %v489 = vld [vmem:[%s486 + $0x8] sm:$0xf]
  %v490 = vld [vmem:[%s486 + $0xc] sm:$0xf]
  %v491 = vld [vmem:[%s486 + $0x10] sm:$0xf]
  %v492 = vld [vmem:[%s486 + $0x14] sm:$0xf]
  %v493 = vld [vmem:[%s486 + $0x18] sm:$0xf]
  %v494 = vld [vmem:[%s486 + $0x1c] sm:$0xf]
  %s495 = scalar_lea.vmem %s5, 1
  %v496 = vld [vmem:[%s495] sm:$0x1]
  %v498 = vlaneseq
  %v499 = vshrl.u32 %v498, 7
  %v500 = vsub.s32 0, %v499
  %v501 = vrot.slane %v496, %v500
  %v511 = vunpack.c.l.b16 %v487
  %v512 = vunpack.c.l.b16 %v488
  %v513 = vunpack.c.l.b16 %v489
  %v514 = vunpack.c.l.b16 %v490
  %v515 = vunpack.c.l.b16 %v491
  %v516 = vunpack.c.l.b16 %v492
  %v517 = vunpack.c.l.b16 %v493
  %v518 = vunpack.c.l.b16 %v494
  %v519 = vpack.c.b16 %v512, %v511
  %v520 = vpack.c.b16 %v514, %v513
  %v521 = vpack.c.b16 %v516, %v515
  %v522 = vpack.c.b16 %v518, %v517
  %527 = vmatprep.subr.bf16.mxu0 0
  %528 = vmatpush1.bf16.msra.mxu0 %v519
  %529 = vmatprep.subr.bf16.mxu0 0
  %530 = vmatpush1.bf16.msra.mxu0 %v520
  %531 = vmatprep.subr.bf16.mxu0 0
  %532 = vmatpush1.bf16.msra.mxu0 %v521
  %533 = vmatprep.subr.bf16.mxu0 0
  %534 = vmatpush1.bf16.msra.mxu0 %v522
  %535 = vmatprep.subr.bf16.mxu0 0
  %536 = vmatpush1.bf16.msra.mxu0 0
  %537 = vmatprep.subr.bf16.mxu0 0
  %538 = vmatpush1.bf16.msra.mxu0 0
  %539 = vmatprep.subr.bf16.mxu0 0
  %540 = vmatpush1.bf16.msra.mxu0 0
  %541 = vmatprep.subr.bf16.mxu0 0
  %542 = vmatpush1.bf16.msra.mxu0 0
  %543 = vmatprep.subr.bf16.mxu0 0
  %544 = vmatpush1.bf16.msra.mxu0 0
  %545 = vmatprep.subr.bf16.mxu0 0
  %546 = vmatpush1.bf16.msra.mxu0 0
  %547 = vmatprep.subr.bf16.mxu0 0
  %548 = vmatpush1.bf16.msra.mxu0 0
  %549 = vmatprep.subr.bf16.mxu0 0
  %550 = vmatpush1.bf16.msra.mxu0 0
  %551 = vmatprep.subr.bf16.mxu0 0
  %552 = vmatpush1.bf16.msra.mxu0 0
  %553 = vmatprep.subr.bf16.mxu0 0
  %554 = vmatpush1.bf16.msra.mxu0 0
  %555 = vmatprep.subr.bf16.mxu0 0
  %556 = vmatpush1.bf16.msra.mxu0 0
  %557 = vmatprep.subr.bf16.mxu0 0
  %558 = vmatpush1.bf16.msra.mxu0 0
  %559 = vmatprep.mubr.bf16.mxu0 0
  %560 = vmatmul.mubr.bf16.gmra.mrb[0].mxu0 %v150
  %v561 = vpop.f32.mrb[0].mxu0
  %v562 = vadd.f32 %v501, %v561
  %v563 = vpop.f32.mrb[0].mxu0
  %v564 = vpop.f32.mrb[0].mxu0
  %v565 = vadd.f32 %v501, %v564
  %v566 = vpop.f32.mrb[0].mxu0
  %567 = vdwg.mxu0
  %s568 = scalar_lea.vmem %s4, 160
  %v569 = vld [vmem:[%s568] sm:$0xf]
  %v570 = vld [vmem:[%s568 + $0x4] sm:$0xf]
  %v571 = vld [vmem:[%s568 + $0x8] sm:$0xf]
  %v572 = vld [vmem:[%s568 + $0xc] sm:$0xf]
  %v573 = vld [vmem:[%s568 + $0x10] sm:$0xf]
  %v574 = vld [vmem:[%s568 + $0x14] sm:$0xf]
  %v575 = vld [vmem:[%s568 + $0x18] sm:$0xf]
  %v576 = vld [vmem:[%s568 + $0x1c] sm:$0xf]
  %s577 = scalar_lea.vmem %s5, 5
  %v578 = vld [vmem:[%s577] sm:$0x1]
  %v580 = vlaneseq
  %v581 = vshrl.u32 %v580, 7
  %v582 = vsub.s32 0, %v581
  %v583 = vrot.slane %v578, %v582
  %v593 = vunpack.c.l.b16 %v569
  %v594 = vunpack.c.l.b16 %v570
  %v595 = vunpack.c.l.b16 %v571
  %v596 = vunpack.c.l.b16 %v572
  %v597 = vunpack.c.l.b16 %v573
  %v598 = vunpack.c.l.b16 %v574
  %v599 = vunpack.c.l.b16 %v575
  %v600 = vunpack.c.l.b16 %v576
  %v601 = vpack.c.b16 %v594, %v593
  %v602 = vpack.c.b16 %v596, %v595
  %v603 = vpack.c.b16 %v598, %v597
  %v604 = vpack.c.b16 %v600, %v599
  %609 = vmatprep.subr.bf16.mxu0 0
  %610 = vmatpush1.bf16.msra.mxu0 %v601
  %611 = vmatprep.subr.bf16.mxu0 0
  %612 = vmatpush1.bf16.msra.mxu0 %v602
  %613 = vmatprep.subr.bf16.mxu0 0
  %614 = vmatpush1.bf16.msra.mxu0 %v603
  %615 = vmatprep.subr.bf16.mxu0 0
  %616 = vmatpush1.bf16.msra.mxu0 %v604
  %617 = vmatprep.subr.bf16.mxu0 0
  %618 = vmatpush1.bf16.msra.mxu0 0
  %619 = vmatprep.subr.bf16.mxu0 0
  %620 = vmatpush1.bf16.msra.mxu0 0
  %621 = vmatprep.subr.bf16.mxu0 0
  %622 = vmatpush1.bf16.msra.mxu0 0
  %623 = vmatprep.subr.bf16.mxu0 0
  %624 = vmatpush1.bf16.msra.mxu0 0
  %625 = vmatprep.subr.bf16.mxu0 0
  %626 = vmatpush1.bf16.msra.mxu0 0
  %627 = vmatprep.subr.bf16.mxu0 0
  %628 = vmatpush1.bf16.msra.mxu0 0
  %629 = vmatprep.subr.bf16.mxu0 0
  %630 = vmatpush1.bf16.msra.mxu0 0
  %631 = vmatprep.subr.bf16.mxu0 0
  %632 = vmatpush1.bf16.msra.mxu0 0
  %633 = vmatprep.subr.bf16.mxu0 0
  %634 = vmatpush1.bf16.msra.mxu0 0
  %635 = vmatprep.subr.bf16.mxu0 0
  %636 = vmatpush1.bf16.msra.mxu0 0
  %637 = vmatprep.subr.bf16.mxu0 0
  %638 = vmatpush1.bf16.msra.mxu0 0
  %639 = vmatprep.subr.bf16.mxu0 0
  %640 = vmatpush1.bf16.msra.mxu0 0
  %641 = vmatprep.mubr.bf16.mxu0 0
  %642 = vmatmul.mubr.bf16.gmra.mrb[0].mxu0 %v150
  %v643 = vpop.f32.mrb[0].mxu0
  %v644 = vadd.f32 %v583, %v643
  %v645 = vpop.f32.mrb[0].mxu0
  %v646 = vpop.f32.mrb[0].mxu0
  %v647 = vadd.f32 %v583, %v646
  %v648 = vpop.f32.mrb[0].mxu0
  %649 = vdwg.mxu0
  %s650 = scalar_lea.vmem %s4, 288
  %v651 = vld [vmem:[%s650] sm:$0xf]
  %v652 = vld [vmem:[%s650 + $0x4] sm:$0xf]
  %v653 = vld [vmem:[%s650 + $0x8] sm:$0xf]
  %v654 = vld [vmem:[%s650 + $0xc] sm:$0xf]
  %v655 = vld [vmem:[%s650 + $0x10] sm:$0xf]
  %v656 = vld [vmem:[%s650 + $0x14] sm:$0xf]
  %v657 = vld [vmem:[%s650 + $0x18] sm:$0xf]
  %v658 = vld [vmem:[%s650 + $0x1c] sm:$0xf]
  %s659 = scalar_lea.vmem %s5, 9
  %v660 = vld [vmem:[%s659] sm:$0x1]
  %v662 = vlaneseq
  %v663 = vshrl.u32 %v662, 7
  %v664 = vsub.s32 0, %v663
  %v665 = vrot.slane %v660, %v664
  %v675 = vunpack.c.l.b16 %v651
  %v676 = vunpack.c.l.b16 %v652
  %v677 = vunpack.c.l.b16 %v653
  %v678 = vunpack.c.l.b16 %v654
  %v679 = vunpack.c.l.b16 %v655
  %v680 = vunpack.c.l.b16 %v656
  %v681 = vunpack.c.l.b16 %v657
  %v682 = vunpack.c.l.b16 %v658
  %v683 = vpack.c.b16 %v676, %v675
  %v684 = vpack.c.b16 %v678, %v677
  %v685 = vpack.c.b16 %v680, %v679
  %v686 = vpack.c.b16 %v682, %v681
  %691 = vmatprep.subr.bf16.mxu0 0
  %692 = vmatpush1.bf16.msra.mxu0 %v683
  %693 = vmatprep.subr.bf16.mxu0 0
  %694 = vmatpush1.bf16.msra.mxu0 %v684
  %695 = vmatprep.subr.bf16.mxu0 0
  %696 = vmatpush1.bf16.msra.mxu0 %v685
  %697 = vmatprep.subr.bf16.mxu0 0
  %698 = vmatpush1.bf16.msra.mxu0 %v686
  %699 = vmatprep.subr.bf16.mxu0 0
  %700 = vmatpush1.bf16.msra.mxu0 0
  %701 = vmatprep.subr.bf16.mxu0 0
  %702 = vmatpush1.bf16.msra.mxu0 0
  %703 = vmatprep.subr.bf16.mxu0 0
  %704 = vmatpush1.bf16.msra.mxu0 0
  %705 = vmatprep.subr.bf16.mxu0 0
  %706 = vmatpush1.bf16.msra.mxu0 0
  %707 = vmatprep.subr.bf16.mxu0 0
  %708 = vmatpush1.bf16.msra.mxu0 0
  %709 = vmatprep.subr.bf16.mxu0 0
  %710 = vmatpush1.bf16.msra.mxu0 0
  %711 = vmatprep.subr.bf16.mxu0 0
  %712 = vmatpush1.bf16.msra.mxu0 0
  %713 = vmatprep.subr.bf16.mxu0 0
  %714 = vmatpush1.bf16.msra.mxu0 0
  %715 = vmatprep.subr.bf16.mxu0 0
  %716 = vmatpush1.bf16.msra.mxu0 0
  %717 = vmatprep.subr.bf16.mxu0 0
  %718 = vmatpush1.bf16.msra.mxu0 0
  %719 = vmatprep.subr.bf16.mxu0 0
  %720 = vmatpush1.bf16.msra.mxu0 0
  %721 = vmatprep.subr.bf16.mxu0 0
  %722 = vmatpush1.bf16.msra.mxu0 0
  %723 = vmatprep.mubr.bf16.mxu0 0
  %724 = vmatmul.mubr.bf16.gmra.mrb[0].mxu0 %v150
  %v725 = vpop.f32.mrb[0].mxu0
  %v726 = vadd.f32 %v665, %v725
  %v727 = vpop.f32.mrb[0].mxu0
  %v728 = vpop.f32.mrb[0].mxu0
  %v729 = vadd.f32 %v665, %v728
  %v730 = vpop.f32.mrb[0].mxu0
  %731 = vdwg.mxu0
  %v732 = vmul.f32 %v562, 0.25
  %v733 = vmul.f32 %v565, 0.25
  %v734 = vpack.c.bf16 %v733, %v732
  %v735 = vpack.c.bf16 %v647, %v644
  %v737 = vsel %vm361, %v734, 0
  %v740 = vsel %vm361, %v735, 0
  %742 = vmatprep.subr.bf16.mxu0 0
  %743 = vmatpush1.bf16.xpose.msra.mxu0 %v740
  %744 = vmatprep.subr.bf16.mxu0 0
  %745 = vmatpush1.bf16.xpose.msra.mxu0 0
  %746 = vmatprep.subr.bf16.mxu0 0
  %747 = vmatpush1.bf16.xpose.msra.mxu0 0
  %748 = vmatprep.subr.bf16.mxu0 0
  %749 = vmatpush1.bf16.xpose.msra.mxu0 0
  %750 = vmatprep.subr.bf16.mxu0 0
  %751 = vmatpush1.bf16.xpose.msra.mxu0 0
  %752 = vmatprep.subr.bf16.mxu0 0
  %753 = vmatpush1.bf16.xpose.msra.mxu0 0
  %754 = vmatprep.subr.bf16.mxu0 0
  %755 = vmatpush1.bf16.xpose.msra.mxu0 0
  %756 = vmatprep.subr.bf16.mxu0 0
  %757 = vmatpush1.bf16.xpose.msra.mxu0 0
  %758 = vmatprep.subr.bf16.mxu0 0
  %759 = vmatpush1.bf16.xpose.msra.mxu0 0
  %760 = vmatprep.subr.bf16.mxu0 0
  %761 = vmatpush1.bf16.xpose.msra.mxu0 0
  %762 = vmatprep.subr.bf16.mxu0 0
  %763 = vmatpush1.bf16.xpose.msra.mxu0 0
  %764 = vmatprep.subr.bf16.mxu0 0
  %765 = vmatpush1.bf16.xpose.msra.mxu0 0
  %766 = vmatprep.subr.bf16.mxu0 0
  %767 = vmatpush1.bf16.xpose.msra.mxu0 0
  %768 = vmatprep.subr.bf16.mxu0 0
  %769 = vmatpush1.bf16.xpose.msra.mxu0 0
  %770 = vmatprep.subr.bf16.mxu0 0
  %771 = vmatpush1.bf16.xpose.msra.mxu0 0
  %772 = vmatprep.subr.bf16.mxu0 0
  %773 = vmatpush1.bf16.xpose.msra.mxu0 0
  %774 = vmatprep.mubr.bf16.mxu0 0
  %775 = vmatmul.mubr.bf16.gmra.mrb[0].mxu0 %v737
  %v776 = vpop.f32.mrb[0].mxu0
  %v777 = vadd.f32 %v60, %v776
  %v778 = vpop.f32.mrb[0].mxu0
  %v779 = vpop.f32.mrb[0].mxu0
  %v780 = vadd.f32 %v61, %v779
  %v781 = vpop.f32.mrb[0].mxu0
  %782 = vdwg.mxu0
  %v783 = vsel %vm409, %v777, -inf
  %784 = vmax.xlane.f32.xlu0 %v783
  %v785 = vpop.xlane.xlu0 %784
  %v786 = vsel %vm413, %v780, -inf
  %787 = vmax.xlane.f32.xlu0 %v786
  %v788 = vpop.xlane.xlu0 %787
  %v789 = vsub.f32 %v777, %v785
  %v790 = vsub.f32 %v780, %v788
  %v791 = vmul.f32 %v789, 1.442695
  %v792 = vpow.pop %v791
  %v793 = vmul.f32 %v790, 1.442695
  %v794 = vpow.pop %v793
  %v795 = vsel %vm409, %v792, 0.0
  %796 = vadd.xlane.f32.xlu0 %v795
  %v797 = vpop.xlane.xlu0 %796
  %v798 = vsel %vm413, %v794, 0.0
  %799 = vadd.xlane.f32.xlu0 %v798
  %v800 = vpop.xlane.xlu0 %799
  %v801 = vrcp.pop %v797
  %v802 = vrcp.pop %v800
  %v803 = vmul.f32 %v792, %v801
  %v804 = vmul.f32 %v794, %v802
  %v805 = vpack.c.bf16 %v804, %v803
  %v806 = vpack.c.bf16 %v729, %v726
  %v808 = vsel %vm409, %v805, 0
  %v811 = vsel %vm438, %v806, 0
  %813 = vmatprep.subr.bf16.mxu0 0
  %814 = vmatpush1.bf16.msra.mxu0 %v811
  %815 = vmatprep.subr.bf16.mxu0 0
  %816 = vmatpush1.bf16.msra.mxu0 0
  %817 = vmatprep.subr.bf16.mxu0 0
  %818 = vmatpush1.bf16.msra.mxu0 0
  %819 = vmatprep.subr.bf16.mxu0 0
  %820 = vmatpush1.bf16.msra.mxu0 0
  %821 = vmatprep.subr.bf16.mxu0 0
  %822 = vmatpush1.bf16.msra.mxu0 0
  %823 = vmatprep.subr.bf16.mxu0 0
  %824 = vmatpush1.bf16.msra.mxu0 0
  %825 = vmatprep.subr.bf16.mxu0 0
  %826 = vmatpush1.bf16.msra.mxu0 0
  %827 = vmatprep.subr.bf16.mxu0 0
  %828 = vmatpush1.bf16.msra.mxu0 0
  %829 = vmatprep.subr.bf16.mxu0 0
  %830 = vmatpush1.bf16.msra.mxu0 0
  %831 = vmatprep.subr.bf16.mxu0 0
  %832 = vmatpush1.bf16.msra.mxu0 0
  %833 = vmatprep.subr.bf16.mxu0 0
  %834 = vmatpush1.bf16.msra.mxu0 0
  %835 = vmatprep.subr.bf16.mxu0 0
  %836 = vmatpush1.bf16.msra.mxu0 0
  %837 = vmatprep.subr.bf16.mxu0 0
  %838 = vmatpush1.bf16.msra.mxu0 0
  %839 = vmatprep.subr.bf16.mxu0 0
  %840 = vmatpush1.bf16.msra.mxu0 0
  %841 = vmatprep.subr.bf16.mxu0 0
  %842 = vmatpush1.bf16.msra.mxu0 0
  %843 = vmatprep.subr.bf16.mxu0 0
  %844 = vmatpush1.bf16.msra.mxu0 0
  %845 = vmatprep.mubr.bf16.mxu0 0
  %846 = vmatmul.mubr.bf16.gmra.mrb[0].mxu0 %v808
  %v847 = vpop.f32.mrb[0].mxu0
  %v848 = vadd.f32 0.0, %v847
  %v849 = vpop.f32.mrb[0].mxu0
  %v850 = vpop.f32.mrb[0].mxu0
  %v851 = vadd.f32 0.0, %v850
  %v852 = vpop.f32.mrb[0].mxu0
  %853 = vdwg.mxu0
  %s854 = scalar_lea.vmem %s6, 8
  %v855 = vld [vmem:[%s854] sm:$0xf]
  %v856 = vld [vmem:[%s854 + $0x4] sm:$0xf]
  %v857 = vpack.c.bf16 %v851, %v848
  %v860 = vunpack.c.l.b16 %v855
  %v861 = vunpack.c.l.b16 %v856
  %v862 = vpack.c.b16 %v861, %v860
  %v865 = vsel %vm361, %v857, 0
  %867 = vmatprep.subr.bf16.mxu0 0
  %868 = vmatpush1.bf16.msra.mxu0 %v862
  %869 = vmatprep.subr.bf16.mxu0 0
  %870 = vmatpush1.bf16.msra.mxu0 0
  %871 = vmatprep.subr.bf16.mxu0 0
  %872 = vmatpush1.bf16.msra.mxu0 0
  %873 = vmatprep.subr.bf16.mxu0 0
  %874 = vmatpush1.bf16.msra.mxu0 0
  %875 = vmatprep.subr.bf16.mxu0 0
  %876 = vmatpush1.bf16.msra.mxu0 0
  %877 = vmatprep.subr.bf16.mxu0 0
  %878 = vmatpush1.bf16.msra.mxu0 0
  %879 = vmatprep.subr.bf16.mxu0 0
  %880 = vmatpush1.bf16.msra.mxu0 0
  %881 = vmatprep.subr.bf16.mxu0 0
  %882 = vmatpush1.bf16.msra.mxu0 0
  %883 = vmatprep.subr.bf16.mxu0 0
  %884 = vmatpush1.bf16.msra.mxu0 0
  %885 = vmatprep.subr.bf16.mxu0 0
  %886 = vmatpush1.bf16.msra.mxu0 0
  %887 = vmatprep.subr.bf16.mxu0 0
  %888 = vmatpush1.bf16.msra.mxu0 0
  %889 = vmatprep.subr.bf16.mxu0 0
  %890 = vmatpush1.bf16.msra.mxu0 0
  %891 = vmatprep.subr.bf16.mxu0 0
  %892 = vmatpush1.bf16.msra.mxu0 0
  %893 = vmatprep.subr.bf16.mxu0 0
  %894 = vmatpush1.bf16.msra.mxu0 0
  %895 = vmatprep.subr.bf16.mxu0 0
  %896 = vmatpush1.bf16.msra.mxu0 0
  %897 = vmatprep.subr.bf16.mxu0 0
  %898 = vmatpush1.bf16.msra.mxu0 0
  %899 = vmatprep.mubr.bf16.mxu0 0
  %900 = vmatmul.mubr.bf16.gmra.mrb[0].mxu0 %v865
  %v901 = vpop.f32.mrb[0].mxu0
  %v902 = vadd.f32 0.0, %v901
  %v903 = vpop.f32.mrb[0].mxu0
  %v904 = vpop.f32.mrb[0].mxu0
  %v905 = vadd.f32 0.0, %v904
  %v906 = vpop.f32.mrb[0].mxu0
  %907 = vdwg.mxu0
  %v910 = vunpack.c.l.b16 %v483
  %v911 = vunpack.c.l.b16 %v484
  %v912 = vpack.c.b16 %v911, %v910
  %v915 = vsel %vm361, %v485, 0
  %917 = vmatprep.subr.bf16.mxu0 0
  %918 = vmatpush1.bf16.msra.mxu0 %v912
  %919 = vmatprep.subr.bf16.mxu0 0
  %920 = vmatpush1.bf16.msra.mxu0 0
  %921 = vmatprep.subr.bf16.mxu0 0
  %922 = vmatpush1.bf16.msra.mxu0 0
  %923 = vmatprep.subr.bf16.mxu0 0
  %924 = vmatpush1.bf16.msra.mxu0 0
  %925 = vmatprep.subr.bf16.mxu0 0
  %926 = vmatpush1.bf16.msra.mxu0 0
  %927 = vmatprep.subr.bf16.mxu0 0
  %928 = vmatpush1.bf16.msra.mxu0 0
  %929 = vmatprep.subr.bf16.mxu0 0
  %930 = vmatpush1.bf16.msra.mxu0 0
  %931 = vmatprep.subr.bf16.mxu0 0
  %932 = vmatpush1.bf16.msra.mxu0 0
  %933 = vmatprep.subr.bf16.mxu0 0
  %934 = vmatpush1.bf16.msra.mxu0 0
  %935 = vmatprep.subr.bf16.mxu0 0
  %936 = vmatpush1.bf16.msra.mxu0 0
  %937 = vmatprep.subr.bf16.mxu0 0
  %938 = vmatpush1.bf16.msra.mxu0 0
  %939 = vmatprep.subr.bf16.mxu0 0
  %940 = vmatpush1.bf16.msra.mxu0 0
  %941 = vmatprep.subr.bf16.mxu0 0
  %942 = vmatpush1.bf16.msra.mxu0 0
  %943 = vmatprep.subr.bf16.mxu0 0
  %944 = vmatpush1.bf16.msra.mxu0 0
  %945 = vmatprep.subr.bf16.mxu0 0
  %946 = vmatpush1.bf16.msra.mxu0 0
  %947 = vmatprep.subr.bf16.mxu0 0
  %948 = vmatpush1.bf16.msra.mxu0 0
  %949 = vmatprep.mubr.bf16.mxu0 0
  %950 = vmatmul.mubr.bf16.gmra.mrb[0].mxu0 %v915
  %v951 = vpop.f32.mrb[0].mxu0
  %v952 = vadd.f32 %v902, %v951
  %v953 = vpop.f32.mrb[0].mxu0
  %v954 = vpop.f32.mrb[0].mxu0
  %v955 = vadd.f32 %v905, %v954
  %v956 = vpop.f32.mrb[0].mxu0
  %957 = vdwg.mxu0
  %s958 = scalar_lea.vmem %s4, 64
  %v959 = vld [vmem:[%s958] sm:$0xf]
  %v960 = vld [vmem:[%s958 + $0x4] sm:$0xf]
  %v961 = vld [vmem:[%s958 + $0x8] sm:$0xf]
  %v962 = vld [vmem:[%s958 + $0xc] sm:$0xf]
  %v963 = vld [vmem:[%s958 + $0x10] sm:$0xf]
  %v964 = vld [vmem:[%s958 + $0x14] sm:$0xf]
  %v965 = vld [vmem:[%s958 + $0x18] sm:$0xf]
  %v966 = vld [vmem:[%s958 + $0x1c] sm:$0xf]
  %s967 = scalar_lea.vmem %s5, 2
  %v968 = vld [vmem:[%s967] sm:$0x1]
  %v970 = vlaneseq
  %v971 = vshrl.u32 %v970, 7
  %v972 = vsub.s32 0, %v971
  %v973 = vrot.slane %v968, %v972
  %v983 = vunpack.c.l.b16 %v959
  %v984 = vunpack.c.l.b16 %v960
  %v985 = vunpack.c.l.b16 %v961
  %v986 = vunpack.c.l.b16 %v962
  %v987 = vunpack.c.l.b16 %v963
  %v988 = vunpack.c.l.b16 %v964
  %v989 = vunpack.c.l.b16 %v965
  %v990 = vunpack.c.l.b16 %v966
  %v991 = vpack.c.b16 %v984, %v983
  %v992 = vpack.c.b16 %v986, %v985
  %v993 = vpack.c.b16 %v988, %v987
  %v994 = vpack.c.b16 %v990, %v989
  %999 = vmatprep.subr.bf16.mxu0 0
  %1000 = vmatpush1.bf16.msra.mxu0 %v991
  %1001 = vmatprep.subr.bf16.mxu0 0
  %1002 = vmatpush1.bf16.msra.mxu0 %v992
  %1003 = vmatprep.subr.bf16.mxu0 0
  %1004 = vmatpush1.bf16.msra.mxu0 %v993
  %1005 = vmatprep.subr.bf16.mxu0 0
  %1006 = vmatpush1.bf16.msra.mxu0 %v994
  %1007 = vmatprep.subr.bf16.mxu0 0
  %1008 = vmatpush1.bf16.msra.mxu0 0
  %1009 = vmatprep.subr.bf16.mxu0 0
  %1010 = vmatpush1.bf16.msra.mxu0 0
  %1011 = vmatprep.subr.bf16.mxu0 0
  %1012 = vmatpush1.bf16.msra.mxu0 0
  %1013 = vmatprep.subr.bf16.mxu0 0
  %1014 = vmatpush1.bf16.msra.mxu0 0
  %1015 = vmatprep.subr.bf16.mxu0 0
  %1016 = vmatpush1.bf16.msra.mxu0 0
  %1017 = vmatprep.subr.bf16.mxu0 0
  %1018 = vmatpush1.bf16.msra.mxu0 0
  %1019 = vmatprep.subr.bf16.mxu0 0
  %1020 = vmatpush1.bf16.msra.mxu0 0
  %1021 = vmatprep.subr.bf16.mxu0 0
  %1022 = vmatpush1.bf16.msra.mxu0 0
  %1023 = vmatprep.subr.bf16.mxu0 0
  %1024 = vmatpush1.bf16.msra.mxu0 0
  %1025 = vmatprep.subr.bf16.mxu0 0
  %1026 = vmatpush1.bf16.msra.mxu0 0
  %1027 = vmatprep.subr.bf16.mxu0 0
  %1028 = vmatpush1.bf16.msra.mxu0 0
  %1029 = vmatprep.subr.bf16.mxu0 0
  %1030 = vmatpush1.bf16.msra.mxu0 0
  %1031 = vmatprep.mubr.bf16.mxu0 0
  %1032 = vmatmul.mubr.bf16.gmra.mrb[0].mxu0 %v150
  %v1033 = vpop.f32.mrb[0].mxu0
  %v1034 = vadd.f32 %v973, %v1033
  %v1035 = vpop.f32.mrb[0].mxu0
  %v1036 = vpop.f32.mrb[0].mxu0
  %v1037 = vadd.f32 %v973, %v1036
  %v1038 = vpop.f32.mrb[0].mxu0
  %1039 = vdwg.mxu0
  %s1040 = scalar_lea.vmem %s4, 192
  %v1041 = vld [vmem:[%s1040] sm:$0xf]
  %v1042 = vld [vmem:[%s1040 + $0x4] sm:$0xf]
  %v1043 = vld [vmem:[%s1040 + $0x8] sm:$0xf]
  %v1044 = vld [vmem:[%s1040 + $0xc] sm:$0xf]
  %v1045 = vld [vmem:[%s1040 + $0x10] sm:$0xf]
  %v1046 = vld [vmem:[%s1040 + $0x14] sm:$0xf]
  %v1047 = vld [vmem:[%s1040 + $0x18] sm:$0xf]
  %v1048 = vld [vmem:[%s1040 + $0x1c] sm:$0xf]
  %s1049 = scalar_lea.vmem %s5, 6
  %v1050 = vld [vmem:[%s1049] sm:$0x1]
  %v1052 = vlaneseq
  %v1053 = vshrl.u32 %v1052, 7
  %v1054 = vsub.s32 0, %v1053
  %v1055 = vrot.slane %v1050, %v1054
  %v1065 = vunpack.c.l.b16 %v1041
  %v1066 = vunpack.c.l.b16 %v1042
  %v1067 = vunpack.c.l.b16 %v1043
  %v1068 = vunpack.c.l.b16 %v1044
  %v1069 = vunpack.c.l.b16 %v1045
  %v1070 = vunpack.c.l.b16 %v1046
  %v1071 = vunpack.c.l.b16 %v1047
  %v1072 = vunpack.c.l.b16 %v1048
  %v1073 = vpack.c.b16 %v1066, %v1065
  %v1074 = vpack.c.b16 %v1068, %v1067
  %v1075 = vpack.c.b16 %v1070, %v1069
  %v1076 = vpack.c.b16 %v1072, %v1071
  %1081 = vmatprep.subr.bf16.mxu0 0
  %1082 = vmatpush1.bf16.msra.mxu0 %v1073
  %1083 = vmatprep.subr.bf16.mxu0 0
  %1084 = vmatpush1.bf16.msra.mxu0 %v1074
  %1085 = vmatprep.subr.bf16.mxu0 0
  %1086 = vmatpush1.bf16.msra.mxu0 %v1075
  %1087 = vmatprep.subr.bf16.mxu0 0
  %1088 = vmatpush1.bf16.msra.mxu0 %v1076
  %1089 = vmatprep.subr.bf16.mxu0 0
  %1090 = vmatpush1.bf16.msra.mxu0 0
  %1091 = vmatprep.subr.bf16.mxu0 0
  %1092 = vmatpush1.bf16.msra.mxu0 0
  %1093 = vmatprep.subr.bf16.mxu0 0
  %1094 = vmatpush1.bf16.msra.mxu0 0
  %1095 = vmatprep.subr.bf16.mxu0 0
  %1096 = vmatpush1.bf16.msra.mxu0 0
  %1097 = vmatprep.subr.bf16.mxu0 0
  %1098 = vmatpush1.bf16.msra.mxu0 0
  %1099 = vmatprep.subr.bf16.mxu0 0
  %1100 = vmatpush1.bf16.msra.mxu0 0
  %1101 = vmatprep.subr.bf16.mxu0 0
  %1102 = vmatpush1.bf16.msra.mxu0 0
  %1103 = vmatprep.subr.bf16.mxu0 0
  %1104 = vmatpush1.bf16.msra.mxu0 0
  %1105 = vmatprep.subr.bf16.mxu0 0
  %1106 = vmatpush1.bf16.msra.mxu0 0
  %1107 = vmatprep.subr.bf16.mxu0 0
  %1108 = vmatpush1.bf16.msra.mxu0 0
  %1109 = vmatprep.subr.bf16.mxu0 0
  %1110 = vmatpush1.bf16.msra.mxu0 0
  %1111 = vmatprep.subr.bf16.mxu0 0
  %1112 = vmatpush1.bf16.msra.mxu0 0
  %1113 = vmatprep.mubr.bf16.mxu0 0
  %1114 = vmatmul.mubr.bf16.gmra.mrb[0].mxu0 %v150
  %v1115 = vpop.f32.mrb[0].mxu0
  %v1116 = vadd.f32 %v1055, %v1115
  %v1117 = vpop.f32.mrb[0].mxu0
  %v1118 = vpop.f32.mrb[0].mxu0
  %v1119 = vadd.f32 %v1055, %v1118
  %v1120 = vpop.f32.mrb[0].mxu0
  %1121 = vdwg.mxu0
  %s1122 = scalar_lea.vmem %s4, 320
  %v1123 = vld [vmem:[%s1122] sm:$0xf]
  %v1124 = vld [vmem:[%s1122 + $0x4] sm:$0xf]
  %v1125 = vld [vmem:[%s1122 + $0x8] sm:$0xf]
  %v1126 = vld [vmem:[%s1122 + $0xc] sm:$0xf]
  %v1127 = vld [vmem:[%s1122 + $0x10] sm:$0xf]
  %v1128 = vld [vmem:[%s1122 + $0x14] sm:$0xf]
  %v1129 = vld [vmem:[%s1122 + $0x18] sm:$0xf]
  %v1130 = vld [vmem:[%s1122 + $0x1c] sm:$0xf]
  %s1131 = scalar_lea.vmem %s5, 10
  %v1132 = vld [vmem:[%s1131] sm:$0x1]
  %v1134 = vlaneseq
  %v1135 = vshrl.u32 %v1134, 7
  %v1136 = vsub.s32 0, %v1135
  %v1137 = vrot.slane %v1132, %v1136
  %v1147 = vunpack.c.l.b16 %v1123
  %v1148 = vunpack.c.l.b16 %v1124
  %v1149 = vunpack.c.l.b16 %v1125
  %v1150 = vunpack.c.l.b16 %v1126
  %v1151 = vunpack.c.l.b16 %v1127
  %v1152 = vunpack.c.l.b16 %v1128
  %v1153 = vunpack.c.l.b16 %v1129
  %v1154 = vunpack.c.l.b16 %v1130
  %v1155 = vpack.c.b16 %v1148, %v1147
  %v1156 = vpack.c.b16 %v1150, %v1149
  %v1157 = vpack.c.b16 %v1152, %v1151
  %v1158 = vpack.c.b16 %v1154, %v1153
  %1163 = vmatprep.subr.bf16.mxu0 0
  %1164 = vmatpush1.bf16.msra.mxu0 %v1155
  %1165 = vmatprep.subr.bf16.mxu0 0
  %1166 = vmatpush1.bf16.msra.mxu0 %v1156
  %1167 = vmatprep.subr.bf16.mxu0 0
  %1168 = vmatpush1.bf16.msra.mxu0 %v1157
  %1169 = vmatprep.subr.bf16.mxu0 0
  %1170 = vmatpush1.bf16.msra.mxu0 %v1158
  %1171 = vmatprep.subr.bf16.mxu0 0
  %1172 = vmatpush1.bf16.msra.mxu0 0
  %1173 = vmatprep.subr.bf16.mxu0 0
  %1174 = vmatpush1.bf16.msra.mxu0 0
  %1175 = vmatprep.subr.bf16.mxu0 0
  %1176 = vmatpush1.bf16.msra.mxu0 0
  %1177 = vmatprep.subr.bf16.mxu0 0
  %1178 = vmatpush1.bf16.msra.mxu0 0
  %1179 = vmatprep.subr.bf16.mxu0 0
  %1180 = vmatpush1.bf16.msra.mxu0 0
  %1181 = vmatprep.subr.bf16.mxu0 0
  %1182 = vmatpush1.bf16.msra.mxu0 0
  %1183 = vmatprep.subr.bf16.mxu0 0
  %1184 = vmatpush1.bf16.msra.mxu0 0
  %1185 = vmatprep.subr.bf16.mxu0 0
  %1186 = vmatpush1.bf16.msra.mxu0 0
  %1187 = vmatprep.subr.bf16.mxu0 0
  %1188 = vmatpush1.bf16.msra.mxu0 0
  %1189 = vmatprep.subr.bf16.mxu0 0
  %1190 = vmatpush1.bf16.msra.mxu0 0
  %1191 = vmatprep.subr.bf16.mxu0 0
  %1192 = vmatpush1.bf16.msra.mxu0 0
  %1193 = vmatprep.subr.bf16.mxu0 0
  %1194 = vmatpush1.bf16.msra.mxu0 0
  %1195 = vmatprep.mubr.bf16.mxu0 0
  %1196 = vmatmul.mubr.bf16.gmra.mrb[0].mxu0 %v150
  %v1197 = vpop.f32.mrb[0].mxu0
  %v1198 = vadd.f32 %v1137, %v1197
  %v1199 = vpop.f32.mrb[0].mxu0
  %v1200 = vpop.f32.mrb[0].mxu0
  %v1201 = vadd.f32 %v1137, %v1200
  %v1202 = vpop.f32.mrb[0].mxu0
  %1203 = vdwg.mxu0
  %v1204 = vmul.f32 %v1034, 0.25
  %v1205 = vmul.f32 %v1037, 0.25
  %v1206 = vpack.c.bf16 %v1205, %v1204
  %v1207 = vpack.c.bf16 %v1119, %v1116
  %v1209 = vsel %vm361, %v1206, 0
  %v1212 = vsel %vm361, %v1207, 0
  %1214 = vmatprep.subr.bf16.mxu0 0
  %1215 = vmatpush1.bf16.xpose.msra.mxu0 %v1212
  %1216 = vmatprep.subr.bf16.mxu0 0
  %1217 = vmatpush1.bf16.xpose.msra.mxu0 0
  %1218 = vmatprep.subr.bf16.mxu0 0
  %1219 = vmatpush1.bf16.xpose.msra.mxu0 0
  %1220 = vmatprep.subr.bf16.mxu0 0
  %1221 = vmatpush1.bf16.xpose.msra.mxu0 0
  %1222 = vmatprep.subr.bf16.mxu0 0
  %1223 = vmatpush1.bf16.xpose.msra.mxu0 0
  %1224 = vmatprep.subr.bf16.mxu0 0
  %1225 = vmatpush1.bf16.xpose.msra.mxu0 0
  %1226 = vmatprep.subr.bf16.mxu0 0
  %1227 = vmatpush1.bf16.xpose.msra.mxu0 0
  %1228 = vmatprep.subr.bf16.mxu0 0
  %1229 = vmatpush1.bf16.xpose.msra.mxu0 0
  %1230 = vmatprep.subr.bf16.mxu0 0
  %1231 = vmatpush1.bf16.xpose.msra.mxu0 0
  %1232 = vmatprep.subr.bf16.mxu0 0
  %1233 = vmatpush1.bf16.xpose.msra.mxu0 0
  %1234 = vmatprep.subr.bf16.mxu0 0
  %1235 = vmatpush1.bf16.xpose.msra.mxu0 0
  %1236 = vmatprep.subr.bf16.mxu0 0
  %1237 = vmatpush1.bf16.xpose.msra.mxu0 0
  %1238 = vmatprep.subr.bf16.mxu0 0
  %1239 = vmatpush1.bf16.xpose.msra.mxu0 0
  %1240 = vmatprep.subr.bf16.mxu0 0
  %1241 = vmatpush1.bf16.xpose.msra.mxu0 0
  %1242 = vmatprep.subr.bf16.mxu0 0
  %1243 = vmatpush1.bf16.xpose.msra.mxu0 0
  %1244 = vmatprep.subr.bf16.mxu0 0
  %1245 = vmatpush1.bf16.xpose.msra.mxu0 0
  %1246 = vmatprep.mubr.bf16.mxu0 0
  %1247 = vmatmul.mubr.bf16.gmra.mrb[0].mxu0 %v1209
  %v1248 = vpop.f32.mrb[0].mxu0
  %v1249 = vadd.f32 %v60, %v1248
  %v1250 = vpop.f32.mrb[0].mxu0
  %v1251 = vpop.f32.mrb[0].mxu0
  %v1252 = vadd.f32 %v61, %v1251
  %v1253 = vpop.f32.mrb[0].mxu0
  %1254 = vdwg.mxu0
  %v1255 = vsel %vm409, %v1249, -inf
  %1256 = vmax.xlane.f32.xlu0 %v1255
  %v1257 = vpop.xlane.xlu0 %1256
  %v1258 = vsel %vm413, %v1252, -inf
  %1259 = vmax.xlane.f32.xlu0 %v1258
  %v1260 = vpop.xlane.xlu0 %1259
  %v1261 = vsub.f32 %v1249, %v1257
  %v1262 = vsub.f32 %v1252, %v1260
  %v1263 = vmul.f32 %v1261, 1.442695
  %v1264 = vpow.pop %v1263
  %v1265 = vmul.f32 %v1262, 1.442695
  %v1266 = vpow.pop %v1265
  %v1267 = vsel %vm409, %v1264, 0.0
  %1268 = vadd.xlane.f32.xlu0 %v1267
  %v1269 = vpop.xlane.xlu0 %1268
  %v1270 = vsel %vm413, %v1266, 0.0
  %1271 = vadd.xlane.f32.xlu0 %v1270
  %v1272 = vpop.xlane.xlu0 %1271
  %v1273 = vrcp.pop %v1269
  %v1274 = vrcp.pop %v1272
  %v1275 = vmul.f32 %v1264, %v1273
  %v1276 = vmul.f32 %v1266, %v1274
  %v1277 = vpack.c.bf16 %v1276, %v1275
  %v1278 = vpack.c.bf16 %v1201, %v1198
  %v1280 = vsel %vm409, %v1277, 0
  %v1283 = vsel %vm438, %v1278, 0
  %1285 = vmatprep.subr.bf16.mxu0 0
  %1286 = vmatpush1.bf16.msra.mxu0 %v1283
  %1287 = vmatprep.subr.bf16.mxu0 0
  %1288 = vmatpush1.bf16.msra.mxu0 0
  %1289 = vmatprep.subr.bf16.mxu0 0
  %1290 = vmatpush1.bf16.msra.mxu0 0
  %1291 = vmatprep.subr.bf16.mxu0 0
  %1292 = vmatpush1.bf16.msra.mxu0 0
  %1293 = vmatprep.subr.bf16.mxu0 0
  %1294 = vmatpush1.bf16.msra.mxu0 0
  %1295 = vmatprep.subr.bf16.mxu0 0
  %1296 = vmatpush1.bf16.msra.mxu0 0
  %1297 = vmatprep.subr.bf16.mxu0 0
  %1298 = vmatpush1.bf16.msra.mxu0 0
  %1299 = vmatprep.subr.bf16.mxu0 0
  %1300 = vmatpush1.bf16.msra.mxu0 0
  %1301 = vmatprep.subr.bf16.mxu0 0
  %1302 = vmatpush1.bf16.msra.mxu0 0
  %1303 = vmatprep.subr.bf16.mxu0 0
  %1304 = vmatpush1.bf16.msra.mxu0 0
  %1305 = vmatprep.subr.bf16.mxu0 0
  %1306 = vmatpush1.bf16.msra.mxu0 0
  %1307 = vmatprep.subr.bf16.mxu0 0
  %1308 = vmatpush1.bf16.msra.mxu0 0
  %1309 = vmatprep.subr.bf16.mxu0 0
  %1310 = vmatpush1.bf16.msra.mxu0 0
  %1311 = vmatprep.subr.bf16.mxu0 0
  %1312 = vmatpush1.bf16.msra.mxu0 0
  %1313 = vmatprep.subr.bf16.mxu0 0
  %1314 = vmatpush1.bf16.msra.mxu0 0
  %1315 = vmatprep.subr.bf16.mxu0 0
  %1316 = vmatpush1.bf16.msra.mxu0 0
  %1317 = vmatprep.mubr.bf16.mxu0 0
  %1318 = vmatmul.mubr.bf16.gmra.mrb[0].mxu0 %v1280
  %v1319 = vpop.f32.mrb[0].mxu0
  %v1320 = vadd.f32 0.0, %v1319
  %v1321 = vpop.f32.mrb[0].mxu0
  %v1322 = vpop.f32.mrb[0].mxu0
  %v1323 = vadd.f32 0.0, %v1322
  %v1324 = vpop.f32.mrb[0].mxu0
  %1325 = vdwg.mxu0
  %s1326 = scalar_lea.vmem %s6, 16
  %v1327 = vld [vmem:[%s1326] sm:$0xf]
  %v1328 = vld [vmem:[%s1326 + $0x4] sm:$0xf]
  %v1329 = vpack.c.bf16 %v1323, %v1320
  %v1332 = vunpack.c.l.b16 %v1327
  %v1333 = vunpack.c.l.b16 %v1328
  %v1334 = vpack.c.b16 %v1333, %v1332
  %v1337 = vsel %vm361, %v1329, 0
  %1339 = vmatprep.subr.bf16.mxu0 0
  %1340 = vmatpush1.bf16.msra.mxu0 %v1334
  %1341 = vmatprep.subr.bf16.mxu0 0
  %1342 = vmatpush1.bf16.msra.mxu0 0
  %1343 = vmatprep.subr.bf16.mxu0 0
  %1344 = vmatpush1.bf16.msra.mxu0 0
  %1345 = vmatprep.subr.bf16.mxu0 0
  %1346 = vmatpush1.bf16.msra.mxu0 0
  %1347 = vmatprep.subr.bf16.mxu0 0
  %1348 = vmatpush1.bf16.msra.mxu0 0
  %1349 = vmatprep.subr.bf16.mxu0 0
  %1350 = vmatpush1.bf16.msra.mxu0 0
  %1351 = vmatprep.subr.bf16.mxu0 0
  %1352 = vmatpush1.bf16.msra.mxu0 0
  %1353 = vmatprep.subr.bf16.mxu0 0
  %1354 = vmatpush1.bf16.msra.mxu0 0
  %1355 = vmatprep.subr.bf16.mxu0 0
  %1356 = vmatpush1.bf16.msra.mxu0 0
  %1357 = vmatprep.subr.bf16.mxu0 0
  %1358 = vmatpush1.bf16.msra.mxu0 0
  %1359 = vmatprep.subr.bf16.mxu0 0
  %1360 = vmatpush1.bf16.msra.mxu0 0
  %1361 = vmatprep.subr.bf16.mxu0 0
  %1362 = vmatpush1.bf16.msra.mxu0 0
  %1363 = vmatprep.subr.bf16.mxu0 0
  %1364 = vmatpush1.bf16.msra.mxu0 0
  %1365 = vmatprep.subr.bf16.mxu0 0
  %1366 = vmatpush1.bf16.msra.mxu0 0
  %1367 = vmatprep.subr.bf16.mxu0 0
  %1368 = vmatpush1.bf16.msra.mxu0 0
  %1369 = vmatprep.subr.bf16.mxu0 0
  %1370 = vmatpush1.bf16.msra.mxu0 0
  %1371 = vmatprep.mubr.bf16.mxu0 0
  %1372 = vmatmul.mubr.bf16.gmra.mrb[0].mxu0 %v1337
  %v1373 = vpop.f32.mrb[0].mxu0
  %v1374 = vadd.f32 0.0, %v1373
  %v1375 = vpop.f32.mrb[0].mxu0
  %v1376 = vpop.f32.mrb[0].mxu0
  %v1377 = vadd.f32 0.0, %v1376
  %v1378 = vpop.f32.mrb[0].mxu0
  %1379 = vdwg.mxu0
  %v1380 = vadd.f32 %v952, %v1374
  %v1381 = vadd.f32 %v955, %v1377
  %s1382 = scalar_lea.vmem %s4, 96
  %v1383 = vld [vmem:[%s1382] sm:$0xf]
  %v1384 = vld [vmem:[%s1382 + $0x4] sm:$0xf]
  %v1385 = vld [vmem:[%s1382 + $0x8] sm:$0xf]
  %v1386 = vld [vmem:[%s1382 + $0xc] sm:$0xf]
  %v1387 = vld [vmem:[%s1382 + $0x10] sm:$0xf]
  %v1388 = vld [vmem:[%s1382 + $0x14] sm:$0xf]
  %v1389 = vld [vmem:[%s1382 + $0x18] sm:$0xf]
  %v1390 = vld [vmem:[%s1382 + $0x1c] sm:$0xf]
  %s1391 = scalar_lea.vmem %s5, 3
  %v1392 = vld [vmem:[%s1391] sm:$0x1]
  %v1394 = vlaneseq
  %v1395 = vshrl.u32 %v1394, 7
  %v1396 = vsub.s32 0, %v1395
  %v1397 = vrot.slane %v1392, %v1396
  %v1407 = vunpack.c.l.b16 %v1383
  %v1408 = vunpack.c.l.b16 %v1384
  %v1409 = vunpack.c.l.b16 %v1385
  %v1410 = vunpack.c.l.b16 %v1386
  %v1411 = vunpack.c.l.b16 %v1387
  %v1412 = vunpack.c.l.b16 %v1388
  %v1413 = vunpack.c.l.b16 %v1389
  %v1414 = vunpack.c.l.b16 %v1390
  %v1415 = vpack.c.b16 %v1408, %v1407
  %v1416 = vpack.c.b16 %v1410, %v1409
  %v1417 = vpack.c.b16 %v1412, %v1411
  %v1418 = vpack.c.b16 %v1414, %v1413
  %1423 = vmatprep.subr.bf16.mxu0 0
  %1424 = vmatpush1.bf16.msra.mxu0 %v1415
  %1425 = vmatprep.subr.bf16.mxu0 0
  %1426 = vmatpush1.bf16.msra.mxu0 %v1416
  %1427 = vmatprep.subr.bf16.mxu0 0
  %1428 = vmatpush1.bf16.msra.mxu0 %v1417
  %1429 = vmatprep.subr.bf16.mxu0 0
  %1430 = vmatpush1.bf16.msra.mxu0 %v1418
  %1431 = vmatprep.subr.bf16.mxu0 0
  %1432 = vmatpush1.bf16.msra.mxu0 0
  %1433 = vmatprep.subr.bf16.mxu0 0
  %1434 = vmatpush1.bf16.msra.mxu0 0
  %1435 = vmatprep.subr.bf16.mxu0 0
  %1436 = vmatpush1.bf16.msra.mxu0 0
  %1437 = vmatprep.subr.bf16.mxu0 0
  %1438 = vmatpush1.bf16.msra.mxu0 0
  %1439 = vmatprep.subr.bf16.mxu0 0
  %1440 = vmatpush1.bf16.msra.mxu0 0
  %1441 = vmatprep.subr.bf16.mxu0 0
  %1442 = vmatpush1.bf16.msra.mxu0 0
  %1443 = vmatprep.subr.bf16.mxu0 0
  %1444 = vmatpush1.bf16.msra.mxu0 0
  %1445 = vmatprep.subr.bf16.mxu0 0
  %1446 = vmatpush1.bf16.msra.mxu0 0
  %1447 = vmatprep.subr.bf16.mxu0 0
  %1448 = vmatpush1.bf16.msra.mxu0 0
  %1449 = vmatprep.subr.bf16.mxu0 0
  %1450 = vmatpush1.bf16.msra.mxu0 0
  %1451 = vmatprep.subr.bf16.mxu0 0
  %1452 = vmatpush1.bf16.msra.mxu0 0
  %1453 = vmatprep.subr.bf16.mxu0 0
  %1454 = vmatpush1.bf16.msra.mxu0 0
  %1455 = vmatprep.mubr.bf16.mxu0 0
  %1456 = vmatmul.mubr.bf16.gmra.mrb[0].mxu0 %v150
  %v1457 = vpop.f32.mrb[0].mxu0
  %v1458 = vadd.f32 %v1397, %v1457
  %v1459 = vpop.f32.mrb[0].mxu0
  %v1460 = vpop.f32.mrb[0].mxu0
  %v1461 = vadd.f32 %v1397, %v1460
  %v1462 = vpop.f32.mrb[0].mxu0
  %1463 = vdwg.mxu0
  %s1464 = scalar_lea.vmem %s4, 224
  %v1465 = vld [vmem:[%s1464] sm:$0xf]
  %v1466 = vld [vmem:[%s1464 + $0x4] sm:$0xf]
  %v1467 = vld [vmem:[%s1464 + $0x8] sm:$0xf]
  %v1468 = vld [vmem:[%s1464 + $0xc] sm:$0xf]
  %v1469 = vld [vmem:[%s1464 + $0x10] sm:$0xf]
  %v1470 = vld [vmem:[%s1464 + $0x14] sm:$0xf]
  %v1471 = vld [vmem:[%s1464 + $0x18] sm:$0xf]
  %v1472 = vld [vmem:[%s1464 + $0x1c] sm:$0xf]
  %s1473 = scalar_lea.vmem %s5, 7
  %v1474 = vld [vmem:[%s1473] sm:$0x1]
  %v1476 = vlaneseq
  %v1477 = vshrl.u32 %v1476, 7
  %v1478 = vsub.s32 0, %v1477
  %v1479 = vrot.slane %v1474, %v1478
  %v1489 = vunpack.c.l.b16 %v1465
  %v1490 = vunpack.c.l.b16 %v1466
  %v1491 = vunpack.c.l.b16 %v1467
  %v1492 = vunpack.c.l.b16 %v1468
  %v1493 = vunpack.c.l.b16 %v1469
  %v1494 = vunpack.c.l.b16 %v1470
  %v1495 = vunpack.c.l.b16 %v1471
  %v1496 = vunpack.c.l.b16 %v1472
  %v1497 = vpack.c.b16 %v1490, %v1489
  %v1498 = vpack.c.b16 %v1492, %v1491
  %v1499 = vpack.c.b16 %v1494, %v1493
  %v1500 = vpack.c.b16 %v1496, %v1495
  %1505 = vmatprep.subr.bf16.mxu0 0
  %1506 = vmatpush1.bf16.msra.mxu0 %v1497
  %1507 = vmatprep.subr.bf16.mxu0 0
  %1508 = vmatpush1.bf16.msra.mxu0 %v1498
  %1509 = vmatprep.subr.bf16.mxu0 0
  %1510 = vmatpush1.bf16.msra.mxu0 %v1499
  %1511 = vmatprep.subr.bf16.mxu0 0
  %1512 = vmatpush1.bf16.msra.mxu0 %v1500
  %1513 = vmatprep.subr.bf16.mxu0 0
  %1514 = vmatpush1.bf16.msra.mxu0 0
  %1515 = vmatprep.subr.bf16.mxu0 0
  %1516 = vmatpush1.bf16.msra.mxu0 0
  %1517 = vmatprep.subr.bf16.mxu0 0
  %1518 = vmatpush1.bf16.msra.mxu0 0
  %1519 = vmatprep.subr.bf16.mxu0 0
  %1520 = vmatpush1.bf16.msra.mxu0 0
  %1521 = vmatprep.subr.bf16.mxu0 0
  %1522 = vmatpush1.bf16.msra.mxu0 0
  %1523 = vmatprep.subr.bf16.mxu0 0
  %1524 = vmatpush1.bf16.msra.mxu0 0
  %1525 = vmatprep.subr.bf16.mxu0 0
  %1526 = vmatpush1.bf16.msra.mxu0 0
  %1527 = vmatprep.subr.bf16.mxu0 0
  %1528 = vmatpush1.bf16.msra.mxu0 0
  %1529 = vmatprep.subr.bf16.mxu0 0
  %1530 = vmatpush1.bf16.msra.mxu0 0
  %1531 = vmatprep.subr.bf16.mxu0 0
  %1532 = vmatpush1.bf16.msra.mxu0 0
  %1533 = vmatprep.subr.bf16.mxu0 0
  %1534 = vmatpush1.bf16.msra.mxu0 0
  %1535 = vmatprep.subr.bf16.mxu0 0
  %1536 = vmatpush1.bf16.msra.mxu0 0
  %1537 = vmatprep.mubr.bf16.mxu0 0
  %1538 = vmatmul.mubr.bf16.gmra.mrb[0].mxu0 %v150
  %v1539 = vpop.f32.mrb[0].mxu0
  %v1540 = vadd.f32 %v1479, %v1539
  %v1541 = vpop.f32.mrb[0].mxu0
  %v1542 = vpop.f32.mrb[0].mxu0
  %v1543 = vadd.f32 %v1479, %v1542
  %v1544 = vpop.f32.mrb[0].mxu0
  %1545 = vdwg.mxu0
  %s1546 = scalar_lea.vmem %s4, 352
  %v1547 = vld [vmem:[%s1546] sm:$0xf]
  %v1548 = vld [vmem:[%s1546 + $0x4] sm:$0xf]
  %v1549 = vld [vmem:[%s1546 + $0x8] sm:$0xf]
  %v1550 = vld [vmem:[%s1546 + $0xc] sm:$0xf]
  %v1551 = vld [vmem:[%s1546 + $0x10] sm:$0xf]
  %v1552 = vld [vmem:[%s1546 + $0x14] sm:$0xf]
  %v1553 = vld [vmem:[%s1546 + $0x18] sm:$0xf]
  %v1554 = vld [vmem:[%s1546 + $0x1c] sm:$0xf]
  %s1555 = scalar_lea.vmem %s5, 11
  %v1556 = vld [vmem:[%s1555] sm:$0x1]
  %v1558 = vlaneseq
  %v1559 = vshrl.u32 %v1558, 7
  %v1560 = vsub.s32 0, %v1559
  %v1561 = vrot.slane %v1556, %v1560
  %v1571 = vunpack.c.l.b16 %v1547
  %v1572 = vunpack.c.l.b16 %v1548
  %v1573 = vunpack.c.l.b16 %v1549
  %v1574 = vunpack.c.l.b16 %v1550
  %v1575 = vunpack.c.l.b16 %v1551
  %v1576 = vunpack.c.l.b16 %v1552
  %v1577 = vunpack.c.l.b16 %v1553
  %v1578 = vunpack.c.l.b16 %v1554
  %v1579 = vpack.c.b16 %v1572, %v1571
  %v1580 = vpack.c.b16 %v1574, %v1573
  %v1581 = vpack.c.b16 %v1576, %v1575
  %v1582 = vpack.c.b16 %v1578, %v1577
  %1587 = vmatprep.subr.bf16.mxu0 0
  %1588 = vmatpush1.bf16.msra.mxu0 %v1579
  %1589 = vmatprep.subr.bf16.mxu0 0
  %1590 = vmatpush1.bf16.msra.mxu0 %v1580
  %1591 = vmatprep.subr.bf16.mxu0 0
  %1592 = vmatpush1.bf16.msra.mxu0 %v1581
  %1593 = vmatprep.subr.bf16.mxu0 0
  %1594 = vmatpush1.bf16.msra.mxu0 %v1582
  %1595 = vmatprep.subr.bf16.mxu0 0
  %1596 = vmatpush1.bf16.msra.mxu0 0
  %1597 = vmatprep.subr.bf16.mxu0 0
  %1598 = vmatpush1.bf16.msra.mxu0 0
  %1599 = vmatprep.subr.bf16.mxu0 0
  %1600 = vmatpush1.bf16.msra.mxu0 0
  %1601 = vmatprep.subr.bf16.mxu0 0
  %1602 = vmatpush1.bf16.msra.mxu0 0
  %1603 = vmatprep.subr.bf16.mxu0 0
  %1604 = vmatpush1.bf16.msra.mxu0 0
  %1605 = vmatprep.subr.bf16.mxu0 0
  %1606 = vmatpush1.bf16.msra.mxu0 0
  %1607 = vmatprep.subr.bf16.mxu0 0
  %1608 = vmatpush1.bf16.msra.mxu0 0
  %1609 = vmatprep.subr.bf16.mxu0 0
  %1610 = vmatpush1.bf16.msra.mxu0 0
  %1611 = vmatprep.subr.bf16.mxu0 0
  %1612 = vmatpush1.bf16.msra.mxu0 0
  %1613 = vmatprep.subr.bf16.mxu0 0
  %1614 = vmatpush1.bf16.msra.mxu0 0
  %1615 = vmatprep.subr.bf16.mxu0 0
  %1616 = vmatpush1.bf16.msra.mxu0 0
  %1617 = vmatprep.subr.bf16.mxu0 0
  %1618 = vmatpush1.bf16.msra.mxu0 0
  %1619 = vmatprep.mubr.bf16.mxu0 0
  %1620 = vmatmul.mubr.bf16.gmra.mrb[0].mxu0 %v150
  %v1621 = vpop.f32.mrb[0].mxu0
  %v1622 = vadd.f32 %v1561, %v1621
  %v1623 = vpop.f32.mrb[0].mxu0
  %v1624 = vpop.f32.mrb[0].mxu0
  %v1625 = vadd.f32 %v1561, %v1624
  %v1626 = vpop.f32.mrb[0].mxu0
  %1627 = vdwg.mxu0
  %v1628 = vmul.f32 %v1458, 0.25
  %v1629 = vmul.f32 %v1461, 0.25
  %v1630 = vpack.c.bf16 %v1629, %v1628
  %v1631 = vpack.c.bf16 %v1543, %v1540
  %v1633 = vsel %vm361, %v1630, 0
  %v1636 = vsel %vm361, %v1631, 0
  %1638 = vmatprep.subr.bf16.mxu0 0
  %1639 = vmatpush1.bf16.xpose.msra.mxu0 %v1636
  %1640 = vmatprep.subr.bf16.mxu0 0
  %1641 = vmatpush1.bf16.xpose.msra.mxu0 0
  %1642 = vmatprep.subr.bf16.mxu0 0
  %1643 = vmatpush1.bf16.xpose.msra.mxu0 0
  %1644 = vmatprep.subr.bf16.mxu0 0
  %1645 = vmatpush1.bf16.xpose.msra.mxu0 0
  %1646 = vmatprep.subr.bf16.mxu0 0
  %1647 = vmatpush1.bf16.xpose.msra.mxu0 0
  %1648 = vmatprep.subr.bf16.mxu0 0
  %1649 = vmatpush1.bf16.xpose.msra.mxu0 0
  %1650 = vmatprep.subr.bf16.mxu0 0
  %1651 = vmatpush1.bf16.xpose.msra.mxu0 0
  %1652 = vmatprep.subr.bf16.mxu0 0
  %1653 = vmatpush1.bf16.xpose.msra.mxu0 0
  %1654 = vmatprep.subr.bf16.mxu0 0
  %1655 = vmatpush1.bf16.xpose.msra.mxu0 0
  %1656 = vmatprep.subr.bf16.mxu0 0
  %1657 = vmatpush1.bf16.xpose.msra.mxu0 0
  %1658 = vmatprep.subr.bf16.mxu0 0
  %1659 = vmatpush1.bf16.xpose.msra.mxu0 0
  %1660 = vmatprep.subr.bf16.mxu0 0
  %1661 = vmatpush1.bf16.xpose.msra.mxu0 0
  %1662 = vmatprep.subr.bf16.mxu0 0
  %1663 = vmatpush1.bf16.xpose.msra.mxu0 0
  %1664 = vmatprep.subr.bf16.mxu0 0
  %1665 = vmatpush1.bf16.xpose.msra.mxu0 0
  %1666 = vmatprep.subr.bf16.mxu0 0
  %1667 = vmatpush1.bf16.xpose.msra.mxu0 0
  %1668 = vmatprep.subr.bf16.mxu0 0
  %1669 = vmatpush1.bf16.xpose.msra.mxu0 0
  %1670 = vmatprep.mubr.bf16.mxu0 0
  %1671 = vmatmul.mubr.bf16.gmra.mrb[0].mxu0 %v1633
  %v1672 = vpop.f32.mrb[0].mxu0
  %v1673 = vadd.f32 %v60, %v1672
  %v1674 = vpop.f32.mrb[0].mxu0
  %v1675 = vpop.f32.mrb[0].mxu0
  %v1676 = vadd.f32 %v61, %v1675
  %v1677 = vpop.f32.mrb[0].mxu0
  %1678 = vdwg.mxu0
  %v1679 = vsel %vm409, %v1673, -inf
  %1680 = vmax.xlane.f32.xlu0 %v1679
  %v1681 = vpop.xlane.xlu0 %1680
  %v1682 = vsel %vm413, %v1676, -inf
  %1683 = vmax.xlane.f32.xlu0 %v1682
  %v1684 = vpop.xlane.xlu0 %1683
  %v1685 = vsub.f32 %v1673, %v1681
  %v1686 = vsub.f32 %v1676, %v1684
  %v1687 = vmul.f32 %v1685, 1.442695
  %v1688 = vpow.pop %v1687
  %v1689 = vmul.f32 %v1686, 1.442695
  %v1690 = vpow.pop %v1689
  %v1691 = vsel %vm409, %v1688, 0.0
  %1692 = vadd.xlane.f32.xlu0 %v1691
  %v1693 = vpop.xlane.xlu0 %1692
  %v1694 = vsel %vm413, %v1690, 0.0
  %1695 = vadd.xlane.f32.xlu0 %v1694
  %v1696 = vpop.xlane.xlu0 %1695
  %v1697 = vrcp.pop %v1693
  %v1698 = vrcp.pop %v1696
  %v1699 = vmul.f32 %v1688, %v1697
  %v1700 = vmul.f32 %v1690, %v1698
  %v1701 = vpack.c.bf16 %v1700, %v1699
  %v1702 = vpack.c.bf16 %v1625, %v1622
  %v1704 = vsel %vm409, %v1701, 0
  %v1707 = vsel %vm438, %v1702, 0
  %1709 = vmatprep.subr.bf16.mxu0 0
  %1710 = vmatpush1.bf16.msra.mxu0 %v1707
  %1711 = vmatprep.subr.bf16.mxu0 0
  %1712 = vmatpush1.bf16.msra.mxu0 0
  %1713 = vmatprep.subr.bf16.mxu0 0
  %1714 = vmatpush1.bf16.msra.mxu0 0
  %1715 = vmatprep.subr.bf16.mxu0 0
  %1716 = vmatpush1.bf16.msra.mxu0 0
  %1717 = vmatprep.subr.bf16.mxu0 0
  %1718 = vmatpush1.bf16.msra.mxu0 0
  %1719 = vmatprep.subr.bf16.mxu0 0
  %1720 = vmatpush1.bf16.msra.mxu0 0
  %1721 = vmatprep.subr.bf16.mxu0 0
  %1722 = vmatpush1.bf16.msra.mxu0 0
  %1723 = vmatprep.subr.bf16.mxu0 0
  %1724 = vmatpush1.bf16.msra.mxu0 0
  %1725 = vmatprep.subr.bf16.mxu0 0
  %1726 = vmatpush1.bf16.msra.mxu0 0
  %1727 = vmatprep.subr.bf16.mxu0 0
  %1728 = vmatpush1.bf16.msra.mxu0 0
  %1729 = vmatprep.subr.bf16.mxu0 0
  %1730 = vmatpush1.bf16.msra.mxu0 0
  %1731 = vmatprep.subr.bf16.mxu0 0
  %1732 = vmatpush1.bf16.msra.mxu0 0
  %1733 = vmatprep.subr.bf16.mxu0 0
  %1734 = vmatpush1.bf16.msra.mxu0 0
  %1735 = vmatprep.subr.bf16.mxu0 0
  %1736 = vmatpush1.bf16.msra.mxu0 0
  %1737 = vmatprep.subr.bf16.mxu0 0
  %1738 = vmatpush1.bf16.msra.mxu0 0
  %1739 = vmatprep.subr.bf16.mxu0 0
  %1740 = vmatpush1.bf16.msra.mxu0 0
  %1741 = vmatprep.mubr.bf16.mxu0 0
  %1742 = vmatmul.mubr.bf16.gmra.mrb[0].mxu0 %v1704
  %v1743 = vpop.f32.mrb[0].mxu0
  %v1744 = vadd.f32 0.0, %v1743
  %v1745 = vpop.f32.mrb[0].mxu0
  %v1746 = vpop.f32.mrb[0].mxu0
  %v1747 = vadd.f32 0.0, %v1746
  %v1748 = vpop.f32.mrb[0].mxu0
  %1749 = vdwg.mxu0
  %s1750 = scalar_lea.vmem %s6, 24
  %v1751 = vld [vmem:[%s1750] sm:$0xf]
  %v1752 = vld [vmem:[%s1750 + $0x4] sm:$0xf]
  %v1753 = vpack.c.bf16 %v1747, %v1744
  %v1756 = vunpack.c.l.b16 %v1751
  %v1757 = vunpack.c.l.b16 %v1752
  %v1758 = vpack.c.b16 %v1757, %v1756
  %v1761 = vsel %vm361, %v1753, 0
  %1763 = vmatprep.subr.bf16.mxu0 0
  %1764 = vmatpush1.bf16.msra.mxu0 %v1758
  %1765 = vmatprep.subr.bf16.mxu0 0
  %1766 = vmatpush1.bf16.msra.mxu0 0
  %1767 = vmatprep.subr.bf16.mxu0 0
  %1768 = vmatpush1.bf16.msra.mxu0 0
  %1769 = vmatprep.subr.bf16.mxu0 0
  %1770 = vmatpush1.bf16.msra.mxu0 0
  %1771 = vmatprep.subr.bf16.mxu0 0
  %1772 = vmatpush1.bf16.msra.mxu0 0
  %1773 = vmatprep.subr.bf16.mxu0 0
  %1774 = vmatpush1.bf16.msra.mxu0 0
  %1775 = vmatprep.subr.bf16.mxu0 0
  %1776 = vmatpush1.bf16.msra.mxu0 0
  %1777 = vmatprep.subr.bf16.mxu0 0
  %1778 = vmatpush1.bf16.msra.mxu0 0
  %1779 = vmatprep.subr.bf16.mxu0 0
  %1780 = vmatpush1.bf16.msra.mxu0 0
  %1781 = vmatprep.subr.bf16.mxu0 0
  %1782 = vmatpush1.bf16.msra.mxu0 0
  %1783 = vmatprep.subr.bf16.mxu0 0
  %1784 = vmatpush1.bf16.msra.mxu0 0
  %1785 = vmatprep.subr.bf16.mxu0 0
  %1786 = vmatpush1.bf16.msra.mxu0 0
  %1787 = vmatprep.subr.bf16.mxu0 0
  %1788 = vmatpush1.bf16.msra.mxu0 0
  %1789 = vmatprep.subr.bf16.mxu0 0
  %1790 = vmatpush1.bf16.msra.mxu0 0
  %1791 = vmatprep.subr.bf16.mxu0 0
  %1792 = vmatpush1.bf16.msra.mxu0 0
  %1793 = vmatprep.subr.bf16.mxu0 0
  %1794 = vmatpush1.bf16.msra.mxu0 0
  %1795 = vmatprep.mubr.bf16.mxu0 0
  %1796 = vmatmul.mubr.bf16.gmra.mrb[0].mxu0 %v1761
  %v1797 = vpop.f32.mrb[0].mxu0
  %v1798 = vadd.f32 0.0, %v1797
  %v1799 = vpop.f32.mrb[0].mxu0
  %v1800 = vpop.f32.mrb[0].mxu0
  %v1801 = vadd.f32 0.0, %v1800
  %v1802 = vpop.f32.mrb[0].mxu0
  %1803 = vdwg.mxu0
  %v1804 = vadd.f32 %v1380, %v1798
  %v1805 = vadd.f32 %v1381, %v1801
  %v1806 = vadd.f32 %v58, %v1804
  %v1807 = vadd.f32 %v59, %v1805
  %v1808 = vld [vmem:[%s7] sm:$0x1]
  %v1810 = vlaneseq
  %v1811 = vshrl.u32 %v1810, 7
  %v1812 = vsub.s32 0, %v1811
  %v1813 = vrot.slane %v1808, %v1812
  %v1815 = vadd.f32 %v1806, %v1813
  %v1816 = vadd.f32 %v1807, %v1813
  %v1817 = vld [vmem:[%s8] sm:$0x1]
  %v1818 = vld [vmem:[%s9] sm:$0x1]
  %v1819 = vsel %vm64, %v1815, 0.0
  %1820 = vadd.xlane.f32.xlu0 %v1819
  %v1821 = vpop.xlane.xlu0 %1820
  %v1822 = vsel %vm68, %v1816, 0.0
  %1823 = vadd.xlane.f32.xlu0 %v1822
  %v1824 = vpop.xlane.xlu0 %1823
  %v1825 = vmul.f32 %v1821, %v72
  %v1826 = vmul.f32 %v1824, %v72
  %v1827 = vsub.f32 %v1815, %v1825
  %v1828 = vsub.f32 %v1816, %v1826
  %v1829 = vmul.f32 %v1827, %v1827
  %v1830 = vmul.f32 %v1828, %v1828
  %v1831 = vsel %vm64, %v1829, 0.0
  %1832 = vadd.xlane.f32.xlu0 %v1831
  %v1833 = vpop.xlane.xlu0 %1832
  %v1834 = vsel %vm68, %v1830, 0.0
  %1835 = vadd.xlane.f32.xlu0 %v1834
  %v1836 = vpop.xlane.xlu0 %1835
  %v1837 = vmul.f32 %v1833, %v72
  %v1838 = vmul.f32 %v1836, %v72
  %v1839 = vadd.f32 %v1837, 1e-06
  %v1840 = vadd.f32 %v1838, 1e-06
  %v1841 = vrsqrt.pop %v1839
  %v1842 = vrsqrt.pop %v1840
  %v1843 = vmul.f32 %v1827, %v1841
  %v1844 = vmul.f32 %v1828, %v1842
  %v1846 = vlaneseq
  %v1847 = vshrl.u32 %v1846, 7
  %v1848 = vsub.s32 0, %v1847
  %v1849 = vrot.slane %v1817, %v1848
  %v1851 = vmul.f32 %v1843, %v1849
  %v1852 = vmul.f32 %v1844, %v1849
  %v1854 = vlaneseq
  %v1855 = vshrl.u32 %v1854, 7
  %v1856 = vsub.s32 0, %v1855
  %v1857 = vrot.slane %v1818, %v1856
  %v1859 = vadd.f32 %v1851, %v1857
  %v1860 = vadd.f32 %v1852, %v1857
  %v1861 = vld [vmem:[%s10] sm:$0xf]
  %v1862 = vld [vmem:[%s10 + $0x4] sm:$0xf]
  %v1863 = vld [vmem:[%s10 + $0x8] sm:$0xf]
  %v1864 = vld [vmem:[%s10 + $0xc] sm:$0xf]
  %v1865 = vld [vmem:[%s10 + $0x10] sm:$0xf]
  %v1866 = vld [vmem:[%s10 + $0x14] sm:$0xf]
  %v1867 = vld [vmem:[%s10 + $0x18] sm:$0xf]
  %v1868 = vld [vmem:[%s10 + $0x1c] sm:$0xf]
  %v1869 = vpack.c.bf16 %v1860, %v1859
  %v1870 = vld [vmem:[%s11] sm:$0x1]
  %v1872 = vlaneseq
  %v1873 = vshrl.u32 %v1872, 7
  %v1874 = vsub.s32 0, %v1873
  %v1875 = vrot.slane %v1870, %v1874
  %v1885 = vunpack.c.l.b16 %v1861
  %v1886 = vunpack.c.l.b16 %v1862
  %v1887 = vunpack.c.l.b16 %v1863
  %v1888 = vunpack.c.l.b16 %v1864
  %v1889 = vunpack.c.l.b16 %v1865
  %v1890 = vunpack.c.l.b16 %v1866
  %v1891 = vunpack.c.l.b16 %v1867
  %v1892 = vunpack.c.l.b16 %v1868
  %v1893 = vpack.c.b16 %v1886, %v1885
  %v1894 = vpack.c.b16 %v1888, %v1887
  %v1895 = vpack.c.b16 %v1890, %v1889
  %v1896 = vpack.c.b16 %v1892, %v1891
  %v1902 = vsel %vm64, %v1869, 0
  %1904 = vmatprep.subr.bf16.mxu0 0
  %1905 = vmatpush1.bf16.msra.mxu0 %v1893
  %1906 = vmatprep.subr.bf16.mxu0 0
  %1907 = vmatpush1.bf16.msra.mxu0 %v1894
  %1908 = vmatprep.subr.bf16.mxu0 0
  %1909 = vmatpush1.bf16.msra.mxu0 %v1895
  %1910 = vmatprep.subr.bf16.mxu0 0
  %1911 = vmatpush1.bf16.msra.mxu0 %v1896
  %1912 = vmatprep.subr.bf16.mxu0 0
  %1913 = vmatpush1.bf16.msra.mxu0 0
  %1914 = vmatprep.subr.bf16.mxu0 0
  %1915 = vmatpush1.bf16.msra.mxu0 0
  %1916 = vmatprep.subr.bf16.mxu0 0
  %1917 = vmatpush1.bf16.msra.mxu0 0
  %1918 = vmatprep.subr.bf16.mxu0 0
  %1919 = vmatpush1.bf16.msra.mxu0 0
  %1920 = vmatprep.subr.bf16.mxu0 0
  %1921 = vmatpush1.bf16.msra.mxu0 0
  %1922 = vmatprep.subr.bf16.mxu0 0
  %1923 = vmatpush1.bf16.msra.mxu0 0
  %1924 = vmatprep.subr.bf16.mxu0 0
  %1925 = vmatpush1.bf16.msra.mxu0 0
  %1926 = vmatprep.subr.bf16.mxu0 0
  %1927 = vmatpush1.bf16.msra.mxu0 0
  %1928 = vmatprep.subr.bf16.mxu0 0
  %1929 = vmatpush1.bf16.msra.mxu0 0
  %1930 = vmatprep.subr.bf16.mxu0 0
  %1931 = vmatpush1.bf16.msra.mxu0 0
  %1932 = vmatprep.subr.bf16.mxu0 0
  %1933 = vmatpush1.bf16.msra.mxu0 0
  %1934 = vmatprep.subr.bf16.mxu0 0
  %1935 = vmatpush1.bf16.msra.mxu0 0
  %1936 = vmatprep.mubr.bf16.mxu0 0
  %1937 = vmatmul.mubr.bf16.gmra.mrb[0].mxu0 %v1902
  %v1938 = vpop.f32.mrb[0].mxu0
  %v1939 = vadd.f32 %v1875, %v1938
  %v1940 = vpop.f32.mrb[0].mxu0
  %v1941 = vpop.f32.mrb[0].mxu0
  %v1942 = vadd.f32 %v1875, %v1941
  %v1943 = vpop.f32.mrb[0].mxu0
  %1944 = vdwg.mxu0
  %v1945 = vmul.f32 %v1939, %v1939
  %v1946 = vmul.f32 %v1942, %v1942
  %v1947 = vmul.f32 %v1939, %v1945
  %v1948 = vmul.f32 %v1942, %v1946
  %v1949 = vmul.f32 %v1947, 0.044715
  %v1950 = vmul.f32 %v1948, 0.044715
  %v1951 = vadd.f32 %v1939, %v1949
  %v1952 = vadd.f32 %v1942, %v1950
  %v1953 = vmul.f32 %v1951, 0.7978846
  %v1954 = vmul.f32 %v1952, 0.7978846
  %v1955 = vtanh.pop %v1953
  %v1956 = vtanh.pop %v1954
  %v1957 = vadd.f32 %v1955, 1.0
  %v1958 = vadd.f32 %v1956, 1.0
  %v1959 = vmul.f32 %v1957, 0.5
  %v1960 = vmul.f32 %v1958, 0.5
  %v1961 = vmul.f32 %v1939, %v1959
  %v1962 = vmul.f32 %v1942, %v1960
  %v1963 = vld [vmem:[%s12] sm:$0xf]
  %v1964 = vld [vmem:[%s12 + $0x4] sm:$0xf]
  %v1965 = vld [vmem:[%s12 + $0x8] sm:$0xf]
  %v1966 = vld [vmem:[%s12 + $0xc] sm:$0xf]
  %v1967 = vld [vmem:[%s12 + $0x10] sm:$0xf]
  %v1968 = vld [vmem:[%s12 + $0x14] sm:$0xf]
  %v1969 = vld [vmem:[%s12 + $0x18] sm:$0xf]
  %v1970 = vld [vmem:[%s12 + $0x1c] sm:$0xf]
  %v1971 = vpack.c.bf16 %v1962, %v1961
  %v1972 = vld [vmem:[%s13] sm:$0x1]
  %v1974 = vlaneseq
  %v1975 = vshrl.u32 %v1974, 7
  %v1976 = vsub.s32 0, %v1975
  %v1977 = vrot.slane %v1972, %v1976
  %v1987 = vunpack.c.l.b16 %v1963
  %v1988 = vunpack.c.l.b16 %v1964
  %v1989 = vunpack.c.l.b16 %v1965
  %v1990 = vunpack.c.l.b16 %v1966
  %v1991 = vunpack.c.l.b16 %v1967
  %v1992 = vunpack.c.l.b16 %v1968
  %v1993 = vunpack.c.l.b16 %v1969
  %v1994 = vunpack.c.l.b16 %v1970
  %v1995 = vpack.c.b16 %v1988, %v1987
  %v1996 = vpack.c.b16 %v1990, %v1989
  %v1997 = vpack.c.b16 %v1992, %v1991
  %v1998 = vpack.c.b16 %v1994, %v1993
  %v2004 = vsel %vm64, %v1971, 0
  %2006 = vmatprep.subr.bf16.mxu0 0
  %2007 = vmatpush1.bf16.msra.mxu0 %v1995
  %2008 = vmatprep.subr.bf16.mxu0 0
  %2009 = vmatpush1.bf16.msra.mxu0 %v1996
  %2010 = vmatprep.subr.bf16.mxu0 0
  %2011 = vmatpush1.bf16.msra.mxu0 %v1997
  %2012 = vmatprep.subr.bf16.mxu0 0
  %2013 = vmatpush1.bf16.msra.mxu0 %v1998
  %2014 = vmatprep.subr.bf16.mxu0 0
  %2015 = vmatpush1.bf16.msra.mxu0 0
  %2016 = vmatprep.subr.bf16.mxu0 0
  %2017 = vmatpush1.bf16.msra.mxu0 0
  %2018 = vmatprep.subr.bf16.mxu0 0
  %2019 = vmatpush1.bf16.msra.mxu0 0
  %2020 = vmatprep.subr.bf16.mxu0 0
  %2021 = vmatpush1.bf16.msra.mxu0 0
  %2022 = vmatprep.subr.bf16.mxu0 0
  %2023 = vmatpush1.bf16.msra.mxu0 0
  %2024 = vmatprep.subr.bf16.mxu0 0
  %2025 = vmatpush1.bf16.msra.mxu0 0
  %2026 = vmatprep.subr.bf16.mxu0 0
  %2027 = vmatpush1.bf16.msra.mxu0 0
  %2028 = vmatprep.subr.bf16.mxu0 0
  %2029 = vmatpush1.bf16.msra.mxu0 0
  %2030 = vmatprep.subr.bf16.mxu0 0
  %2031 = vmatpush1.bf16.msra.mxu0 0
  %2032 = vmatprep.subr.bf16.mxu0 0
  %2033 = vmatpush1.bf16.msra.mxu0 0
  %2034 = vmatprep.subr.bf16.mxu0 0
  %2035 = vmatpush1.bf16.msra.mxu0 0
  %2036 = vmatprep.subr.bf16.mxu0 0
  %2037 = vmatpush1.bf16.msra.mxu0 0
  %2038 = vmatprep.mubr.bf16.mxu0 0
  %2039 = vmatmul.mubr.bf16.gmra.mrb[0].mxu0 %v2004
  %v2040 = vpop.f32.mrb[0].mxu0
  %v2041 = vadd.f32 %v1977, %v2040
  %v2042 = vpop.f32.mrb[0].mxu0
  %v2043 = vpop.f32.mrb[0].mxu0
  %v2044 = vadd.f32 %v1977, %v2043
  %v2045 = vpop.f32.mrb[0].mxu0
  %2046 = vdwg.mxu0
  %v2047 = vadd.f32 %v1815, %v2041
  %v2048 = vadd.f32 %v1816, %v2044
  %2049 = vst.msk [vmem:[%s14] sm:$0xff] %vm64, %v2047
  %2050 = vst.msk [vmem:[%s14 + $0x8] sm:$0x3] %vm68, %v2048
  // Predicated region
  $region62: #{_lambda_.10} parent=0 // pred_check
    _
  $region63: #{_lambda_.10} parent=0 // pred_check_branch
    %2052 = sbr.rel (0) target = $region65
  $region64: #{_lambda_.10} parent=0 // pred_region
    _
  $region65: #{_lambda_.10} parent=0 // pred_fallthru
    _
  // Predicated region
  $region66: #{_lambda_.10} parent=0 // pred_check
    _
  $region67: #{_lambda_.10} parent=0 // pred_check_branch
    %2054 = sbr.rel (0) target = $region69
  $region68: #{_lambda_.10} parent=0 // pred_region
    _
  $region69: #{_lambda_.10} parent=0 // pred_fallthru
    _

// kernel: _lambda_.8
$region0: #{_lambda_.8}
  #allocation0 [shape = 'u32[]', space=smem, size = 0x4, offset = 0x4, fixed_abs, tag = 'smem constant byte address 0x4 - core index']
  #allocation1 [shape = 'u32[144,128]{1,0:T(1,128)}', space=vmem, size = 0x12000, scoped, tag = 'internal scratch']
  %s0 = inlined_call_operand.vmem [shape: f32[50,64], index: 0, kind: input, shape index: {}]
  %s1 = inlined_call_operand.vmem [shape: f32[50,50], index: 1, kind: input, shape index: {}]
  %s2 = inlined_call_operand.vmem [shape: f32[2,1,64], index: 2, kind: input, shape index: {}]
  %s3 = inlined_call_operand.vmem [shape: f32[2,1,64], index: 3, kind: input, shape index: {}]
  %s4 = inlined_call_operand.vmem [shape: bf16[2,3,4,64,16], index: 4, kind: input, shape index: {}]
  %s5 = inlined_call_operand.vmem [shape: f32[2,3,4,1,16], index: 5, kind: input, shape index: {}]
  %s6 = inlined_call_operand.vmem [shape: bf16[2,4,16,64], index: 6, kind: input, shape index: {}]
  %s7 = inlined_call_operand.vmem [shape: f32[2,1,64], index: 7, kind: input, shape index: {}]
  %s8 = inlined_call_operand.vmem [shape: f32[2,1,64], index: 8, kind: input, shape index: {}]
  %s9 = inlined_call_operand.vmem [shape: f32[2,1,64], index: 9, kind: input, shape index: {}]
  %s10 = inlined_call_operand.vmem [shape: bf16[2,64,256], index: 10, kind: input, shape index: {}]
  %s11 = inlined_call_operand.vmem [shape: f32[2,1,256], index: 11, kind: input, shape index: {}]
  %s12 = inlined_call_operand.vmem [shape: bf16[2,256,64], index: 12, kind: input, shape index: {}]
  %s13 = inlined_call_operand.vmem [shape: f32[2,1,64], index: 13, kind: input, shape index: {}]
  %s14 = inlined_call_operand.vmem [shape: f32[50,64], index: 14, kind: output, shape index: {}]
  %s15 = sld [smem:[#allocation0]]
  $region93: #{_lambda_.8} parent=0
    _
  %s17 = ssub.s32 1, %s15
  %s18 = scalar_select 0, %s17, %s15
  loop: start=0, step=1, limit=4
  $region2: #{_lambda_.8} parent=0 // loop_pre_header
    _
  $region3: #{_lambda_.8} parent=0 // loop_header
    %s20 = sphi 0, %s24
    %p21 = scmp.ge.s32.totalorder %s20, 4
    %s28 = sphi 0, %s28
    %s30 = sphi 0, %s28
    %s31 = sphi 0, %s30
    %s45 = sphi 0, %s31
    %s49 = sphi 0, %s49
    %s51 = sphi 0, %s49
    %s52 = sphi 0, %s51
    %s66 = sphi 0, %s52
    %s72 = sphi 0, %s74
    %s75 = sphi 0, %s72
    %s76 = sphi 0, %s75
    %s92 = sphi 0, %s76
    %s98 = sphi 0, %s100
    %s101 = sphi 0, %s98
    %s102 = sphi 0, %s101
    %s118 = sphi 0, %s102
    %s124 = sphi 0, %s126
    %s127 = sphi 0, %s124
    %s128 = sphi 0, %s127
    %s144 = sphi 0, %s128
    %s150 = sphi 0, %s152
    %s153 = sphi 0, %s150
    %s154 = sphi 0, %s153
    %s170 = sphi 0, %s154
    %s176 = sphi 0, %s178
    %s179 = sphi 0, %s176
    %s180 = sphi 0, %s179
    %s196 = sphi 0, %s180
    %s202 = sphi 0, %s204
    %s205 = sphi 0, %s202
    %s206 = sphi 0, %s205
    %s222 = sphi 0, %s206
    %s228 = sphi 0, %s230
    %s231 = sphi 0, %s228
    %s232 = sphi 0, %s231
    %s248 = sphi 0, %s232
    %s254 = sphi 0, %s256
    %s257 = sphi 0, %s254
    %s258 = sphi 0, %s257
    %s274 = sphi 0, %s258
    %s280 = sphi 0, %s282
    %s283 = sphi 0, %s280
    %s284 = sphi 0, %s283
    %s300 = sphi 0, %s284
    %s306 = sphi 0, %s308
    %s309 = sphi 0, %s306
    %s310 = sphi 0, %s309
    %s326 = sphi 0, %s310
    %s332 = sphi 0, %s334
    %s335 = sphi 0, %s332
    %s336 = sphi 0, %s335
    %s352 = sphi 0, %s336
    %s358 = sphi 0, %s360
    %s361 = sphi 0, %s358
    %s362 = sphi 0, %s361
    %s378 = sphi 0, %s362
    %s382 = sphi 0, %s382
    %s384 = sphi 0, %s382
    %s385 = sphi 0, %s384
    %s399 = sphi 0, %s385
  $region4: #{_lambda_.8} parent=0 // loop_header_branch
    %23 = sbr.rel (%p21) target = $region8
  $region5: #{_lambda_.8} parent=0 // loop_body
    %s25 = ssub.s32 %s20, 1
    %s26 = ssub.s32 %s20, 2
    %s27 = sadd.s32 %s20, 1
    %s29 = sadd.s32 %s28, 1
    %p32 = scmp.eq.s32.totalorder %s20, 1
    %p33 = scmp.ne.s32.totalorder %s28, %s30
    %p34 = scmp.eq.s32.totalorder %s20, 0
    %p35 = por %p33, %p34
    %p36 = scmp.ne.s32.totalorder %s28, %s30
    %p37 = scmp.eq.s32.totalorder %s25, 1
    %p38 = por %p36, %p37
    %p39 = scmp.ne.s32.totalorder %s30, %s31
    %p40 = scmp.eq.s32.totalorder %s25, 0
    %p41 = por %p39, %p40
    %p42 = scmp.ne.s32.totalorder %s30, %s31
    %p43 = scmp.eq.s32.totalorder %s26, 1
    %p44 = por %p42, %p43
    %p46 = scmp.ne.s32.totalorder %s31, %s45
    %p47 = scmp.eq.s32.totalorder %s26, 0
    %p48 = por %p46, %p47
    %s50 = sadd.s32 %s49, 1
    %p53 = scmp.eq.s32.totalorder %s20, 1
    %p54 = scmp.ne.s32.totalorder %s49, %s51
    %p55 = scmp.eq.s32.totalorder %s20, 0
    %p56 = por %p54, %p55
    %p57 = scmp.ne.s32.totalorder %s49, %s51
    %p58 = scmp.eq.s32.totalorder %s25, 1
    %p59 = por %p57, %p58
    %p60 = scmp.ne.s32.totalorder %s51, %s52
    %p61 = scmp.eq.s32.totalorder %s25, 0
    %p62 = por %p60, %p61
    %p63 = scmp.ne.s32.totalorder %s51, %s52
    %p64 = scmp.eq.s32.totalorder %s26, 1
    %p65 = por %p63, %p64
    %p67 = scmp.ne.s32.totalorder %s52, %s66
    %p68 = scmp.eq.s32.totalorder %s26, 0
    %p69 = por %p67, %p68
    %s70 = ssub.s32 %s20, %s27
    %p71 = scmp.eq.s32.totalorder %s70, 0
    %s73 = sadd.s32 %s72, 1
    %s74 = scalar_select %p71, %s72, %s73
    %p77 = pneg %p71
    %p78 = scmp.eq.s32.totalorder %s20, 1
    %p79 = por %p77, %p78
    %p80 = scmp.ne.s32.totalorder %s72, %s75
    %p81 = scmp.eq.s32.totalorder %s20, 0
    %p82 = por %p80, %p81
    %p83 = scmp.ne.s32.totalorder %s72, %s75
    %p84 = scmp.eq.s32.totalorder %s25, 1
    %p85 = por %p83, %p84
    %p86 = scmp.ne.s32.totalorder %s75, %s76
    %p87 = scmp.eq.s32.totalorder %s25, 0
    %p88 = por %p86, %p87
    %p89 = scmp.ne.s32.totalorder %s75, %s76
    %p90 = scmp.eq.s32.totalorder %s26, 1
    %p91 = por %p89, %p90
    %p93 = scmp.ne.s32.totalorder %s76, %s92
    %p94 = scmp.eq.s32.totalorder %s26, 0
    %p95 = por %p93, %p94
    %s96 = ssub.s32 %s20, %s27
    %p97 = scmp.eq.s32.totalorder %s96, 0
    %s99 = sadd.s32 %s98, 1
    %s100 = scalar_select %p97, %s98, %s99
    %p103 = pneg %p97
    %p104 = scmp.eq.s32.totalorder %s20, 1
    %p105 = por %p103, %p104
    %p106 = scmp.ne.s32.totalorder %s98, %s101
    %p107 = scmp.eq.s32.totalorder %s20, 0
    %p108 = por %p106, %p107
    %p109 = scmp.ne.s32.totalorder %s98, %s101
    %p110 = scmp.eq.s32.totalorder %s25, 1
    %p111 = por %p109, %p110
    %p112 = scmp.ne.s32.totalorder %s101, %s102
    %p113 = scmp.eq.s32.totalorder %s25, 0
    %p114 = por %p112, %p113
    %p115 = scmp.ne.s32.totalorder %s101, %s102
    %p116 = scmp.eq.s32.totalorder %s26, 1
    %p117 = por %p115, %p116
    %p119 = scmp.ne.s32.totalorder %s102, %s118
    %p120 = scmp.eq.s32.totalorder %s26, 0
    %p121 = por %p119, %p120
    %s122 = ssub.s32 %s20, %s27
    %p123 = scmp.eq.s32.totalorder %s122, 0
    %s125 = sadd.s32 %s124, 1
    %s126 = scalar_select %p123, %s124, %s125
    %p129 = pneg %p123
    %p130 = scmp.eq.s32.totalorder %s20, 1
    %p131 = por %p129, %p130
    %p132 = scmp.ne.s32.totalorder %s124, %s127
    %p133 = scmp.eq.s32.totalorder %s20, 0
    %p134 = por %p132, %p133
    %p135 = scmp.ne.s32.totalorder %s124, %s127
    %p136 = scmp.eq.s32.totalorder %s25, 1
    %p137 = por %p135, %p136
    %p138 = scmp.ne.s32.totalorder %s127, %s128
    %p139 = scmp.eq.s32.totalorder %s25, 0
    %p140 = por %p138, %p139
    %p141 = scmp.ne.s32.totalorder %s127, %s128
    %p142 = scmp.eq.s32.totalorder %s26, 1
    %p143 = por %p141, %p142
    %p145 = scmp.ne.s32.totalorder %s128, %s144
    %p146 = scmp.eq.s32.totalorder %s26, 0
    %p147 = por %p145, %p146
    %s148 = ssub.s32 %s20, %s27
    %p149 = scmp.eq.s32.totalorder %s148, 0
    %s151 = sadd.s32 %s150, 1
    %s152 = scalar_select %p149, %s150, %s151
    %p155 = pneg %p149
    %p156 = scmp.eq.s32.totalorder %s20, 1
    %p157 = por %p155, %p156
    %p158 = scmp.ne.s32.totalorder %s150, %s153
    %p159 = scmp.eq.s32.totalorder %s20, 0
    %p160 = por %p158, %p159
    %p161 = scmp.ne.s32.totalorder %s150, %s153
    %p162 = scmp.eq.s32.totalorder %s25, 1
    %p163 = por %p161, %p162
    %p164 = scmp.ne.s32.totalorder %s153, %s154
    %p165 = scmp.eq.s32.totalorder %s25, 0
    %p166 = por %p164, %p165
    %p167 = scmp.ne.s32.totalorder %s153, %s154
    %p168 = scmp.eq.s32.totalorder %s26, 1
    %p169 = por %p167, %p168
    %p171 = scmp.ne.s32.totalorder %s154, %s170
    %p172 = scmp.eq.s32.totalorder %s26, 0
    %p173 = por %p171, %p172
    %s174 = ssub.s32 %s20, %s27
    %p175 = scmp.eq.s32.totalorder %s174, 0
    %s177 = sadd.s32 %s176, 1
    %s178 = scalar_select %p175, %s176, %s177
    %p181 = pneg %p175
    %p182 = scmp.eq.s32.totalorder %s20, 1
    %p183 = por %p181, %p182
    %p184 = scmp.ne.s32.totalorder %s176, %s179
    %p185 = scmp.eq.s32.totalorder %s20, 0
    %p186 = por %p184, %p185
    %p187 = scmp.ne.s32.totalorder %s176, %s179
    %p188 = scmp.eq.s32.totalorder %s25, 1
    %p189 = por %p187, %p188
    %p190 = scmp.ne.s32.totalorder %s179, %s180
    %p191 = scmp.eq.s32.totalorder %s25, 0
    %p192 = por %p190, %p191
    %p193 = scmp.ne.s32.totalorder %s179, %s180
    %p194 = scmp.eq.s32.totalorder %s26, 1
    %p195 = por %p193, %p194
    %p197 = scmp.ne.s32.totalorder %s180, %s196
    %p198 = scmp.eq.s32.totalorder %s26, 0
    %p199 = por %p197, %p198
    %s200 = ssub.s32 %s20, %s27
    %p201 = scmp.eq.s32.totalorder %s200, 0
    %s203 = sadd.s32 %s202, 1
    %s204 = scalar_select %p201, %s202, %s203
    %p207 = pneg %p201
    %p208 = scmp.eq.s32.totalorder %s20, 1
    %p209 = por %p207, %p208
    %p210 = scmp.ne.s32.totalorder %s202, %s205
    %p211 = scmp.eq.s32.totalorder %s20, 0
    %p212 = por %p210, %p211
    %p213 = scmp.ne.s32.totalorder %s202, %s205
    %p214 = scmp.eq.s32.totalorder %s25, 1
    %p215 = por %p213, %p214
    %p216 = scmp.ne.s32.totalorder %s205, %s206
    %p217 = scmp.eq.s32.totalorder %s25, 0
    %p218 = por %p216, %p217
    %p219 = scmp.ne.s32.totalorder %s205, %s206
    %p220 = scmp.eq.s32.totalorder %s26, 1
    %p221 = por %p219, %p220
    %p223 = scmp.ne.s32.totalorder %s206, %s222
    %p224 = scmp.eq.s32.totalorder %s26, 0
    %p225 = por %p223, %p224
    %s226 = ssub.s32 %s20, %s27
    %p227 = scmp.eq.s32.totalorder %s226, 0
    %s229 = sadd.s32 %s228, 1
    %s230 = scalar_select %p227, %s228, %s229
    %p233 = pneg %p227
    %p234 = scmp.eq.s32.totalorder %s20, 1
    %p235 = por %p233, %p234
    %p236 = scmp.ne.s32.totalorder %s228, %s231
    %p237 = scmp.eq.s32.totalorder %s20, 0
    %p238 = por %p236, %p237
    %p239 = scmp.ne.s32.totalorder %s228, %s231
    %p240 = scmp.eq.s32.totalorder %s25, 1
    %p241 = por %p239, %p240
    %p242 = scmp.ne.s32.totalorder %s231, %s232
    %p243 = scmp.eq.s32.totalorder %s25, 0
    %p244 = por %p242, %p243
    %p245 = scmp.ne.s32.totalorder %s231, %s232
    %p246 = scmp.eq.s32.totalorder %s26, 1
    %p247 = por %p245, %p246
    %p249 = scmp.ne.s32.totalorder %s232, %s248
    %p250 = scmp.eq.s32.totalorder %s26, 0
    %p251 = por %p249, %p250
    %s252 = ssub.s32 %s20, %s27
    %p253 = scmp.eq.s32.totalorder %s252, 0
    %s255 = sadd.s32 %s254, 1
    %s256 = scalar_select %p253, %s254, %s255
    %p259 = pneg %p253
    %p260 = scmp.eq.s32.totalorder %s20, 1
    %p261 = por %p259, %p260
    %p262 = scmp.ne.s32.totalorder %s254, %s257
    %p263 = scmp.eq.s32.totalorder %s20, 0
    %p264 = por %p262, %p263
    %p265 = scmp.ne.s32.totalorder %s254, %s257
    %p266 = scmp.eq.s32.totalorder %s25, 1
    %p267 = por %p265, %p266
    %p268 = scmp.ne.s32.totalorder %s257, %s258
    %p269 = scmp.eq.s32.totalorder %s25, 0
    %p270 = por %p268, %p269
    %p271 = scmp.ne.s32.totalorder %s257, %s258
    %p272 = scmp.eq.s32.totalorder %s26, 1
    %p273 = por %p271, %p272
    %p275 = scmp.ne.s32.totalorder %s258, %s274
    %p276 = scmp.eq.s32.totalorder %s26, 0
    %p277 = por %p275, %p276
    %s278 = ssub.s32 %s20, %s27
    %p279 = scmp.eq.s32.totalorder %s278, 0
    %s281 = sadd.s32 %s280, 1
    %s282 = scalar_select %p279, %s280, %s281
    %p285 = pneg %p279
    %p286 = scmp.eq.s32.totalorder %s20, 1
    %p287 = por %p285, %p286
    %p288 = scmp.ne.s32.totalorder %s280, %s283
    %p289 = scmp.eq.s32.totalorder %s20, 0
    %p290 = por %p288, %p289
    %p291 = scmp.ne.s32.totalorder %s280, %s283
    %p292 = scmp.eq.s32.totalorder %s25, 1
    %p293 = por %p291, %p292
    %p294 = scmp.ne.s32.totalorder %s283, %s284
    %p295 = scmp.eq.s32.totalorder %s25, 0
    %p296 = por %p294, %p295
    %p297 = scmp.ne.s32.totalorder %s283, %s284
    %p298 = scmp.eq.s32.totalorder %s26, 1
    %p299 = por %p297, %p298
    %p301 = scmp.ne.s32.totalorder %s284, %s300
    %p302 = scmp.eq.s32.totalorder %s26, 0
    %p303 = por %p301, %p302
    %s304 = ssub.s32 %s20, %s27
    %p305 = scmp.eq.s32.totalorder %s304, 0
    %s307 = sadd.s32 %s306, 1
    %s308 = scalar_select %p305, %s306, %s307
    %p311 = pneg %p305
    %p312 = scmp.eq.s32.totalorder %s20, 1
    %p313 = por %p311, %p312
    %p314 = scmp.ne.s32.totalorder %s306, %s309
    %p315 = scmp.eq.s32.totalorder %s20, 0
    %p316 = por %p314, %p315
    %p317 = scmp.ne.s32.totalorder %s306, %s309
    %p318 = scmp.eq.s32.totalorder %s25, 1
    %p319 = por %p317, %p318
    %p320 = scmp.ne.s32.totalorder %s309, %s310
    %p321 = scmp.eq.s32.totalorder %s25, 0
    %p322 = por %p320, %p321
    %p323 = scmp.ne.s32.totalorder %s309, %s310
    %p324 = scmp.eq.s32.totalorder %s26, 1
    %p325 = por %p323, %p324
    %p327 = scmp.ne.s32.totalorder %s310, %s326
    %p328 = scmp.eq.s32.totalorder %s26, 0
    %p329 = por %p327, %p328
    %s330 = ssub.s32 %s20, %s27
    %p331 = scmp.eq.s32.totalorder %s330, 0
    %s333 = sadd.s32 %s332, 1
    %s334 = scalar_select %p331, %s332, %s333
    %p337 = pneg %p331
    %p338 = scmp.eq.s32.totalorder %s20, 1
    %p339 = por %p337, %p338
    %p340 = scmp.ne.s32.totalorder %s332, %s335
    %p341 = scmp.eq.s32.totalorder %s20, 0
    %p342 = por %p340, %p341
    %p343 = scmp.ne.s32.totalorder %s332, %s335
    %p344 = scmp.eq.s32.totalorder %s25, 1
    %p345 = por %p343, %p344
    %p346 = scmp.ne.s32.totalorder %s335, %s336
    %p347 = scmp.eq.s32.totalorder %s25, 0
    %p348 = por %p346, %p347
    %p349 = scmp.ne.s32.totalorder %s335, %s336
    %p350 = scmp.eq.s32.totalorder %s26, 1
    %p351 = por %p349, %p350
    %p353 = scmp.ne.s32.totalorder %s336, %s352
    %p354 = scmp.eq.s32.totalorder %s26, 0
    %p355 = por %p353, %p354
    %s356 = ssub.s32 %s20, %s27
    %p357 = scmp.eq.s32.totalorder %s356, 0
    %s359 = sadd.s32 %s358, 1
    %s360 = scalar_select %p357, %s358, %s359
    %p363 = pneg %p357
    %p364 = scmp.eq.s32.totalorder %s20, 1
    %p365 = por %p363, %p364
    %p366 = scmp.ne.s32.totalorder %s358, %s361
    %p367 = scmp.eq.s32.totalorder %s20, 0
    %p368 = por %p366, %p367
    %p369 = scmp.ne.s32.totalorder %s358, %s361
    %p370 = scmp.eq.s32.totalorder %s25, 1
    %p371 = por %p369, %p370
    %p372 = scmp.ne.s32.totalorder %s361, %s362
    %p373 = scmp.eq.s32.totalorder %s25, 0
    %p374 = por %p372, %p373
    %p375 = scmp.ne.s32.totalorder %s361, %s362
    %p376 = scmp.eq.s32.totalorder %s26, 1
    %p377 = por %p375, %p376
    %p379 = scmp.ne.s32.totalorder %s362, %s378
    %p380 = scmp.eq.s32.totalorder %s26, 0
    %p381 = por %p379, %p380
    %s383 = sadd.s32 %s382, 1
    %p386 = scmp.eq.s32.totalorder %s20, 1
    %p387 = scmp.ne.s32.totalorder %s382, %s384
    %p388 = scmp.eq.s32.totalorder %s20, 0
    %p389 = por %p387, %p388
    %p390 = scmp.ne.s32.totalorder %s382, %s384
    %p391 = scmp.eq.s32.totalorder %s25, 1
    %p392 = por %p390, %p391
    %p393 = scmp.ne.s32.totalorder %s384, %s385
    %p394 = scmp.eq.s32.totalorder %s25, 0
    %p395 = por %p393, %p394
    %p396 = scmp.ne.s32.totalorder %s384, %s385
    %p397 = scmp.eq.s32.totalorder %s26, 1
    %p398 = por %p396, %p397
    %p400 = scmp.ne.s32.totalorder %s385, %s399
    %p401 = scmp.eq.s32.totalorder %s26, 0
    %p402 = por %p400, %p401
    %p403 = scmp.le.s32.totalorder 1, %s20
    %p404 = scmp.lt.s32.totalorder %s20, 3
    %p405 = pnand %p403, %p404
    %p406 = pneg %p405
    // Predicated region
    $region9: #{_lambda_.8} parent=5 // pred_check
      _
    $region10: #{_lambda_.8} parent=5 // pred_check_branch
      %408 = sbr.rel (%p405) target = $region12
    $region11: #{_lambda_.8} parent=5 // pred_region
      %s409 = ssub.s32 %s20, 1
      // Predicated region
      $region13: #{_lambda_.8} parent=11 // pred_check
        %p410 = pneg %p41
      $region14: #{_lambda_.8} parent=11 // pred_check_branch
        %412 = sbr.rel (%p410) target = $region16
      $region15: #{_lambda_.8} parent=11 // pred_region
        _
      $region16: #{_lambda_.8} parent=11 // pred_fallthru
        _
      // Predicated region
      $region17: #{_lambda_.8} parent=11 // pred_check
        %p413 = pneg %p62
      $region18: #{_lambda_.8} parent=11 // pred_check_branch
        %415 = sbr.rel (%p413) target = $region20
      $region19: #{_lambda_.8} parent=11 // pred_region
        _
      $region20: #{_lambda_.8} parent=11 // pred_fallthru
        _
    $region12: #{_lambda_.8} parent=5 // pred_fallthru
      _
    %p416 = scmp.lt.s32.totalorder %s20, 2
    // Predicated region
    $region21: #{_lambda_.8} parent=5 // pred_check
      %p417 = pneg %p416
    $region22: #{_lambda_.8} parent=5 // pred_check_branch
      %419 = sbr.rel (%p417) target = $region24
    $region23: #{_lambda_.8} parent=5 // pred_region
      // Predicated region
      $region25: #{_lambda_.8} parent=23 // pred_check
        %p420 = pneg %p82
      $region26: #{_lambda_.8} parent=23 // pred_check_branch
        %422 = sbr.rel (%p420) target = $region28
      $region27: #{_lambda_.8} parent=23 // pred_region
        %p423 = scmp.lt.s32.totalorder %s20, 1
        %s424 = scalar_select %p423, %s20, 1
        %s425 = scalar_lea.vmem %s2, %s424
      $region28: #{_lambda_.8} parent=23 // pred_fallthru
        _
      // Predicated region
      $region29: #{_lambda_.8} parent=23 // pred_check
        %p426 = pneg %p108
      $region30: #{_lambda_.8} parent=23 // pred_check_branch
        %428 = sbr.rel (%p426) target = $region32
      $region31: #{_lambda_.8} parent=23 // pred_region
        %p429 = scmp.lt.s32.totalorder %s20, 1
        %s430 = scalar_select %p429, %s20, 1
        %s431 = scalar_lea.vmem %s3, %s430
      $region32: #{_lambda_.8} parent=23 // pred_fallthru
        _
      // Predicated region
      $region33: #{_lambda_.8} parent=23 // pred_check
        %p432 = pneg %p134
      $region34: #{_lambda_.8} parent=23 // pred_check_branch
        %434 = sbr.rel (%p432) target = $region36
      $region35: #{_lambda_.8} parent=23 // pred_region
        %p435 = scmp.lt.s32.totalorder %s20, 1
        %s436 = scalar_select %p435, %s20, 1
        %s437 = smul.addr %s436, 96
        %s438 = smul.addr %s437, 4
        %s439 = scalar_lea.vmem %s4, %s438
      $region36: #{_lambda_.8} parent=23 // pred_fallthru
        _
      // Predicated region
      $region37: #{_lambda_.8} parent=23 // pred_check
        %p440 = pneg %p160
      $region38: #{_lambda_.8} parent=23 // pred_check_branch
        %442 = sbr.rel (%p440) target = $region40
      $region39: #{_lambda_.8} parent=23 // pred_region
        %p443 = scmp.lt.s32.totalorder %s20, 1
        %s444 = scalar_select %p443, %s20, 1
        %s445 = smul.addr %s444, 12
        %s446 = scalar_lea.vmem %s5, %s445
      $region40: #{_lambda_.8} parent=23 // pred_fallthru
        _
      // Predicated region
      $region41: #{_lambda_.8} parent=23 // pred_check
        %p447 = pneg %p186
      $region42: #{_lambda_.8} parent=23 // pred_check_branch
        %449 = sbr.rel (%p447) target = $region44
      $region43: #{_lambda_.8} parent=23 // pred_region
        %p450 = scmp.lt.s32.totalorder %s20, 1
        %s451 = scalar_select %p450, %s20, 1
        %s452 = smul.addr %s451, 8
        %s453 = smul.addr %s452, 4
        %s454 = scalar_lea.vmem %s6, %s453
      $region44: #{_lambda_.8} parent=23 // pred_fallthru
        _
      // Predicated region
      $region45: #{_lambda_.8} parent=23 // pred_check
        %p455 = pneg %p212
      $region46: #{_lambda_.8} parent=23 // pred_check_branch
        %457 = sbr.rel (%p455) target = $region48
      $region47: #{_lambda_.8} parent=23 // pred_region
        %p458 = scmp.lt.s32.totalorder %s20, 1
        %s459 = scalar_select %p458, %s20, 1
        %s460 = scalar_lea.vmem %s7, %s459
      $region48: #{_lambda_.8} parent=23 // pred_fallthru
        _
      // Predicated region
      $region49: #{_lambda_.8} parent=23 // pred_check
        %p461 = pneg %p238
      $region50: #{_lambda_.8} parent=23 // pred_check_branch
        %463 = sbr.rel (%p461) target = $region52
      $region51: #{_lambda_.8} parent=23 // pred_region
        %p464 = scmp.lt.s32.totalorder %s20, 1
        %s465 = scalar_select %p464, %s20, 1
        %s466 = scalar_lea.vmem %s8, %s465
      $region52: #{_lambda_.8} parent=23 // pred_fallthru
        _
      // Predicated region
      $region53: #{_lambda_.8} parent=23 // pred_check
        %p467 = pneg %p264
      $region54: #{_lambda_.8} parent=23 // pred_check_branch
        %469 = sbr.rel (%p467) target = $region56
      $region55: #{_lambda_.8} parent=23 // pred_region
        %p470 = scmp.lt.s32.totalorder %s20, 1
        %s471 = scalar_select %p470, %s20, 1
        %s472 = scalar_lea.vmem %s9, %s471
      $region56: #{_lambda_.8} parent=23 // pred_fallthru
        _
      // Predicated region
      $region57: #{_lambda_.8} parent=23 // pred_check
        %p473 = pneg %p290
      $region58: #{_lambda_.8} parent=23 // pred_check_branch
        %475 = sbr.rel (%p473) target = $region60
      $region59: #{_lambda_.8} parent=23 // pred_region
        %p476 = scmp.lt.s32.totalorder %s20, 1
        %s477 = scalar_select %p476, %s20, 1
        %s478 = smul.addr %s477, 16
        %s479 = smul.addr %s478, 4
        %s480 = scalar_lea.vmem %s10, %s479
      $region60: #{_lambda_.8} parent=23 // pred_fallthru
        _
      // Predicated region
      $region61: #{_lambda_.8} parent=23 // pred_check
        %p481 = pneg %p316
      $region62: #{_lambda_.8} parent=23 // pred_check_branch
        %483 = sbr.rel (%p481) target = $region64
      $region63: #{_lambda_.8} parent=23 // pred_region
        %p484 = scmp.lt.s32.totalorder %s20, 1
        %s485 = scalar_select %p484, %s20, 1
        %s486 = smul.addr %s485, 2
        %s487 = scalar_lea.vmem %s11, %s486
      $region64: #{_lambda_.8} parent=23 // pred_fallthru
        _
      // Predicated region
      $region65: #{_lambda_.8} parent=23 // pred_check
        %p488 = pneg %p342
      $region66: #{_lambda_.8} parent=23 // pred_check_branch
        %490 = sbr.rel (%p488) target = $region68
      $region67: #{_lambda_.8} parent=23 // pred_region
        %p491 = scmp.lt.s32.totalorder %s20, 1
        %s492 = scalar_select %p491, %s20, 1
        %s493 = smul.addr %s492, 32
        %s494 = smul.addr %s493, 4
        %s495 = scalar_lea.vmem %s12, %s494
      $region68: #{_lambda_.8} parent=23 // pred_fallthru
        _
      // Predicated region
      $region69: #{_lambda_.8} parent=23 // pred_check
        %p496 = pneg %p368
      $region70: #{_lambda_.8} parent=23 // pred_check_branch
        %498 = sbr.rel (%p496) target = $region72
      $region71: #{_lambda_.8} parent=23 // pred_region
        %p499 = scmp.lt.s32.totalorder %s20, 1
        %s500 = scalar_select %p499, %s20, 1
        %s501 = scalar_lea.vmem %s13, %s500
      $region72: #{_lambda_.8} parent=23 // pred_fallthru
        _
    $region24: #{_lambda_.8} parent=5 // pred_fallthru
      _
    %p502 = scmp.le.s32.totalorder 1, %s20
    %p503 = scmp.lt.s32.totalorder %s20, 3
    %p504 = pnand %p502, %p503
    %p505 = pneg %p504
    // Predicated region
    $region73: #{_lambda_.8} parent=5 // pred_check
      _
    $region74: #{_lambda_.8} parent=5 // pred_check_branch
      %507 = sbr.rel (%p504) target = $region76
    $region75: #{_lambda_.8} parent=5 // pred_region
      %s508 = ssub.s32 %s20, 1
      %p509 = pneg %p41
      %p510 = pneg %p38
      %p511 = pneg %p62
      %p512 = pneg %p59
      %p513 = scmp.lt.s32.totalorder %s25, 1
      %s514 = scalar_select %p513, %s25, 1
      %s515 = scalar_lea.vmem %s2, %s514
      %p516 = pneg %p88
      %p517 = pneg %p85
      %p518 = scmp.lt.s32.totalorder %s25, 1
      %s519 = scalar_select %p518, %s25, 1
      %s520 = scalar_lea.vmem %s3, %s519
      %p521 = pneg %p114
      %p522 = pneg %p111
      %p523 = scmp.lt.s32.totalorder %s25, 1
      %s524 = scalar_select %p523, %s25, 1
      %s525 = smul.addr %s524, 96
      %s526 = smul.addr %s525, 4
      %s527 = scalar_lea.vmem %s4, %s526
      %p528 = pneg %p140
      %p529 = pneg %p137
      %p530 = scmp.lt.s32.totalorder %s25, 1
      %s531 = scalar_select %p530, %s25, 1
      %s532 = smul.addr %s531, 12
      %s533 = scalar_lea.vmem %s5, %s532
      %p534 = pneg %p166
      %p535 = pneg %p163
      %p536 = scmp.lt.s32.totalorder %s25, 1
      %s537 = scalar_select %p536, %s25, 1
      %s538 = smul.addr %s537, 8
      %s539 = smul.addr %s538, 4
      %s540 = scalar_lea.vmem %s6, %s539
      %p541 = pneg %p192
      %p542 = pneg %p189
      %p543 = scmp.lt.s32.totalorder %s25, 1
      %s544 = scalar_select %p543, %s25, 1
      %s545 = scalar_lea.vmem %s7, %s544
      %p546 = pneg %p218
      %p547 = pneg %p215
      %p548 = scmp.lt.s32.totalorder %s25, 1
      %s549 = scalar_select %p548, %s25, 1
      %s550 = scalar_lea.vmem %s8, %s549
      %p551 = pneg %p244
      %p552 = pneg %p241
      %p553 = scmp.lt.s32.totalorder %s25, 1
      %s554 = scalar_select %p553, %s25, 1
      %s555 = scalar_lea.vmem %s9, %s554
      %p556 = pneg %p270
      %p557 = pneg %p267
      %p558 = scmp.lt.s32.totalorder %s25, 1
      %s559 = scalar_select %p558, %s25, 1
      %s560 = smul.addr %s559, 16
      %s561 = smul.addr %s560, 4
      %s562 = scalar_lea.vmem %s10, %s561
      %p563 = pneg %p296
      %p564 = pneg %p293
      %p565 = scmp.lt.s32.totalorder %s25, 1
      %s566 = scalar_select %p565, %s25, 1
      %s567 = smul.addr %s566, 2
      %s568 = scalar_lea.vmem %s11, %s567
      %p569 = pneg %p322
      %p570 = pneg %p319
      %p571 = scmp.lt.s32.totalorder %s25, 1
      %s572 = scalar_select %p571, %s25, 1
      %s573 = smul.addr %s572, 32
      %s574 = smul.addr %s573, 4
      %s575 = scalar_lea.vmem %s12, %s574
      %p576 = pneg %p348
      %p577 = pneg %p345
      %p578 = scmp.lt.s32.totalorder %s25, 1
      %s579 = scalar_select %p578, %s25, 1
      %s580 = scalar_lea.vmem %s13, %s579
      %p581 = pneg %p374
      %p582 = pneg %p371
      %p583 = pneg %p395
      %p584 = pneg %p392
      %p585 = scmp.lt.s32.totalorder %s25, 1
      %s586 = scalar_select %p585, %s25, 1
      %s587 = scalar_lea.vmem %s2, %s586
      %p588 = scmp.lt.s32.totalorder %s25, 1
      %s589 = scalar_select %p588, %s25, 1
      %s590 = scalar_lea.vmem %s3, %s589
      %p591 = scmp.lt.s32.totalorder %s25, 1
      %s592 = scalar_select %p591, %s25, 1
      %s593 = smul.addr %s592, 96
      %s594 = smul.addr %s593, 4
      %s595 = scalar_lea.vmem %s4, %s594
      %p596 = scmp.lt.s32.totalorder %s25, 1
      %s597 = scalar_select %p596, %s25, 1
      %s598 = smul.addr %s597, 12
      %s599 = scalar_lea.vmem %s5, %s598
      %p600 = scmp.lt.s32.totalorder %s25, 1
      %s601 = scalar_select %p600, %s25, 1
      %s602 = smul.addr %s601, 8
      %s603 = smul.addr %s602, 4
      %s604 = scalar_lea.vmem %s6, %s603
      %p605 = scmp.lt.s32.totalorder %s25, 1
      %s606 = scalar_select %p605, %s25, 1
      %s607 = scalar_lea.vmem %s7, %s606
      %p608 = scmp.lt.s32.totalorder %s25, 1
      %s609 = scalar_select %p608, %s25, 1
      %s610 = scalar_lea.vmem %s8, %s609
      %p611 = scmp.lt.s32.totalorder %s25, 1
      %s612 = scalar_select %p611, %s25, 1
      %s613 = scalar_lea.vmem %s9, %s612
      %p614 = scmp.lt.s32.totalorder %s25, 1
      %s615 = scalar_select %p614, %s25, 1
      %s616 = smul.addr %s615, 16
      %s617 = smul.addr %s616, 4
      %s618 = scalar_lea.vmem %s10, %s617
      %p619 = scmp.lt.s32.totalorder %s25, 1
      %s620 = scalar_select %p619, %s25, 1
      %s621 = smul.addr %s620, 2
      %s622 = scalar_lea.vmem %s11, %s621
      %p623 = scmp.lt.s32.totalorder %s25, 1
      %s624 = scalar_select %p623, %s25, 1
      %s625 = smul.addr %s624, 32
      %s626 = smul.addr %s625, 4
      %s627 = scalar_lea.vmem %s12, %s626
      %p628 = scmp.lt.s32.totalorder %s25, 1
      %s629 = scalar_select %p628, %s25, 1
      %s630 = scalar_lea.vmem %s13, %s629
      %p632 = scmp.eq.s32.totalorder %s25, 0
      // Predicated region
      $region77: #{_lambda_.8} parent=75 // pred_check
        %p633 = pneg %p632
      $region78: #{_lambda_.8} parent=75 // pred_check_branch
        %635 = sbr.rel (%p633) target = $region80
      $region79: #{_lambda_.8} parent=75 // pred_region
        %v636 = vld [vmem:[%s0] sm:$0xff]
        %v637 = vld [vmem:[%s0 + $0x8] sm:$0xff]
        %v638 = vld [vmem:[%s0 + $0x10] sm:$0xff]
        %v639 = vld [vmem:[%s0 + $0x18] sm:$0xff]
        %v640 = vld [vmem:[%s0 + $0x20] sm:$0xff]
        %v641 = vld [vmem:[%s0 + $0x28] sm:$0xff]
        %v642 = vld [vmem:[%s0 + $0x30] sm:$0x3]
        %vm643 = vcmask 523264
        %644 = vst.msk [vmem:[%s14] sm:$0xff] %vm643, %v636
        %645 = vst.msk [vmem:[%s14 + $0x8] sm:$0xff] %vm643, %v637
        %646 = vst.msk [vmem:[%s14 + $0x10] sm:$0xff] %vm643, %v638
        %647 = vst.msk [vmem:[%s14 + $0x18] sm:$0xff] %vm643, %v639
        %648 = vst.msk [vmem:[%s14 + $0x20] sm:$0xff] %vm643, %v640
        %649 = vst.msk [vmem:[%s14 + $0x28] sm:$0xff] %vm643, %v641
        %vm650 = vcmask 517120
        %651 = vst.msk [vmem:[%s14 + $0x30] sm:$0x3] %vm650, %v642
      $region80: #{_lambda_.8} parent=75 // pred_fallthru
        _
      %v652 = vld [vmem:[%s14] sm:$0xff]
      %v653 = vld [vmem:[%s14 + $0x8] sm:$0xff]
      %v654 = vld [vmem:[%s14 + $0x10] sm:$0xff]
      %v655 = vld [vmem:[%s14 + $0x18] sm:$0xff]
      %v656 = vld [vmem:[%s14 + $0x20] sm:$0xff]
      %v657 = vld [vmem:[%s14 + $0x28] sm:$0xff]
      %v658 = vld [vmem:[%s14 + $0x30] sm:$0x3]
      %v659 = vld [vmem:[%s1] sm:$0xff]
      %v660 = vld [vmem:[%s1 + $0x8] sm:$0xff]
      %v661 = vld [vmem:[%s1 + $0x10] sm:$0xff]
      %v662 = vld [vmem:[%s1 + $0x18] sm:$0xff]
      %v663 = vld [vmem:[%s1 + $0x20] sm:$0xff]
      %v664 = vld [vmem:[%s1 + $0x28] sm:$0xff]
      %v665 = vld [vmem:[%s1 + $0x30] sm:$0x3]
      %v666 = vld [vmem:[%s587] sm:$0x1]
      %v667 = vld [vmem:[%s590] sm:$0x1]
      %vm668 = vcmask 523264
      %v669 = vsel %vm668, %v652, 0.0
      %670 = vadd.xlane.f32.xlu0 %v669
      %v671 = vpop.xlane.xlu0 %670
      %v672 = vsel %vm668, %v653, 0.0
      %673 = vadd.xlane.f32.xlu0 %v672
      %v674 = vpop.xlane.xlu0 %673
      %v675 = vsel %vm668, %v654, 0.0
      %676 = vadd.xlane.f32.xlu0 %v675
      %v677 = vpop.xlane.xlu0 %676
      %v678 = vsel %vm668, %v655, 0.0
      %679 = vadd.xlane.f32.xlu0 %v678
      %v680 = vpop.xlane.xlu0 %679
      %v681 = vsel %vm668, %v656, 0.0
      %682 = vadd.xlane.f32.xlu0 %v681
      %v683 = vpop.xlane.xlu0 %682
      %v684 = vsel %vm668, %v657, 0.0
      %685 = vadd.xlane.f32.xlu0 %v684
      %v686 = vpop.xlane.xlu0 %685
      %vm687 = vcmask 517120
      %v688 = vsel %vm687, %v658, 0.0
      %689 = vadd.xlane.f32.xlu0 %v688
      %v690 = vpop.xlane.xlu0 %689
      %v691 = vrcp.pop 64.0
      %v692 = vmul.f32 %v671, %v691
      %v693 = vmul.f32 %v674, %v691
      %v694 = vmul.f32 %v677, %v691
      %v695 = vmul.f32 %v680, %v691
      %v696 = vmul.f32 %v683, %v691
      %v697 = vmul.f32 %v686, %v691
      %v698 = vmul.f32 %v690, %v691
      %v699 = vsub.f32 %v652, %v692
      %v700 = vsub.f32 %v653, %v693
      %v701 = vsub.f32 %v654, %v694
      %v702 = vsub.f32 %v655, %v695
      %v703 = vsub.f32 %v656, %v696
      %v704 = vsub.f32 %v657, %v697
      %v705 = vsub.f32 %v658, %v698
      %v706 = vmul.f32 %v699, %v699
      %v707 = vmul.f32 %v700, %v700
      %v708 = vmul.f32 %v701, %v701
      %v709 = vmul.f32 %v702, %v702
      %v710 = vmul.f32 %v703, %v703
      %v711 = vmul.f32 %v704, %v704
      %v712 = vmul.f32 %v705, %v705
      %v713 = vsel %vm668, %v706, 0.0
      %714 = vadd.xlane.f32.xlu0 %v713
      %v715 = vpop.xlane.xlu0 %714
      %v716 = vsel %vm668, %v707, 0.0
      %717 = vadd.xlane.f32.xlu0 %v716
      %v718 = vpop.xlane.xlu0 %717
      %v719 = vsel %vm668, %v708, 0.0
      %720 = vadd.xlane.f32.xlu0 %v719
      %v721 = vpop.xlane.xlu0 %720
      %v722 = vsel %vm668, %v709, 0.0
      %723 = vadd.xlane.f32.xlu0 %v722
      %v724 = vpop.xlane.xlu0 %723
      %v725 = vsel %vm668, %v710, 0.0
      %726 = vadd.xlane.f32.xlu0 %v725
      %v727 = vpop.xlane.xlu0 %726
      %v728 = vsel %vm668, %v711, 0.0
      %729 = vadd.xlane.f32.xlu0 %v728
      %v730 = vpop.xlane.xlu0 %729
      %v731 = vsel %vm687, %v712, 0.0
      %732 = vadd.xlane.f32.xlu0 %v731
      %v733 = vpop.xlane.xlu0 %732
      %v734 = vmul.f32 %v715, %v691
      %v735 = vmul.f32 %v718, %v691
      %v736 = vmul.f32 %v721, %v691
      %v737 = vmul.f32 %v724, %v691
      %v738 = vmul.f32 %v727, %v691
      %v739 = vmul.f32 %v730, %v691
      %v740 = vmul.f32 %v733, %v691
      %v741 = vadd.f32 %v734, 1e-06
      %v742 = vadd.f32 %v735, 1e-06
      %v743 = vadd.f32 %v736, 1e-06
      %v744 = vadd.f32 %v737, 1e-06
      %v745 = vadd.f32 %v738, 1e-06
      %v746 = vadd.f32 %v739, 1e-06
      %v747 = vadd.f32 %v740, 1e-06
      %v748 = vrsqrt.pop %v741
      %v749 = vrsqrt.pop %v742
      %v750 = vrsqrt.pop %v743
      %v751 = vrsqrt.pop %v744
      %v752 = vrsqrt.pop %v745
      %v753 = vrsqrt.pop %v746
      %v754 = vrsqrt.pop %v747
      %v755 = vmul.f32 %v699, %v748
      %v756 = vmul.f32 %v700, %v749
      %v757 = vmul.f32 %v701, %v750
      %v758 = vmul.f32 %v702, %v751
      %v759 = vmul.f32 %v703, %v752
      %v760 = vmul.f32 %v704, %v753
      %v761 = vmul.f32 %v705, %v754
      %v763 = vlaneseq
      %v764 = vshrl.u32 %v763, 7
      %v765 = vsub.s32 0, %v764
      %v766 = vrot.slane %v666, %v765
      %v768 = vmul.f32 %v755, %v766
      %v769 = vmul.f32 %v756, %v766
      %v770 = vmul.f32 %v757, %v766
      %v771 = vmul.f32 %v758, %v766
      %v772 = vmul.f32 %v759, %v766
      %v773 = vmul.f32 %v760, %v766
      %v774 = vmul.f32 %v761, %v766
      %v776 = vlaneseq
      %v777 = vshrl.u32 %v776, 7
      %v778 = vsub.s32 0, %v777
      %v779 = vrot.slane %v667, %v778
      %v781 = vadd.f32 %v768, %v779
      %v782 = vadd.f32 %v769, %v779
      %v783 = vadd.f32 %v770, %v779
      %v784 = vadd.f32 %v771, %v779
      %v785 = vadd.f32 %v772, %v779
      %v786 = vadd.f32 %v773, %v779
      %v787 = vadd.f32 %v774, %v779
      %v788 = vpack.c.bf16 %v782, %v781
      %v789 = vpack.c.bf16 %v784, %v783
      %v790 = vpack.c.bf16 %v786, %v785
      %v791 = vpack.c.bf16 %v787, %v787
      %v792 = vld [vmem:[%s595] sm:$0xf]
      %v793 = vld [vmem:[%s595 + $0x4] sm:$0xf]
      %v794 = vld [vmem:[%s595 + $0x8] sm:$0xf]
      %v795 = vld [vmem:[%s595 + $0xc] sm:$0xf]
      %v796 = vld [vmem:[%s595 + $0x10] sm:$0xf]
      %v797 = vld [vmem:[%s595 + $0x14] sm:$0xf]
      %v798 = vld [vmem:[%s595 + $0x18] sm:$0xf]
      %v799 = vld [vmem:[%s595 + $0x1c] sm:$0xf]
      %v800 = vld [vmem:[%s599] sm:$0x1]
      %v802 = vlaneseq
      %v803 = vshrl.u32 %v802, 7
      %v804 = vsub.s32 0, %v803
      %v805 = vrot.slane %v800, %v804
      %v815 = vunpack.c.l.b16 %v792
      %v816 = vunpack.c.l.b16 %v793
      %v817 = vunpack.c.l.b16 %v794
      %v818 = vunpack.c.l.b16 %v795
      %v819 = vunpack.c.l.b16 %v796
      %v820 = vunpack.c.l.b16 %v797
      %v821 = vunpack.c.l.b16 %v798
      %v822 = vunpack.c.l.b16 %v799
      %v823 = vpack.c.b16 %v816, %v815
      %v824 = vpack.c.b16 %v818, %v817
      %v825 = vpack.c.b16 %v820, %v819
      %v826 = vpack.c.b16 %v822, %v821
      %v832 = vsel %vm668, %v788, 0
      %v835 = vsel %vm668, %v789, 0
      %v838 = vsel %vm668, %v790, 0
      %v841 = vsel %vm668, %v791, 0
      %843 = vmatprep.subr.bf16.mxu0 0
      %844 = vmatpush1.bf16.msra.mxu0 %v823
      %845 = vmatprep.subr.bf16.mxu0 0
      %846 = vmatpush1.bf16.msra.mxu0 %v824
      %847 = vmatprep.subr.bf16.mxu0 0
      %848 = vmatpush1.bf16.msra.mxu0 %v825
      %849 = vmatprep.subr.bf16.mxu0 0
      %850 = vmatpush1.bf16.msra.mxu0 %v826
      %851 = vmatprep.subr.bf16.mxu0 0
      %852 = vmatpush1.bf16.msra.mxu0 0
      %853 = vmatprep.subr.bf16.mxu0 0
      %854 = vmatpush1.bf16.msra.mxu0 0
      %855 = vmatprep.subr.bf16.mxu0 0
      %856 = vmatpush1.bf16.msra.mxu0 0
      %857 = vmatprep.subr.bf16.mxu0 0
      %858 = vmatpush1.bf16.msra.mxu0 0
      %859 = vmatprep.subr.bf16.mxu0 0
      %860 = vmatpush1.bf16.msra.mxu0 0
      %861 = vmatprep.subr.bf16.mxu0 0
      %862 = vmatpush1.bf16.msra.mxu0 0
      %863 = vmatprep.subr.bf16.mxu0 0
      %864 = vmatpush1.bf16.msra.mxu0 0
      %865 = vmatprep.subr.bf16.mxu0 0
      %866 = vmatpush1.bf16.msra.mxu0 0
      %867 = vmatprep.subr.bf16.mxu0 0
      %868 = vmatpush1.bf16.msra.mxu0 0
      %869 = vmatprep.subr.bf16.mxu0 0
      %870 = vmatpush1.bf16.msra.mxu0 0
      %871 = vmatprep.subr.bf16.mxu0 0
      %872 = vmatpush1.bf16.msra.mxu0 0
      %873 = vmatprep.subr.bf16.mxu0 0
      %874 = vmatpush1.bf16.msra.mxu0 0
      %875 = vmatprep.mubr.bf16.mxu0 0
      %876 = vmatmul.mubr.bf16.gmra.mrb[0].mxu0 %v832
      %v877 = vpop.f32.mrb[0].mxu0
      %v878 = vadd.f32 %v805, %v877
      %v879 = vpop.f32.mrb[0].mxu0
      %v880 = vpop.f32.mrb[0].mxu0
      %v881 = vadd.f32 %v805, %v880
      %v882 = vpop.f32.mrb[0].mxu0
      %883 = vmatprep.mubr.bf16.mxu0 0
      %884 = vmatmul.mubr.bf16.gmra.mrb[0].mxu0 %v835
      %v885 = vpop.f32.mrb[0].mxu0
      %v886 = vadd.f32 %v805, %v885
      %v887 = vpop.f32.mrb[0].mxu0
      %v888 = vpop.f32.mrb[0].mxu0
      %v889 = vadd.f32 %v805, %v888
      %v890 = vpop.f32.mrb[0].mxu0
      %891 = vmatprep.mubr.bf16.mxu0 0
      %892 = vmatmul.mubr.bf16.gmra.mrb[0].mxu0 %v838
      %v893 = vpop.f32.mrb[0].mxu0
      %v894 = vadd.f32 %v805, %v893
      %v895 = vpop.f32.mrb[0].mxu0
      %v896 = vpop.f32.mrb[0].mxu0
      %v897 = vadd.f32 %v805, %v896
      %v898 = vpop.f32.mrb[0].mxu0
      %899 = vmatprep.mubr.bf16.mxu0 0
      %900 = vmatmul.mubr.bf16.gmra.mrb[0].mxu0 %v841
      %v901 = vpop.f32.mrb[0].mxu0
      %v902 = vadd.f32 %v805, %v901
      %v903 = vpop.f32.mrb[0].mxu0
      %v904 = vpop.f32.mrb[0].mxu0
      %v905 = vpop.f32.mrb[0].mxu0
      %906 = vdwg.mxu0
      %s907 = scalar_lea.vmem %s595, 128
      %v908 = vld [vmem:[%s907] sm:$0xf]
      %v909 = vld [vmem:[%s907 + $0x4] sm:$0xf]
      %v910 = vld [vmem:[%s907 + $0x8] sm:$0xf]
      %v911 = vld [vmem:[%s907 + $0xc] sm:$0xf]
      %v912 = vld [vmem:[%s907 + $0x10] sm:$0xf]
      %v913 = vld [vmem:[%s907 + $0x14] sm:$0xf]
      %v914 = vld [vmem:[%s907 + $0x18] sm:$0xf]
      %v915 = vld [vmem:[%s907 + $0x1c] sm:$0xf]
      %s916 = scalar_lea.vmem %s599, 4
      %v917 = vld [vmem:[%s916] sm:$0x1]
      %v919 = vlaneseq
      %v920 = vshrl.u32 %v919, 7
      %v921 = vsub.s32 0, %v920
      %v922 = vrot.slane %v917, %v921
      %v932 = vunpack.c.l.b16 %v908
      %v933 = vunpack.c.l.b16 %v909
      %v934 = vunpack.c.l.b16 %v910
      %v935 = vunpack.c.l.b16 %v911
      %v936 = vunpack.c.l.b16 %v912
      %v937 = vunpack.c.l.b16 %v913
      %v938 = vunpack.c.l.b16 %v914
      %v939 = vunpack.c.l.b16 %v915
      %v940 = vpack.c.b16 %v933, %v932
      %v941 = vpack.c.b16 %v935, %v934
      %v942 = vpack.c.b16 %v937, %v936
      %v943 = vpack.c.b16 %v939, %v938
      %948 = vmatprep.subr.bf16.mxu0 0
      %949 = vmatpush1.bf16.msra.mxu0 %v940
      %950 = vmatprep.subr.bf16.mxu0 0
      %951 = vmatpush1.bf16.msra.mxu0 %v941
      %952 = vmatprep.subr.bf16.mxu0 0
      %953 = vmatpush1.bf16.msra.mxu0 %v942
      %954 = vmatprep.subr.bf16.mxu0 0
      %955 = vmatpush1.bf16.msra.mxu0 %v943
      %956 = vmatprep.subr.bf16.mxu0 0
      %957 = vmatpush1.bf16.msra.mxu0 0
      %958 = vmatprep.subr.bf16.mxu0 0
      %959 = vmatpush1.bf16.msra.mxu0 0
      %960 = vmatprep.subr.bf16.mxu0 0
      %961 = vmatpush1.bf16.msra.mxu0 0
      %962 = vmatprep.subr.bf16.mxu0 0
      %963 = vmatpush1.bf16.msra.mxu0 0
      %964 = vmatprep.subr.bf16.mxu0 0
      %965 = vmatpush1.bf16.msra.mxu0 0
      %966 = vmatprep.subr.bf16.mxu0 0
      %967 = vmatpush1.bf16.msra.mxu0 0
      %968 = vmatprep.subr.bf16.mxu0 0
      %969 = vmatpush1.bf16.msra.mxu0 0
      %970 = vmatprep.subr.bf16.mxu0 0
      %971 = vmatpush1.bf16.msra.mxu0 0
      %972 = vmatprep.subr.bf16.mxu0 0
      %973 = vmatpush1.bf16.msra.mxu0 0
      %974 = vmatprep.subr.bf16.mxu0 0
      %975 = vmatpush1.bf16.msra.mxu0 0
      %976 = vmatprep.subr.bf16.mxu0 0
      %977 = vmatpush1.bf16.msra.mxu0 0
      %978 = vmatprep.subr.bf16.mxu0 0
      %979 = vmatpush1.bf16.msra.mxu0 0
      %980 = vmatprep.mubr.bf16.mxu0 0
      %981 = vmatmul.mubr.bf16.gmra.mrb[0].mxu0 %v832
      %v982 = vpop.f32.mrb[0].mxu0
      %v983 = vadd.f32 %v922, %v982
      %v984 = vpop.f32.mrb[0].mxu0
      %v985 = vpop.f32.mrb[0].mxu0
      %v986 = vadd.f32 %v922, %v985
      %v987 = vpop.f32.mrb[0].mxu0
      %988 = vmatprep.mubr.bf16.mxu0 0
      %989 = vmatmul.mubr.bf16.gmra.mrb[0].mxu0 %v835
      %v990 = vpop.f32.mrb[0].mxu0
      %v991 = vadd.f32 %v922, %v990
      %v992 = vpop.f32.mrb[0].mxu0
      %v993 = vpop.f32.mrb[0].mxu0
      %v994 = vadd.f32 %v922, %v993
      %v995 = vpop.f32.mrb[0].mxu0
      %996 = vmatprep.mubr.bf16.mxu0 0
      %997 = vmatmul.mubr.bf16.gmra.mrb[0].mxu0 %v838
      %v998 = vpop.f32.mrb[0].mxu0
      %v999 = vadd.f32 %v922, %v998
      %v1000 = vpop.f32.mrb[0].mxu0
      %v1001 = vpop.f32.mrb[0].mxu0
      %v1002 = vadd.f32 %v922, %v1001
      %v1003 = vpop.f32.mrb[0].mxu0
      %1004 = vmatprep.mubr.bf16.mxu0 0
      %1005 = vmatmul.mubr.bf16.gmra.mrb[0].mxu0 %v841
      %v1006 = vpop.f32.mrb[0].mxu0
      %v1007 = vadd.f32 %v922, %v1006
      %v1008 = vpop.f32.mrb[0].mxu0
      %v1009 = vpop.f32.mrb[0].mxu0
      %v1010 = vpop.f32.mrb[0].mxu0
      %1011 = vdwg.mxu0
      %s1012 = scalar_lea.vmem %s595, 256
      %v1013 = vld [vmem:[%s1012] sm:$0xf]
      %v1014 = vld [vmem:[%s1012 + $0x4] sm:$0xf]
      %v1015 = vld [vmem:[%s1012 + $0x8] sm:$0xf]
      %v1016 = vld [vmem:[%s1012 + $0xc] sm:$0xf]
      %v1017 = vld [vmem:[%s1012 + $0x10] sm:$0xf]
      %v1018 = vld [vmem:[%s1012 + $0x14] sm:$0xf]
      %v1019 = vld [vmem:[%s1012 + $0x18] sm:$0xf]
      %v1020 = vld [vmem:[%s1012 + $0x1c] sm:$0xf]
      %s1021 = scalar_lea.vmem %s599, 8
      %v1022 = vld [vmem:[%s1021] sm:$0x1]
      %v1024 = vlaneseq
      %v1025 = vshrl.u32 %v1024, 7
      %v1026 = vsub.s32 0, %v1025
      %v1027 = vrot.slane %v1022, %v1026
      %v1037 = vunpack.c.l.b16 %v1013
      %v1038 = vunpack.c.l.b16 %v1014
      %v1039 = vunpack.c.l.b16 %v1015
      %v1040 = vunpack.c.l.b16 %v1016
      %v1041 = vunpack.c.l.b16 %v1017
      %v1042 = vunpack.c.l.b16 %v1018
      %v1043 = vunpack.c.l.b16 %v1019
      %v1044 = vunpack.c.l.b16 %v1020
      %v1045 = vpack.c.b16 %v1038, %v1037
      %v1046 = vpack.c.b16 %v1040, %v1039
      %v1047 = vpack.c.b16 %v1042, %v1041
      %v1048 = vpack.c.b16 %v1044, %v1043
      %1053 = vmatprep.subr.bf16.mxu0 0
      %1054 = vmatpush1.bf16.msra.mxu0 %v1045
      %1055 = vmatprep.subr.bf16.mxu0 0
      %1056 = vmatpush1.bf16.msra.mxu0 %v1046
      %1057 = vmatprep.subr.bf16.mxu0 0
      %1058 = vmatpush1.bf16.msra.mxu0 %v1047
      %1059 = vmatprep.subr.bf16.mxu0 0
      %1060 = vmatpush1.bf16.msra.mxu0 %v1048
      %1061 = vmatprep.subr.bf16.mxu0 0
      %1062 = vmatpush1.bf16.msra.mxu0 0
      %1063 = vmatprep.subr.bf16.mxu0 0
      %1064 = vmatpush1.bf16.msra.mxu0 0
      %1065 = vmatprep.subr.bf16.mxu0 0
      %1066 = vmatpush1.bf16.msra.mxu0 0
      %1067 = vmatprep.subr.bf16.mxu0 0
      %1068 = vmatpush1.bf16.msra.mxu0 0
      %1069 = vmatprep.subr.bf16.mxu0 0
      %1070 = vmatpush1.bf16.msra.mxu0 0
      %1071 = vmatprep.subr.bf16.mxu0 0
      %1072 = vmatpush1.bf16.msra.mxu0 0
      %1073 = vmatprep.subr.bf16.mxu0 0
      %1074 = vmatpush1.bf16.msra.mxu0 0
      %1075 = vmatprep.subr.bf16.mxu0 0
      %1076 = vmatpush1.bf16.msra.mxu0 0
      %1077 = vmatprep.subr.bf16.mxu0 0
      %1078 = vmatpush1.bf16.msra.mxu0 0
      %1079 = vmatprep.subr.bf16.mxu0 0
      %1080 = vmatpush1.bf16.msra.mxu0 0
      %1081 = vmatprep.subr.bf16.mxu0 0
      %1082 = vmatpush1.bf16.msra.mxu0 0
      %1083 = vmatprep.subr.bf16.mxu0 0
      %1084 = vmatpush1.bf16.msra.mxu0 0
      %1085 = vmatprep.mubr.bf16.mxu0 0
      %1086 = vmatmul.mubr.bf16.gmra.mrb[0].mxu0 %v832
      %v1087 = vpop.f32.mrb[0].mxu0
      %v1088 = vadd.f32 %v1027, %v1087
      %v1089 = vpop.f32.mrb[0].mxu0
      %v1090 = vpop.f32.mrb[0].mxu0
      %v1091 = vadd.f32 %v1027, %v1090
      %v1092 = vpop.f32.mrb[0].mxu0
      %1093 = vmatprep.mubr.bf16.mxu0 0
      %1094 = vmatmul.mubr.bf16.gmra.mrb[0].mxu0 %v835
      %v1095 = vpop.f32.mrb[0].mxu0
      %v1096 = vadd.f32 %v1027, %v1095
      %v1097 = vpop.f32.mrb[0].mxu0
      %v1098 = vpop.f32.mrb[0].mxu0
      %v1099 = vadd.f32 %v1027, %v1098
      %v1100 = vpop.f32.mrb[0].mxu0
      %1101 = vmatprep.mubr.bf16.mxu0 0
      %1102 = vmatmul.mubr.bf16.gmra.mrb[0].mxu0 %v838
      %v1103 = vpop.f32.mrb[0].mxu0
      %v1104 = vadd.f32 %v1027, %v1103
      %v1105 = vpop.f32.mrb[0].mxu0
      %v1106 = vpop.f32.mrb[0].mxu0
      %v1107 = vadd.f32 %v1027, %v1106
      %v1108 = vpop.f32.mrb[0].mxu0
      %1109 = vmatprep.mubr.bf16.mxu0 0
      %1110 = vmatmul.mubr.bf16.gmra.mrb[0].mxu0 %v841
      %v1111 = vpop.f32.mrb[0].mxu0
      %v1112 = vadd.f32 %v1027, %v1111
      %v1113 = vpop.f32.mrb[0].mxu0
      %v1114 = vpop.f32.mrb[0].mxu0
      %v1115 = vpop.f32.mrb[0].mxu0
      %1116 = vdwg.mxu0
      %v1117 = vmul.f32 %v878, 0.25
      %v1118 = vmul.f32 %v881, 0.25
      %v1119 = vmul.f32 %v886, 0.25
      %v1120 = vmul.f32 %v889, 0.25
      %v1121 = vmul.f32 %v894, 0.25
      %v1122 = vmul.f32 %v897, 0.25
      %v1123 = vmul.f32 %v902, 0.25
      %v1124 = vpack.c.bf16 %v1118, %v1117
      %v1125 = vpack.c.bf16 %v1120, %v1119
      %v1126 = vpack.c.bf16 %v1122, %v1121
      %v1127 = vpack.c.bf16 %v1123, %v1123
      %v1128 = vpack.c.bf16 %v986, %v983
      %v1129 = vpack.c.bf16 %v994, %v991
      %v1130 = vpack.c.bf16 %v1002, %v999
      %v1131 = vpack.c.bf16 %v1007, %v1007
      %vm1132 = vcmask 130048
      %v1134 = vsel %vm1132, %v1124, 0
      %v1137 = vsel %vm1132, %v1125, 0
      %v1140 = vsel %vm1132, %v1126, 0
      %v1143 = vsel %vm1132, %v1127, 0
      %v1146 = vsel %vm1132, %v1128, 0
      %v1149 = vsel %vm1132, %v1129, 0
      %v1152 = vsel %vm1132, %v1130, 0
      %v1155 = vsel %vm1132, %v1131, 0
      %1157 = vmatprep.subr.bf16.mxu0 0
      %1158 = vmatpush1.bf16.xpose.msra.mxu0 %v1146
      %1159 = vmatprep.subr.bf16.mxu0 0
      %1160 = vmatpush1.bf16.xpose.msra.mxu0 %v1149
      %1161 = vmatprep.subr.bf16.mxu0 0
      %1162 = vmatpush1.bf16.xpose.msra.mxu0 %v1152
      %1163 = vmatprep.subr.bf16.mxu0 0
      %1164 = vmatpush1.bf16.xpose.msra.mxu0 %v1155
      %1165 = vmatprep.subr.bf16.mxu0 0
      %1166 = vmatpush1.bf16.xpose.msra.mxu0 0
      %1167 = vmatprep.subr.bf16.mxu0 0
      %1168 = vmatpush1.bf16.xpose.msra.mxu0 0
      %1169 = vmatprep.subr.bf16.mxu0 0
      %1170 = vmatpush1.bf16.xpose.msra.mxu0 0
      %1171 = vmatprep.subr.bf16.mxu0 0
      %1172 = vmatpush1.bf16.xpose.msra.mxu0 0
      %1173 = vmatprep.subr.bf16.mxu0 0
      %1174 = vmatpush1.bf16.xpose.msra.mxu0 0
      %1175 = vmatprep.subr.bf16.mxu0 0
      %1176 = vmatpush1.bf16.xpose.msra.mxu0 0
      %1177 = vmatprep.subr.bf16.mxu0 0
      %1178 = vmatpush1.bf16.xpose.msra.mxu0 0
      %1179 = vmatprep.subr.bf16.mxu0 0
      %1180 = vmatpush1.bf16.xpose.msra.mxu0 0
      %1181 = vmatprep.subr.bf16.mxu0 0
      %1182 = vmatpush1.bf16.xpose.msra.mxu0 0
      %1183 = vmatprep.subr.bf16.mxu0 0
      %1184 = vmatpush1.bf16.xpose.msra.mxu0 0
      %1185 = vmatprep.subr.bf16.mxu0 0
      %1186 = vmatpush1.bf16.xpose.msra.mxu0 0
      %1187 = vmatprep.subr.bf16.mxu0 0
      %1188 = vmatpush1.bf16.xpose.msra.mxu0 0
      %1189 = vmatprep.mubr.bf16.mxu0 0
      %1190 = vmatmul.mubr.bf16.gmra.mrb[0].mxu0 %v1134
      %v1191 = vpop.f32.mrb[0].mxu0
      %v1192 = vadd.f32 %v659, %v1191
      %v1193 = vpop.f32.mrb[0].mxu0
      %v1194 = vpop.f32.mrb[0].mxu0
      %v1195 = vadd.f32 %v660, %v1194
      %v1196 = vpop.f32.mrb[0].mxu0
      %1197 = vmatprep.mubr.bf16.mxu0 0
      %1198 = vmatmul.mubr.bf16.gmra.mrb[0].mxu0 %v1137
      %v1199 = vpop.f32.mrb[0].mxu0
      %v1200 = vadd.f32 %v661, %v1199
      %v1201 = vpop.f32.mrb[0].mxu0
      %v1202 = vpop.f32.mrb[0].mxu0
      %v1203 = vadd.f32 %v662, %v1202
      %v1204 = vpop.f32.mrb[0].mxu0
      %1205 = vmatprep.mubr.bf16.mxu0 0
      %1206 = vmatmul.mubr.bf16.gmra.mrb[0].mxu0 %v1140
      %v1207 = vpop.f32.mrb[0].mxu0
      %v1208 = vadd.f32 %v663, %v1207
      %v1209 = vpop.f32.mrb[0].mxu0
      %v1210 = vpop.f32.mrb[0].mxu0
      %v1211 = vadd.f32 %v664, %v1210
      %v1212 = vpop.f32.mrb[0].mxu0
      %1213 = vmatprep.mubr.bf16.mxu0 0
      %1214 = vmatmul.mubr.bf16.gmra.mrb[0].mxu0 %v1143
      %v1215 = vpop.f32.mrb[0].mxu0
      %v1216 = vadd.f32 %v665, %v1215
      %v1217 = vpop.f32.mrb[0].mxu0
      %v1218 = vpop.f32.mrb[0].mxu0
      %v1219 = vpop.f32.mrb[0].mxu0
      %1220 = vdwg.mxu0
      %vm1221 = vcmask 408576
      %v1222 = vsel %vm1221, %v1192, -inf
      %1223 = vmax.xlane.f32.xlu0 %v1222
      %v1224 = vpop.xlane.xlu0 %1223
      %v1225 = vsel %vm1221, %v1195, -inf
      %1226 = vmax.xlane.f32.xlu0 %v1225
      %v1227 = vpop.xlane.xlu0 %1226
      %v1228 = vsel %vm1221, %v1200, -inf
      %1229 = vmax.xlane.f32.xlu0 %v1228
      %v1230 = vpop.xlane.xlu0 %1229
      %v1231 = vsel %vm1221, %v1203, -inf
      %1232 = vmax.xlane.f32.xlu0 %v1231
      %v1233 = vpop.xlane.xlu0 %1232
      %v1234 = vsel %vm1221, %v1208, -inf
      %1235 = vmax.xlane.f32.xlu0 %v1234
      %v1236 = vpop.xlane.xlu0 %1235
      %v1237 = vsel %vm1221, %v1211, -inf
      %1238 = vmax.xlane.f32.xlu0 %v1237
      %v1239 = vpop.xlane.xlu0 %1238
      %vm1240 = vcmask 402432
      %v1241 = vsel %vm1240, %v1216, -inf
      %1242 = vmax.xlane.f32.xlu0 %v1241
      %v1243 = vpop.xlane.xlu0 %1242
      %v1244 = vsub.f32 %v1192, %v1224
      %v1245 = vsub.f32 %v1195, %v1227
      %v1246 = vsub.f32 %v1200, %v1230
      %v1247 = vsub.f32 %v1203, %v1233
      %v1248 = vsub.f32 %v1208, %v1236
      %v1249 = vsub.f32 %v1211, %v1239
      %v1250 = vsub.f32 %v1216, %v1243
      %v1251 = vmul.f32 %v1244, 1.442695
      %v1252 = vpow.pop %v1251
      %v1253 = vmul.f32 %v1245, 1.442695
      %v1254 = vpow.pop %v1253
      %v1255 = vmul.f32 %v1246, 1.442695
      %v1256 = vpow.pop %v1255
      %v1257 = vmul.f32 %v1247, 1.442695
      %v1258 = vpow.pop %v1257
      %v1259 = vmul.f32 %v1248, 1.442695
      %v1260 = vpow.pop %v1259
      %v1261 = vmul.f32 %v1249, 1.442695
      %v1262 = vpow.pop %v1261
      %v1263 = vmul.f32 %v1250, 1.442695
      %v1264 = vpow.pop %v1263
      %v1265 = vsel %vm1221, %v1252, 0.0
      %1266 = vadd.xlane.f32.xlu0 %v1265
      %v1267 = vpop.xlane.xlu0 %1266
      %v1268 = vsel %vm1221, %v1254, 0.0
      %1269 = vadd.xlane.f32.xlu0 %v1268
      %v1270 = vpop.xlane.xlu0 %1269
      %v1271 = vsel %vm1221, %v1256, 0.0
      %1272 = vadd.xlane.f32.xlu0 %v1271
      %v1273 = vpop.xlane.xlu0 %1272
      %v1274 = vsel %vm1221, %v1258, 0.0
      %1275 = vadd.xlane.f32.xlu0 %v1274
      %v1276 = vpop.xlane.xlu0 %1275
      %v1277 = vsel %vm1221, %v1260, 0.0
      %1278 = vadd.xlane.f32.xlu0 %v1277
      %v1279 = vpop.xlane.xlu0 %1278
      %v1280 = vsel %vm1221, %v1262, 0.0
      %1281 = vadd.xlane.f32.xlu0 %v1280
      %v1282 = vpop.xlane.xlu0 %1281
      %v1283 = vsel %vm1240, %v1264, 0.0
      %1284 = vadd.xlane.f32.xlu0 %v1283
      %v1285 = vpop.xlane.xlu0 %1284
      %v1286 = vrcp.pop %v1267
      %v1287 = vrcp.pop %v1270
      %v1288 = vrcp.pop %v1273
      %v1289 = vrcp.pop %v1276
      %v1290 = vrcp.pop %v1279
      %v1291 = vrcp.pop %v1282
      %v1292 = vrcp.pop %v1285
      %v1293 = vmul.f32 %v1252, %v1286
      %v1294 = vmul.f32 %v1254, %v1287
      %v1295 = vmul.f32 %v1256, %v1288
      %v1296 = vmul.f32 %v1258, %v1289
      %v1297 = vmul.f32 %v1260, %v1290
      %v1298 = vmul.f32 %v1262, %v1291
      %v1299 = vmul.f32 %v1264, %v1292
      %v1300 = vpack.c.bf16 %v1294, %v1293
      %v1301 = vpack.c.bf16 %v1296, %v1295
      %v1302 = vpack.c.bf16 %v1298, %v1297
      %v1303 = vpack.c.bf16 %v1299, %v1299
      %v1304 = vpack.c.bf16 %v1091, %v1088
      %v1305 = vpack.c.bf16 %v1099, %v1096
      %v1306 = vpack.c.bf16 %v1107, %v1104
      %v1307 = vpack.c.bf16 %v1112, %v1112
      %v1309 = vsel %vm1221, %v1300, 0
      %v1312 = vsel %vm1221, %v1301, 0
      %v1315 = vsel %vm1221, %v1302, 0
      %v1318 = vsel %vm1221, %v1303, 0
      %vm1320 = vcmask 1040384
      %v1322 = vsel %vm1320, %v1307, 0
      %1324 = vmatprep.subr.bf16.mxu0 0
      %1325 = vmatpush1.bf16.msra.mxu0 %v1304
      %1326 = vmatprep.subr.bf16.mxu0 0
      %1327 = vmatpush1.bf16.msra.mxu0 %v1305
      %1328 = vmatprep.subr.bf16.mxu0 0
      %1329 = vmatpush1.bf16.msra.mxu0 %v1306
      %1330 = vmatprep.subr.bf16.mxu0 0
      %1331 = vmatpush1.bf16.msra.mxu0 %v1322
      %1332 = vmatprep.subr.bf16.mxu0 0
      %1333 = vmatpush1.bf16.msra.mxu0 0
      %1334 = vmatprep.subr.bf16.mxu0 0
      %1335 = vmatpush1.bf16.msra.mxu0 0
      %1336 = vmatprep.subr.bf16.mxu0 0
      %1337 = vmatpush1.bf16.msra.mxu0 0
      %1338 = vmatprep.subr.bf16.mxu0 0
      %1339 = vmatpush1.bf16.msra.mxu0 0
      %1340 = vmatprep.subr.bf16.mxu0 0
      %1341 = vmatpush1.bf16.msra.mxu0 0
      %1342 = vmatprep.subr.bf16.mxu0 0
      %1343 = vmatpush1.bf16.msra.mxu0 0
      %1344 = vmatprep.subr.bf16.mxu0 0
      %1345 = vmatpush1.bf16.msra.mxu0 0
      %1346 = vmatprep.subr.bf16.mxu0 0
      %1347 = vmatpush1.bf16.msra.mxu0 0
      %1348 = vmatprep.subr.bf16.mxu0 0
      %1349 = vmatpush1.bf16.msra.mxu0 0
      %1350 = vmatprep.subr.bf16.mxu0 0
      %1351 = vmatpush1.bf16.msra.mxu0 0
      %1352 = vmatprep.subr.bf16.mxu0 0
      %1353 = vmatpush1.bf16.msra.mxu0 0
      %1354 = vmatprep.subr.bf16.mxu0 0
      %1355 = vmatpush1.bf16.msra.mxu0 0
      %1356 = vmatprep.mubr.bf16.mxu0 0
      %1357 = vmatmul.mubr.bf16.gmra.mrb[0].mxu0 %v1309
      %v1358 = vpop.f32.mrb[0].mxu0
      %v1359 = vadd.f32 0.0, %v1358
      %v1360 = vpop.f32.mrb[0].mxu0
      %v1361 = vpop.f32.mrb[0].mxu0
      %v1362 = vadd.f32 0.0, %v1361
      %v1363 = vpop.f32.mrb[0].mxu0
      %1364 = vmatprep.mubr.bf16.mxu0 0
      %1365 = vmatmul.mubr.bf16.gmra.mrb[0].mxu0 %v1312
      %v1366 = vpop.f32.mrb[0].mxu0
      %v1367 = vadd.f32 0.0, %v1366
      %v1368 = vpop.f32.mrb[0].mxu0
      %v1369 = vpop.f32.mrb[0].mxu0
      %v1370 = vadd.f32 0.0, %v1369
      %v1371 = vpop.f32.mrb[0].mxu0
      %1372 = vmatprep.mubr.bf16.mxu0 0
      %1373 = vmatmul.mubr.bf16.gmra.mrb[0].mxu0 %v1315
      %v1374 = vpop.f32.mrb[0].mxu0
      %v1375 = vadd.f32 0.0, %v1374
      %v1376 = vpop.f32.mrb[0].mxu0
      %v1377 = vpop.f32.mrb[0].mxu0
      %v1378 = vadd.f32 0.0, %v1377
      %v1379 = vpop.f32.mrb[0].mxu0
      %1380 = vmatprep.mubr.bf16.mxu0 0
      %1381 = vmatmul.mubr.bf16.gmra.mrb[0].mxu0 %v1318
      %v1382 = vpop.f32.mrb[0].mxu0
      %v1383 = vadd.f32 0.0, %v1382
      %v1384 = vpop.f32.mrb[0].mxu0
      %v1385 = vpop.f32.mrb[0].mxu0
      %v1386 = vpop.f32.mrb[0].mxu0
      %1387 = vdwg.mxu0
      %v1388 = vld [vmem:[%s604] sm:$0xf]
      %v1389 = vld [vmem:[%s604 + $0x4] sm:$0xf]
      %v1390 = vpack.c.bf16 %v1362, %v1359
      %v1391 = vpack.c.bf16 %v1370, %v1367
      %v1392 = vpack.c.bf16 %v1378, %v1375
      %v1393 = vpack.c.bf16 %v1383, %v1383
      %s1394 = scalar_lea.vmem %s595, 32
      %v1395 = vld [vmem:[%s1394] sm:$0xf]
      %v1396 = vld [vmem:[%s1394 + $0x4] sm:$0xf]
      %v1397 = vld [vmem:[%s1394 + $0x8] sm:$0xf]
      %v1398 = vld [vmem:[%s1394 + $0xc] sm:$0xf]
      %v1399 = vld [vmem:[%s1394 + $0x10] sm:$0xf]
      %v1400 = vld [vmem:[%s1394 + $0x14] sm:$0xf]
      %v1401 = vld [vmem:[%s1394 + $0x18] sm:$0xf]
      %v1402 = vld [vmem:[%s1394 + $0x1c] sm:$0xf]
      %s1403 = scalar_lea.vmem %s599, 1
      %v1404 = vld [vmem:[%s1403] sm:$0x1]
      %v1406 = vlaneseq
      %v1407 = vshrl.u32 %v1406, 7
      %v1408 = vsub.s32 0, %v1407
      %v1409 = vrot.slane %v1404, %v1408
      %v1419 = vunpack.c.l.b16 %v1395
      %v1420 = vunpack.c.l.b16 %v1396
      %v1421 = vunpack.c.l.b16 %v1397
      %v1422 = vunpack.c.l.b16 %v1398
      %v1423 = vunpack.c.l.b16 %v1399
      %v1424 = vunpack.c.l.b16 %v1400
      %v1425 = vunpack.c.l.b16 %v1401
      %v1426 = vunpack.c.l.b16 %v1402
      %v1427 = vpack.c.b16 %v1420, %v1419
      %v1428 = vpack.c.b16 %v1422, %v1421
      %v1429 = vpack.c.b16 %v1424, %v1423
      %v1430 = vpack.c.b16 %v1426, %v1425
      %1435 = vmatprep.subr.bf16.mxu0 0
      %1436 = vmatpush1.bf16.msra.mxu0 %v1427
      %1437 = vmatprep.subr.bf16.mxu0 0
      %1438 = vmatpush1.bf16.msra.mxu0 %v1428
      %1439 = vmatprep.subr.bf16.mxu0 0
      %1440 = vmatpush1.bf16.msra.mxu0 %v1429
      %1441 = vmatprep.subr.bf16.mxu0 0
      %1442 = vmatpush1.bf16.msra.mxu0 %v1430
      %1443 = vmatprep.subr.bf16.mxu0 0
      %1444 = vmatpush1.bf16.msra.mxu0 0
      %1445 = vmatprep.subr.bf16.mxu0 0
      %1446 = vmatpush1.bf16.msra.mxu0 0
      %1447 = vmatprep.subr.bf16.mxu0 0
      %1448 = vmatpush1.bf16.msra.mxu0 0
      %1449 = vmatprep.subr.bf16.mxu0 0
      %1450 = vmatpush1.bf16.msra.mxu0 0
      %1451 = vmatprep.subr.bf16.mxu0 0
      %1452 = vmatpush1.bf16.msra.mxu0 0
      %1453 = vmatprep.subr.bf16.mxu0 0
      %1454 = vmatpush1.bf16.msra.mxu0 0
      %1455 = vmatprep.subr.bf16.mxu0 0
      %1456 = vmatpush1.bf16.msra.mxu0 0
      %1457 = vmatprep.subr.bf16.mxu0 0
      %1458 = vmatpush1.bf16.msra.mxu0 0
      %1459 = vmatprep.subr.bf16.mxu0 0
      %1460 = vmatpush1.bf16.msra.mxu0 0
      %1461 = vmatprep.subr.bf16.mxu0 0
      %1462 = vmatpush1.bf16.msra.mxu0 0
      %1463 = vmatprep.subr.bf16.mxu0 0
      %1464 = vmatpush1.bf16.msra.mxu0 0
      %1465 = vmatprep.subr.bf16.mxu0 0
      %1466 = vmatpush1.bf16.msra.mxu0 0
      %1467 = vmatprep.mubr.bf16.mxu0 0
      %1468 = vmatmul.mubr.bf16.gmra.mrb[0].mxu0 %v832
      %v1469 = vpop.f32.mrb[0].mxu0
      %v1470 = vadd.f32 %v1409, %v1469
      %v1471 = vpop.f32.mrb[0].mxu0
      %v1472 = vpop.f32.mrb[0].mxu0
      %v1473 = vadd.f32 %v1409, %v1472
      %v1474 = vpop.f32.mrb[0].mxu0
      %1475 = vmatprep.mubr.bf16.mxu0 0
      %1476 = vmatmul.mubr.bf16.gmra.mrb[0].mxu0 %v835
      %v1477 = vpop.f32.mrb[0].mxu0
      %v1478 = vadd.f32 %v1409, %v1477
      %v1479 = vpop.f32.mrb[0].mxu0
      %v1480 = vpop.f32.mrb[0].mxu0
      %v1481 = vadd.f32 %v1409, %v1480
      %v1482 = vpop.f32.mrb[0].mxu0
      %1483 = vmatprep.mubr.bf16.mxu0 0
      %1484 = vmatmul.mubr.bf16.gmra.mrb[0].mxu0 %v838
      %v1485 = vpop.f32.mrb[0].mxu0
      %v1486 = vadd.f32 %v1409, %v1485
      %v1487 = vpop.f32.mrb[0].mxu0
      %v1488 = vpop.f32.mrb[0].mxu0
      %v1489 = vadd.f32 %v1409, %v1488
      %v1490 = vpop.f32.mrb[0].mxu0
      %1491 = vmatprep.mubr.bf16.mxu0 0
      %1492 = vmatmul.mubr.bf16.gmra.mrb[0].mxu0 %v841
      %v1493 = vpop.f32.mrb[0].mxu0
      %v1494 = vadd.f32 %v1409, %v1493
      %v1495 = vpop.f32.mrb[0].mxu0
      %v1496 = vpop.f32.mrb[0].mxu0
      %v1497 = vpop.f32.mrb[0].mxu0
      %1498 = vdwg.mxu0
      %s1499 = scalar_lea.vmem %s595, 160
      %v1500 = vld [vmem:[%s1499] sm:$0xf]
      %v1501 = vld [vmem:[%s1499 + $0x4] sm:$0xf]
      %v1502 = vld [vmem:[%s1499 + $0x8] sm:$0xf]
      %v1503 = vld [vmem:[%s1499 + $0xc] sm:$0xf]
      %v1504 = vld [vmem:[%s1499 + $0x10] sm:$0xf]
      %v1505 = vld [vmem:[%s1499 + $0x14] sm:$0xf]
      %v1506 = vld [vmem:[%s1499 + $0x18] sm:$0xf]
      %v1507 = vld [vmem:[%s1499 + $0x1c] sm:$0xf]
      %s1508 = scalar_lea.vmem %s599, 5
      %v1509 = vld [vmem:[%s1508] sm:$0x1]
      %v1511 = vlaneseq
      %v1512 = vshrl.u32 %v1511, 7
      %v1513 = vsub.s32 0, %v1512
      %v1514 = vrot.slane %v1509, %v1513
      %v1524 = vunpack.c.l.b16 %v1500
      %v1525 = vunpack.c.l.b16 %v1501
      %v1526 = vunpack.c.l.b16 %v1502
      %v1527 = vunpack.c.l.b16 %v1503
      %v1528 = vunpack.c.l.b16 %v1504
      %v1529 = vunpack.c.l.b16 %v1505
      %v1530 = vunpack.c.l.b16 %v1506
      %v1531 = vunpack.c.l.b16 %v1507
      %v1532 = vpack.c.b16 %v1525, %v1524
      %v1533 = vpack.c.b16 %v1527, %v1526
      %v1534 = vpack.c.b16 %v1529, %v1528
      %v1535 = vpack.c.b16 %v1531, %v1530
      %1540 = vmatprep.subr.bf16.mxu0 0
      %1541 = vmatpush1.bf16.msra.mxu0 %v1532
      %1542 = vmatprep.subr.bf16.mxu0 0
      %1543 = vmatpush1.bf16.msra.mxu0 %v1533
      %1544 = vmatprep.subr.bf16.mxu0 0
      %1545 = vmatpush1.bf16.msra.mxu0 %v1534
      %1546 = vmatprep.subr.bf16.mxu0 0
      %1547 = vmatpush1.bf16.msra.mxu0 %v1535
      %1548 = vmatprep.subr.bf16.mxu0 0
      %1549 = vmatpush1.bf16.msra.mxu0 0
      %1550 = vmatprep.subr.bf16.mxu0 0
      %1551 = vmatpush1.bf16.msra.mxu0 0
      %1552 = vmatprep.subr.bf16.mxu0 0
      %1553 = vmatpush1.bf16.msra.mxu0 0
      %1554 = vmatprep.subr.bf16.mxu0 0
      %1555 = vmatpush1.bf16.msra.mxu0 0
      %1556 = vmatprep.subr.bf16.mxu0 0
      %1557 = vmatpush1.bf16.msra.mxu0 0
      %1558 = vmatprep.subr.bf16.mxu0 0
      %1559 = vmatpush1.bf16.msra.mxu0 0
      %1560 = vmatprep.subr.bf16.mxu0 0
      %1561 = vmatpush1.bf16.msra.mxu0 0
      %1562 = vmatprep.subr.bf16.mxu0 0
      %1563 = vmatpush1.bf16.msra.mxu0 0
      %1564 = vmatprep.subr.bf16.mxu0 0
      %1565 = vmatpush1.bf16.msra.mxu0 0
      %1566 = vmatprep.subr.bf16.mxu0 0
      %1567 = vmatpush1.bf16.msra.mxu0 0
      %1568 = vmatprep.subr.bf16.mxu0 0
      %1569 = vmatpush1.bf16.msra.mxu0 0
      %1570 = vmatprep.subr.bf16.mxu0 0
      %1571 = vmatpush1.bf16.msra.mxu0 0
      %1572 = vmatprep.mubr.bf16.mxu0 0
      %1573 = vmatmul.mubr.bf16.gmra.mrb[0].mxu0 %v832
      %v1574 = vpop.f32.mrb[0].mxu0
      %v1575 = vadd.f32 %v1514, %v1574
      %v1576 = vpop.f32.mrb[0].mxu0
      %v1577 = vpop.f32.mrb[0].mxu0
      %v1578 = vadd.f32 %v1514, %v1577
      %v1579 = vpop.f32.mrb[0].mxu0
      %1580 = vmatprep.mubr.bf16.mxu0 0
      %1581 = vmatmul.mubr.bf16.gmra.mrb[0].mxu0 %v835
      %v1582 = vpop.f32.mrb[0].mxu0
      %v1583 = vadd.f32 %v1514, %v1582
      %v1584 = vpop.f32.mrb[0].mxu0
      %v1585 = vpop.f32.mrb[0].mxu0
      %v1586 = vadd.f32 %v1514, %v1585
      %v1587 = vpop.f32.mrb[0].mxu0
      %1588 = vmatprep.mubr.bf16.mxu0 0
      %1589 = vmatmul.mubr.bf16.gmra.mrb[0].mxu0 %v838
      %v1590 = vpop.f32.mrb[0].mxu0
      %v1591 = vadd.f32 %v1514, %v1590
      %v1592 = vpop.f32.mrb[0].mxu0
      %v1593 = vpop.f32.mrb[0].mxu0
      %v1594 = vadd.f32 %v1514, %v1593
      %v1595 = vpop.f32.mrb[0].mxu0
      %1596 = vmatprep.mubr.bf16.mxu0 0
      %1597 = vmatmul.mubr.bf16.gmra.mrb[0].mxu0 %v841
      %v1598 = vpop.f32.mrb[0].mxu0
      %v1599 = vadd.f32 %v1514, %v1598
      %v1600 = vpop.f32.mrb[0].mxu0
      %v1601 = vpop.f32.mrb[0].mxu0
      %v1602 = vpop.f32.mrb[0].mxu0
      %1603 = vdwg.mxu0
      %s1604 = scalar_lea.vmem %s595, 288
      %v1605 = vld [vmem:[%s1604] sm:$0xf]
      %v1606 = vld [vmem:[%s1604 + $0x4] sm:$0xf]
      %v1607 = vld [vmem:[%s1604 + $0x8] sm:$0xf]
      %v1608 = vld [vmem:[%s1604 + $0xc] sm:$0xf]
      %v1609 = vld [vmem:[%s1604 + $0x10] sm:$0xf]
      %v1610 = vld [vmem:[%s1604 + $0x14] sm:$0xf]
      %v1611 = vld [vmem:[%s1604 + $0x18] sm:$0xf]
      %v1612 = vld [vmem:[%s1604 + $0x1c] sm:$0xf]
      %s1613 = scalar_lea.vmem %s599, 9
      %v1614 = vld [vmem:[%s1613] sm:$0x1]
      %v1616 = vlaneseq
      %v1617 = vshrl.u32 %v1616, 7
      %v1618 = vsub.s32 0, %v1617
      %v1619 = vrot.slane %v1614, %v1618
      %v1629 = vunpack.c.l.b16 %v1605
      %v1630 = vunpack.c.l.b16 %v1606
      %v1631 = vunpack.c.l.b16 %v1607
      %v1632 = vunpack.c.l.b16 %v1608
      %v1633 = vunpack.c.l.b16 %v1609
      %v1634 = vunpack.c.l.b16 %v1610
      %v1635 = vunpack.c.l.b16 %v1611
      %v1636 = vunpack.c.l.b16 %v1612
      %v1637 = vpack.c.b16 %v1630, %v1629
      %v1638 = vpack.c.b16 %v1632, %v1631
      %v1639 = vpack.c.b16 %v1634, %v1633
      %v1640 = vpack.c.b16 %v1636, %v1635
      %1645 = vmatprep.subr.bf16.mxu0 0
      %1646 = vmatpush1.bf16.msra.mxu0 %v1637
      %1647 = vmatprep.subr.bf16.mxu0 0
      %1648 = vmatpush1.bf16.msra.mxu0 %v1638
      %1649 = vmatprep.subr.bf16.mxu0 0
      %1650 = vmatpush1.bf16.msra.mxu0 %v1639
      %1651 = vmatprep.subr.bf16.mxu0 0
      %1652 = vmatpush1.bf16.msra.mxu0 %v1640
      %1653 = vmatprep.subr.bf16.mxu0 0
      %1654 = vmatpush1.bf16.msra.mxu0 0
      %1655 = vmatprep.subr.bf16.mxu0 0
      %1656 = vmatpush1.bf16.msra.mxu0 0
      %1657 = vmatprep.subr.bf16.mxu0 0
      %1658 = vmatpush1.bf16.msra.mxu0 0
      %1659 = vmatprep.subr.bf16.mxu0 0
      %1660 = vmatpush1.bf16.msra.mxu0 0
      %1661 = vmatprep.subr.bf16.mxu0 0
      %1662 = vmatpush1.bf16.msra.mxu0 0
      %1663 = vmatprep.subr.bf16.mxu0 0
      %1664 = vmatpush1.bf16.msra.mxu0 0
      %1665 = vmatprep.subr.bf16.mxu0 0
      %1666 = vmatpush1.bf16.msra.mxu0 0
      %1667 = vmatprep.subr.bf16.mxu0 0
      %1668 = vmatpush1.bf16.msra.mxu0 0
      %1669 = vmatprep.subr.bf16.mxu0 0
      %1670 = vmatpush1.bf16.msra.mxu0 0
      %1671 = vmatprep.subr.bf16.mxu0 0
      %1672 = vmatpush1.bf16.msra.mxu0 0
      %1673 = vmatprep.subr.bf16.mxu0 0
      %1674 = vmatpush1.bf16.msra.mxu0 0
      %1675 = vmatprep.subr.bf16.mxu0 0
      %1676 = vmatpush1.bf16.msra.mxu0 0
      %1677 = vmatprep.mubr.bf16.mxu0 0
      %1678 = vmatmul.mubr.bf16.gmra.mrb[0].mxu0 %v832
      %v1679 = vpop.f32.mrb[0].mxu0
      %v1680 = vadd.f32 %v1619, %v1679
      %v1681 = vpop.f32.mrb[0].mxu0
      %v1682 = vpop.f32.mrb[0].mxu0
      %v1683 = vadd.f32 %v1619, %v1682
      %v1684 = vpop.f32.mrb[0].mxu0
      %1685 = vmatprep.mubr.bf16.mxu0 0
      %1686 = vmatmul.mubr.bf16.gmra.mrb[0].mxu0 %v835
      %v1687 = vpop.f32.mrb[0].mxu0
      %v1688 = vadd.f32 %v1619, %v1687
      %v1689 = vpop.f32.mrb[0].mxu0
      %v1690 = vpop.f32.mrb[0].mxu0
      %v1691 = vadd.f32 %v1619, %v1690
      %v1692 = vpop.f32.mrb[0].mxu0
      %1693 = vmatprep.mubr.bf16.mxu0 0
      %1694 = vmatmul.mubr.bf16.gmra.mrb[0].mxu0 %v838
      %v1695 = vpop.f32.mrb[0].mxu0
      %v1696 = vadd.f32 %v1619, %v1695
      %v1697 = vpop.f32.mrb[0].mxu0
      %v1698 = vpop.f32.mrb[0].mxu0
      %v1699 = vadd.f32 %v1619, %v1698
      %v1700 = vpop.f32.mrb[0].mxu0
      %1701 = vmatprep.mubr.bf16.mxu0 0
      %1702 = vmatmul.mubr.bf16.gmra.mrb[0].mxu0 %v841
      %v1703 = vpop.f32.mrb[0].mxu0
      %v1704 = vadd.f32 %v1619, %v1703
      %v1705 = vpop.f32.mrb[0].mxu0
      %v1706 = vpop.f32.mrb[0].mxu0
      %v1707 = vpop.f32.mrb[0].mxu0
      %1708 = vdwg.mxu0
      %v1709 = vmul.f32 %v1470, 0.25
      %v1710 = vmul.f32 %v1473, 0.25
      %v1711 = vmul.f32 %v1478, 0.25
      %v1712 = vmul.f32 %v1481, 0.25
      %v1713 = vmul.f32 %v1486, 0.25
      %v1714 = vmul.f32 %v1489, 0.25
      %v1715 = vmul.f32 %v1494, 0.25
      %v1716 = vpack.c.bf16 %v1710, %v1709
      %v1717 = vpack.c.bf16 %v1712, %v1711
      %v1718 = vpack.c.bf16 %v1714, %v1713
      %v1719 = vpack.c.bf16 %v1715, %v1715
      %v1720 = vpack.c.bf16 %v1578, %v1575
      %v1721 = vpack.c.bf16 %v1586, %v1583
      %v1722 = vpack.c.bf16 %v1594, %v1591
      %v1723 = vpack.c.bf16 %v1599, %v1599
      %v1725 = vsel %vm1132, %v1716, 0
      %v1728 = vsel %vm1132, %v1717, 0
      %v1731 = vsel %vm1132, %v1718, 0
      %v1734 = vsel %vm1132, %v1719, 0
      %v1737 = vsel %vm1132, %v1720, 0
      %v1740 = vsel %vm1132, %v1721, 0
      %v1743 = vsel %vm1132, %v1722, 0
      %v1746 = vsel %vm1132, %v1723, 0
      %1748 = vmatprep.subr.bf16.mxu0 0
      %1749 = vmatpush1.bf16.xpose.msra.mxu0 %v1737
      %1750 = vmatprep.subr.bf16.mxu0 0
      %1751 = vmatpush1.bf16.xpose.msra.mxu0 %v1740
      %1752 = vmatprep.subr.bf16.mxu0 0
      %1753 = vmatpush1.bf16.xpose.msra.mxu0 %v1743
      %1754 = vmatprep.subr.bf16.mxu0 0
      %1755 = vmatpush1.bf16.xpose.msra.mxu0 %v1746
      %1756 = vmatprep.subr.bf16.mxu0 0
      %1757 = vmatpush1.bf16.xpose.msra.mxu0 0
      %1758 = vmatprep.subr.bf16.mxu0 0
      %1759 = vmatpush1.bf16.xpose.msra.mxu0 0
      %1760 = vmatprep.subr.bf16.mxu0 0
      %1761 = vmatpush1.bf16.xpose.msra.mxu0 0
      %1762 = vmatprep.subr.bf16.mxu0 0
      %1763 = vmatpush1.bf16.xpose.msra.mxu0 0
      %1764 = vmatprep.subr.bf16.mxu0 0
      %1765 = vmatpush1.bf16.xpose.msra.mxu0 0
      %1766 = vmatprep.subr.bf16.mxu0 0
      %1767 = vmatpush1.bf16.xpose.msra.mxu0 0
      %1768 = vmatprep.subr.bf16.mxu0 0
      %1769 = vmatpush1.bf16.xpose.msra.mxu0 0
      %1770 = vmatprep.subr.bf16.mxu0 0
      %1771 = vmatpush1.bf16.xpose.msra.mxu0 0
      %1772 = vmatprep.subr.bf16.mxu0 0
      %1773 = vmatpush1.bf16.xpose.msra.mxu0 0
      %1774 = vmatprep.subr.bf16.mxu0 0
      %1775 = vmatpush1.bf16.xpose.msra.mxu0 0
      %1776 = vmatprep.subr.bf16.mxu0 0
      %1777 = vmatpush1.bf16.xpose.msra.mxu0 0
      %1778 = vmatprep.subr.bf16.mxu0 0
      %1779 = vmatpush1.bf16.xpose.msra.mxu0 0
      %1780 = vmatprep.mubr.bf16.mxu0 0
      %1781 = vmatmul.mubr.bf16.gmra.mrb[0].mxu0 %v1725
      %v1782 = vpop.f32.mrb[0].mxu0
      %v1783 = vadd.f32 %v659, %v1782
      %v1784 = vpop.f32.mrb[0].mxu0
      %v1785 = vpop.f32.mrb[0].mxu0
      %v1786 = vadd.f32 %v660, %v1785
      %v1787 = vpop.f32.mrb[0].mxu0
      %1788 = vmatprep.mubr.bf16.mxu0 0
      %1789 = vmatmul.mubr.bf16.gmra.mrb[0].mxu0 %v1728
      %v1790 = vpop.f32.mrb[0].mxu0
      %v1791 = vadd.f32 %v661, %v1790
      %v1792 = vpop.f32.mrb[0].mxu0
      %v1793 = vpop.f32.mrb[0].mxu0
      %v1794 = vadd.f32 %v662, %v1793
      %v1795 = vpop.f32.mrb[0].mxu0
      %1796 = vmatprep.mubr.bf16.mxu0 0
      %1797 = vmatmul.mubr.bf16.gmra.mrb[0].mxu0 %v1731
      %v1798 = vpop.f32.mrb[0].mxu0
      %v1799 = vadd.f32 %v663, %v1798
      %v1800 = vpop.f32.mrb[0].mxu0
      %v1801 = vpop.f32.mrb[0].mxu0
      %v1802 = vadd.f32 %v664, %v1801
      %v1803 = vpop.f32.mrb[0].mxu0
      %1804 = vmatprep.mubr.bf16.mxu0 0
      %1805 = vmatmul.mubr.bf16.gmra.mrb[0].mxu0 %v1734
      %v1806 = vpop.f32.mrb[0].mxu0
      %v1807 = vadd.f32 %v665, %v1806
      %v1808 = vpop.f32.mrb[0].mxu0
      %v1809 = vpop.f32.mrb[0].mxu0
      %v1810 = vpop.f32.mrb[0].mxu0
      %1811 = vdwg.mxu0
      %v1812 = vsel %vm1221, %v1783, -inf
      %1813 = vmax.xlane.f32.xlu0 %v1812
      %v1814 = vpop.xlane.xlu0 %1813
      %v1815 = vsel %vm1221, %v1786, -inf
      %1816 = vmax.xlane.f32.xlu0 %v1815
      %v1817 = vpop.xlane.xlu0 %1816
      %v1818 = vsel %vm1221, %v1791, -inf
      %1819 = vmax.xlane.f32.xlu0 %v1818
      %v1820 = vpop.xlane.xlu0 %1819
      %v1821 = vsel %vm1221, %v1794, -inf
      %1822 = vmax.xlane.f32.xlu0 %v1821
      %v1823 = vpop.xlane.xlu0 %1822
      %v1824 = vsel %vm1221, %v1799, -inf
      %1825 = vmax.xlane.f32.xlu0 %v1824
      %v1826 = vpop.xlane.xlu0 %1825
      %v1827 = vsel %vm1221, %v1802, -inf
      %1828 = vmax.xlane.f32.xlu0 %v1827
      %v1829 = vpop.xlane.xlu0 %1828
      %v1830 = vsel %vm1240, %v1807, -inf
      %1831 = vmax.xlane.f32.xlu0 %v1830
      %v1832 = vpop.xlane.xlu0 %1831
      %v1833 = vsub.f32 %v1783, %v1814
      %v1834 = vsub.f32 %v1786, %v1817
      %v1835 = vsub.f32 %v1791, %v1820
      %v1836 = vsub.f32 %v1794, %v1823
      %v1837 = vsub.f32 %v1799, %v1826
      %v1838 = vsub.f32 %v1802, %v1829
      %v1839 = vsub.f32 %v1807, %v1832
      %v1840 = vmul.f32 %v1833, 1.442695
      %v1841 = vpow.pop %v1840
      %v1842 = vmul.f32 %v1834, 1.442695
      %v1843 = vpow.pop %v1842
      %v1844 = vmul.f32 %v1835, 1.442695
      %v1845 = vpow.pop %v1844
      %v1846 = vmul.f32 %v1836, 1.442695
      %v1847 = vpow.pop %v1846
      %v1848 = vmul.f32 %v1837, 1.442695
      %v1849 = vpow.pop %v1848
      %v1850 = vmul.f32 %v1838, 1.442695
      %v1851 = vpow.pop %v1850
      %v1852 = vmul.f32 %v1839, 1.442695
      %v1853 = vpow.pop %v1852
      %v1854 = vsel %vm1221, %v1841, 0.0
      %1855 = vadd.xlane.f32.xlu0 %v1854
      %v1856 = vpop.xlane.xlu0 %1855
      %v1857 = vsel %vm1221, %v1843, 0.0
      %1858 = vadd.xlane.f32.xlu0 %v1857
      %v1859 = vpop.xlane.xlu0 %1858
      %v1860 = vsel %vm1221, %v1845, 0.0
      %1861 = vadd.xlane.f32.xlu0 %v1860
      %v1862 = vpop.xlane.xlu0 %1861
      %v1863 = vsel %vm1221, %v1847, 0.0
      %1864 = vadd.xlane.f32.xlu0 %v1863
      %v1865 = vpop.xlane.xlu0 %1864
      %v1866 = vsel %vm1221, %v1849, 0.0
      %1867 = vadd.xlane.f32.xlu0 %v1866
      %v1868 = vpop.xlane.xlu0 %1867
      %v1869 = vsel %vm1221, %v1851, 0.0
      %1870 = vadd.xlane.f32.xlu0 %v1869
      %v1871 = vpop.xlane.xlu0 %1870
      %v1872 = vsel %vm1240, %v1853, 0.0
      %1873 = vadd.xlane.f32.xlu0 %v1872
      %v1874 = vpop.xlane.xlu0 %1873
      %v1875 = vrcp.pop %v1856
      %v1876 = vrcp.pop %v1859
      %v1877 = vrcp.pop %v1862
      %v1878 = vrcp.pop %v1865
      %v1879 = vrcp.pop %v1868
      %v1880 = vrcp.pop %v1871
      %v1881 = vrcp.pop %v1874
      %v1882 = vmul.f32 %v1841, %v1875
      %v1883 = vmul.f32 %v1843, %v1876
      %v1884 = vmul.f32 %v1845, %v1877
      %v1885 = vmul.f32 %v1847, %v1878
      %v1886 = vmul.f32 %v1849, %v1879
      %v1887 = vmul.f32 %v1851, %v1880
      %v1888 = vmul.f32 %v1853, %v1881
      %v1889 = vpack.c.bf16 %v1883, %v1882
      %v1890 = vpack.c.bf16 %v1885, %v1884
      %v1891 = vpack.c.bf16 %v1887, %v1886
      %v1892 = vpack.c.bf16 %v1888, %v1888
      %v1893 = vpack.c.bf16 %v1683, %v1680
      %v1894 = vpack.c.bf16 %v1691, %v1688
      %v1895 = vpack.c.bf16 %v1699, %v1696
      %v1896 = vpack.c.bf16 %v1704, %v1704
      %v1898 = vsel %vm1221, %v1889, 0
      %v1901 = vsel %vm1221, %v1890, 0
      %v1904 = vsel %vm1221, %v1891, 0
      %v1907 = vsel %vm1221, %v1892, 0
      %v1910 = vsel %vm1320, %v1896, 0
      %1912 = vmatprep.subr.bf16.mxu0 0
      %1913 = vmatpush1.bf16.msra.mxu0 %v1893
      %1914 = vmatprep.subr.bf16.mxu0 0
      %1915 = vmatpush1.bf16.msra.mxu0 %v1894
      %1916 = vmatprep.subr.bf16.mxu0 0
      %1917 = vmatpush1.bf16.msra.mxu0 %v1895
      %1918 = vmatprep.subr.bf16.mxu0 0
      %1919 = vmatpush1.bf16.msra.mxu0 %v1910
      %1920 = vmatprep.subr.bf16.mxu0 0
      %1921 = vmatpush1.bf16.msra.mxu0 0
      %1922 = vmatprep.subr.bf16.mxu0 0
      %1923 = vmatpush1.bf16.msra.mxu0 0
      %1924 = vmatprep.subr.bf16.mxu0 0
      %1925 = vmatpush1.bf16.msra.mxu0 0
      %1926 = vmatprep.subr.bf16.mxu0 0
      %1927 = vmatpush1.bf16.msra.mxu0 0
      %1928 = vmatprep.subr.bf16.mxu0 0
      %1929 = vmatpush1.bf16.msra.mxu0 0
      %1930 = vmatprep.subr.bf16.mxu0 0
      %1931 = vmatpush1.bf16.msra.mxu0 0
      %1932 = vmatprep.subr.bf16.mxu0 0
      %1933 = vmatpush1.bf16.msra.mxu0 0
      %1934 = vmatprep.subr.bf16.mxu0 0
      %1935 = vmatpush1.bf16.msra.mxu0 0
      %1936 = vmatprep.subr.bf16.mxu0 0
      %1937 = vmatpush1.bf16.msra.mxu0 0
      %1938 = vmatprep.subr.bf16.mxu0 0
      %1939 = vmatpush1.bf16.msra.mxu0 0
      %1940 = vmatprep.subr.bf16.mxu0 0
      %1941 = vmatpush1.bf16.msra.mxu0 0
      %1942 = vmatprep.subr.bf16.mxu0 0
      %1943 = vmatpush1.bf16.msra.mxu0 0
      %1944 = vmatprep.mubr.bf16.mxu0 0
      %1945 = vmatmul.mubr.bf16.gmra.mrb[0].mxu0 %v1898
      %v1946 = vpop.f32.mrb[0].mxu0
      %v1947 = vadd.f32 0.0, %v1946
      %v1948 = vpop.f32.mrb[0].mxu0
      %v1949 = vpop.f32.mrb[0].mxu0
      %v1950 = vadd.f32 0.0, %v1949
      %v1951 = vpop.f32.mrb[0].mxu0
      %1952 = vmatprep.mubr.bf16.mxu0 0
      %1953 = vmatmul.mubr.bf16.gmra.mrb[0].mxu0 %v1901
      %v1954 = vpop.f32.mrb[0].mxu0
      %v1955 = vadd.f32 0.0, %v1954
      %v1956 = vpop.f32.mrb[0].mxu0
      %v1957 = vpop.f32.mrb[0].mxu0
      %v1958 = vadd.f32 0.0, %v1957
      %v1959 = vpop.f32.mrb[0].mxu0
      %1960 = vmatprep.mubr.bf16.mxu0 0
      %1961 = vmatmul.mubr.bf16.gmra.mrb[0].mxu0 %v1904
      %v1962 = vpop.f32.mrb[0].mxu0
      %v1963 = vadd.f32 0.0, %v1962
      %v1964 = vpop.f32.mrb[0].mxu0
      %v1965 = vpop.f32.mrb[0].mxu0
      %v1966 = vadd.f32 0.0, %v1965
      %v1967 = vpop.f32.mrb[0].mxu0
      %1968 = vmatprep.mubr.bf16.mxu0 0
      %1969 = vmatmul.mubr.bf16.gmra.mrb[0].mxu0 %v1907
      %v1970 = vpop.f32.mrb[0].mxu0
      %v1971 = vadd.f32 0.0, %v1970
      %v1972 = vpop.f32.mrb[0].mxu0
      %v1973 = vpop.f32.mrb[0].mxu0
      %v1974 = vpop.f32.mrb[0].mxu0
      %1975 = vdwg.mxu0
      %s1976 = scalar_lea.vmem %s604, 8
      %v1977 = vld [vmem:[%s1976] sm:$0xf]
      %v1978 = vld [vmem:[%s1976 + $0x4] sm:$0xf]
      %v1979 = vpack.c.bf16 %v1950, %v1947
      %v1980 = vpack.c.bf16 %v1958, %v1955
      %v1981 = vpack.c.bf16 %v1966, %v1963
      %v1982 = vpack.c.bf16 %v1971, %v1971
      %v1985 = vunpack.c.l.b16 %v1977
      %v1986 = vunpack.c.l.b16 %v1978
      %v1987 = vpack.c.b16 %v1986, %v1985
      %v1990 = vsel %vm1132, %v1979, 0
      %v1993 = vsel %vm1132, %v1980, 0
      %v1996 = vsel %vm1132, %v1981, 0
      %v1999 = vsel %vm1132, %v1982, 0
      %2001 = vmatprep.subr.bf16.mxu0 0
      %2002 = vmatpush1.bf16.msra.mxu0 %v1987
      %2003 = vmatprep.subr.bf16.mxu0 0
      %2004 = vmatpush1.bf16.msra.mxu0 0
      %2005 = vmatprep.subr.bf16.mxu0 0
      %2006 = vmatpush1.bf16.msra.mxu0 0
      %2007 = vmatprep.subr.bf16.mxu0 0
      %2008 = vmatpush1.bf16.msra.mxu0 0
      %2009 = vmatprep.subr.bf16.mxu0 0
      %2010 = vmatpush1.bf16.msra.mxu0 0
      %2011 = vmatprep.subr.bf16.mxu0 0
      %2012 = vmatpush1.bf16.msra.mxu0 0
      %2013 = vmatprep.subr.bf16.mxu0 0
      %2014 = vmatpush1.bf16.msra.mxu0 0
      %2015 = vmatprep.subr.bf16.mxu0 0
      %2016 = vmatpush1.bf16.msra.mxu0 0
      %2017 = vmatprep.subr.bf16.mxu0 0
      %2018 = vmatpush1.bf16.msra.mxu0 0
      %2019 = vmatprep.subr.bf16.mxu0 0
      %2020 = vmatpush1.bf16.msra.mxu0 0
      %2021 = vmatprep.subr.bf16.mxu0 0
      %2022 = vmatpush1.bf16.msra.mxu0 0
      %2023 = vmatprep.subr.bf16.mxu0 0
      %2024 = vmatpush1.bf16.msra.mxu0 0
      %2025 = vmatprep.subr.bf16.mxu0 0
      %2026 = vmatpush1.bf16.msra.mxu0 0
      %2027 = vmatprep.subr.bf16.mxu0 0
      %2028 = vmatpush1.bf16.msra.mxu0 0
      %2029 = vmatprep.subr.bf16.mxu0 0
      %2030 = vmatpush1.bf16.msra.mxu0 0
      %2031 = vmatprep.subr.bf16.mxu0 0
      %2032 = vmatpush1.bf16.msra.mxu0 0
      %2033 = vmatprep.mubr.bf16.mxu0 0
      %2034 = vmatmul.mubr.bf16.gmra.mrb[0].mxu0 %v1990
      %v2035 = vpop.f32.mrb[0].mxu0
      %v2036 = vadd.f32 0.0, %v2035
      %v2037 = vpop.f32.mrb[0].mxu0
      %v2038 = vpop.f32.mrb[0].mxu0
      %v2039 = vadd.f32 0.0, %v2038
      %v2040 = vpop.f32.mrb[0].mxu0
      %2041 = vmatprep.mubr.bf16.mxu0 0
      %2042 = vmatmul.mubr.bf16.gmra.mrb[0].mxu0 %v1993
      %v2043 = vpop.f32.mrb[0].mxu0
      %v2044 = vadd.f32 0.0, %v2043
      %v2045 = vpop.f32.mrb[0].mxu0
      %v2046 = vpop.f32.mrb[0].mxu0
      %v2047 = vadd.f32 0.0, %v2046
      %v2048 = vpop.f32.mrb[0].mxu0
      %2049 = vmatprep.mubr.bf16.mxu0 0
      %2050 = vmatmul.mubr.bf16.gmra.mrb[0].mxu0 %v1996
      %v2051 = vpop.f32.mrb[0].mxu0
      %v2052 = vadd.f32 0.0, %v2051
      %v2053 = vpop.f32.mrb[0].mxu0
      %v2054 = vpop.f32.mrb[0].mxu0
      %v2055 = vadd.f32 0.0, %v2054
      %v2056 = vpop.f32.mrb[0].mxu0
      %2057 = vmatprep.mubr.bf16.mxu0 0
      %2058 = vmatmul.mubr.bf16.gmra.mrb[0].mxu0 %v1999
      %v2059 = vpop.f32.mrb[0].mxu0
      %v2060 = vadd.f32 0.0, %v2059
      %v2061 = vpop.f32.mrb[0].mxu0
      %v2062 = vpop.f32.mrb[0].mxu0
      %v2063 = vpop.f32.mrb[0].mxu0
      %2064 = vdwg.mxu0
      %v2067 = vunpack.c.l.b16 %v1388
      %v2068 = vunpack.c.l.b16 %v1389
      %v2069 = vpack.c.b16 %v2068, %v2067
      %v2072 = vsel %vm1132, %v1390, 0
      %v2075 = vsel %vm1132, %v1391, 0
      %v2078 = vsel %vm1132, %v1392, 0
      %v2081 = vsel %vm1132, %v1393, 0
      %2083 = vmatprep.subr.bf16.mxu0 0
      %2084 = vmatpush1.bf16.msra.mxu0 %v2069
      %2085 = vmatprep.subr.bf16.mxu0 0
      %2086 = vmatpush1.bf16.msra.mxu0 0
      %2087 = vmatprep.subr.bf16.mxu0 0
      %2088 = vmatpush1.bf16.msra.mxu0 0
      %2089 = vmatprep.subr.bf16.mxu0 0
      %2090 = vmatpush1.bf16.msra.mxu0 0
      %2091 = vmatprep.subr.bf16.mxu0 0
      %2092 = vmatpush1.bf16.msra.mxu0 0
      %2093 = vmatprep.subr.bf16.mxu0 0
      %2094 = vmatpush1.bf16.msra.mxu0 0
      %2095 = vmatprep.subr.bf16.mxu0 0
      %2096 = vmatpush1.bf16.msra.mxu0 0
      %2097 = vmatprep.subr.bf16.mxu0 0
      %2098 = vmatpush1.bf16.msra.mxu0 0
      %2099 = vmatprep.subr.bf16.mxu0 0
      %2100 = vmatpush1.bf16.msra.mxu0 0
      %2101 = vmatprep.subr.bf16.mxu0 0
      %2102 = vmatpush1.bf16.msra.mxu0 0
      %2103 = vmatprep.subr.bf16.mxu0 0
      %2104 = vmatpush1.bf16.msra.mxu0 0
      %2105 = vmatprep.subr.bf16.mxu0 0
      %2106 = vmatpush1.bf16.msra.mxu0 0
      %2107 = vmatprep.subr.bf16.mxu0 0
      %2108 = vmatpush1.bf16.msra.mxu0 0
      %2109 = vmatprep.subr.bf16.mxu0 0
      %2110 = vmatpush1.bf16.msra.mxu0 0
      %2111 = vmatprep.subr.bf16.mxu0 0
      %2112 = vmatpush1.bf16.msra.mxu0 0
      %2113 = vmatprep.subr.bf16.mxu0 0
      %2114 = vmatpush1.bf16.msra.mxu0 0
      %2115 = vmatprep.mubr.bf16.mxu0 0
      %2116 = vmatmul.mubr.bf16.gmra.mrb[0].mxu0 %v2072
      %v2117 = vpop.f32.mrb[0].mxu0
      %v2118 = vadd.f32 %v2036, %v2117
      %v2119 = vpop.f32.mrb[0].mxu0
      %v2120 = vpop.f32.mrb[0].mxu0
      %v2121 = vadd.f32 %v2039, %v2120
      %v2122 = vpop.f32.mrb[0].mxu0
      %2123 = vmatprep.mubr.bf16.mxu0 0
      %2124 = vmatmul.mubr.bf16.gmra.mrb[0].mxu0 %v2075
      %v2125 = vpop.f32.mrb[0].mxu0
      %v2126 = vadd.f32 %v2044, %v2125
      %v2127 = vpop.f32.mrb[0].mxu0
      %v2128 = vpop.f32.mrb[0].mxu0
      %v2129 = vadd.f32 %v2047, %v2128
      %v2130 = vpop.f32.mrb[0].mxu0
      %2131 = vmatprep.mubr.bf16.mxu0 0
      %2132 = vmatmul.mubr.bf16.gmra.mrb[0].mxu0 %v2078
      %v2133 = vpop.f32.mrb[0].mxu0
      %v2134 = vadd.f32 %v2052, %v2133
      %v2135 = vpop.f32.mrb[0].mxu0
      %v2136 = vpop.f32.mrb[0].mxu0
      %v2137 = vadd.f32 %v2055, %v2136
      %v2138 = vpop.f32.mrb[0].mxu0
      %2139 = vmatprep.mubr.bf16.mxu0 0
      %2140 = vmatmul.mubr.bf16.gmra.mrb[0].mxu0 %v2081
      %v2141 = vpop.f32.mrb[0].mxu0
      %v2142 = vadd.f32 %v2060, %v2141
      %v2143 = vpop.f32.mrb[0].mxu0
      %v2144 = vpop.f32.mrb[0].mxu0
      %v2145 = vpop.f32.mrb[0].mxu0
      %2146 = vdwg.mxu0
      %s2147 = scalar_lea.vmem %s595, 64
      %v2148 = vld [vmem:[%s2147] sm:$0xf]
      %v2149 = vld [vmem:[%s2147 + $0x4] sm:$0xf]
      %v2150 = vld [vmem:[%s2147 + $0x8] sm:$0xf]
      %v2151 = vld [vmem:[%s2147 + $0xc] sm:$0xf]
      %v2152 = vld [vmem:[%s2147 + $0x10] sm:$0xf]
      %v2153 = vld [vmem:[%s2147 + $0x14] sm:$0xf]
      %v2154 = vld [vmem:[%s2147 + $0x18] sm:$0xf]
      %v2155 = vld [vmem:[%s2147 + $0x1c] sm:$0xf]
      %s2156 = scalar_lea.vmem %s599, 2
      %v2157 = vld [vmem:[%s2156] sm:$0x1]
      %v2159 = vlaneseq
      %v2160 = vshrl.u32 %v2159, 7
      %v2161 = vsub.s32 0, %v2160
      %v2162 = vrot.slane %v2157, %v2161
      %v2172 = vunpack.c.l.b16 %v2148
      %v2173 = vunpack.c.l.b16 %v2149
      %v2174 = vunpack.c.l.b16 %v2150
      %v2175 = vunpack.c.l.b16 %v2151
      %v2176 = vunpack.c.l.b16 %v2152
      %v2177 = vunpack.c.l.b16 %v2153
      %v2178 = vunpack.c.l.b16 %v2154
      %v2179 = vunpack.c.l.b16 %v2155
      %v2180 = vpack.c.b16 %v2173, %v2172
      %v2181 = vpack.c.b16 %v2175, %v2174
      %v2182 = vpack.c.b16 %v2177, %v2176
      %v2183 = vpack.c.b16 %v2179, %v2178
      %2188 = vmatprep.subr.bf16.mxu0 0
      %2189 = vmatpush1.bf16.msra.mxu0 %v2180
      %2190 = vmatprep.subr.bf16.mxu0 0
      %2191 = vmatpush1.bf16.msra.mxu0 %v2181
      %2192 = vmatprep.subr.bf16.mxu0 0
      %2193 = vmatpush1.bf16.msra.mxu0 %v2182
      %2194 = vmatprep.subr.bf16.mxu0 0
      %2195 = vmatpush1.bf16.msra.mxu0 %v2183
      %2196 = vmatprep.subr.bf16.mxu0 0
      %2197 = vmatpush1.bf16.msra.mxu0 0
      %2198 = vmatprep.subr.bf16.mxu0 0
      %2199 = vmatpush1.bf16.msra.mxu0 0
      %2200 = vmatprep.subr.bf16.mxu0 0
      %2201 = vmatpush1.bf16.msra.mxu0 0
      %2202 = vmatprep.subr.bf16.mxu0 0
      %2203 = vmatpush1.bf16.msra.mxu0 0
      %2204 = vmatprep.subr.bf16.mxu0 0
      %2205 = vmatpush1.bf16.msra.mxu0 0
      %2206 = vmatprep.subr.bf16.mxu0 0
      %2207 = vmatpush1.bf16.msra.mxu0 0
      %2208 = vmatprep.subr.bf16.mxu0 0
      %2209 = vmatpush1.bf16.msra.mxu0 0
      %2210 = vmatprep.subr.bf16.mxu0 0
      %2211 = vmatpush1.bf16.msra.mxu0 0
      %2212 = vmatprep.subr.bf16.mxu0 0
      %2213 = vmatpush1.bf16.msra.mxu0 0
      %2214 = vmatprep.subr.bf16.mxu0 0
      %2215 = vmatpush1.bf16.msra.mxu0 0
      %2216 = vmatprep.subr.bf16.mxu0 0
      %2217 = vmatpush1.bf16.msra.mxu0 0
      %2218 = vmatprep.subr.bf16.mxu0 0
      %2219 = vmatpush1.bf16.msra.mxu0 0
      %2220 = vmatprep.mubr.bf16.mxu0 0
      %2221 = vmatmul.mubr.bf16.gmra.mrb[0].mxu0 %v832
      %v2222 = vpop.f32.mrb[0].mxu0
      %v2223 = vadd.f32 %v2162, %v2222
      %v2224 = vpop.f32.mrb[0].mxu0
      %v2225 = vpop.f32.mrb[0].mxu0
      %v2226 = vadd.f32 %v2162, %v2225
      %v2227 = vpop.f32.mrb[0].mxu0
      %2228 = vmatprep.mubr.bf16.mxu0 0
      %2229 = vmatmul.mubr.bf16.gmra.mrb[0].mxu0 %v835
      %v2230 = vpop.f32.mrb[0].mxu0
      %v2231 = vadd.f32 %v2162, %v2230
      %v2232 = vpop.f32.mrb[0].mxu0
      %v2233 = vpop.f32.mrb[0].mxu0
      %v2234 = vadd.f32 %v2162, %v2233
      %v2235 = vpop.f32.mrb[0].mxu0
      %2236 = vmatprep.mubr.bf16.mxu0 0
      %2237 = vmatmul.mubr.bf16.gmra.mrb[0].mxu0 %v838
      %v2238 = vpop.f32.mrb[0].mxu0
      %v2239 = vadd.f32 %v2162, %v2238
      %v2240 = vpop.f32.mrb[0].mxu0
      %v2241 = vpop.f32.mrb[0].mxu0
      %v2242 = vadd.f32 %v2162, %v2241
      %v2243 = vpop.f32.mrb[0].mxu0
      %2244 = vmatprep.mubr.bf16.mxu0 0
      %2245 = vmatmul.mubr.bf16.gmra.mrb[0].mxu0 %v841
      %v2246 = vpop.f32.mrb[0].mxu0
      %v2247 = vadd.f32 %v2162, %v2246
      %v2248 = vpop.f32.mrb[0].mxu0
      %v2249 = vpop.f32.mrb[0].mxu0
      %v2250 = vpop.f32.mrb[0].mxu0
      %2251 = vdwg.mxu0
      %s2252 = scalar_lea.vmem %s595, 192
      %v2253 = vld [vmem:[%s2252] sm:$0xf]
      %v2254 = vld [vmem:[%s2252 + $0x4] sm:$0xf]
      %v2255 = vld [vmem:[%s2252 + $0x8] sm:$0xf]
      %v2256 = vld [vmem:[%s2252 + $0xc] sm:$0xf]
      %v2257 = vld [vmem:[%s2252 + $0x10] sm:$0xf]
      %v2258 = vld [vmem:[%s2252 + $0x14] sm:$0xf]
      %v2259 = vld [vmem:[%s2252 + $0x18] sm:$0xf]
      %v2260 = vld [vmem:[%s2252 + $0x1c] sm:$0xf]
      %s2261 = scalar_lea.vmem %s599, 6
      %v2262 = vld [vmem:[%s2261] sm:$0x1]
      %v2264 = vlaneseq
      %v2265 = vshrl.u32 %v2264, 7
      %v2266 = vsub.s32 0, %v2265
      %v2267 = vrot.slane %v2262, %v2266
      %v2277 = vunpack.c.l.b16 %v2253
      %v2278 = vunpack.c.l.b16 %v2254
      %v2279 = vunpack.c.l.b16 %v2255
      %v2280 = vunpack.c.l.b16 %v2256
      %v2281 = vunpack.c.l.b16 %v2257
      %v2282 = vunpack.c.l.b16 %v2258
      %v2283 = vunpack.c.l.b16 %v2259
      %v2284 = vunpack.c.l.b16 %v2260
      %v2285 = vpack.c.b16 %v2278, %v2277
      %v2286 = vpack.c.b16 %v2280, %v2279
      %v2287 = vpack.c.b16 %v2282, %v2281
      %v2288 = vpack.c.b16 %v2284, %v2283
      %2293 = vmatprep.subr.bf16.mxu0 0
      %2294 = vmatpush1.bf16.msra.mxu0 %v2285
      %2295 = vmatprep.subr.bf16.mxu0 0
      %2296 = vmatpush1.bf16.msra.mxu0 %v2286
      %2297 = vmatprep.subr.bf16.mxu0 0
      %2298 = vmatpush1.bf16.msra.mxu0 %v2287
      %2299 = vmatprep.subr.bf16.mxu0 0
      %2300 = vmatpush1.bf16.msra.mxu0 %v2288
      %2301 = vmatprep.subr.bf16.mxu0 0
      %2302 = vmatpush1.bf16.msra.mxu0 0
      %2303 = vmatprep.subr.bf16.mxu0 0
      %2304 = vmatpush1.bf16.msra.mxu0 0
      %2305 = vmatprep.subr.bf16.mxu0 0
      %2306 = vmatpush1.bf16.msra.mxu0 0
      %2307 = vmatprep.subr.bf16.mxu0 0
      %2308 = vmatpush1.bf16.msra.mxu0 0
      %2309 = vmatprep.subr.bf16.mxu0 0
      %2310 = vmatpush1.bf16.msra.mxu0 0
      %2311 = vmatprep.subr.bf16.mxu0 0
      %2312 = vmatpush1.bf16.msra.mxu0 0
      %2313 = vmatprep.subr.bf16.mxu0 0
      %2314 = vmatpush1.bf16.msra.mxu0 0
      %2315 = vmatprep.subr.bf16.mxu0 0
      %2316 = vmatpush1.bf16.msra.mxu0 0
      %2317 = vmatprep.subr.bf16.mxu0 0
      %2318 = vmatpush1.bf16.msra.mxu0 0
      %2319 = vmatprep.subr.bf16.mxu0 0
      %2320 = vmatpush1.bf16.msra.mxu0 0
      %2321 = vmatprep.subr.bf16.mxu0 0
      %2322 = vmatpush1.bf16.msra.mxu0 0
      %2323 = vmatprep.subr.bf16.mxu0 0
      %2324 = vmatpush1.bf16.msra.mxu0 0
      %2325 = vmatprep.mubr.bf16.mxu0 0
      %2326 = vmatmul.mubr.bf16.gmra.mrb[0].mxu0 %v832
      %v2327 = vpop.f32.mrb[0].mxu0
      %v2328 = vadd.f32 %v2267, %v2327
      %v2329 = vpop.f32.mrb[0].mxu0
      %v2330 = vpop.f32.mrb[0].mxu0
      %v2331 = vadd.f32 %v2267, %v2330
      %v2332 = vpop.f32.mrb[0].mxu0
      %2333 = vmatprep.mubr.bf16.mxu0 0
      %2334 = vmatmul.mubr.bf16.gmra.mrb[0].mxu0 %v835
      %v2335 = vpop.f32.mrb[0].mxu0
      %v2336 = vadd.f32 %v2267, %v2335
      %v2337 = vpop.f32.mrb[0].mxu0
      %v2338 = vpop.f32.mrb[0].mxu0
      %v2339 = vadd.f32 %v2267, %v2338
      %v2340 = vpop.f32.mrb[0].mxu0
      %2341 = vmatprep.mubr.bf16.mxu0 0
      %2342 = vmatmul.mubr.bf16.gmra.mrb[0].mxu0 %v838
      %v2343 = vpop.f32.mrb[0].mxu0
      %v2344 = vadd.f32 %v2267, %v2343
      %v2345 = vpop.f32.mrb[0].mxu0
      %v2346 = vpop.f32.mrb[0].mxu0
      %v2347 = vadd.f32 %v2267, %v2346
      %v2348 = vpop.f32.mrb[0].mxu0
      %2349 = vmatprep.mubr.bf16.mxu0 0
      %2350 = vmatmul.mubr.bf16.gmra.mrb[0].mxu0 %v841
      %v2351 = vpop.f32.mrb[0].mxu0
      %v2352 = vadd.f32 %v2267, %v2351
      %v2353 = vpop.f32.mrb[0].mxu0
      %v2354 = vpop.f32.mrb[0].mxu0
      %v2355 = vpop.f32.mrb[0].mxu0
      %2356 = vdwg.mxu0
      %s2357 = scalar_lea.vmem %s595, 320
      %v2358 = vld [vmem:[%s2357] sm:$0xf]
      %v2359 = vld [vmem:[%s2357 + $0x4] sm:$0xf]
      %v2360 = vld [vmem:[%s2357 + $0x8] sm:$0xf]
      %v2361 = vld [vmem:[%s2357 + $0xc] sm:$0xf]
      %v2362 = vld [vmem:[%s2357 + $0x10] sm:$0xf]
      %v2363 = vld [vmem:[%s2357 + $0x14] sm:$0xf]
      %v2364 = vld [vmem:[%s2357 + $0x18] sm:$0xf]
      %v2365 = vld [vmem:[%s2357 + $0x1c] sm:$0xf]
      %s2366 = scalar_lea.vmem %s599, 10
      %v2367 = vld [vmem:[%s2366] sm:$0x1]
      %v2369 = vlaneseq
      %v2370 = vshrl.u32 %v2369, 7
      %v2371 = vsub.s32 0, %v2370
      %v2372 = vrot.slane %v2367, %v2371
      %v2382 = vunpack.c.l.b16 %v2358
      %v2383 = vunpack.c.l.b16 %v2359
      %v2384 = vunpack.c.l.b16 %v2360
      %v2385 = vunpack.c.l.b16 %v2361
      %v2386 = vunpack.c.l.b16 %v2362
      %v2387 = vunpack.c.l.b16 %v2363
      %v2388 = vunpack.c.l.b16 %v2364
      %v2389 = vunpack.c.l.b16 %v2365
      %v2390 = vpack.c.b16 %v2383, %v2382
      %v2391 = vpack.c.b16 %v2385, %v2384
      %v2392 = vpack.c.b16 %v2387, %v2386
      %v2393 = vpack.c.b16 %v2389, %v2388
      %2398 = vmatprep.subr.bf16.mxu0 0
      %2399 = vmatpush1.bf16.msra.mxu0 %v2390
      %2400 = vmatprep.subr.bf16.mxu0 0
      %2401 = vmatpush1.bf16.msra.mxu0 %v2391
      %2402 = vmatprep.subr.bf16.mxu0 0
      %2403 = vmatpush1.bf16.msra.mxu0 %v2392
      %2404 = vmatprep.subr.bf16.mxu0 0
      %2405 = vmatpush1.bf16.msra.mxu0 %v2393
      %2406 = vmatprep.subr.bf16.mxu0 0
      %2407 = vmatpush1.bf16.msra.mxu0 0
      %2408 = vmatprep.subr.bf16.mxu0 0
      %2409 = vmatpush1.bf16.msra.mxu0 0
      %2410 = vmatprep.subr.bf16.mxu0 0
      %2411 = vmatpush1.bf16.msra.mxu0 0
      %2412 = vmatprep.subr.bf16.mxu0 0
      %2413 = vmatpush1.bf16.msra.mxu0 0
      %2414 = vmatprep.subr.bf16.mxu0 0
      %2415 = vmatpush1.bf16.msra.mxu0 0
      %2416 = vmatprep.subr.bf16.mxu0 0
      %2417 = vmatpush1.bf16.msra.mxu0 0
      %2418 = vmatprep.subr.bf16.mxu0 0
      %2419 = vmatpush1.bf16.msra.mxu0 0
      %2420 = vmatprep.subr.bf16.mxu0 0
      %2421 = vmatpush1.bf16.msra.mxu0 0
      %2422 = vmatprep.subr.bf16.mxu0 0
      %2423 = vmatpush1.bf16.msra.mxu0 0
      %2424 = vmatprep.subr.bf16.mxu0 0
      %2425 = vmatpush1.bf16.msra.mxu0 0
      %2426 = vmatprep.subr.bf16.mxu0 0
      %2427 = vmatpush1.bf16.msra.mxu0 0
      %2428 = vmatprep.subr.bf16.mxu0 0
      %2429 = vmatpush1.bf16.msra.mxu0 0
      %2430 = vmatprep.mubr.bf16.mxu0 0
      %2431 = vmatmul.mubr.bf16.gmra.mrb[0].mxu0 %v832
      %v2432 = vpop.f32.mrb[0].mxu0
      %v2433 = vadd.f32 %v2372, %v2432
      %v2434 = vpop.f32.mrb[0].mxu0
      %v2435 = vpop.f32.mrb[0].mxu0
      %v2436 = vadd.f32 %v2372, %v2435
      %v2437 = vpop.f32.mrb[0].mxu0
      %2438 = vmatprep.mubr.bf16.mxu0 0
      %2439 = vmatmul.mubr.bf16.gmra.mrb[0].mxu0 %v835
      %v2440 = vpop.f32.mrb[0].mxu0
      %v2441 = vadd.f32 %v2372, %v2440
      %v2442 = vpop.f32.mrb[0].mxu0
      %v2443 = vpop.f32.mrb[0].mxu0
      %v2444 = vadd.f32 %v2372, %v2443
      %v2445 = vpop.f32.mrb[0].mxu0
      %2446 = vmatprep.mubr.bf16.mxu0 0
      %2447 = vmatmul.mubr.bf16.gmra.mrb[0].mxu0 %v838
      %v2448 = vpop.f32.mrb[0].mxu0
      %v2449 = vadd.f32 %v2372, %v2448
      %v2450 = vpop.f32.mrb[0].mxu0
      %v2451 = vpop.f32.mrb[0].mxu0
      %v2452 = vadd.f32 %v2372, %v2451
      %v2453 = vpop.f32.mrb[0].mxu0
      %2454 = vmatprep.mubr.bf16.mxu0 0
      %2455 = vmatmul.mubr.bf16.gmra.mrb[0].mxu0 %v841
      %v2456 = vpop.f32.mrb[0].mxu0
      %v2457 = vadd.f32 %v2372, %v2456
      %v2458 = vpop.f32.mrb[0].mxu0
      %v2459 = vpop.f32.mrb[0].mxu0
      %v2460 = vpop.f32.mrb[0].mxu0
      %2461 = vdwg.mxu0
      %v2462 = vmul.f32 %v2223, 0.25
      %v2463 = vmul.f32 %v2226, 0.25
      %v2464 = vmul.f32 %v2231, 0.25
      %v2465 = vmul.f32 %v2234, 0.25
      %v2466 = vmul.f32 %v2239, 0.25
      %v2467 = vmul.f32 %v2242, 0.25
      %v2468 = vmul.f32 %v2247, 0.25
      %v2469 = vpack.c.bf16 %v2463, %v2462
      %v2470 = vpack.c.bf16 %v2465, %v2464
      %v2471 = vpack.c.bf16 %v2467, %v2466
      %v2472 = vpack.c.bf16 %v2468, %v2468
      %v2473 = vpack.c.bf16 %v2331, %v2328
      %v2474 = vpack.c.bf16 %v2339, %v2336
      %v2475 = vpack.c.bf16 %v2347, %v2344
      %v2476 = vpack.c.bf16 %v2352, %v2352
      %v2478 = vsel %vm1132, %v2469, 0
      %v2481 = vsel %vm1132, %v2470, 0
      %v2484 = vsel %vm1132, %v2471, 0
      %v2487 = vsel %vm1132, %v2472, 0
      %v2490 = vsel %vm1132, %v2473, 0
      %v2493 = vsel %vm1132, %v2474, 0
      %v2496 = vsel %vm1132, %v2475, 0
      %v2499 = vsel %vm1132, %v2476, 0
      %2501 = vmatprep.subr.bf16.mxu0 0
      %2502 = vmatpush1.bf16.xpose.msra.mxu0 %v2490
      %2503 = vmatprep.subr.bf16.mxu0 0
      %2504 = vmatpush1.bf16.xpose.msra.mxu0 %v2493
      %2505 = vmatprep.subr.bf16.mxu0 0
      %2506 = vmatpush1.bf16.xpose.msra.mxu0 %v2496
      %2507 = vmatprep.subr.bf16.mxu0 0
      %2508 = vmatpush1.bf16.xpose.msra.mxu0 %v2499
      %2509 = vmatprep.subr.bf16.mxu0 0
      %2510 = vmatpush1.bf16.xpose.msra.mxu0 0
      %2511 = vmatprep.subr.bf16.mxu0 0
      %2512 = vmatpush1.bf16.xpose.msra.mxu0 0
      %2513 = vmatprep.subr.bf16.mxu0 0
      %2514 = vmatpush1.bf16.xpose.msra.mxu0 0
      %2515 = vmatprep.subr.bf16.mxu0 0
      %2516 = vmatpush1.bf16.xpose.msra.mxu0 0
      %2517 = vmatprep.subr.bf16.mxu0 0
      %2518 = vmatpush1.bf16.xpose.msra.mxu0 0
      %2519 = vmatprep.subr.bf16.mxu0 0
      %2520 = vmatpush1.bf16.xpose.msra.mxu0 0
      %2521 = vmatprep.subr.bf16.mxu0 0
      %2522 = vmatpush1.bf16.xpose.msra.mxu0 0
      %2523 = vmatprep.subr.bf16.mxu0 0
      %2524 = vmatpush1.bf16.xpose.msra.mxu0 0
      %2525 = vmatprep.subr.bf16.mxu0 0
      %2526 = vmatpush1.bf16.xpose.msra.mxu0 0
      %2527 = vmatprep.subr.bf16.mxu0 0
      %2528 = vmatpush1.bf16.xpose.msra.mxu0 0
      %2529 = vmatprep.subr.bf16.mxu0 0
      %2530 = vmatpush1.bf16.xpose.msra.mxu0 0
      %2531 = vmatprep.subr.bf16.mxu0 0
      %2532 = vmatpush1.bf16.xpose.msra.mxu0 0
      %2533 = vmatprep.mubr.bf16.mxu0 0
      %2534 = vmatmul.mubr.bf16.gmra.mrb[0].mxu0 %v2478
      %v2535 = vpop.f32.mrb[0].mxu0
      %v2536 = vadd.f32 %v659, %v2535
      %v2537 = vpop.f32.mrb[0].mxu0
      %v2538 = vpop.f32.mrb[0].mxu0
      %v2539 = vadd.f32 %v660, %v2538
      %v2540 = vpop.f32.mrb[0].mxu0
      %2541 = vmatprep.mubr.bf16.mxu0 0
      %2542 = vmatmul.mubr.bf16.gmra.mrb[0].mxu0 %v2481
      %v2543 = vpop.f32.mrb[0].mxu0
      %v2544 = vadd.f32 %v661, %v2543
      %v2545 = vpop.f32.mrb[0].mxu0
      %v2546 = vpop.f32.mrb[0].mxu0
      %v2547 = vadd.f32 %v662, %v2546
      %v2548 = vpop.f32.mrb[0].mxu0
      %2549 = vmatprep.mubr.bf16.mxu0 0
      %2550 = vmatmul.mubr.bf16.gmra.mrb[0].mxu0 %v2484
      %v2551 = vpop.f32.mrb[0].mxu0
      %v2552 = vadd.f32 %v663, %v2551
      %v2553 = vpop.f32.mrb[0].mxu0
      %v2554 = vpop.f32.mrb[0].mxu0
      %v2555 = vadd.f32 %v664, %v2554
      %v2556 = vpop.f32.mrb[0].mxu0
      %2557 = vmatprep.mubr.bf16.mxu0 0
      %2558 = vmatmul.mubr.bf16.gmra.mrb[0].mxu0 %v2487
      %v2559 = vpop.f32.mrb[0].mxu0
      %v2560 = vadd.f32 %v665, %v2559
      %v2561 = vpop.f32.mrb[0].mxu0
      %v2562 = vpop.f32.mrb[0].mxu0
      %v2563 = vpop.f32.mrb[0].mxu0
      %2564 = vdwg.mxu0
      %v2565 = vsel %vm1221, %v2536, -inf
      %2566 = vmax.xlane.f32.xlu0 %v2565
      %v2567 = vpop.xlane.xlu0 %2566
      %v2568 = vsel %vm1221, %v2539, -inf
      %2569 = vmax.xlane.f32.xlu0 %v2568
      %v2570 = vpop.xlane.xlu0 %2569
      %v2571 = vsel %vm1221, %v2544, -inf
      %2572 = vmax.xlane.f32.xlu0 %v2571
      %v2573 = vpop.xlane.xlu0 %2572
      %v2574 = vsel %vm1221, %v2547, -inf
      %2575 = vmax.xlane.f32.xlu0 %v2574
      %v2576 = vpop.xlane.xlu0 %2575
      %v2577 = vsel %vm1221, %v2552, -inf
      %2578 = vmax.xlane.f32.xlu0 %v2577
      %v2579 = vpop.xlane.xlu0 %2578
      %v2580 = vsel %vm1221, %v2555, -inf
      %2581 = vmax.xlane.f32.xlu0 %v2580
      %v2582 = vpop.xlane.xlu0 %2581
      %v2583 = vsel %vm1240, %v2560, -inf
      %2584 = vmax.xlane.f32.xlu0 %v2583
      %v2585 = vpop.xlane.xlu0 %2584
      %v2586 = vsub.f32 %v2536, %v2567
      %v2587 = vsub.f32 %v2539, %v2570
      %v2588 = vsub.f32 %v2544, %v2573
      %v2589 = vsub.f32 %v2547, %v2576
      %v2590 = vsub.f32 %v2552, %v2579
      %v2591 = vsub.f32 %v2555, %v2582
      %v2592 = vsub.f32 %v2560, %v2585
      %v2593 = vmul.f32 %v2586, 1.442695
      %v2594 = vpow.pop %v2593
      %v2595 = vmul.f32 %v2587, 1.442695
      %v2596 = vpow.pop %v2595
      %v2597 = vmul.f32 %v2588, 1.442695
      %v2598 = vpow.pop %v2597
      %v2599 = vmul.f32 %v2589, 1.442695
      %v2600 = vpow.pop %v2599
      %v2601 = vmul.f32 %v2590, 1.442695
      %v2602 = vpow.pop %v2601
      %v2603 = vmul.f32 %v2591, 1.442695
      %v2604 = vpow.pop %v2603
      %v2605 = vmul.f32 %v2592, 1.442695
      %v2606 = vpow.pop %v2605
      %v2607 = vsel %vm1221, %v2594, 0.0
      %2608 = vadd.xlane.f32.xlu0 %v2607
      %v2609 = vpop.xlane.xlu0 %2608
      %v2610 = vsel %vm1221, %v2596, 0.0
      %2611 = vadd.xlane.f32.xlu0 %v2610
      %v2612 = vpop.xlane.xlu0 %2611
      %v2613 = vsel %vm1221, %v2598, 0.0
      %2614 = vadd.xlane.f32.xlu0 %v2613
      %v2615 = vpop.xlane.xlu0 %2614
      %v2616 = vsel %vm1221, %v2600, 0.0
      %2617 = vadd.xlane.f32.xlu0 %v2616
      %v2618 = vpop.xlane.xlu0 %2617
      %v2619 = vsel %vm1221, %v2602, 0.0
      %2620 = vadd.xlane.f32.xlu0 %v2619
      %v2621 = vpop.xlane.xlu0 %2620
      %v2622 = vsel %vm1221, %v2604, 0.0
      %2623 = vadd.xlane.f32.xlu0 %v2622
      %v2624 = vpop.xlane.xlu0 %2623
      %v2625 = vsel %vm1240, %v2606, 0.0
      %2626 = vadd.xlane.f32.xlu0 %v2625
      %v2627 = vpop.xlane.xlu0 %2626
      %v2628 = vrcp.pop %v2609
      %v2629 = vrcp.pop %v2612
      %v2630 = vrcp.pop %v2615
      %v2631 = vrcp.pop %v2618
      %v2632 = vrcp.pop %v2621
      %v2633 = vrcp.pop %v2624
      %v2634 = vrcp.pop %v2627
      %v2635 = vmul.f32 %v2594, %v2628
      %v2636 = vmul.f32 %v2596, %v2629
      %v2637 = vmul.f32 %v2598, %v2630
      %v2638 = vmul.f32 %v2600, %v2631
      %v2639 = vmul.f32 %v2602, %v2632
      %v2640 = vmul.f32 %v2604, %v2633
      %v2641 = vmul.f32 %v2606, %v2634
      %v2642 = vpack.c.bf16 %v2636, %v2635
      %v2643 = vpack.c.bf16 %v2638, %v2637
      %v2644 = vpack.c.bf16 %v2640, %v2639
      %v2645 = vpack.c.bf16 %v2641, %v2641
      %v2646 = vpack.c.bf16 %v2436, %v2433
      %v2647 = vpack.c.bf16 %v2444, %v2441
      %v2648 = vpack.c.bf16 %v2452, %v2449
      %v2649 = vpack.c.bf16 %v2457, %v2457
      %v2651 = vsel %vm1221, %v2642, 0
      %v2654 = vsel %vm1221, %v2643, 0
      %v2657 = vsel %vm1221, %v2644, 0
      %v2660 = vsel %vm1221, %v2645, 0
      %v2663 = vsel %vm1320, %v2649, 0
      %2665 = vmatprep.subr.bf16.mxu0 0
      %2666 = vmatpush1.bf16.msra.mxu0 %v2646
      %2667 = vmatprep.subr.bf16.mxu0 0
      %2668 = vmatpush1.bf16.msra.mxu0 %v2647
      %2669 = vmatprep.subr.bf16.mxu0 0
      %2670 = vmatpush1.bf16.msra.mxu0 %v2648
      %2671 = vmatprep.subr.bf16.mxu0 0
      %2672 = vmatpush1.bf16.msra.mxu0 %v2663
      %2673 = vmatprep.subr.bf16.mxu0 0
      %2674 = vmatpush1.bf16.msra.mxu0 0
      %2675 = vmatprep.subr.bf16.mxu0 0
      %2676 = vmatpush1.bf16.msra.mxu0 0
      %2677 = vmatprep.subr.bf16.mxu0 0
      %2678 = vmatpush1.bf16.msra.mxu0 0
      %2679 = vmatprep.subr.bf16.mxu0 0
      %2680 = vmatpush1.bf16.msra.mxu0 0
      %2681 = vmatprep.subr.bf16.mxu0 0
      %2682 = vmatpush1.bf16.msra.mxu0 0
      %2683 = vmatprep.subr.bf16.mxu0 0
      %2684 = vmatpush1.bf16.msra.mxu0 0
      %2685 = vmatprep.subr.bf16.mxu0 0
      %2686 = vmatpush1.bf16.msra.mxu0 0
      %2687 = vmatprep.subr.bf16.mxu0 0
      %2688 = vmatpush1.bf16.msra.mxu0 0
      %2689 = vmatprep.subr.bf16.mxu0 0
      %2690 = vmatpush1.bf16.msra.mxu0 0
      %2691 = vmatprep.subr.bf16.mxu0 0
      %2692 = vmatpush1.bf16.msra.mxu0 0
      %2693 = vmatprep.subr.bf16.mxu0 0
      %2694 = vmatpush1.bf16.msra.mxu0 0
      %2695 = vmatprep.subr.bf16.mxu0 0
      %2696 = vmatpush1.bf16.msra.mxu0 0
      %2697 = vmatprep.mubr.bf16.mxu0 0
      %2698 = vmatmul.mubr.bf16.gmra.mrb[0].mxu0 %v2651
      %v2699 = vpop.f32.mrb[0].mxu0
      %v2700 = vadd.f32 0.0, %v2699
      %v2701 = vpop.f32.mrb[0].mxu0
      %v2702 = vpop.f32.mrb[0].mxu0
      %v2703 = vadd.f32 0.0, %v2702
      %v2704 = vpop.f32.mrb[0].mxu0
      %2705 = vmatprep.mubr.bf16.mxu0 0
      %2706 = vmatmul.mubr.bf16.gmra.mrb[0].mxu0 %v2654
      %v2707 = vpop.f32.mrb[0].mxu0
      %v2708 = vadd.f32 0.0, %v2707
      %v2709 = vpop.f32.mrb[0].mxu0
      %v2710 = vpop.f32.mrb[0].mxu0
      %v2711 = vadd.f32 0.0, %v2710
      %v2712 = vpop.f32.mrb[0].mxu0
      %2713 = vmatprep.mubr.bf16.mxu0 0
      %2714 = vmatmul.mubr.bf16.gmra.mrb[0].mxu0 %v2657
      %v2715 = vpop.f32.mrb[0].mxu0
      %v2716 = vadd.f32 0.0, %v2715
      %v2717 = vpop.f32.mrb[0].mxu0
      %v2718 = vpop.f32.mrb[0].mxu0
      %v2719 = vadd.f32 0.0, %v2718
      %v2720 = vpop.f32.mrb[0].mxu0
      %2721 = vmatprep.mubr.bf16.mxu0 0
      %2722 = vmatmul.mubr.bf16.gmra.mrb[0].mxu0 %v2660
      %v2723 = vpop.f32.mrb[0].mxu0
      %v2724 = vadd.f32 0.0, %v2723
      %v2725 = vpop.f32.mrb[0].mxu0
      %v2726 = vpop.f32.mrb[0].mxu0
      %v2727 = vpop.f32.mrb[0].mxu0
      %2728 = vdwg.mxu0
      %s2729 = scalar_lea.vmem %s604, 16
      %v2730 = vld [vmem:[%s2729] sm:$0xf]
      %v2731 = vld [vmem:[%s2729 + $0x4] sm:$0xf]
      %v2732 = vpack.c.bf16 %v2703, %v2700
      %v2733 = vpack.c.bf16 %v2711, %v2708
      %v2734 = vpack.c.bf16 %v2719, %v2716
      %v2735 = vpack.c.bf16 %v2724, %v2724
      %v2738 = vunpack.c.l.b16 %v2730
      %v2739 = vunpack.c.l.b16 %v2731
      %v2740 = vpack.c.b16 %v2739, %v2738
      %v2743 = vsel %vm1132, %v2732, 0
      %v2746 = vsel %vm1132, %v2733, 0
      %v2749 = vsel %vm1132, %v2734, 0
      %v2752 = vsel %vm1132, %v2735, 0
      %2754 = vmatprep.subr.bf16.mxu0 0
      %2755 = vmatpush1.bf16.msra.mxu0 %v2740
      %2756 = vmatprep.subr.bf16.mxu0 0
      %2757 = vmatpush1.bf16.msra.mxu0 0
      %2758 = vmatprep.subr.bf16.mxu0 0
      %2759 = vmatpush1.bf16.msra.mxu0 0
      %2760 = vmatprep.subr.bf16.mxu0 0
      %2761 = vmatpush1.bf16.msra.mxu0 0
      %2762 = vmatprep.subr.bf16.mxu0 0
      %2763 = vmatpush1.bf16.msra.mxu0 0
      %2764 = vmatprep.subr.bf16.mxu0 0
      %2765 = vmatpush1.bf16.msra.mxu0 0
      %2766 = vmatprep.subr.bf16.mxu0 0
      %2767 = vmatpush1.bf16.msra.mxu0 0
      %2768 = vmatprep.subr.bf16.mxu0 0
      %2769 = vmatpush1.bf16.msra.mxu0 0
      %2770 = vmatprep.subr.bf16.mxu0 0
      %2771 = vmatpush1.bf16.msra.mxu0 0
      %2772 = vmatprep.subr.bf16.mxu0 0
      %2773 = vmatpush1.bf16.msra.mxu0 0
      %2774 = vmatprep.subr.bf16.mxu0 0
      %2775 = vmatpush1.bf16.msra.mxu0 0
      %2776 = vmatprep.subr.bf16.mxu0 0
      %2777 = vmatpush1.bf16.msra.mxu0 0
      %2778 = vmatprep.subr.bf16.mxu0 0
      %2779 = vmatpush1.bf16.msra.mxu0 0
      %2780 = vmatprep.subr.bf16.mxu0 0
      %2781 = vmatpush1.bf16.msra.mxu0 0
      %2782 = vmatprep.subr.bf16.mxu0 0
      %2783 = vmatpush1.bf16.msra.mxu0 0
      %2784 = vmatprep.subr.bf16.mxu0 0
      %2785 = vmatpush1.bf16.msra.mxu0 0
      %2786 = vmatprep.mubr.bf16.mxu0 0
      %2787 = vmatmul.mubr.bf16.gmra.mrb[0].mxu0 %v2743
      %v2788 = vpop.f32.mrb[0].mxu0
      %v2789 = vadd.f32 0.0, %v2788
      %v2790 = vpop.f32.mrb[0].mxu0
      %v2791 = vpop.f32.mrb[0].mxu0
      %v2792 = vadd.f32 0.0, %v2791
      %v2793 = vpop.f32.mrb[0].mxu0
      %2794 = vmatprep.mubr.bf16.mxu0 0
      %2795 = vmatmul.mubr.bf16.gmra.mrb[0].mxu0 %v2746
      %v2796 = vpop.f32.mrb[0].mxu0
      %v2797 = vadd.f32 0.0, %v2796
      %v2798 = vpop.f32.mrb[0].mxu0
      %v2799 = vpop.f32.mrb[0].mxu0
      %v2800 = vadd.f32 0.0, %v2799
      %v2801 = vpop.f32.mrb[0].mxu0
      %2802 = vmatprep.mubr.bf16.mxu0 0
      %2803 = vmatmul.mubr.bf16.gmra.mrb[0].mxu0 %v2749
      %v2804 = vpop.f32.mrb[0].mxu0
      %v2805 = vadd.f32 0.0, %v2804
      %v2806 = vpop.f32.mrb[0].mxu0
      %v2807 = vpop.f32.mrb[0].mxu0
      %v2808 = vadd.f32 0.0, %v2807
      %v2809 = vpop.f32.mrb[0].mxu0
      %2810 = vmatprep.mubr.bf16.mxu0 0
      %2811 = vmatmul.mubr.bf16.gmra.mrb[0].mxu0 %v2752
      %v2812 = vpop.f32.mrb[0].mxu0
      %v2813 = vadd.f32 0.0, %v2812
      %v2814 = vpop.f32.mrb[0].mxu0
      %v2815 = vpop.f32.mrb[0].mxu0
      %v2816 = vpop.f32.mrb[0].mxu0
      %2817 = vdwg.mxu0
      %v2818 = vadd.f32 %v2118, %v2789
      %v2819 = vadd.f32 %v2121, %v2792
      %v2820 = vadd.f32 %v2126, %v2797
      %v2821 = vadd.f32 %v2129, %v2800
      %v2822 = vadd.f32 %v2134, %v2805
      %v2823 = vadd.f32 %v2137, %v2808
      %v2824 = vadd.f32 %v2142, %v2813
      %s2825 = scalar_lea.vmem %s595, 96
      %v2826 = vld [vmem:[%s2825] sm:$0xf]
      %v2827 = vld [vmem:[%s2825 + $0x4] sm:$0xf]
      %v2828 = vld [vmem:[%s2825 + $0x8] sm:$0xf]
      %v2829 = vld [vmem:[%s2825 + $0xc] sm:$0xf]
      %v2830 = vld [vmem:[%s2825 + $0x10] sm:$0xf]
      %v2831 = vld [vmem:[%s2825 + $0x14] sm:$0xf]
      %v2832 = vld [vmem:[%s2825 + $0x18] sm:$0xf]
      %v2833 = vld [vmem:[%s2825 + $0x1c] sm:$0xf]
      %s2834 = scalar_lea.vmem %s599, 3
      %v2835 = vld [vmem:[%s2834] sm:$0x1]
      %v2837 = vlaneseq
      %v2838 = vshrl.u32 %v2837, 7
      %v2839 = vsub.s32 0, %v2838
      %v2840 = vrot.slane %v2835, %v2839
      %v2850 = vunpack.c.l.b16 %v2826
      %v2851 = vunpack.c.l.b16 %v2827
      %v2852 = vunpack.c.l.b16 %v2828
      %v2853 = vunpack.c.l.b16 %v2829
      %v2854 = vunpack.c.l.b16 %v2830
      %v2855 = vunpack.c.l.b16 %v2831
      %v2856 = vunpack.c.l.b16 %v2832
      %v2857 = vunpack.c.l.b16 %v2833
      %v2858 = vpack.c.b16 %v2851, %v2850
      %v2859 = vpack.c.b16 %v2853, %v2852
      %v2860 = vpack.c.b16 %v2855, %v2854
      %v2861 = vpack.c.b16 %v2857, %v2856
      %2866 = vmatprep.subr.bf16.mxu0 0
      %2867 = vmatpush1.bf16.msra.mxu0 %v2858
      %2868 = vmatprep.subr.bf16.mxu0 0
      %2869 = vmatpush1.bf16.msra.mxu0 %v2859
      %2870 = vmatprep.subr.bf16.mxu0 0
      %2871 = vmatpush1.bf16.msra.mxu0 %v2860
      %2872 = vmatprep.subr.bf16.mxu0 0
      %2873 = vmatpush1.bf16.msra.mxu0 %v2861
      %2874 = vmatprep.subr.bf16.mxu0 0
      %2875 = vmatpush1.bf16.msra.mxu0 0
      %2876 = vmatprep.subr.bf16.mxu0 0
      %2877 = vmatpush1.bf16.msra.mxu0 0
      %2878 = vmatprep.subr.bf16.mxu0 0
      %2879 = vmatpush1.bf16.msra.mxu0 0
      %2880 = vmatprep.subr.bf16.mxu0 0
      %2881 = vmatpush1.bf16.msra.mxu0 0
      %2882 = vmatprep.subr.bf16.mxu0 0
      %2883 = vmatpush1.bf16.msra.mxu0 0
      %2884 = vmatprep.subr.bf16.mxu0 0
      %2885 = vmatpush1.bf16.msra.mxu0 0
      %2886 = vmatprep.subr.bf16.mxu0 0
      %2887 = vmatpush1.bf16.msra.mxu0 0
      %2888 = vmatprep.subr.bf16.mxu0 0
      %2889 = vmatpush1.bf16.msra.mxu0 0
      %2890 = vmatprep.subr.bf16.mxu0 0
      %2891 = vmatpush1.bf16.msra.mxu0 0
      %2892 = vmatprep.subr.bf16.mxu0 0
      %2893 = vmatpush1.bf16.msra.mxu0 0
      %2894 = vmatprep.subr.bf16.mxu0 0
      %2895 = vmatpush1.bf16.msra.mxu0 0
      %2896 = vmatprep.subr.bf16.mxu0 0
      %2897 = vmatpush1.bf16.msra.mxu0 0
      %2898 = vmatprep.mubr.bf16.mxu0 0
      %2899 = vmatmul.mubr.bf16.gmra.mrb[0].mxu0 %v832
      %v2900 = vpop.f32.mrb[0].mxu0
      %v2901 = vadd.f32 %v2840, %v2900
      %v2902 = vpop.f32.mrb[0].mxu0
      %v2903 = vpop.f32.mrb[0].mxu0
      %v2904 = vadd.f32 %v2840, %v2903
      %v2905 = vpop.f32.mrb[0].mxu0
      %2906 = vmatprep.mubr.bf16.mxu0 0
      %2907 = vmatmul.mubr.bf16.gmra.mrb[0].mxu0 %v835
      %v2908 = vpop.f32.mrb[0].mxu0
      %v2909 = vadd.f32 %v2840, %v2908
      %v2910 = vpop.f32.mrb[0].mxu0
      %v2911 = vpop.f32.mrb[0].mxu0
      %v2912 = vadd.f32 %v2840, %v2911
      %v2913 = vpop.f32.mrb[0].mxu0
      %2914 = vmatprep.mubr.bf16.mxu0 0
      %2915 = vmatmul.mubr.bf16.gmra.mrb[0].mxu0 %v838
      %v2916 = vpop.f32.mrb[0].mxu0
      %v2917 = vadd.f32 %v2840, %v2916
      %v2918 = vpop.f32.mrb[0].mxu0
      %v2919 = vpop.f32.mrb[0].mxu0
      %v2920 = vadd.f32 %v2840, %v2919
      %v2921 = vpop.f32.mrb[0].mxu0
      %2922 = vmatprep.mubr.bf16.mxu0 0
      %2923 = vmatmul.mubr.bf16.gmra.mrb[0].mxu0 %v841
      %v2924 = vpop.f32.mrb[0].mxu0
      %v2925 = vadd.f32 %v2840, %v2924
      %v2926 = vpop.f32.mrb[0].mxu0
      %v2927 = vpop.f32.mrb[0].mxu0
      %v2928 = vpop.f32.mrb[0].mxu0
      %2929 = vdwg.mxu0
      %s2930 = scalar_lea.vmem %s595, 224
      %v2931 = vld [vmem:[%s2930] sm:$0xf]
      %v2932 = vld [vmem:[%s2930 + $0x4] sm:$0xf]
      %v2933 = vld [vmem:[%s2930 + $0x8] sm:$0xf]
      %v2934 = vld [vmem:[%s2930 + $0xc] sm:$0xf]
      %v2935 = vld [vmem:[%s2930 + $0x10] sm:$0xf]
      %v2936 = vld [vmem:[%s2930 + $0x14] sm:$0xf]
      %v2937 = vld [vmem:[%s2930 + $0x18] sm:$0xf]
      %v2938 = vld [vmem:[%s2930 + $0x1c] sm:$0xf]
      %s2939 = scalar_lea.vmem %s599, 7
      %v2940 = vld [vmem:[%s2939] sm:$0x1]
      %v2942 = vlaneseq
      %v2943 = vshrl.u32 %v2942, 7
      %v2944 = vsub.s32 0, %v2943
      %v2945 = vrot.slane %v2940, %v2944
      %v2955 = vunpack.c.l.b16 %v2931
      %v2956 = vunpack.c.l.b16 %v2932
      %v2957 = vunpack.c.l.b16 %v2933
      %v2958 = vunpack.c.l.b16 %v2934
      %v2959 = vunpack.c.l.b16 %v2935
      %v2960 = vunpack.c.l.b16 %v2936
      %v2961 = vunpack.c.l.b16 %v2937
      %v2962 = vunpack.c.l.b16 %v2938
      %v2963 = vpack.c.b16 %v2956, %v2955
      %v2964 = vpack.c.b16 %v2958, %v2957
      %v2965 = vpack.c.b16 %v2960, %v2959
      %v2966 = vpack.c.b16 %v2962, %v2961
      %2971 = vmatprep.subr.bf16.mxu0 0
      %2972 = vmatpush1.bf16.msra.mxu0 %v2963
      %2973 = vmatprep.subr.bf16.mxu0 0
      %2974 = vmatpush1.bf16.msra.mxu0 %v2964
      %2975 = vmatprep.subr.bf16.mxu0 0
      %2976 = vmatpush1.bf16.msra.mxu0 %v2965
      %2977 = vmatprep.subr.bf16.mxu0 0
      %2978 = vmatpush1.bf16.msra.mxu0 %v2966
      %2979 = vmatprep.subr.bf16.mxu0 0
      %2980 = vmatpush1.bf16.msra.mxu0 0
      %2981 = vmatprep.subr.bf16.mxu0 0
      %2982 = vmatpush1.bf16.msra.mxu0 0
      %2983 = vmatprep.subr.bf16.mxu0 0
      %2984 = vmatpush1.bf16.msra.mxu0 0
      %2985 = vmatprep.subr.bf16.mxu0 0
      %2986 = vmatpush1.bf16.msra.mxu0 0
      %2987 = vmatprep.subr.bf16.mxu0 0
      %2988 = vmatpush1.bf16.msra.mxu0 0
      %2989 = vmatprep.subr.bf16.mxu0 0
      %2990 = vmatpush1.bf16.msra.mxu0 0
      %2991 = vmatprep.subr.bf16.mxu0 0
      %2992 = vmatpush1.bf16.msra.mxu0 0
      %2993 = vmatprep.subr.bf16.mxu0 0
      %2994 = vmatpush1.bf16.msra.mxu0 0
      %2995 = vmatprep.subr.bf16.mxu0 0
      %2996 = vmatpush1.bf16.msra.mxu0 0
      %2997 = vmatprep.subr.bf16.mxu0 0
      %2998 = vmatpush1.bf16.msra.mxu0 0
      %2999 = vmatprep.subr.bf16.mxu0 0
      %3000 = vmatpush1.bf16.msra.mxu0 0
      %3001 = vmatprep.subr.bf16.mxu0 0
      %3002 = vmatpush1.bf16.msra.mxu0 0
      %3003 = vmatprep.mubr.bf16.mxu0 0
      %3004 = vmatmul.mubr.bf16.gmra.mrb[0].mxu0 %v832
      %v3005 = vpop.f32.mrb[0].mxu0
      %v3006 = vadd.f32 %v2945, %v3005
      %v3007 = vpop.f32.mrb[0].mxu0
      %v3008 = vpop.f32.mrb[0].mxu0
      %v3009 = vadd.f32 %v2945, %v3008
      %v3010 = vpop.f32.mrb[0].mxu0
      %3011 = vmatprep.mubr.bf16.mxu0 0
      %3012 = vmatmul.mubr.bf16.gmra.mrb[0].mxu0 %v835
      %v3013 = vpop.f32.mrb[0].mxu0
      %v3014 = vadd.f32 %v2945, %v3013
      %v3015 = vpop.f32.mrb[0].mxu0
      %v3016 = vpop.f32.mrb[0].mxu0
      %v3017 = vadd.f32 %v2945, %v3016
      %v3018 = vpop.f32.mrb[0].mxu0
      %3019 = vmatprep.mubr.bf16.mxu0 0
      %3020 = vmatmul.mubr.bf16.gmra.mrb[0].mxu0 %v838
      %v3021 = vpop.f32.mrb[0].mxu0
      %v3022 = vadd.f32 %v2945, %v3021
      %v3023 = vpop.f32.mrb[0].mxu0
      %v3024 = vpop.f32.mrb[0].mxu0
      %v3025 = vadd.f32 %v2945, %v3024
      %v3026 = vpop.f32.mrb[0].mxu0
      %3027 = vmatprep.mubr.bf16.mxu0 0
      %3028 = vmatmul.mubr.bf16.gmra.mrb[0].mxu0 %v841
      %v3029 = vpop.f32.mrb[0].mxu0
      %v3030 = vadd.f32 %v2945, %v3029
      %v3031 = vpop.f32.mrb[0].mxu0
      %v3032 = vpop.f32.mrb[0].mxu0
      %v3033 = vpop.f32.mrb[0].mxu0
      %3034 = vdwg.mxu0
      %s3035 = scalar_lea.vmem %s595, 352
      %v3036 = vld [vmem:[%s3035] sm:$0xf]
      %v3037 = vld [vmem:[%s3035 + $0x4] sm:$0xf]
      %v3038 = vld [vmem:[%s3035 + $0x8] sm:$0xf]
      %v3039 = vld [vmem:[%s3035 + $0xc] sm:$0xf]
      %v3040 = vld [vmem:[%s3035 + $0x10] sm:$0xf]
      %v3041 = vld [vmem:[%s3035 + $0x14] sm:$0xf]
      %v3042 = vld [vmem:[%s3035 + $0x18] sm:$0xf]
      %v3043 = vld [vmem:[%s3035 + $0x1c] sm:$0xf]
      %s3044 = scalar_lea.vmem %s599, 11
      %v3045 = vld [vmem:[%s3044] sm:$0x1]
      %v3047 = vlaneseq
      %v3048 = vshrl.u32 %v3047, 7
      %v3049 = vsub.s32 0, %v3048
      %v3050 = vrot.slane %v3045, %v3049
      %v3060 = vunpack.c.l.b16 %v3036
      %v3061 = vunpack.c.l.b16 %v3037
      %v3062 = vunpack.c.l.b16 %v3038
      %v3063 = vunpack.c.l.b16 %v3039
      %v3064 = vunpack.c.l.b16 %v3040
      %v3065 = vunpack.c.l.b16 %v3041
      %v3066 = vunpack.c.l.b16 %v3042
      %v3067 = vunpack.c.l.b16 %v3043
      %v3068 = vpack.c.b16 %v3061, %v3060
      %v3069 = vpack.c.b16 %v3063, %v3062
      %v3070 = vpack.c.b16 %v3065, %v3064
      %v3071 = vpack.c.b16 %v3067, %v3066
      %3076 = vmatprep.subr.bf16.mxu0 0
      %3077 = vmatpush1.bf16.msra.mxu0 %v3068
      %3078 = vmatprep.subr.bf16.mxu0 0
      %3079 = vmatpush1.bf16.msra.mxu0 %v3069
      %3080 = vmatprep.subr.bf16.mxu0 0
      %3081 = vmatpush1.bf16.msra.mxu0 %v3070
      %3082 = vmatprep.subr.bf16.mxu0 0
      %3083 = vmatpush1.bf16.msra.mxu0 %v3071
      %3084 = vmatprep.subr.bf16.mxu0 0
      %3085 = vmatpush1.bf16.msra.mxu0 0
      %3086 = vmatprep.subr.bf16.mxu0 0
      %3087 = vmatpush1.bf16.msra.mxu0 0
      %3088 = vmatprep.subr.bf16.mxu0 0
      %3089 = vmatpush1.bf16.msra.mxu0 0
      %3090 = vmatprep.subr.bf16.mxu0 0
      %3091 = vmatpush1.bf16.msra.mxu0 0
      %3092 = vmatprep.subr.bf16.mxu0 0
      %3093 = vmatpush1.bf16.msra.mxu0 0
      %3094 = vmatprep.subr.bf16.mxu0 0
      %3095 = vmatpush1.bf16.msra.mxu0 0
      %3096 = vmatprep.subr.bf16.mxu0 0
      %3097 = vmatpush1.bf16.msra.mxu0 0
      %3098 = vmatprep.subr.bf16.mxu0 0
      %3099 = vmatpush1.bf16.msra.mxu0 0
      %3100 = vmatprep.subr.bf16.mxu0 0
      %3101 = vmatpush1.bf16.msra.mxu0 0
      %3102 = vmatprep.subr.bf16.mxu0 0
      %3103 = vmatpush1.bf16.msra.mxu0 0
      %3104 = vmatprep.subr.bf16.mxu0 0
      %3105 = vmatpush1.bf16.msra.mxu0 0
      %3106 = vmatprep.subr.bf16.mxu0 0
      %3107 = vmatpush1.bf16.msra.mxu0 0
      %3108 = vmatprep.mubr.bf16.mxu0 0
      %3109 = vmatmul.mubr.bf16.gmra.mrb[0].mxu0 %v832
      %v3110 = vpop.f32.mrb[0].mxu0
      %v3111 = vadd.f32 %v3050, %v3110
      %v3112 = vpop.f32.mrb[0].mxu0
      %v3113 = vpop.f32.mrb[0].mxu0
      %v3114 = vadd.f32 %v3050, %v3113
      %v3115 = vpop.f32.mrb[0].mxu0
      %3116 = vmatprep.mubr.bf16.mxu0 0
      %3117 = vmatmul.mubr.bf16.gmra.mrb[0].mxu0 %v835
      %v3118 = vpop.f32.mrb[0].mxu0
      %v3119 = vadd.f32 %v3050, %v3118
      %v3120 = vpop.f32.mrb[0].mxu0
      %v3121 = vpop.f32.mrb[0].mxu0
      %v3122 = vadd.f32 %v3050, %v3121
      %v3123 = vpop.f32.mrb[0].mxu0
      %3124 = vmatprep.mubr.bf16.mxu0 0
      %3125 = vmatmul.mubr.bf16.gmra.mrb[0].mxu0 %v838
      %v3126 = vpop.f32.mrb[0].mxu0
      %v3127 = vadd.f32 %v3050, %v3126
      %v3128 = vpop.f32.mrb[0].mxu0
      %v3129 = vpop.f32.mrb[0].mxu0
      %v3130 = vadd.f32 %v3050, %v3129
      %v3131 = vpop.f32.mrb[0].mxu0
      %3132 = vmatprep.mubr.bf16.mxu0 0
      %3133 = vmatmul.mubr.bf16.gmra.mrb[0].mxu0 %v841
      %v3134 = vpop.f32.mrb[0].mxu0
      %v3135 = vadd.f32 %v3050, %v3134
      %v3136 = vpop.f32.mrb[0].mxu0
      %v3137 = vpop.f32.mrb[0].mxu0
      %v3138 = vpop.f32.mrb[0].mxu0
      %3139 = vdwg.mxu0
      %v3140 = vmul.f32 %v2901, 0.25
      %v3141 = vmul.f32 %v2904, 0.25
      %v3142 = vmul.f32 %v2909, 0.25
      %v3143 = vmul.f32 %v2912, 0.25
      %v3144 = vmul.f32 %v2917, 0.25
      %v3145 = vmul.f32 %v2920, 0.25
      %v3146 = vmul.f32 %v2925, 0.25
      %v3147 = vpack.c.bf16 %v3141, %v3140
      %v3148 = vpack.c.bf16 %v3143, %v3142
      %v3149 = vpack.c.bf16 %v3145, %v3144
      %v3150 = vpack.c.bf16 %v3146, %v3146
      %v3151 = vpack.c.bf16 %v3009, %v3006
      %v3152 = vpack.c.bf16 %v3017, %v3014
      %v3153 = vpack.c.bf16 %v3025, %v3022
      %v3154 = vpack.c.bf16 %v3030, %v3030
      %v3156 = vsel %vm1132, %v3147, 0
      %v3159 = vsel %vm1132, %v3148, 0
      %v3162 = vsel %vm1132, %v3149, 0
      %v3165 = vsel %vm1132, %v3150, 0
      %v3168 = vsel %vm1132, %v3151, 0
      %v3171 = vsel %vm1132, %v3152, 0
      %v3174 = vsel %vm1132, %v3153, 0
      %v3177 = vsel %vm1132, %v3154, 0
      %3179 = vmatprep.subr.bf16.mxu0 0
      %3180 = vmatpush1.bf16.xpose.msra.mxu0 %v3168
      %3181 = vmatprep.subr.bf16.mxu0 0
      %3182 = vmatpush1.bf16.xpose.msra.mxu0 %v3171
      %3183 = vmatprep.subr.bf16.mxu0 0
      %3184 = vmatpush1.bf16.xpose.msra.mxu0 %v3174
      %3185 = vmatprep.subr.bf16.mxu0 0
      %3186 = vmatpush1.bf16.xpose.msra.mxu0 %v3177
      %3187 = vmatprep.subr.bf16.mxu0 0
      %3188 = vmatpush1.bf16.xpose.msra.mxu0 0
      %3189 = vmatprep.subr.bf16.mxu0 0
      %3190 = vmatpush1.bf16.xpose.msra.mxu0 0
      %3191 = vmatprep.subr.bf16.mxu0 0
      %3192 = vmatpush1.bf16.xpose.msra.mxu0 0
      %3193 = vmatprep.subr.bf16.mxu0 0
      %3194 = vmatpush1.bf16.xpose.msra.mxu0 0
      %3195 = vmatprep.subr.bf16.mxu0 0
      %3196 = vmatpush1.bf16.xpose.msra.mxu0 0
      %3197 = vmatprep.subr.bf16.mxu0 0
      %3198 = vmatpush1.bf16.xpose.msra.mxu0 0
      %3199 = vmatprep.subr.bf16.mxu0 0
      %3200 = vmatpush1.bf16.xpose.msra.mxu0 0
      %3201 = vmatprep.subr.bf16.mxu0 0
      %3202 = vmatpush1.bf16.xpose.msra.mxu0 0
      %3203 = vmatprep.subr.bf16.mxu0 0
      %3204 = vmatpush1.bf16.xpose.msra.mxu0 0
      %3205 = vmatprep.subr.bf16.mxu0 0
      %3206 = vmatpush1.bf16.xpose.msra.mxu0 0
      %3207 = vmatprep.subr.bf16.mxu0 0
      %3208 = vmatpush1.bf16.xpose.msra.mxu0 0
      %3209 = vmatprep.subr.bf16.mxu0 0
      %3210 = vmatpush1.bf16.xpose.msra.mxu0 0
      %3211 = vmatprep.mubr.bf16.mxu0 0
      %3212 = vmatmul.mubr.bf16.gmra.mrb[0].mxu0 %v3156
      %v3213 = vpop.f32.mrb[0].mxu0
      %v3214 = vadd.f32 %v659, %v3213
      %v3215 = vpop.f32.mrb[0].mxu0
      %v3216 = vpop.f32.mrb[0].mxu0
      %v3217 = vadd.f32 %v660, %v3216
      %v3218 = vpop.f32.mrb[0].mxu0
      %3219 = vmatprep.mubr.bf16.mxu0 0
      %3220 = vmatmul.mubr.bf16.gmra.mrb[0].mxu0 %v3159
      %v3221 = vpop.f32.mrb[0].mxu0
      %v3222 = vadd.f32 %v661, %v3221
      %v3223 = vpop.f32.mrb[0].mxu0
      %v3224 = vpop.f32.mrb[0].mxu0
      %v3225 = vadd.f32 %v662, %v3224
      %v3226 = vpop.f32.mrb[0].mxu0
      %3227 = vmatprep.mubr.bf16.mxu0 0
      %3228 = vmatmul.mubr.bf16.gmra.mrb[0].mxu0 %v3162
      %v3229 = vpop.f32.mrb[0].mxu0
      %v3230 = vadd.f32 %v663, %v3229
      %v3231 = vpop.f32.mrb[0].mxu0
      %v3232 = vpop.f32.mrb[0].mxu0
      %v3233 = vadd.f32 %v664, %v3232
      %v3234 = vpop.f32.mrb[0].mxu0
      %3235 = vmatprep.mubr.bf16.mxu0 0
      %3236 = vmatmul.mubr.bf16.gmra.mrb[0].mxu0 %v3165
      %v3237 = vpop.f32.mrb[0].mxu0
      %v3238 = vadd.f32 %v665, %v3237
      %v3239 = vpop.f32.mrb[0].mxu0
      %v3240 = vpop.f32.mrb[0].mxu0
      %v3241 = vpop.f32.mrb[0].mxu0
      %3242 = vdwg.mxu0
      %v3243 = vsel %vm1221, %v3214, -inf
      %3244 = vmax.xlane.f32.xlu0 %v3243
      %v3245 = vpop.xlane.xlu0 %3244
      %v3246 = vsel %vm1221, %v3217, -inf
      %3247 = vmax.xlane.f32.xlu0 %v3246
      %v3248 = vpop.xlane.xlu0 %3247
      %v3249 = vsel %vm1221, %v3222, -inf
      %3250 = vmax.xlane.f32.xlu0 %v3249
      %v3251 = vpop.xlane.xlu0 %3250
      %v3252 = vsel %vm1221, %v3225, -inf
      %3253 = vmax.xlane.f32.xlu0 %v3252
      %v3254 = vpop.xlane.xlu0 %3253
      %v3255 = vsel %vm1221, %v3230, -inf
      %3256 = vmax.xlane.f32.xlu0 %v3255
      %v3257 = vpop.xlane.xlu0 %3256
      %v3258 = vsel %vm1221, %v3233, -inf
      %3259 = vmax.xlane.f32.xlu0 %v3258
      %v3260 = vpop.xlane.xlu0 %3259
      %v3261 = vsel %vm1240, %v3238, -inf
      %3262 = vmax.xlane.f32.xlu0 %v3261
      %v3263 = vpop.xlane.xlu0 %3262
      %v3264 = vsub.f32 %v3214, %v3245
      %v3265 = vsub.f32 %v3217, %v3248
      %v3266 = vsub.f32 %v3222, %v3251
      %v3267 = vsub.f32 %v3225, %v3254
      %v3268 = vsub.f32 %v3230, %v3257
      %v3269 = vsub.f32 %v3233, %v3260
      %v3270 = vsub.f32 %v3238, %v3263
      %v3271 = vmul.f32 %v3264, 1.442695
      %v3272 = vpow.pop %v3271
      %v3273 = vmul.f32 %v3265, 1.442695
      %v3274 = vpow.pop %v3273
      %v3275 = vmul.f32 %v3266, 1.442695
      %v3276 = vpow.pop %v3275
      %v3277 = vmul.f32 %v3267, 1.442695
      %v3278 = vpow.pop %v3277
      %v3279 = vmul.f32 %v3268, 1.442695
      %v3280 = vpow.pop %v3279
      %v3281 = vmul.f32 %v3269, 1.442695
      %v3282 = vpow.pop %v3281
      %v3283 = vmul.f32 %v3270, 1.442695
      %v3284 = vpow.pop %v3283
      %v3285 = vsel %vm1221, %v3272, 0.0
      %3286 = vadd.xlane.f32.xlu0 %v3285
      %v3287 = vpop.xlane.xlu0 %3286
      %v3288 = vsel %vm1221, %v3274, 0.0
      %3289 = vadd.xlane.f32.xlu0 %v3288
      %v3290 = vpop.xlane.xlu0 %3289
      %v3291 = vsel %vm1221, %v3276, 0.0
      %3292 = vadd.xlane.f32.xlu0 %v3291
      %v3293 = vpop.xlane.xlu0 %3292
      %v3294 = vsel %vm1221, %v3278, 0.0
      %3295 = vadd.xlane.f32.xlu0 %v3294
      %v3296 = vpop.xlane.xlu0 %3295
      %v3297 = vsel %vm1221, %v3280, 0.0
      %3298 = vadd.xlane.f32.xlu0 %v3297
      %v3299 = vpop.xlane.xlu0 %3298
      %v3300 = vsel %vm1221, %v3282, 0.0
      %3301 = vadd.xlane.f32.xlu0 %v3300
      %v3302 = vpop.xlane.xlu0 %3301
      %v3303 = vsel %vm1240, %v3284, 0.0
      %3304 = vadd.xlane.f32.xlu0 %v3303
      %v3305 = vpop.xlane.xlu0 %3304
      %v3306 = vrcp.pop %v3287
      %v3307 = vrcp.pop %v3290
      %v3308 = vrcp.pop %v3293
      %v3309 = vrcp.pop %v3296
      %v3310 = vrcp.pop %v3299
      %v3311 = vrcp.pop %v3302
      %v3312 = vrcp.pop %v3305
      %v3313 = vmul.f32 %v3272, %v3306
      %v3314 = vmul.f32 %v3274, %v3307
      %v3315 = vmul.f32 %v3276, %v3308
      %v3316 = vmul.f32 %v3278, %v3309
      %v3317 = vmul.f32 %v3280, %v3310
      %v3318 = vmul.f32 %v3282, %v3311
      %v3319 = vmul.f32 %v3284, %v3312
      %v3320 = vpack.c.bf16 %v3314, %v3313
      %v3321 = vpack.c.bf16 %v3316, %v3315
      %v3322 = vpack.c.bf16 %v3318, %v3317
      %v3323 = vpack.c.bf16 %v3319, %v3319
      %v3324 = vpack.c.bf16 %v3114, %v3111
      %v3325 = vpack.c.bf16 %v3122, %v3119
      %v3326 = vpack.c.bf16 %v3130, %v3127
      %v3327 = vpack.c.bf16 %v3135, %v3135
      %v3329 = vsel %vm1221, %v3320, 0
      %v3332 = vsel %vm1221, %v3321, 0
      %v3335 = vsel %vm1221, %v3322, 0
      %v3338 = vsel %vm1221, %v3323, 0
      %v3341 = vsel %vm1320, %v3327, 0
      %3343 = vmatprep.subr.bf16.mxu0 0
      %3344 = vmatpush1.bf16.msra.mxu0 %v3324
      %3345 = vmatprep.subr.bf16.mxu0 0
      %3346 = vmatpush1.bf16.msra.mxu0 %v3325
      %3347 = vmatprep.subr.bf16.mxu0 0
      %3348 = vmatpush1.bf16.msra.mxu0 %v3326
      %3349 = vmatprep.subr.bf16.mxu0 0
      %3350 = vmatpush1.bf16.msra.mxu0 %v3341
      %3351 = vmatprep.subr.bf16.mxu0 0
      %3352 = vmatpush1.bf16.msra.mxu0 0
      %3353 = vmatprep.subr.bf16.mxu0 0
      %3354 = vmatpush1.bf16.msra.mxu0 0
      %3355 = vmatprep.subr.bf16.mxu0 0
      %3356 = vmatpush1.bf16.msra.mxu0 0
      %3357 = vmatprep.subr.bf16.mxu0 0
      %3358 = vmatpush1.bf16.msra.mxu0 0
      %3359 = vmatprep.subr.bf16.mxu0 0
      %3360 = vmatpush1.bf16.msra.mxu0 0
      %3361 = vmatprep.subr.bf16.mxu0 0
      %3362 = vmatpush1.bf16.msra.mxu0 0
      %3363 = vmatprep.subr.bf16.mxu0 0
      %3364 = vmatpush1.bf16.msra.mxu0 0
      %3365 = vmatprep.subr.bf16.mxu0 0
      %3366 = vmatpush1.bf16.msra.mxu0 0
      %3367 = vmatprep.subr.bf16.mxu0 0
      %3368 = vmatpush1.bf16.msra.mxu0 0
      %3369 = vmatprep.subr.bf16.mxu0 0
      %3370 = vmatpush1.bf16.msra.mxu0 0
      %3371 = vmatprep.subr.bf16.mxu0 0
      %3372 = vmatpush1.bf16.msra.mxu0 0
      %3373 = vmatprep.subr.bf16.mxu0 0
      %3374 = vmatpush1.bf16.msra.mxu0 0
      %3375 = vmatprep.mubr.bf16.mxu0 0
      %3376 = vmatmul.mubr.bf16.gmra.mrb[0].mxu0 %v3329
      %v3377 = vpop.f32.mrb[0].mxu0
      %v3378 = vadd.f32 0.0, %v3377
      %v3379 = vpop.f32.mrb[0].mxu0
      %v3380 = vpop.f32.mrb[0].mxu0
      %v3381 = vadd.f32 0.0, %v3380
      %v3382 = vpop.f32.mrb[0].mxu0
      %3383 = vmatprep.mubr.bf16.mxu0 0
      %3384 = vmatmul.mubr.bf16.gmra.mrb[0].mxu0 %v3332
      %v3385 = vpop.f32.mrb[0].mxu0
      %v3386 = vadd.f32 0.0, %v3385
      %v3387 = vpop.f32.mrb[0].mxu0
      %v3388 = vpop.f32.mrb[0].mxu0
      %v3389 = vadd.f32 0.0, %v3388
      %v3390 = vpop.f32.mrb[0].mxu0
      %3391 = vmatprep.mubr.bf16.mxu0 0
      %3392 = vmatmul.mubr.bf16.gmra.mrb[0].mxu0 %v3335
      %v3393 = vpop.f32.mrb[0].mxu0
      %v3394 = vadd.f32 0.0, %v3393
      %v3395 = vpop.f32.mrb[0].mxu0
      %v3396 = vpop.f32.mrb[0].mxu0
      %v3397 = vadd.f32 0.0, %v3396
      %v3398 = vpop.f32.mrb[0].mxu0
      %3399 = vmatprep.mubr.bf16.mxu0 0
      %3400 = vmatmul.mubr.bf16.gmra.mrb[0].mxu0 %v3338
      %v3401 = vpop.f32.mrb[0].mxu0
      %v3402 = vadd.f32 0.0, %v3401
      %v3403 = vpop.f32.mrb[0].mxu0
      %v3404 = vpop.f32.mrb[0].mxu0
      %v3405 = vpop.f32.mrb[0].mxu0
      %3406 = vdwg.mxu0
      %s3407 = scalar_lea.vmem %s604, 24
      %v3408 = vld [vmem:[%s3407] sm:$0xf]
      %v3409 = vld [vmem:[%s3407 + $0x4] sm:$0xf]
      %v3410 = vpack.c.bf16 %v3381, %v3378
      %v3411 = vpack.c.bf16 %v3389, %v3386
      %v3412 = vpack.c.bf16 %v3397, %v3394
      %v3413 = vpack.c.bf16 %v3402, %v3402
      %v3416 = vunpack.c.l.b16 %v3408
      %v3417 = vunpack.c.l.b16 %v3409
      %v3418 = vpack.c.b16 %v3417, %v3416
      %v3421 = vsel %vm1132, %v3410, 0
      %v3424 = vsel %vm1132, %v3411, 0
      %v3427 = vsel %vm1132, %v3412, 0
      %v3430 = vsel %vm1132, %v3413, 0
      %3432 = vmatprep.subr.bf16.mxu0 0
      %3433 = vmatpush1.bf16.msra.mxu0 %v3418
      %3434 = vmatprep.subr.bf16.mxu0 0
      %3435 = vmatpush1.bf16.msra.mxu0 0
      %3436 = vmatprep.subr.bf16.mxu0 0
      %3437 = vmatpush1.bf16.msra.mxu0 0
      %3438 = vmatprep.subr.bf16.mxu0 0
      %3439 = vmatpush1.bf16.msra.mxu0 0
      %3440 = vmatprep.subr.bf16.mxu0 0
      %3441 = vmatpush1.bf16.msra.mxu0 0
      %3442 = vmatprep.subr.bf16.mxu0 0
      %3443 = vmatpush1.bf16.msra.mxu0 0
      %3444 = vmatprep.subr.bf16.mxu0 0
      %3445 = vmatpush1.bf16.msra.mxu0 0
      %3446 = vmatprep.subr.bf16.mxu0 0
      %3447 = vmatpush1.bf16.msra.mxu0 0
      %3448 = vmatprep.subr.bf16.mxu0 0
      %3449 = vmatpush1.bf16.msra.mxu0 0
      %3450 = vmatprep.subr.bf16.mxu0 0
      %3451 = vmatpush1.bf16.msra.mxu0 0
      %3452 = vmatprep.subr.bf16.mxu0 0
      %3453 = vmatpush1.bf16.msra.mxu0 0
      %3454 = vmatprep.subr.bf16.mxu0 0
      %3455 = vmatpush1.bf16.msra.mxu0 0
      %3456 = vmatprep.subr.bf16.mxu0 0
      %3457 = vmatpush1.bf16.msra.mxu0 0
      %3458 = vmatprep.subr.bf16.mxu0 0
      %3459 = vmatpush1.bf16.msra.mxu0 0
      %3460 = vmatprep.subr.bf16.mxu0 0
      %3461 = vmatpush1.bf16.msra.mxu0 0
      %3462 = vmatprep.subr.bf16.mxu0 0
      %3463 = vmatpush1.bf16.msra.mxu0 0
      %3464 = vmatprep.mubr.bf16.mxu0 0
      %3465 = vmatmul.mubr.bf16.gmra.mrb[0].mxu0 %v3421
      %v3466 = vpop.f32.mrb[0].mxu0
      %v3467 = vadd.f32 0.0, %v3466
      %v3468 = vpop.f32.mrb[0].mxu0
      %v3469 = vpop.f32.mrb[0].mxu0
      %v3470 = vadd.f32 0.0, %v3469
      %v3471 = vpop.f32.mrb[0].mxu0
      %3472 = vmatprep.mubr.bf16.mxu0 0
      %3473 = vmatmul.mubr.bf16.gmra.mrb[0].mxu0 %v3424
      %v3474 = vpop.f32.mrb[0].mxu0
      %v3475 = vadd.f32 0.0, %v3474
      %v3476 = vpop.f32.mrb[0].mxu0
      %v3477 = vpop.f32.mrb[0].mxu0
      %v3478 = vadd.f32 0.0, %v3477
      %v3479 = vpop.f32.mrb[0].mxu0
      %3480 = vmatprep.mubr.bf16.mxu0 0
      %3481 = vmatmul.mubr.bf16.gmra.mrb[0].mxu0 %v3427
      %v3482 = vpop.f32.mrb[0].mxu0
      %v3483 = vadd.f32 0.0, %v3482
      %v3484 = vpop.f32.mrb[0].mxu0
      %v3485 = vpop.f32.mrb[0].mxu0
      %v3486 = vadd.f32 0.0, %v3485
      %v3487 = vpop.f32.mrb[0].mxu0
      %3488 = vmatprep.mubr.bf16.mxu0 0
      %3489 = vmatmul.mubr.bf16.gmra.mrb[0].mxu0 %v3430
      %v3490 = vpop.f32.mrb[0].mxu0
      %v3491 = vadd.f32 0.0, %v3490
      %v3492 = vpop.f32.mrb[0].mxu0
      %v3493 = vpop.f32.mrb[0].mxu0
      %v3494 = vpop.f32.mrb[0].mxu0
      %3495 = vdwg.mxu0
      %v3496 = vadd.f32 %v2818, %v3467
      %v3497 = vadd.f32 %v2819, %v3470
      %v3498 = vadd.f32 %v2820, %v3475
      %v3499 = vadd.f32 %v2821, %v3478
      %v3500 = vadd.f32 %v2822, %v3483
      %v3501 = vadd.f32 %v2823, %v3486
      %v3502 = vadd.f32 %v2824, %v3491
      %v3503 = vadd.f32 %v652, %v3496
      %v3504 = vadd.f32 %v653, %v3497
      %v3505 = vadd.f32 %v654, %v3498
      %v3506 = vadd.f32 %v655, %v3499
      %v3507 = vadd.f32 %v656, %v3500
      %v3508 = vadd.f32 %v657, %v3501
      %v3509 = vadd.f32 %v658, %v3502
      %v3510 = vld [vmem:[%s607] sm:$0x1]
      %v3512 = vlaneseq
      %v3513 = vshrl.u32 %v3512, 7
      %v3514 = vsub.s32 0, %v3513
      %v3515 = vrot.slane %v3510, %v3514
      %v3517 = vadd.f32 %v3503, %v3515
      %v3518 = vadd.f32 %v3504, %v3515
      %v3519 = vadd.f32 %v3505, %v3515
      %v3520 = vadd.f32 %v3506, %v3515
      %v3521 = vadd.f32 %v3507, %v3515
      %v3522 = vadd.f32 %v3508, %v3515
      %v3523 = vadd.f32 %v3509, %v3515
      %v3524 = vld [vmem:[%s610] sm:$0x1]
      %v3525 = vld [vmem:[%s613] sm:$0x1]
      %v3526 = vsel %vm668, %v3517, 0.0
      %3527 = vadd.xlane.f32.xlu0 %v3526
      %v3528 = vpop.xlane.xlu0 %3527
      %v3529 = vsel %vm668, %v3518, 0.0
      %3530 = vadd.xlane.f32.xlu0 %v3529
      %v3531 = vpop.xlane.xlu0 %3530
      %v3532 = vsel %vm668, %v3519, 0.0
      %3533 = vadd.xlane.f32.xlu0 %v3532
      %v3534 = vpop.xlane.xlu0 %3533
      %v3535 = vsel %vm668, %v3520, 0.0
      %3536 = vadd.xlane.f32.xlu0 %v3535
      %v3537 = vpop.xlane.xlu0 %3536
      %v3538 = vsel %vm668, %v3521, 0.0
      %3539 = vadd.xlane.f32.xlu0 %v3538
      %v3540 = vpop.xlane.xlu0 %3539
      %v3541 = vsel %vm668, %v3522, 0.0
      %3542 = vadd.xlane.f32.xlu0 %v3541
      %v3543 = vpop.xlane.xlu0 %3542
      %v3544 = vsel %vm687, %v3523, 0.0
      %3545 = vadd.xlane.f32.xlu0 %v3544
      %v3546 = vpop.xlane.xlu0 %3545
      %v3547 = vmul.f32 %v3528, %v691
      %v3548 = vmul.f32 %v3531, %v691
      %v3549 = vmul.f32 %v3534, %v691
      %v3550 = vmul.f32 %v3537, %v691
      %v3551 = vmul.f32 %v3540, %v691
      %v3552 = vmul.f32 %v3543, %v691
      %v3553 = vmul.f32 %v3546, %v691
      %v3554 = vsub.f32 %v3517, %v3547
      %v3555 = vsub.f32 %v3518, %v3548
      %v3556 = vsub.f32 %v3519, %v3549
      %v3557 = vsub.f32 %v3520, %v3550
      %v3558 = vsub.f32 %v3521, %v3551
      %v3559 = vsub.f32 %v3522, %v3552
      %v3560 = vsub.f32 %v3523, %v3553
      %v3561 = vmul.f32 %v3554, %v3554
      %v3562 = vmul.f32 %v3555, %v3555
      %v3563 = vmul.f32 %v3556, %v3556
      %v3564 = vmul.f32 %v3557, %v3557
      %v3565 = vmul.f32 %v3558, %v3558
      %v3566 = vmul.f32 %v3559, %v3559
      %v3567 = vmul.f32 %v3560, %v3560
      %v3568 = vsel %vm668, %v3561, 0.0
      %3569 = vadd.xlane.f32.xlu0 %v3568
      %v3570 = vpop.xlane.xlu0 %3569
      %v3571 = vsel %vm668, %v3562, 0.0
      %3572 = vadd.xlane.f32.xlu0 %v3571
      %v3573 = vpop.xlane.xlu0 %3572
      %v3574 = vsel %vm668, %v3563, 0.0
      %3575 = vadd.xlane.f32.xlu0 %v3574
      %v3576 = vpop.xlane.xlu0 %3575
      %v3577 = vsel %vm668, %v3564, 0.0
      %3578 = vadd.xlane.f32.xlu0 %v3577
      %v3579 = vpop.xlane.xlu0 %3578
      %v3580 = vsel %vm668, %v3565, 0.0
      %3581 = vadd.xlane.f32.xlu0 %v3580
      %v3582 = vpop.xlane.xlu0 %3581
      %v3583 = vsel %vm668, %v3566, 0.0
      %3584 = vadd.xlane.f32.xlu0 %v3583
      %v3585 = vpop.xlane.xlu0 %3584
      %v3586 = vsel %vm687, %v3567, 0.0
      %3587 = vadd.xlane.f32.xlu0 %v3586
      %v3588 = vpop.xlane.xlu0 %3587
      %v3589 = vmul.f32 %v3570, %v691
      %v3590 = vmul.f32 %v3573, %v691
      %v3591 = vmul.f32 %v3576, %v691
      %v3592 = vmul.f32 %v3579, %v691
      %v3593 = vmul.f32 %v3582, %v691
      %v3594 = vmul.f32 %v3585, %v691
      %v3595 = vmul.f32 %v3588, %v691
      %v3596 = vadd.f32 %v3589, 1e-06
      %v3597 = vadd.f32 %v3590, 1e-06
      %v3598 = vadd.f32 %v3591, 1e-06
      %v3599 = vadd.f32 %v3592, 1e-06
      %v3600 = vadd.f32 %v3593, 1e-06
      %v3601 = vadd.f32 %v3594, 1e-06
      %v3602 = vadd.f32 %v3595, 1e-06
      %v3603 = vrsqrt.pop %v3596
      %v3604 = vrsqrt.pop %v3597
      %v3605 = vrsqrt.pop %v3598
      %v3606 = vrsqrt.pop %v3599
      %v3607 = vrsqrt.pop %v3600
      %v3608 = vrsqrt.pop %v3601
      %v3609 = vrsqrt.pop %v3602
      %v3610 = vmul.f32 %v3554, %v3603
      %v3611 = vmul.f32 %v3555, %v3604
      %v3612 = vmul.f32 %v3556, %v3605
      %v3613 = vmul.f32 %v3557, %v3606
      %v3614 = vmul.f32 %v3558, %v3607
      %v3615 = vmul.f32 %v3559, %v3608
      %v3616 = vmul.f32 %v3560, %v3609
      %v3618 = vlaneseq
      %v3619 = vshrl.u32 %v3618, 7
      %v3620 = vsub.s32 0, %v3619
      %v3621 = vrot.slane %v3524, %v3620
      %v3623 = vmul.f32 %v3610, %v3621
      %v3624 = vmul.f32 %v3611, %v3621
      %v3625 = vmul.f32 %v3612, %v3621
      %v3626 = vmul.f32 %v3613, %v3621
      %v3627 = vmul.f32 %v3614, %v3621
      %v3628 = vmul.f32 %v3615, %v3621
      %v3629 = vmul.f32 %v3616, %v3621
      %v3631 = vlaneseq
      %v3632 = vshrl.u32 %v3631, 7
      %v3633 = vsub.s32 0, %v3632
      %v3634 = vrot.slane %v3525, %v3633
      %v3636 = vadd.f32 %v3623, %v3634
      %v3637 = vadd.f32 %v3624, %v3634
      %v3638 = vadd.f32 %v3625, %v3634
      %v3639 = vadd.f32 %v3626, %v3634
      %v3640 = vadd.f32 %v3627, %v3634
      %v3641 = vadd.f32 %v3628, %v3634
      %v3642 = vadd.f32 %v3629, %v3634
      %v3643 = vld [vmem:[%s618] sm:$0xff]
      %v3644 = vld [vmem:[%s618 + $0x8] sm:$0xff]
      %v3645 = vld [vmem:[%s618 + $0x10] sm:$0xff]
      %v3646 = vld [vmem:[%s618 + $0x18] sm:$0xff]
      %v3647 = vld [vmem:[%s618 + $0x20] sm:$0xff]
      %v3648 = vld [vmem:[%s618 + $0x28] sm:$0xff]
      %v3649 = vld [vmem:[%s618 + $0x30] sm:$0xff]
      %v3650 = vld [vmem:[%s618 + $0x38] sm:$0xff]
      %v3651 = vpack.c.bf16 %v3637, %v3636
      %v3652 = vpack.c.bf16 %v3639, %v3638
      %v3653 = vpack.c.bf16 %v3641, %v3640
      %v3654 = vpack.c.bf16 %v3642, %v3642
      %v3655 = vld [vmem:[%s622] sm:$0x3]
      %v3657 = vlaneseq
      %v3658 = vshrl.u32 %v3657, 7
      %v3659 = vsub.s32 0, %v3658
      %v3660 = vrot.slane %v3655, %v3659
      %v3661 = vlaneseq
      %v3662 = vshrl.u32 %v3661, 7
      %v3663 = vsub.s32 1, %v3662
      %v3664 = vrot.slane %v3655, %v3663
      %v3675 = vunpack.c.l.b16 %v3643
      %v3676 = vunpack.c.h.b16 %v3643
      %v3677 = vunpack.c.l.b16 %v3644
      %v3678 = vunpack.c.h.b16 %v3644
      %v3679 = vunpack.c.l.b16 %v3645
      %v3680 = vunpack.c.h.b16 %v3645
      %v3681 = vunpack.c.l.b16 %v3646
      %v3682 = vunpack.c.h.b16 %v3646
      %v3683 = vunpack.c.l.b16 %v3647
      %v3684 = vunpack.c.h.b16 %v3647
      %v3685 = vunpack.c.l.b16 %v3648
      %v3686 = vunpack.c.h.b16 %v3648
      %v3687 = vunpack.c.l.b16 %v3649
      %v3688 = vunpack.c.h.b16 %v3649
      %v3689 = vunpack.c.l.b16 %v3650
      %v3690 = vunpack.c.h.b16 %v3650
      %v3691 = vpack.c.b16 %v3677, %v3675
      %v3692 = vpack.c.b16 %v3678, %v3676
      %v3693 = vpack.c.b16 %v3681, %v3679
      %v3694 = vpack.c.b16 %v3682, %v3680
      %v3695 = vpack.c.b16 %v3685, %v3683
      %v3696 = vpack.c.b16 %v3686, %v3684
      %v3697 = vpack.c.b16 %v3689, %v3687
      %v3698 = vpack.c.b16 %v3690, %v3688
      %v3708 = vsel %vm668, %v3651, 0
      %v3711 = vsel %vm668, %v3652, 0
      %v3714 = vsel %vm668, %v3653, 0
      %v3717 = vsel %vm668, %v3654, 0
      %3719 = vmatprep.subr.bf16.mxu0 %v3692
      %3720 = vmatpush1.bf16.msra.mxu0 %v3691
      %3721 = vmatprep.subr.bf16.mxu0 %v3694
      %3722 = vmatpush1.bf16.msra.mxu0 %v3693
      %3723 = vmatprep.subr.bf16.mxu0 %v3696
      %3724 = vmatpush1.bf16.msra.mxu0 %v3695
      %3725 = vmatprep.subr.bf16.mxu0 %v3698
      %3726 = vmatpush1.bf16.msra.mxu0 %v3697
      %3727 = vmatprep.subr.bf16.mxu0 0
      %3728 = vmatpush1.bf16.msra.mxu0 0
      %3729 = vmatprep.subr.bf16.mxu0 0
      %3730 = vmatpush1.bf16.msra.mxu0 0
      %3731 = vmatprep.subr.bf16.mxu0 0
      %3732 = vmatpush1.bf16.msra.mxu0 0
      %3733 = vmatprep.subr.bf16.mxu0 0
      %3734 = vmatpush1.bf16.msra.mxu0 0
      %3735 = vmatprep.subr.bf16.mxu0 0
      %3736 = vmatpush1.bf16.msra.mxu0 0
      %3737 = vmatprep.subr.bf16.mxu0 0
      %3738 = vmatpush1.bf16.msra.mxu0 0
      %3739 = vmatprep.subr.bf16.mxu0 0
      %3740 = vmatpush1.bf16.msra.mxu0 0
      %3741 = vmatprep.subr.bf16.mxu0 0
      %3742 = vmatpush1.bf16.msra.mxu0 0
      %3743 = vmatprep.subr.bf16.mxu0 0
      %3744 = vmatpush1.bf16.msra.mxu0 0
      %3745 = vmatprep.subr.bf16.mxu0 0
      %3746 = vmatpush1.bf16.msra.mxu0 0
      %3747 = vmatprep.subr.bf16.mxu0 0
      %3748 = vmatpush1.bf16.msra.mxu0 0
      %3749 = vmatprep.subr.bf16.mxu0 0
      %3750 = vmatpush1.bf16.msra.mxu0 0
      %3751 = vmatprep.mubr.bf16.mxu0 0
      %3752 = vmatmul.mubr.bf16.gmra.mrb[0].mxu0 %v3708
      %v3753 = vpop.f32.mrb[0].mxu0
      %v3754 = vadd.f32 %v3660, %v3753
      %v3755 = vpop.f32.mrb[0].mxu0
      %v3756 = vadd.f32 %v3664, %v3755
      %v3757 = vpop.f32.mrb[0].mxu0
      %v3758 = vadd.f32 %v3660, %v3757
      %v3759 = vpop.f32.mrb[0].mxu0
      %v3760 = vadd.f32 %v3664, %v3759
      %3761 = vmatprep.mubr.bf16.mxu0 0
      %3762 = vmatmul.mubr.bf16.gmra.mrb[0].mxu0 %v3711
      %v3763 = vpop.f32.mrb[0].mxu0
      %v3764 = vadd.f32 %v3660, %v3763
      %v3765 = vpop.f32.mrb[0].mxu0
      %v3766 = vadd.f32 %v3664, %v3765
      %v3767 = vpop.f32.mrb[0].mxu0
      %v3768 = vadd.f32 %v3660, %v3767
      %v3769 = vpop.f32.mrb[0].mxu0
      %v3770 = vadd.f32 %v3664, %v3769
      %3771 = vmatprep.mubr.bf16.mxu0 0
      %3772 = vmatmul.mubr.bf16.gmra.mrb[0].mxu0 %v3714
      %v3773 = vpop.f32.mrb[0].mxu0
      %v3774 = vadd.f32 %v3660, %v3773
      %v3775 = vpop.f32.mrb[0].mxu0
      %v3776 = vadd.f32 %v3664, %v3775
      %v3777 = vpop.f32.mrb[0].mxu0
      %v3778 = vadd.f32 %v3660, %v3777
      %v3779 = vpop.f32.mrb[0].mxu0
      %v3780 = vadd.f32 %v3664, %v3779
      %3781 = vmatprep.mubr.bf16.mxu0 0
      %3782 = vmatmul.mubr.bf16.gmra.mrb[0].mxu0 %v3717
      %v3783 = vpop.f32.mrb[0].mxu0
      %v3784 = vadd.f32 %v3660, %v3783
      %v3785 = vpop.f32.mrb[0].mxu0
      %v3786 = vadd.f32 %v3664, %v3785
      %v3787 = vpop.f32.mrb[0].mxu0
      %v3788 = vpop.f32.mrb[0].mxu0
      %3789 = vdwg.mxu0
      %v3790 = vmul.f32 %v3754, %v3754
      %v3791 = vmul.f32 %v3756, %v3756
      %v3792 = vmul.f32 %v3758, %v3758
      %v3793 = vmul.f32 %v3760, %v3760
      %v3794 = vmul.f32 %v3764, %v3764
      %v3795 = vmul.f32 %v3766, %v3766
      %v3796 = vmul.f32 %v3768, %v3768
      %v3797 = vmul.f32 %v3770, %v3770
      %v3798 = vmul.f32 %v3774, %v3774
      %v3799 = vmul.f32 %v3776, %v3776
      %v3800 = vmul.f32 %v3778, %v3778
      %v3801 = vmul.f32 %v3780, %v3780
      %v3802 = vmul.f32 %v3784, %v3784
      %v3803 = vmul.f32 %v3786, %v3786
      %v3804 = vmul.f32 %v3754, %v3790
      %v3805 = vmul.f32 %v3756, %v3791
      %v3806 = vmul.f32 %v3758, %v3792
      %v3807 = vmul.f32 %v3760, %v3793
      %v3808 = vmul.f32 %v3764, %v3794
      %v3809 = vmul.f32 %v3766, %v3795
      %v3810 = vmul.f32 %v3768, %v3796
      %v3811 = vmul.f32 %v3770, %v3797
      %v3812 = vmul.f32 %v3774, %v3798
      %v3813 = vmul.f32 %v3776, %v3799
      %v3814 = vmul.f32 %v3778, %v3800
      %v3815 = vmul.f32 %v3780, %v3801
      %v3816 = vmul.f32 %v3784, %v3802
      %v3817 = vmul.f32 %v3786, %v3803
      %v3818 = vmul.f32 %v3804, 0.044715
      %v3819 = vmul.f32 %v3805, 0.044715
      %v3820 = vmul.f32 %v3806, 0.044715
      %v3821 = vmul.f32 %v3807, 0.044715
      %v3822 = vmul.f32 %v3808, 0.044715
      %v3823 = vmul.f32 %v3809, 0.044715
      %v3824 = vmul.f32 %v3810, 0.044715
      %v3825 = vmul.f32 %v3811, 0.044715
      %v3826 = vmul.f32 %v3812, 0.044715
      %v3827 = vmul.f32 %v3813, 0.044715
      %v3828 = vmul.f32 %v3814, 0.044715
      %v3829 = vmul.f32 %v3815, 0.044715
      %v3830 = vmul.f32 %v3816, 0.044715
      %v3831 = vmul.f32 %v3817, 0.044715
      %v3832 = vadd.f32 %v3754, %v3818
      %v3833 = vadd.f32 %v3756, %v3819
      %v3834 = vadd.f32 %v3758, %v3820
      %v3835 = vadd.f32 %v3760, %v3821
      %v3836 = vadd.f32 %v3764, %v3822
      %v3837 = vadd.f32 %v3766, %v3823
      %v3838 = vadd.f32 %v3768, %v3824
      %v3839 = vadd.f32 %v3770, %v3825
      %v3840 = vadd.f32 %v3774, %v3826
      %v3841 = vadd.f32 %v3776, %v3827
      %v3842 = vadd.f32 %v3778, %v3828
      %v3843 = vadd.f32 %v3780, %v3829
      %v3844 = vadd.f32 %v3784, %v3830
      %v3845 = vadd.f32 %v3786, %v3831
      %v3846 = vmul.f32 %v3832, 0.7978846
      %v3847 = vmul.f32 %v3833, 0.7978846
      %v3848 = vmul.f32 %v3834, 0.7978846
      %v3849 = vmul.f32 %v3835, 0.7978846
      %v3850 = vmul.f32 %v3836, 0.7978846
      %v3851 = vmul.f32 %v3837, 0.7978846
      %v3852 = vmul.f32 %v3838, 0.7978846
      %v3853 = vmul.f32 %v3839, 0.7978846
      %v3854 = vmul.f32 %v3840, 0.7978846
      %v3855 = vmul.f32 %v3841, 0.7978846
      %v3856 = vmul.f32 %v3842, 0.7978846
      %v3857 = vmul.f32 %v3843, 0.7978846
      %v3858 = vmul.f32 %v3844, 0.7978846
      %v3859 = vmul.f32 %v3845, 0.7978846
      %v3860 = vtanh.pop %v3846
      %v3861 = vtanh.pop %v3847
      %v3862 = vtanh.pop %v3848
      %v3863 = vtanh.pop %v3849
      %v3864 = vtanh.pop %v3850
      %v3865 = vtanh.pop %v3851
      %v3866 = vtanh.pop %v3852
      %v3867 = vtanh.pop %v3853
      %v3868 = vtanh.pop %v3854
      %v3869 = vtanh.pop %v3855
      %v3870 = vtanh.pop %v3856
      %v3871 = vtanh.pop %v3857
      %v3872 = vtanh.pop %v3858
      %v3873 = vtanh.pop %v3859
      %v3874 = vadd.f32 %v3860, 1.0
      %v3875 = vadd.f32 %v3861, 1.0
      %v3876 = vadd.f32 %v3862, 1.0
      %v3877 = vadd.f32 %v3863, 1.0
      %v3878 = vadd.f32 %v3864, 1.0
      %v3879 = vadd.f32 %v3865, 1.0
      %v3880 = vadd.f32 %v3866, 1.0
      %v3881 = vadd.f32 %v3867, 1.0
      %v3882 = vadd.f32 %v3868, 1.0
      %v3883 = vadd.f32 %v3869, 1.0
      %v3884 = vadd.f32 %v3870, 1.0
      %v3885 = vadd.f32 %v3871, 1.0
      %v3886 = vadd.f32 %v3872, 1.0
      %v3887 = vadd.f32 %v3873, 1.0
      %v3888 = vmul.f32 %v3874, 0.5
      %v3889 = vmul.f32 %v3875, 0.5
      %v3890 = vmul.f32 %v3876, 0.5
      %v3891 = vmul.f32 %v3877, 0.5
      %v3892 = vmul.f32 %v3878, 0.5
      %v3893 = vmul.f32 %v3879, 0.5
      %v3894 = vmul.f32 %v3880, 0.5
      %v3895 = vmul.f32 %v3881, 0.5
      %v3896 = vmul.f32 %v3882, 0.5
      %v3897 = vmul.f32 %v3883, 0.5
      %v3898 = vmul.f32 %v3884, 0.5
      %v3899 = vmul.f32 %v3885, 0.5
      %v3900 = vmul.f32 %v3886, 0.5
      %v3901 = vmul.f32 %v3887, 0.5
      %v3902 = vmul.f32 %v3754, %v3888
      %v3903 = vmul.f32 %v3756, %v3889
      %v3904 = vmul.f32 %v3758, %v3890
      %v3905 = vmul.f32 %v3760, %v3891
      %v3906 = vmul.f32 %v3764, %v3892
      %v3907 = vmul.f32 %v3766, %v3893
      %v3908 = vmul.f32 %v3768, %v3894
      %v3909 = vmul.f32 %v3770, %v3895
      %v3910 = vmul.f32 %v3774, %v3896
      %v3911 = vmul.f32 %v3776, %v3897
      %v3912 = vmul.f32 %v3778, %v3898
      %v3913 = vmul.f32 %v3780, %v3899
      %v3914 = vmul.f32 %v3784, %v3900
      %v3915 = vmul.f32 %v3786, %v3901
      %v3916 = vld [vmem:[%s627] sm:$0xf]
      %v3917 = vld [vmem:[%s627 + $0x4] sm:$0xf]
      %v3918 = vld [vmem:[%s627 + $0x8] sm:$0xf]
      %v3919 = vld [vmem:[%s627 + $0xc] sm:$0xf]
      %v3920 = vld [vmem:[%s627 + $0x10] sm:$0xf]
      %v3921 = vld [vmem:[%s627 + $0x14] sm:$0xf]
      %v3922 = vld [vmem:[%s627 + $0x18] sm:$0xf]
      %v3923 = vld [vmem:[%s627 + $0x1c] sm:$0xf]
      %v3924 = vld [vmem:[%s627 + $0x20] sm:$0xf]
      %v3925 = vld [vmem:[%s627 + $0x24] sm:$0xf]
      %v3926 = vld [vmem:[%s627 + $0x28] sm:$0xf]
      %v3927 = vld [vmem:[%s627 + $0x2c] sm:$0xf]
      %v3928 = vld [vmem:[%s627 + $0x30] sm:$0xf]
      %v3929 = vld [vmem:[%s627 + $0x34] sm:$0xf]
      %v3930 = vld [vmem:[%s627 + $0x38] sm:$0xf]
      %v3931 = vld [vmem:[%s627 + $0x3c] sm:$0xf]
      %v3932 = vld [vmem:[%s627 + $0x40] sm:$0xf]
      %v3933 = vld [vmem:[%s627 + $0x44] sm:$0xf]
      %v3934 = vld [vmem:[%s627 + $0x48] sm:$0xf]
      %v3935 = vld [vmem:[%s627 + $0x4c] sm:$0xf]
      %v3936 = vld [vmem:[%s627 + $0x50] sm:$0xf]
      %v3937 = vld [vmem:[%s627 + $0x54] sm:$0xf]
      %v3938 = vld [vmem:[%s627 + $0x58] sm:$0xf]
      %v3939 = vld [vmem:[%s627 + $0x5c] sm:$0xf]
      %v3940 = vld [vmem:[%s627 + $0x60] sm:$0xf]
      %v3941 = vld [vmem:[%s627 + $0x64] sm:$0xf]
      %v3942 = vld [vmem:[%s627 + $0x68] sm:$0xf]
      %v3943 = vld [vmem:[%s627 + $0x6c] sm:$0xf]
      %v3944 = vld [vmem:[%s627 + $0x70] sm:$0xf]
      %v3945 = vld [vmem:[%s627 + $0x74] sm:$0xf]
      %v3946 = vld [vmem:[%s627 + $0x78] sm:$0xf]
      %v3947 = vld [vmem:[%s627 + $0x7c] sm:$0xf]
      %v3948 = vpack.c.bf16 %v3904, %v3902
      %v3949 = vpack.c.bf16 %v3905, %v3903
      %v3950 = vpack.c.bf16 %v3908, %v3906
      %v3951 = vpack.c.bf16 %v3909, %v3907
      %v3952 = vpack.c.bf16 %v3912, %v3910
      %v3953 = vpack.c.bf16 %v3913, %v3911
      %v3954 = vpack.c.bf16 %v3914, %v3914
      %v3955 = vpack.c.bf16 %v3915, %v3915
      %v3956 = vld [vmem:[%s630] sm:$0x1]
      %v3958 = vlaneseq
      %v3959 = vshrl.u32 %v3958, 7
      %v3960 = vsub.s32 0, %v3959
      %v3961 = vrot.slane %v3956, %v3960
      %v3995 = vunpack.c.l.b16 %v3916
      %v3996 = vunpack.c.l.b16 %v3917
      %v3997 = vunpack.c.l.b16 %v3918
      %v3998 = vunpack.c.l.b16 %v3919
      %v3999 = vunpack.c.l.b16 %v3920
      %v4000 = vunpack.c.l.b16 %v3921
      %v4001 = vunpack.c.l.b16 %v3922
      %v4002 = vunpack.c.l.b16 %v3923
      %v4003 = vunpack.c.l.b16 %v3924
      %v4004 = vunpack.c.l.b16 %v3925
      %v4005 = vunpack.c.l.b16 %v3926
      %v4006 = vunpack.c.l.b16 %v3927
      %v4007 = vunpack.c.l.b16 %v3928
      %v4008 = vunpack.c.l.b16 %v3929
      %v4009 = vunpack.c.l.b16 %v3930
      %v4010 = vunpack.c.l.b16 %v3931
      %v4011 = vunpack.c.l.b16 %v3932
      %v4012 = vunpack.c.l.b16 %v3933
      %v4013 = vunpack.c.l.b16 %v3934
      %v4014 = vunpack.c.l.b16 %v3935
      %v4015 = vunpack.c.l.b16 %v3936
      %v4016 = vunpack.c.l.b16 %v3937
      %v4017 = vunpack.c.l.b16 %v3938
      %v4018 = vunpack.c.l.b16 %v3939
      %v4019 = vunpack.c.l.b16 %v3940
      %v4020 = vunpack.c.l.b16 %v3941
      %v4021 = vunpack.c.l.b16 %v3942
      %v4022 = vunpack.c.l.b16 %v3943
      %v4023 = vunpack.c.l.b16 %v3944
      %v4024 = vunpack.c.l.b16 %v3945
      %v4025 = vunpack.c.l.b16 %v3946
      %v4026 = vunpack.c.l.b16 %v3947
      %v4027 = vpack.c.b16 %v3996, %v3995
      %v4028 = vpack.c.b16 %v3998, %v3997
      %v4029 = vpack.c.b16 %v4000, %v3999
      %v4030 = vpack.c.b16 %v4002, %v4001
      %v4031 = vpack.c.b16 %v4004, %v4003
      %v4032 = vpack.c.b16 %v4006, %v4005
      %v4033 = vpack.c.b16 %v4008, %v4007
      %v4034 = vpack.c.b16 %v4010, %v4009
      %v4035 = vpack.c.b16 %v4012, %v4011
      %v4036 = vpack.c.b16 %v4014, %v4013
      %v4037 = vpack.c.b16 %v4016, %v4015
      %v4038 = vpack.c.b16 %v4018, %v4017
      %v4039 = vpack.c.b16 %v4020, %v4019
      %v4040 = vpack.c.b16 %v4022, %v4021
      %v4041 = vpack.c.b16 %v4024, %v4023
      %v4042 = vpack.c.b16 %v4026, %v4025
      %4059 = vmatprep.subr.bf16.mxu0 0
      %4060 = vmatpush1.bf16.msra.mxu0 %v4027
      %4061 = vmatprep.subr.bf16.mxu0 0
      %4062 = vmatpush1.bf16.msra.mxu0 %v4028
      %4063 = vmatprep.subr.bf16.mxu0 0
      %4064 = vmatpush1.bf16.msra.mxu0 %v4029
      %4065 = vmatprep.subr.bf16.mxu0 0
      %4066 = vmatpush1.bf16.msra.mxu0 %v4030
      %4067 = vmatprep.subr.bf16.mxu0 0
      %4068 = vmatpush1.bf16.msra.mxu0 %v4031
      %4069 = vmatprep.subr.bf16.mxu0 0
      %4070 = vmatpush1.bf16.msra.mxu0 %v4032
      %4071 = vmatprep.subr.bf16.mxu0 0
      %4072 = vmatpush1.bf16.msra.mxu0 %v4033
      %4073 = vmatprep.subr.bf16.mxu0 0
      %4074 = vmatpush1.bf16.msra.mxu0 %v4034
      %4075 = vmatprep.subr.bf16.mxu0 0
      %4076 = vmatpush1.bf16.msra.mxu0 %v4035
      %4077 = vmatprep.subr.bf16.mxu0 0
      %4078 = vmatpush1.bf16.msra.mxu0 %v4036
      %4079 = vmatprep.subr.bf16.mxu0 0
      %4080 = vmatpush1.bf16.msra.mxu0 %v4037
      %4081 = vmatprep.subr.bf16.mxu0 0
      %4082 = vmatpush1.bf16.msra.mxu0 %v4038
      %4083 = vmatprep.subr.bf16.mxu0 0
      %4084 = vmatpush1.bf16.msra.mxu0 %v4039
      %4085 = vmatprep.subr.bf16.mxu0 0
      %4086 = vmatpush1.bf16.msra.mxu0 %v4040
      %4087 = vmatprep.subr.bf16.mxu0 0
      %4088 = vmatpush1.bf16.msra.mxu0 %v4041
      %4089 = vmatprep.subr.bf16.mxu0 0
      %4090 = vmatpush1.bf16.msra.mxu0 %v4042
      %4091 = vmatprep.mubr.bf16.mxu0 %v3949
      %4092 = vmatmul.mubr.bf16.gmra.mrb[0].mxu0 %v3948
      %v4093 = vpop.f32.mrb[0].mxu0
      %v4094 = vadd.f32 %v3961, %v4093
      %v4095 = vpop.f32.mrb[0].mxu0
      %v4096 = vpop.f32.mrb[0].mxu0
      %v4097 = vadd.f32 %v3961, %v4096
      %v4098 = vpop.f32.mrb[0].mxu0
      %4099 = vmatprep.mubr.bf16.mxu0 %v3951
      %4100 = vmatmul.mubr.bf16.gmra.mrb[0].mxu0 %v3950
      %v4101 = vpop.f32.mrb[0].mxu0
      %v4102 = vadd.f32 %v3961, %v4101
      %v4103 = vpop.f32.mrb[0].mxu0
      %v4104 = vpop.f32.mrb[0].mxu0
      %v4105 = vadd.f32 %v3961, %v4104
      %v4106 = vpop.f32.mrb[0].mxu0
      %4107 = vmatprep.mubr.bf16.mxu0 %v3953
      %4108 = vmatmul.mubr.bf16.gmra.mrb[0].mxu0 %v3952
      %v4109 = vpop.f32.mrb[0].mxu0
      %v4110 = vadd.f32 %v3961, %v4109
      %v4111 = vpop.f32.mrb[0].mxu0
      %v4112 = vpop.f32.mrb[0].mxu0
      %v4113 = vadd.f32 %v3961, %v4112
      %v4114 = vpop.f32.mrb[0].mxu0
      %4115 = vmatprep.mubr.bf16.mxu0 %v3955
      %4116 = vmatmul.mubr.bf16.gmra.mrb[0].mxu0 %v3954
      %v4117 = vpop.f32.mrb[0].mxu0
      %v4118 = vadd.f32 %v3961, %v4117
      %v4119 = vpop.f32.mrb[0].mxu0
      %v4120 = vpop.f32.mrb[0].mxu0
      %v4121 = vpop.f32.mrb[0].mxu0
      %4122 = vdwg.mxu0
      %v4123 = vadd.f32 %v3517, %v4094
      %v4124 = vadd.f32 %v3518, %v4097
      %v4125 = vadd.f32 %v3519, %v4102
      %v4126 = vadd.f32 %v3520, %v4105
      %v4127 = vadd.f32 %v3521, %v4110
      %v4128 = vadd.f32 %v3522, %v4113
      %v4129 = vadd.f32 %v3523, %v4118
      %4130 = vst.msk [vmem:[%s14] sm:$0xff] %vm668, %v4123
      %4131 = vst.msk [vmem:[%s14 + $0x8] sm:$0xff] %vm668, %v4124
      %4132 = vst.msk [vmem:[%s14 + $0x10] sm:$0xff] %vm668, %v4125
      %4133 = vst.msk [vmem:[%s14 + $0x18] sm:$0xff] %vm668, %v4126
      %4134 = vst.msk [vmem:[%s14 + $0x20] sm:$0xff] %vm668, %v4127
      %4135 = vst.msk [vmem:[%s14 + $0x28] sm:$0xff] %vm668, %v4128
      %4136 = vst.msk [vmem:[%s14 + $0x30] sm:$0x3] %vm687, %v4129
      // Predicated region
      $region81: #{_lambda_.8} parent=75 // pred_check
        %p4137 = pneg %p392
      $region82: #{_lambda_.8} parent=75 // pred_check_branch
        %4139 = sbr.rel (%p4137) target = $region84
      $region83: #{_lambda_.8} parent=75 // pred_region
        _
      $region84: #{_lambda_.8} parent=75 // pred_fallthru
        _
      // Predicated region
      $region85: #{_lambda_.8} parent=75 // pred_check
        %p4140 = pneg %p392
      $region86: #{_lambda_.8} parent=75 // pred_check_branch
        %4142 = sbr.rel (%p4140) target = $region88
      $region87: #{_lambda_.8} parent=75 // pred_region
        _
      $region88: #{_lambda_.8} parent=75 // pred_fallthru
        _
    $region76: #{_lambda_.8} parent=5 // pred_fallthru
      _
    %p4143 = scmp.le.s32.totalorder 2, %s20
    // Predicated region
    $region89: #{_lambda_.8} parent=5 // pred_check
      %p4144 = pneg %p4143
    $region90: #{_lambda_.8} parent=5 // pred_check_branch
      %4146 = sbr.rel (%p4144) target = $region92
    $region91: #{_lambda_.8} parent=5 // pred_region
      %s4147 = ssub.s32 %s20, 2
    $region92: #{_lambda_.8} parent=5 // pred_fallthru
      _
  $region6: #{_lambda_.8} parent=0 // loop_footer
    %s24 = sadd.s32 1, %s20
  $region7: #{_lambda_.8} parent=0 // loop_footer_branch
    %19 = sbr.rel target = $region3
  $region8: #{_lambda_.8} parent=0 // loop_exit
    _

</llo_original>
